<compile_context>
chip_gen: v6e
topology: v6e:2x2x1
jax: 0.10.0
libtpu: 0.0.40
codegen_flags: <defaults>
</compile_context>

<pallas_src>
from typing import NamedTuple

import jax
import jax.numpy as jnp
from jax.experimental import pallas as pl
from jax.experimental.pallas import tpu as pltpu

_LANE = 128     # lane width (last-dim tiling granularity)
_SUBLANE = 8    # f32 sublane granularity (second-to-last dim)


def _round_up(n, m):
    return ((n + m - 1) // m) * m


# --------------------------------------------------------------------------- kernel


def _make_mlp_kernel(n_layers: int):
    """Fused MLP kernel for `n_layers` Linear layers.

    Ref order: x_ref, (w0, b0, ..., w_{L-1}, b_{L-1}), o_ref.
    ReLU after every layer except the last. Weights arrive as bf16, biases as f32.
    """

    def kernel(*refs):
        x_ref = refs[0]
        o_ref = refs[-1]
        p = refs[1:-1]

        h = x_ref[...]
        if h.dtype != jnp.bfloat16:          # only if the caller handed us f32
            h = h.astype(jnp.bfloat16)
        for li in range(n_layers):
            w = p[2 * li][...]               # (in_p, out_p) bf16, VMEM-resident
            b = p[2 * li + 1][...]           # (1, out_p)   f32
            # bf16 x bf16 -> f32 accumulate on the MXU; bias/ReLU in f32 on the VPU.
            acc = jnp.dot(h, w, preferred_element_type=jnp.float32) + b
            if li < n_layers - 1:
                h = jnp.maximum(acc, 0.0).astype(jnp.bfloat16)
            else:
                # TODO(synk): training-mode dropout (is_dropout=True) not implemented;
                # eval-mode dropout is identity so default forward semantics are exact.
                o_ref[...] = acc.astype(o_ref.dtype)

    return kernel


# ----------------------------------------------------------------- parameter prep


class PreparedParams(NamedTuple):
    flat: tuple     # (w0, b0, w1, b1, ...) padded; weights bf16, biases f32
    dims: tuple     # original feature dims (d_in, hidden..., d_out)
    dims_p: tuple   # lane-padded feature dims


def prepare_params(weights, biases):
    """Pad feature dims to lane multiples and cast weights to bf16 -- ONCE.

    Hoisted out of baseline_network_forward so the per-call path does no weight
    preprocessing (previously that wrapper traffic roughly doubled wall-clock).
    Weights must be (in, out) -- i.e. already transposed vs PyTorch's (out, in).
    """
    assert len(weights) == len(biases)
    dims = tuple([weights[0].shape[0]] + [w.shape[1] for w in weights])
    dims_p = tuple(_round_up(d, _LANE) for d in dims)
    flat = []
    for li, (w, b) in enumerate(zip(weights, biases)):
        in_d, out_d = w.shape
        w_p = jnp.pad(w.astype(jnp.bfloat16),
                      ((0, dims_p[li] - in_d), (0, dims_p[li + 1] - out_d)))
        b_p = jnp.pad(jnp.reshape(b, (1, -1)).astype(jnp.float32),
                      ((0, 0), (0, dims_p[li + 1] - out_d)))
        flat.append(w_p)     # half the HBM weight read vs f32
        flat.append(b_p)     # bias stays f32
    flat = jax.block_until_ready(tuple(flat))   # materialize now, not per call
    return PreparedParams(flat=flat, dims=dims, dims_p=dims_p)


# ------------------------------------------------------------ hardware heuristics


def _is_multicore_tpu():
    """True on parts with 2 TensorCores per chip (v7x) -> keep >=2 parallel steps."""
    try:
        kind = jax.devices()[0].device_kind.lower()
    except Exception:
        return False
    return "7" in kind


def _vmem_capacity_bytes():
    try:
        return int(pltpu.get_tpu_info().vmem_capacity_bytes)
    except Exception:
        return 64 << 20   # conservative fallback: v7x per-core VMEM


def _pick_batch_tile(B, batch_tile, multicore):
    if batch_tile is None:
        # v7x (2 TCs): 128-row tiles so the parallel batch grid can shard across
        # cores; single-TC v5e/v6e: bigger tiles amortize per-step overhead.
        batch_tile = 128 if multicore else 256
    bt = min(batch_tile, _round_up(B, _SUBLANE))
    if multicore and B > _SUBLANE:
        # Guarantee at least 2 grid steps so the second TensorCore has work.
        bt = min(bt, _round_up(-(-B // 2), _SUBLANE))
    return max(_SUBLANE, _round_up(bt, _SUBLANE))


# -------------------------------------------------------------------------- forward


def baseline_network_forward(x, params: PreparedParams, *, batch_tile=None):
    """Fused forward pass.

    x:      (B, d_in), float32 or bfloat16 (bf16 preferred: halves the x DMA)
    params: PreparedParams from prepare_params()
    returns (B, d_out) float32
    """
    flat, dims, dims_p = params
    n_layers = len(flat) // 2
    B, d_in = x.shape
    assert d_in == dims[0], f"x feature dim {d_in} != model d_in {dims[0]}"
    d_out, d_out_p = dims[-1], dims_p[-1]

    multicore = _is_multicore_tpu()
    bt = _pick_batch_tile(B, batch_tile, multicore)
    B_p = _round_up(B, bt)

    # Skip the input pad entirely when shapes already line up (a materialized pad is
    # a full HBM round trip of x). When padding is needed, fuse the bf16 cast into it.
    if B_p == B and d_in == dims_p[0]:
        x_in = x
    else:
        x_in = jnp.pad(x.astype(jnp.bfloat16),
                       ((0, B_p - B), (0, dims_p[0] - d_in)))

    grid = (B_p // bt,)
    kernel = _make_mlp_kernel(n_layers)
    out_shape = jax.ShapeDtypeStruct((B_p, d_out_p), jnp.float32)
    out_spec = pl.BlockSpec((bt, d_out_p), lambda i: (i, 0))   # lane-dense store

    def _vmem_limit(param_bufs):
        need = 2 * bt * dims_p[0] * x_in.dtype.itemsize      # x (double-buffered)
        need += 2 * bt * d_out_p * 4                         # out (double-buffered)
        for prm in flat:                                     # resident params
            need += param_bufs * prm.size * prm.dtype.itemsize
        need += 2 * bt * max(dims_p) * 4 + (4 << 20)         # activations + scratch
        cap = _vmem_capacity_bytes() - (8 << 20)             # leave headroom
        return int(min(max(need * 5 // 4, 32 << 20), cap))

    def _call(single_buffer_params):
        pkw = {"pipeline_mode": pl.Buffered(1)} if single_buffer_params else {}
        in_specs = [pl.BlockSpec((bt, dims_p[0]), lambda i: (i, 0))]
        for li in range(n_layers):
            # Constant index_map -> weights/biases stay resident across batch steps.
            in_specs.append(
                pl.BlockSpec((dims_p[li], dims_p[li + 1]), lambda i: (0, 0), **pkw))
            in_specs.append(
                pl.BlockSpec((1, dims_p[li + 1]), lambda i: (0, 0), **pkw))
        return pl.pallas_call(
            kernel,
            out_shape=out_shape,
            grid_spec=pltpu.PrefetchScalarGridSpec(
                num_scalar_prefetch=0,
                grid=grid,
                in_specs=in_specs,
                out_specs=out_spec,
            ),
            compiler_params=pltpu.CompilerParams(
                dimension_semantics=("parallel",),
                vmem_limit_bytes=_vmem_limit(1 if single_buffer_params else 2),
            ),
        )(x_in, *flat)

    try:
        # Constant-index params don't need double buffering; request a single buffer.
        out_padded = _call(single_buffer_params=True)
    except Exception:
        # Fallback if this Pallas build rejects Buffered(1) on pallas_call BlockSpecs.
        out_padded = _call(single_buffer_params=False)

    return out_padded[:B, :d_out]


# ----------------------------------------------------------------- init / reference


def init_params(key, d_in, d_out, net_width, n_hidden_layers, std=0.05):
    """Synthetic init mirroring normal_random_init: W ~ N(0, std), b = 0.
    Weights returned as (in, out) -- already transposed vs PyTorch's (out, in)."""
    dims = [d_in] + [net_width] * n_hidden_layers + [d_out]
    weights, biases = [], []
    for i in range(len(dims) - 1):
        key, sub = jax.random.split(key)
        weights.append(std * jax.random.normal(sub, (dims[i], dims[i + 1]),
                                               dtype=jnp.float32))
        biases.append(jnp.zeros((1, dims[i + 1]), dtype=jnp.float32))
    return weights, biases


def reference_forward(x, weights, biases):
    """Pure-JAX reference with the same bf16-operand / f32-accumulate numerics."""
    h = x
    n = len(weights)
    for i in range(n):
        h = jnp.dot(h.astype(jnp.bfloat16), weights[i].astype(jnp.bfloat16),
                    preferred_element_type=jnp.float32) + jnp.reshape(biases[i], (1, -1))
        if i < n - 1:
            h = jnp.maximum(h, 0.0)
    return h


if __name__ == "__main__":
    # Baseline_Network defaults: d_in=3072, d_out=10, net_width=256,
    # n_hidden_layers=1 (=> no inner layers), is_dropout=False.
    D_IN, D_OUT, NET_WIDTH, N_HIDDEN = 3072, 10, 256, 1
    BATCH = 256

    key = jax.random.PRNGKey(0)
    key, kx = jax.random.split(key)
    # Producer emits bf16 directly (review: fuse the bf16 cast with the producer,
    # not as a standalone wrapper op) -> the kernel streams half the x bytes per tile.
    x = jax.random.normal(kx, (BATCH, D_IN), dtype=jnp.bfloat16)

    weights, biases = init_params(key, D_IN, D_OUT, NET_WIDTH, N_HIDDEN)

    # Pad + bf16-cast the weights ONCE (hoisted out of the per-call forward path).
    params = prepare_params(weights, biases)

    out = baseline_network_forward(x, params)
    out = jax.block_until_ready(out)
    assert out.shape == (BATCH, D_OUT)

    ref = reference_forward(x, weights, biases)
    assert jnp.allclose(out, ref, atol=1e-2, rtol=1e-2), "mismatch vs JAX reference"

    print("KERNEL_OK")
</pallas_src>

<mosaic_0001>
module attributes {stable_mosaic.version = 11 : i64} {
  func.func @kernel(%arg0: i32, %arg1: memref<256x3072xbf16, #tpu.memory_space<vmem>>, %arg2: memref<3072x256xbf16, #tpu.memory_space<vmem>>, %arg3: memref<1x256xf32, #tpu.memory_space<vmem>>, %arg4: memref<256x128xbf16, #tpu.memory_space<vmem>>, %arg5: memref<1x128xf32, #tpu.memory_space<vmem>>, %arg6: memref<256x128xf32, #tpu.memory_space<vmem>>) attributes {dimension_semantics = [#tpu.dimension_semantics<parallel>], iteration_bounds = array<i64: 1>, scalar_prefetch = 0 : i64, scratch_operands = 0 : i64, tpu.core_type = #tpu.core_type<tc>, window_params = [{transform_indices = @transform_0, window_bounds = array<i64: 256, 3072>}, {pipeline_mode = #tpu.pipeline_mode<synchronous>, transform_indices = @transform_1, window_bounds = array<i64: 3072, 256>}, {pipeline_mode = #tpu.pipeline_mode<synchronous>, transform_indices = @transform_2, window_bounds = array<i64: 1, 256>}, {pipeline_mode = #tpu.pipeline_mode<synchronous>, transform_indices = @transform_3, window_bounds = array<i64: 256, 128>}, {pipeline_mode = #tpu.pipeline_mode<synchronous>, transform_indices = @transform_4, window_bounds = array<i64: 1, 128>}, {transform_indices = @transform_5, window_bounds = array<i64: 256, 128>}]} {
    %c0 = arith.constant 0 : index
    %c0_0 = arith.constant 0 : index
    %0 = vector.load %arg1[%c0, %c0_0] : memref<256x3072xbf16, #tpu.memory_space<vmem>>, vector<256x3072xbf16>
    %c0_1 = arith.constant 0 : index
    %c0_2 = arith.constant 0 : index
    %1 = vector.load %arg2[%c0_1, %c0_2] : memref<3072x256xbf16, #tpu.memory_space<vmem>>, vector<3072x256xbf16>
    %c0_3 = arith.constant 0 : index
    %c0_4 = arith.constant 0 : index
    %2 = vector.load %arg3[%c0_3, %c0_4] : memref<1x256xf32, #tpu.memory_space<vmem>>, vector<1x256xf32>
    %cst = arith.constant dense<0.000000e+00> : vector<256x256xf32>
    %3 = tpu.matmul %0, %1, %cst {dimension_numbers = #tpu.dot_dimension_numbers<[1], [0], [0], [1], [0, 0, 1, 1], [], []>} : vector<256x3072xbf16>, vector<3072x256xbf16>, vector<256x256xf32> -> vector<256x256xf32>
    %4 = vector.broadcast %2 : vector<1x256xf32> to vector<256x256xf32>
    %5 = arith.addf %3, %4 : vector<256x256xf32>
    %cst_5 = arith.constant 0.000000e+00 : f32
    %6 = vector.broadcast %cst_5 : f32 to vector<256x256xf32>
    %7 = arith.maximumf %5, %6 : vector<256x256xf32>
    %8 = arith.truncf %7 : vector<256x256xf32> to vector<256x256xbf16>
    %c0_6 = arith.constant 0 : index
    %c0_7 = arith.constant 0 : index
    %9 = vector.load %arg4[%c0_6, %c0_7] : memref<256x128xbf16, #tpu.memory_space<vmem>>, vector<256x128xbf16>
    %c0_8 = arith.constant 0 : index
    %c0_9 = arith.constant 0 : index
    %10 = vector.load %arg5[%c0_8, %c0_9] : memref<1x128xf32, #tpu.memory_space<vmem>>, vector<1x128xf32>
    %cst_10 = arith.constant dense<0.000000e+00> : vector<256x128xf32>
    %11 = tpu.matmul %8, %9, %cst_10 {dimension_numbers = #tpu.dot_dimension_numbers<[1], [0], [0], [1], [0, 0, 1, 1], [], []>} : vector<256x256xbf16>, vector<256x128xbf16>, vector<256x128xf32> -> vector<256x128xf32>
    %12 = vector.broadcast %10 : vector<1x128xf32> to vector<256x128xf32>
    %13 = arith.addf %11, %12 : vector<256x128xf32>
    %c0_11 = arith.constant 0 : index
    %c0_12 = arith.constant 0 : index
    %14 = vector.load %arg6[%c0_11, %c0_12] : memref<256x128xf32, #tpu.memory_space<vmem>>, vector<256x128xf32>
    tpu.vector_store %arg6[%c0_11, %c0_12], %13 {strides = array<i32>} : memref<256x128xf32, #tpu.memory_space<vmem>>, vector<256x128xf32>,
    return
  }
  func.func @transform_0(%arg0: i32) -> (i32, i32) {
    %c0_i32 = arith.constant 0 : i32
    %c0_i32_0 = arith.constant 0 : i32
    return %arg0, %c0_i32 : i32, i32
  }
  func.func @transform_1(%arg0: i32) -> (i32, i32) {
    %c0_i32 = arith.constant 0 : i32
    %c0_i32_0 = arith.constant 0 : i32
    %c0_i32_1 = arith.constant 0 : i32
    return %c0_i32, %c0_i32_0 : i32, i32
  }
  func.func @transform_2(%arg0: i32) -> (i32, i32) {
    %c0_i32 = arith.constant 0 : i32
    %c0_i32_0 = arith.constant 0 : i32
    %c0_i32_1 = arith.constant 0 : i32
    return %c0_i32, %c0_i32_0 : i32, i32
  }
  func.func @transform_3(%arg0: i32) -> (i32, i32) {
    %c0_i32 = arith.constant 0 : i32
    %c0_i32_0 = arith.constant 0 : i32
    %c0_i32_1 = arith.constant 0 : i32
    return %c0_i32, %c0_i32_0 : i32, i32
  }
  func.func @transform_4(%arg0: i32) -> (i32, i32) {
    %c0_i32 = arith.constant 0 : i32
    %c0_i32_0 = arith.constant 0 : i32
    %c0_i32_1 = arith.constant 0 : i32
    return %c0_i32, %c0_i32_0 : i32, i32
  }
  func.func @transform_5(%arg0: i32) -> (i32, i32) {
    %c0_i32 = arith.constant 0 : i32
    %c0_i32_0 = arith.constant 0 : i32
    return %arg0, %c0_i32 : i32, i32
  }
}

module attributes {stable_mosaic.version = 11 : i64} {
  func.func @kernel(%arg0: i32, %arg1: memref<256x3072xbf16, #tpu.memory_space<vmem>>, %arg2: memref<3072x256xbf16, #tpu.memory_space<vmem>>, %arg3: memref<1x256xf32, #tpu.memory_space<vmem>>, %arg4: memref<256x128xbf16, #tpu.memory_space<vmem>>, %arg5: memref<1x128xf32, #tpu.memory_space<vmem>>, %arg6: memref<256x128xf32, #tpu.memory_space<vmem>>) attributes {dimension_semantics = [#tpu.dimension_semantics<parallel>], iteration_bounds = array<i64: 1>, scalar_prefetch = 0 : i64, scratch_operands = 0 : i64, tpu.core_type = #tpu.core_type<tc>, window_params = [{transform_indices = @transform_0, window_bounds = array<i64: 256, 3072>}, {pipeline_mode = #tpu.pipeline_mode<synchronous>, transform_indices = @transform_1, window_bounds = array<i64: 3072, 256>}, {pipeline_mode = #tpu.pipeline_mode<synchronous>, transform_indices = @transform_2, window_bounds = array<i64: 1, 256>}, {pipeline_mode = #tpu.pipeline_mode<synchronous>, transform_indices = @transform_3, window_bounds = array<i64: 256, 128>}, {pipeline_mode = #tpu.pipeline_mode<synchronous>, transform_indices = @transform_4, window_bounds = array<i64: 1, 128>}, {transform_indices = @transform_5, window_bounds = array<i64: 256, 128>}]} {
    %c0 = arith.constant 0 : index
    %c0_0 = arith.constant 0 : index
    %0 = vector.load %arg1[%c0, %c0_0] : memref<256x3072xbf16, #tpu.memory_space<vmem>>, vector<256x3072xbf16>
    %c0_1 = arith.constant 0 : index
    %c0_2 = arith.constant 0 : index
    %1 = vector.load %arg2[%c0_1, %c0_2] : memref<3072x256xbf16, #tpu.memory_space<vmem>>, vector<3072x256xbf16>
    %c0_3 = arith.constant 0 : index
    %c0_4 = arith.constant 0 : index
    %2 = vector.load %arg3[%c0_3, %c0_4] : memref<1x256xf32, #tpu.memory_space<vmem>>, vector<1x256xf32>
    %cst = arith.constant dense<0.000000e+00> : vector<256x256xf32>
    %3 = tpu.matmul %0, %1, %cst {dimension_numbers = #tpu.dot_dimension_numbers<[1], [0], [0], [1], [0, 0, 1, 1], [], []>} : vector<256x3072xbf16>, vector<3072x256xbf16>, vector<256x256xf32> -> vector<256x256xf32>
    %4 = vector.broadcast %2 : vector<1x256xf32> to vector<256x256xf32>
    %5 = arith.addf %3, %4 : vector<256x256xf32>
    %cst_5 = arith.constant 0.000000e+00 : f32
    %6 = vector.broadcast %cst_5 : f32 to vector<256x256xf32>
    %7 = arith.maximumf %5, %6 : vector<256x256xf32>
    %8 = arith.truncf %7 : vector<256x256xf32> to vector<256x256xbf16>
    %c0_6 = arith.constant 0 : index
    %c0_7 = arith.constant 0 : index
    %9 = vector.load %arg4[%c0_6, %c0_7] : memref<256x128xbf16, #tpu.memory_space<vmem>>, vector<256x128xbf16>
    %c0_8 = arith.constant 0 : index
    %c0_9 = arith.constant 0 : index
    %10 = vector.load %arg5[%c0_8, %c0_9] : memref<1x128xf32, #tpu.memory_space<vmem>>, vector<1x128xf32>
    %cst_10 = arith.constant dense<0.000000e+00> : vector<256x128xf32>
    %11 = tpu.matmul %8, %9, %cst_10 {dimension_numbers = #tpu.dot_dimension_numbers<[1], [0], [0], [1], [0, 0, 1, 1], [], []>} : vector<256x256xbf16>, vector<256x128xbf16>, vector<256x128xf32> -> vector<256x128xf32>
    %12 = vector.broadcast %10 : vector<1x128xf32> to vector<256x128xf32>
    %13 = arith.addf %11, %12 : vector<256x128xf32>
    %c0_11 = arith.constant 0 : index
    %c0_12 = arith.constant 0 : index
    %14 = vector.load %arg6[%c0_11, %c0_12] : memref<256x128xf32, #tpu.memory_space<vmem>>, vector<256x128xf32>
    tpu.vector_store %arg6[%c0_11, %c0_12], %13 {strides = array<i32>} : memref<256x128xf32, #tpu.memory_space<vmem>>, vector<256x128xf32>,
    return
  }
  func.func @transform_0(%arg0: i32) -> (i32, i32) {
    %c0_i32 = arith.constant 0 : i32
    %c0_i32_0 = arith.constant 0 : i32
    return %arg0, %c0_i32 : i32, i32
  }
  func.func @transform_1(%arg0: i32) -> (i32, i32) {
    %c0_i32 = arith.constant 0 : i32
    %c0_i32_0 = arith.constant 0 : i32
    %c0_i32_1 = arith.constant 0 : i32
    return %c0_i32, %c0_i32_0 : i32, i32
  }
  func.func @transform_2(%arg0: i32) -> (i32, i32) {
    %c0_i32 = arith.constant 0 : i32
    %c0_i32_0 = arith.constant 0 : i32
    %c0_i32_1 = arith.constant 0 : i32
    return %c0_i32, %c0_i32_0 : i32, i32
  }
  func.func @transform_3(%arg0: i32) -> (i32, i32) {
    %c0_i32 = arith.constant 0 : i32
    %c0_i32_0 = arith.constant 0 : i32
    %c0_i32_1 = arith.constant 0 : i32
    return %c0_i32, %c0_i32_0 : i32, i32
  }
  func.func @transform_4(%arg0: i32) -> (i32, i32) {
    %c0_i32 = arith.constant 0 : i32
    %c0_i32_0 = arith.constant 0 : i32
    %c0_i32_1 = arith.constant 0 : i32
    return %c0_i32, %c0_i32_0 : i32, i32
  }
  func.func @transform_5(%arg0: i32) -> (i32, i32) {
    %c0_i32 = arith.constant 0 : i32
    %c0_i32_0 = arith.constant 0 : i32
    return %arg0, %c0_i32 : i32, i32
  }
}

</mosaic_0001>

<llo_original>
// kernel: tpu_custom_call.1
$region0: #{tpu_custom_call.1}
  #allocation0 [shape = 'u32[]', space=smem, size = 0x4, offset = 0x4, fixed_abs, tag = 'smem constant byte address 0x4 - core index']
  #allocation1 [shape = 'u32[144,128]{1,0:T(1,128)}', space=vmem, size = 0x12000, scoped, tag = 'internal scratch']
  %s0 = inlined_call_operand.hbm [shape: bf16[256,3072], index: 0, kind: input, shape index: {}]
  %s1 = inlined_call_operand.hbm [shape: bf16[3072,256], index: 1, kind: input, shape index: {}]
  %s2 = inlined_call_operand.hbm [shape: f32[1,256], index: 2, kind: input, shape index: {}]
  %s3 = inlined_call_operand.hbm [shape: bf16[256,128], index: 3, kind: input, shape index: {}]
  %s4 = inlined_call_operand.hbm [shape: f32[1,128], index: 4, kind: input, shape index: {}]
  %s5 = inlined_call_operand.hbm [shape: f32[256,128], index: 5, kind: output, shape index: {}]
  %s6 = sld [smem:[#allocation0]]
  $region50: #{tpu_custom_call.1} parent=0
    _
  %s8 = ssub.s32 1, %s6
  %s9 = scalar_select 0, %s8, %s6
  $region1: #{tpu_custom_call.1} parent=0
    #allocation2 [shape = 'u8[1572864]{0}', space=vmem, size = 0x180000, scoped, tag = 'input window, operand 0, single buffered']
    #allocation3 [shape = 's32[1]{0}', space=sflag, size = 0x4, scoped, tag = 'scoped memory for tpu_custom_call.1']
    #allocation4 [shape = 's32[1]{0}', space=sflag, size = 0x4, scoped, tag = 'scoped memory for tpu_custom_call.1']
    #allocation5 [shape = 'u8[1572864]{0}', space=vmem, size = 0x180000, scoped, tag = 'input window, operand 1, single buffered']
    #allocation6 [shape = 's32[1]{0}', space=sflag, size = 0x4, scoped, tag = 'scoped memory for tpu_custom_call.1']
    #allocation7 [shape = 'u8[1024]{0}', space=vmem, size = 0x400, scoped, tag = 'input window, operand 2, single buffered']
    #allocation8 [shape = 'u8[65536]{0}', space=vmem, size = 0x10000, scoped, tag = 'input window, operand 3, single buffered']
    #allocation9 [shape = 's32[1]{0}', space=sflag, size = 0x4, scoped, tag = 'scoped memory for tpu_custom_call.1']
    #allocation10 [shape = 'u8[512]{0}', space=vmem, size = 0x400, scoped, tag = 'input window, operand 4, single buffered']
    #allocation11 [shape = 'u8[131072]{0}', space=vmem, size = 0x20000, scoped, tag = 'output window, operand 0, single buffered']
    %10 = vsyncpa [#allocation3], 0
    %11 = vsyncpa [#allocation6], 0
    %12 = vsyncpa [#allocation9], 0
    %13 = vsyncpa [#allocation4], 0
    // Predicated region
    $region2: #{tpu_custom_call.1} parent=1 // pred_check
      _
    $region3: #{tpu_custom_call.1} parent=1 // pred_check_branch
      %15 = sbr.rel (0) target = $region5
    $region4: #{tpu_custom_call.1} parent=1 // pred_region
      %s17 = ssub.s32 49152, 49152
      %18 = vsyncadd [#allocation3], %s17
      %s19 = sshll.u32 [#allocation2], 4
      %s20 = int_to_ptr.vmem [resolvable:$true] %s19
      %25 = dma.hbm_to_vmem [thread:$0]  %s0, 49152, %s20, [#allocation3], 1536, 1536, 96
    $region5: #{tpu_custom_call.1} parent=1 // pred_fallthru
      _
    // Predicated region
    $region6: #{tpu_custom_call.1} parent=1 // pred_check
      _
    $region7: #{tpu_custom_call.1} parent=1 // pred_check_branch
      %27 = sbr.rel (0) target = $region9
    $region8: #{tpu_custom_call.1} parent=1 // pred_region
      %s29 = ssub.s32 49152, 49152
      %30 = vsyncadd [#allocation6], %s29
      %s31 = sshll.u32 [#allocation5], 4
      %s32 = int_to_ptr.vmem [resolvable:$true] %s31
      %37 = dma.hbm_to_vmem [thread:$0]  %s1, 49152, %s32, [#allocation6], 128, 128, 8
    $region9: #{tpu_custom_call.1} parent=1 // pred_fallthru
      _
    // Predicated region
    $region10: #{tpu_custom_call.1} parent=1 // pred_check
      _
    $region11: #{tpu_custom_call.1} parent=1 // pred_check_branch
      %39 = sbr.rel (0) target = $region13
    $region12: #{tpu_custom_call.1} parent=1 // pred_region
      %s41 = ssub.s32 32, 32
      %42 = vsyncadd [#allocation6], %s41
      %s44 = sshll.u32 [#allocation7], 4
      %s45 = int_to_ptr.vmem [resolvable:$true] %s44
      %47 = dma.hbm_to_vmem [thread:$0]  %s2, 32, %s45, [#allocation6]
    $region13: #{tpu_custom_call.1} parent=1 // pred_fallthru
      _
    // Predicated region
    $region14: #{tpu_custom_call.1} parent=1 // pred_check
      _
    $region15: #{tpu_custom_call.1} parent=1 // pred_check_branch
      %49 = sbr.rel (0) target = $region17
    $region16: #{tpu_custom_call.1} parent=1 // pred_region
      %s51 = ssub.s32 2048, 2048
      %52 = vsyncadd [#allocation9], %s51
      %s53 = sshll.u32 [#allocation8], 4
      %s54 = int_to_ptr.vmem [resolvable:$true] %s53
      %59 = dma.hbm_to_vmem [thread:$0]  %s3, 2048, %s54, [#allocation9], 64, 64, 4
    $region17: #{tpu_custom_call.1} parent=1 // pred_fallthru
      _
    // Predicated region
    $region18: #{tpu_custom_call.1} parent=1 // pred_check
      _
    $region19: #{tpu_custom_call.1} parent=1 // pred_check_branch
      %61 = sbr.rel (0) target = $region21
    $region20: #{tpu_custom_call.1} parent=1 // pred_region
      %s63 = ssub.s32 16, 16
      %64 = vsyncadd [#allocation9], %s63
      %s66 = sshll.u32 [#allocation10], 4
      %s67 = int_to_ptr.vmem [resolvable:$true] %s66
      %69 = dma.hbm_to_vmem [thread:$0]  %s4, 16, %s67, [#allocation9]
    $region21: #{tpu_custom_call.1} parent=1 // pred_fallthru
      _
    // Predicated region
    $region22: #{tpu_custom_call.1} parent=1 // pred_check
      _
    $region23: #{tpu_custom_call.1} parent=1 // pred_check_branch
      %71 = sbr.rel (0) target = $region25
    $region24: #{tpu_custom_call.1} parent=1 // pred_region
      %72 = dma.done [#allocation3], 49152
    $region25: #{tpu_custom_call.1} parent=1 // pred_fallthru
      _
    // Predicated region
    $region26: #{tpu_custom_call.1} parent=1 // pred_check
      _
    $region27: #{tpu_custom_call.1} parent=1 // pred_check_branch
      %74 = sbr.rel (0) target = $region29
    $region28: #{tpu_custom_call.1} parent=1 // pred_region
      %75 = dma.done [#allocation6], 49152
    $region29: #{tpu_custom_call.1} parent=1 // pred_fallthru
      _
    // Predicated region
    $region30: #{tpu_custom_call.1} parent=1 // pred_check
      _
    $region31: #{tpu_custom_call.1} parent=1 // pred_check_branch
      %77 = sbr.rel (0) target = $region33
    $region32: #{tpu_custom_call.1} parent=1 // pred_region
      %78 = dma.done [#allocation6], 32
    $region33: #{tpu_custom_call.1} parent=1 // pred_fallthru
      _
    // Predicated region
    $region34: #{tpu_custom_call.1} parent=1 // pred_check
      _
    $region35: #{tpu_custom_call.1} parent=1 // pred_check_branch
      %80 = sbr.rel (0) target = $region37
    $region36: #{tpu_custom_call.1} parent=1 // pred_region
      %81 = dma.done [#allocation9], 2048
    $region37: #{tpu_custom_call.1} parent=1 // pred_fallthru
      _
    // Predicated region
    $region38: #{tpu_custom_call.1} parent=1 // pred_check
      _
    $region39: #{tpu_custom_call.1} parent=1 // pred_check_branch
      %83 = sbr.rel (0) target = $region41
    $region40: #{tpu_custom_call.1} parent=1 // pred_region
      %84 = dma.done [#allocation9], 16
    $region41: #{tpu_custom_call.1} parent=1 // pred_fallthru
      _
    %v86 = vld [vmem:[#allocation2] sm:$0xff]
    %v87 = vld [vmem:[#allocation2 + $0x8] sm:$0xff]
    %v88 = vld [vmem:[#allocation2 + $0x10] sm:$0xff]
    %v89 = vld [vmem:[#allocation2 + $0x18] sm:$0xff]
    %v90 = vld [vmem:[#allocation2 + $0x20] sm:$0xff]
    %v91 = vld [vmem:[#allocation2 + $0x28] sm:$0xff]
    %v92 = vld [vmem:[#allocation2 + $0x30] sm:$0xff]
    %v93 = vld [vmem:[#allocation2 + $0x38] sm:$0xff]
    %v94 = vld [vmem:[#allocation2 + $0x40] sm:$0xff]
    %v95 = vld [vmem:[#allocation2 + $0x48] sm:$0xff]
    %v96 = vld [vmem:[#allocation2 + $0x50] sm:$0xff]
    %v97 = vld [vmem:[#allocation2 + $0x58] sm:$0xff]
    %v98 = vld [vmem:[#allocation2 + $0x60] sm:$0xff]
    %v99 = vld [vmem:[#allocation2 + $0x68] sm:$0xff]
    %v100 = vld [vmem:[#allocation2 + $0x70] sm:$0xff]
    %v101 = vld [vmem:[#allocation2 + $0x78] sm:$0xff]
    %v102 = vld [vmem:[#allocation2 + $0x80] sm:$0xff]
    %v103 = vld [vmem:[#allocation2 + $0x88] sm:$0xff]
    %v104 = vld [vmem:[#allocation2 + $0x90] sm:$0xff]
    %v105 = vld [vmem:[#allocation2 + $0x98] sm:$0xff]
    %v106 = vld [vmem:[#allocation2 + $0xa0] sm:$0xff]
    %v107 = vld [vmem:[#allocation2 + $0xa8] sm:$0xff]
    %v108 = vld [vmem:[#allocation2 + $0xb0] sm:$0xff]
    %v109 = vld [vmem:[#allocation2 + $0xb8] sm:$0xff]
    %v110 = vld [vmem:[#allocation2 + $0xc0] sm:$0xff]
    %v111 = vld [vmem:[#allocation2 + $0xc8] sm:$0xff]
    %v112 = vld [vmem:[#allocation2 + $0xd0] sm:$0xff]
    %v113 = vld [vmem:[#allocation2 + $0xd8] sm:$0xff]
    %v114 = vld [vmem:[#allocation2 + $0xe0] sm:$0xff]
    %v115 = vld [vmem:[#allocation2 + $0xe8] sm:$0xff]
    %v116 = vld [vmem:[#allocation2 + $0xf0] sm:$0xff]
    %v117 = vld [vmem:[#allocation2 + $0xf8] sm:$0xff]
    %v118 = vld [vmem:[#allocation2 + $0x100] sm:$0xff]
    %v119 = vld [vmem:[#allocation2 + $0x108] sm:$0xff]
    %v120 = vld [vmem:[#allocation2 + $0x110] sm:$0xff]
    %v121 = vld [vmem:[#allocation2 + $0x118] sm:$0xff]
    %v122 = vld [vmem:[#allocation2 + $0x120] sm:$0xff]
    %v123 = vld [vmem:[#allocation2 + $0x128] sm:$0xff]
    %v124 = vld [vmem:[#allocation2 + $0x130] sm:$0xff]
    %v125 = vld [vmem:[#allocation2 + $0x138] sm:$0xff]
    %v126 = vld [vmem:[#allocation2 + $0x140] sm:$0xff]
    %v127 = vld [vmem:[#allocation2 + $0x148] sm:$0xff]
    %v128 = vld [vmem:[#allocation2 + $0x150] sm:$0xff]
    %v129 = vld [vmem:[#allocation2 + $0x158] sm:$0xff]
    %v130 = vld [vmem:[#allocation2 + $0x160] sm:$0xff]
    %v131 = vld [vmem:[#allocation2 + $0x168] sm:$0xff]
    %v132 = vld [vmem:[#allocation2 + $0x170] sm:$0xff]
    %v133 = vld [vmem:[#allocation2 + $0x178] sm:$0xff]
    %v134 = vld [vmem:[#allocation2 + $0x180] sm:$0xff]
    %v135 = vld [vmem:[#allocation2 + $0x188] sm:$0xff]
    %v136 = vld [vmem:[#allocation2 + $0x190] sm:$0xff]
    %v137 = vld [vmem:[#allocation2 + $0x198] sm:$0xff]
    %v138 = vld [vmem:[#allocation2 + $0x1a0] sm:$0xff]
    %v139 = vld [vmem:[#allocation2 + $0x1a8] sm:$0xff]
    %v140 = vld [vmem:[#allocation2 + $0x1b0] sm:$0xff]
    %v141 = vld [vmem:[#allocation2 + $0x1b8] sm:$0xff]
    %v142 = vld [vmem:[#allocation2 + $0x1c0] sm:$0xff]
    %v143 = vld [vmem:[#allocation2 + $0x1c8] sm:$0xff]
    %v144 = vld [vmem:[#allocation2 + $0x1d0] sm:$0xff]
    %v145 = vld [vmem:[#allocation2 + $0x1d8] sm:$0xff]
    %v146 = vld [vmem:[#allocation2 + $0x1e0] sm:$0xff]
    %v147 = vld [vmem:[#allocation2 + $0x1e8] sm:$0xff]
    %v148 = vld [vmem:[#allocation2 + $0x1f0] sm:$0xff]
    %v149 = vld [vmem:[#allocation2 + $0x1f8] sm:$0xff]
    %v150 = vld [vmem:[#allocation2 + $0x200] sm:$0xff]
    %v151 = vld [vmem:[#allocation2 + $0x208] sm:$0xff]
    %v152 = vld [vmem:[#allocation2 + $0x210] sm:$0xff]
    %v153 = vld [vmem:[#allocation2 + $0x218] sm:$0xff]
    %v154 = vld [vmem:[#allocation2 + $0x220] sm:$0xff]
    %v155 = vld [vmem:[#allocation2 + $0x228] sm:$0xff]
    %v156 = vld [vmem:[#allocation2 + $0x230] sm:$0xff]
    %v157 = vld [vmem:[#allocation2 + $0x238] sm:$0xff]
    %v158 = vld [vmem:[#allocation2 + $0x240] sm:$0xff]
    %v159 = vld [vmem:[#allocation2 + $0x248] sm:$0xff]
    %v160 = vld [vmem:[#allocation2 + $0x250] sm:$0xff]
    %v161 = vld [vmem:[#allocation2 + $0x258] sm:$0xff]
    %v162 = vld [vmem:[#allocation2 + $0x260] sm:$0xff]
    %v163 = vld [vmem:[#allocation2 + $0x268] sm:$0xff]
    %v164 = vld [vmem:[#allocation2 + $0x270] sm:$0xff]
    %v165 = vld [vmem:[#allocation2 + $0x278] sm:$0xff]
    %v166 = vld [vmem:[#allocation2 + $0x280] sm:$0xff]
    %v167 = vld [vmem:[#allocation2 + $0x288] sm:$0xff]
    %v168 = vld [vmem:[#allocation2 + $0x290] sm:$0xff]
    %v169 = vld [vmem:[#allocation2 + $0x298] sm:$0xff]
    %v170 = vld [vmem:[#allocation2 + $0x2a0] sm:$0xff]
    %v171 = vld [vmem:[#allocation2 + $0x2a8] sm:$0xff]
    %v172 = vld [vmem:[#allocation2 + $0x2b0] sm:$0xff]
    %v173 = vld [vmem:[#allocation2 + $0x2b8] sm:$0xff]
    %v174 = vld [vmem:[#allocation2 + $0x2c0] sm:$0xff]
    %v175 = vld [vmem:[#allocation2 + $0x2c8] sm:$0xff]
    %v176 = vld [vmem:[#allocation2 + $0x2d0] sm:$0xff]
    %v177 = vld [vmem:[#allocation2 + $0x2d8] sm:$0xff]
    %v178 = vld [vmem:[#allocation2 + $0x2e0] sm:$0xff]
    %v179 = vld [vmem:[#allocation2 + $0x2e8] sm:$0xff]
    %v180 = vld [vmem:[#allocation2 + $0x2f0] sm:$0xff]
    %v181 = vld [vmem:[#allocation2 + $0x2f8] sm:$0xff]
    %v182 = vld [vmem:[#allocation2 + $0x300] sm:$0xff]
    %v183 = vld [vmem:[#allocation2 + $0x308] sm:$0xff]
    %v184 = vld [vmem:[#allocation2 + $0x310] sm:$0xff]
    %v185 = vld [vmem:[#allocation2 + $0x318] sm:$0xff]
    %v186 = vld [vmem:[#allocation2 + $0x320] sm:$0xff]
    %v187 = vld [vmem:[#allocation2 + $0x328] sm:$0xff]
    %v188 = vld [vmem:[#allocation2 + $0x330] sm:$0xff]
    %v189 = vld [vmem:[#allocation2 + $0x338] sm:$0xff]
    %v190 = vld [vmem:[#allocation2 + $0x340] sm:$0xff]
    %v191 = vld [vmem:[#allocation2 + $0x348] sm:$0xff]
    %v192 = vld [vmem:[#allocation2 + $0x350] sm:$0xff]
    %v193 = vld [vmem:[#allocation2 + $0x358] sm:$0xff]
    %v194 = vld [vmem:[#allocation2 + $0x360] sm:$0xff]
    %v195 = vld [vmem:[#allocation2 + $0x368] sm:$0xff]
    %v196 = vld [vmem:[#allocation2 + $0x370] sm:$0xff]
    %v197 = vld [vmem:[#allocation2 + $0x378] sm:$0xff]
    %v198 = vld [vmem:[#allocation2 + $0x380] sm:$0xff]
    %v199 = vld [vmem:[#allocation2 + $0x388] sm:$0xff]
    %v200 = vld [vmem:[#allocation2 + $0x390] sm:$0xff]
    %v201 = vld [vmem:[#allocation2 + $0x398] sm:$0xff]
    %v202 = vld [vmem:[#allocation2 + $0x3a0] sm:$0xff]
    %v203 = vld [vmem:[#allocation2 + $0x3a8] sm:$0xff]
    %v204 = vld [vmem:[#allocation2 + $0x3b0] sm:$0xff]
    %v205 = vld [vmem:[#allocation2 + $0x3b8] sm:$0xff]
    %v206 = vld [vmem:[#allocation2 + $0x3c0] sm:$0xff]
    %v207 = vld [vmem:[#allocation2 + $0x3c8] sm:$0xff]
    %v208 = vld [vmem:[#allocation2 + $0x3d0] sm:$0xff]
    %v209 = vld [vmem:[#allocation2 + $0x3d8] sm:$0xff]
    %v210 = vld [vmem:[#allocation2 + $0x3e0] sm:$0xff]
    %v211 = vld [vmem:[#allocation2 + $0x3e8] sm:$0xff]
    %v212 = vld [vmem:[#allocation2 + $0x3f0] sm:$0xff]
    %v213 = vld [vmem:[#allocation2 + $0x3f8] sm:$0xff]
    %v214 = vld [vmem:[#allocation2 + $0x400] sm:$0xff]
    %v215 = vld [vmem:[#allocation2 + $0x408] sm:$0xff]
    %v216 = vld [vmem:[#allocation2 + $0x410] sm:$0xff]
    %v217 = vld [vmem:[#allocation2 + $0x418] sm:$0xff]
    %v218 = vld [vmem:[#allocation2 + $0x420] sm:$0xff]
    %v219 = vld [vmem:[#allocation2 + $0x428] sm:$0xff]
    %v220 = vld [vmem:[#allocation2 + $0x430] sm:$0xff]
    %v221 = vld [vmem:[#allocation2 + $0x438] sm:$0xff]
    %v222 = vld [vmem:[#allocation2 + $0x440] sm:$0xff]
    %v223 = vld [vmem:[#allocation2 + $0x448] sm:$0xff]
    %v224 = vld [vmem:[#allocation2 + $0x450] sm:$0xff]
    %v225 = vld [vmem:[#allocation2 + $0x458] sm:$0xff]
    %v226 = vld [vmem:[#allocation2 + $0x460] sm:$0xff]
    %v227 = vld [vmem:[#allocation2 + $0x468] sm:$0xff]
    %v228 = vld [vmem:[#allocation2 + $0x470] sm:$0xff]
    %v229 = vld [vmem:[#allocation2 + $0x478] sm:$0xff]
    %v230 = vld [vmem:[#allocation2 + $0x480] sm:$0xff]
    %v231 = vld [vmem:[#allocation2 + $0x488] sm:$0xff]
    %v232 = vld [vmem:[#allocation2 + $0x490] sm:$0xff]
    %v233 = vld [vmem:[#allocation2 + $0x498] sm:$0xff]
    %v234 = vld [vmem:[#allocation2 + $0x4a0] sm:$0xff]
    %v235 = vld [vmem:[#allocation2 + $0x4a8] sm:$0xff]
    %v236 = vld [vmem:[#allocation2 + $0x4b0] sm:$0xff]
    %v237 = vld [vmem:[#allocation2 + $0x4b8] sm:$0xff]
    %v238 = vld [vmem:[#allocation2 + $0x4c0] sm:$0xff]
    %v239 = vld [vmem:[#allocation2 + $0x4c8] sm:$0xff]
    %v240 = vld [vmem:[#allocation2 + $0x4d0] sm:$0xff]
    %v241 = vld [vmem:[#allocation2 + $0x4d8] sm:$0xff]
    %v242 = vld [vmem:[#allocation2 + $0x4e0] sm:$0xff]
    %v243 = vld [vmem:[#allocation2 + $0x4e8] sm:$0xff]
    %v244 = vld [vmem:[#allocation2 + $0x4f0] sm:$0xff]
    %v245 = vld [vmem:[#allocation2 + $0x4f8] sm:$0xff]
    %v246 = vld [vmem:[#allocation2 + $0x500] sm:$0xff]
    %v247 = vld [vmem:[#allocation2 + $0x508] sm:$0xff]
    %v248 = vld [vmem:[#allocation2 + $0x510] sm:$0xff]
    %v249 = vld [vmem:[#allocation2 + $0x518] sm:$0xff]
    %v250 = vld [vmem:[#allocation2 + $0x520] sm:$0xff]
    %v251 = vld [vmem:[#allocation2 + $0x528] sm:$0xff]
    %v252 = vld [vmem:[#allocation2 + $0x530] sm:$0xff]
    %v253 = vld [vmem:[#allocation2 + $0x538] sm:$0xff]
    %v254 = vld [vmem:[#allocation2 + $0x540] sm:$0xff]
    %v255 = vld [vmem:[#allocation2 + $0x548] sm:$0xff]
    %v256 = vld [vmem:[#allocation2 + $0x550] sm:$0xff]
    %v257 = vld [vmem:[#allocation2 + $0x558] sm:$0xff]
    %v258 = vld [vmem:[#allocation2 + $0x560] sm:$0xff]
    %v259 = vld [vmem:[#allocation2 + $0x568] sm:$0xff]
    %v260 = vld [vmem:[#allocation2 + $0x570] sm:$0xff]
    %v261 = vld [vmem:[#allocation2 + $0x578] sm:$0xff]
    %v262 = vld [vmem:[#allocation2 + $0x580] sm:$0xff]
    %v263 = vld [vmem:[#allocation2 + $0x588] sm:$0xff]
    %v264 = vld [vmem:[#allocation2 + $0x590] sm:$0xff]
    %v265 = vld [vmem:[#allocation2 + $0x598] sm:$0xff]
    %v266 = vld [vmem:[#allocation2 + $0x5a0] sm:$0xff]
    %v267 = vld [vmem:[#allocation2 + $0x5a8] sm:$0xff]
    %v268 = vld [vmem:[#allocation2 + $0x5b0] sm:$0xff]
    %v269 = vld [vmem:[#allocation2 + $0x5b8] sm:$0xff]
    %v270 = vld [vmem:[#allocation2 + $0x5c0] sm:$0xff]
    %v271 = vld [vmem:[#allocation2 + $0x5c8] sm:$0xff]
    %v272 = vld [vmem:[#allocation2 + $0x5d0] sm:$0xff]
    %v273 = vld [vmem:[#allocation2 + $0x5d8] sm:$0xff]
    %v274 = vld [vmem:[#allocation2 + $0x5e0] sm:$0xff]
    %v275 = vld [vmem:[#allocation2 + $0x5e8] sm:$0xff]
    %v276 = vld [vmem:[#allocation2 + $0x5f0] sm:$0xff]
    %v277 = vld [vmem:[#allocation2 + $0x5f8] sm:$0xff]
    %v278 = vld [vmem:[#allocation2 + $0x600] sm:$0xff]
    %v279 = vld [vmem:[#allocation2 + $0x608] sm:$0xff]
    %v280 = vld [vmem:[#allocation2 + $0x610] sm:$0xff]
    %v281 = vld [vmem:[#allocation2 + $0x618] sm:$0xff]
    %v282 = vld [vmem:[#allocation2 + $0x620] sm:$0xff]
    %v283 = vld [vmem:[#allocation2 + $0x628] sm:$0xff]
    %v284 = vld [vmem:[#allocation2 + $0x630] sm:$0xff]
    %v285 = vld [vmem:[#allocation2 + $0x638] sm:$0xff]
    %v286 = vld [vmem:[#allocation2 + $0x640] sm:$0xff]
    %v287 = vld [vmem:[#allocation2 + $0x648] sm:$0xff]
    %v288 = vld [vmem:[#allocation2 + $0x650] sm:$0xff]
    %v289 = vld [vmem:[#allocation2 + $0x658] sm:$0xff]
    %v290 = vld [vmem:[#allocation2 + $0x660] sm:$0xff]
    %v291 = vld [vmem:[#allocation2 + $0x668] sm:$0xff]
    %v292 = vld [vmem:[#allocation2 + $0x670] sm:$0xff]
    %v293 = vld [vmem:[#allocation2 + $0x678] sm:$0xff]
    %v294 = vld [vmem:[#allocation2 + $0x680] sm:$0xff]
    %v295 = vld [vmem:[#allocation2 + $0x688] sm:$0xff]
    %v296 = vld [vmem:[#allocation2 + $0x690] sm:$0xff]
    %v297 = vld [vmem:[#allocation2 + $0x698] sm:$0xff]
    %v298 = vld [vmem:[#allocation2 + $0x6a0] sm:$0xff]
    %v299 = vld [vmem:[#allocation2 + $0x6a8] sm:$0xff]
    %v300 = vld [vmem:[#allocation2 + $0x6b0] sm:$0xff]
    %v301 = vld [vmem:[#allocation2 + $0x6b8] sm:$0xff]
    %v302 = vld [vmem:[#allocation2 + $0x6c0] sm:$0xff]
    %v303 = vld [vmem:[#allocation2 + $0x6c8] sm:$0xff]
    %v304 = vld [vmem:[#allocation2 + $0x6d0] sm:$0xff]
    %v305 = vld [vmem:[#allocation2 + $0x6d8] sm:$0xff]
    %v306 = vld [vmem:[#allocation2 + $0x6e0] sm:$0xff]
    %v307 = vld [vmem:[#allocation2 + $0x6e8] sm:$0xff]
    %v308 = vld [vmem:[#allocation2 + $0x6f0] sm:$0xff]
    %v309 = vld [vmem:[#allocation2 + $0x6f8] sm:$0xff]
    %v310 = vld [vmem:[#allocation2 + $0x700] sm:$0xff]
    %v311 = vld [vmem:[#allocation2 + $0x708] sm:$0xff]
    %v312 = vld [vmem:[#allocation2 + $0x710] sm:$0xff]
    %v313 = vld [vmem:[#allocation2 + $0x718] sm:$0xff]
    %v314 = vld [vmem:[#allocation2 + $0x720] sm:$0xff]
    %v315 = vld [vmem:[#allocation2 + $0x728] sm:$0xff]
    %v316 = vld [vmem:[#allocation2 + $0x730] sm:$0xff]
    %v317 = vld [vmem:[#allocation2 + $0x738] sm:$0xff]
    %v318 = vld [vmem:[#allocation2 + $0x740] sm:$0xff]
    %v319 = vld [vmem:[#allocation2 + $0x748] sm:$0xff]
    %v320 = vld [vmem:[#allocation2 + $0x750] sm:$0xff]
    %v321 = vld [vmem:[#allocation2 + $0x758] sm:$0xff]
    %v322 = vld [vmem:[#allocation2 + $0x760] sm:$0xff]
    %v323 = vld [vmem:[#allocation2 + $0x768] sm:$0xff]
    %v324 = vld [vmem:[#allocation2 + $0x770] sm:$0xff]
    %v325 = vld [vmem:[#allocation2 + $0x778] sm:$0xff]
    %v326 = vld [vmem:[#allocation2 + $0x780] sm:$0xff]
    %v327 = vld [vmem:[#allocation2 + $0x788] sm:$0xff]
    %v328 = vld [vmem:[#allocation2 + $0x790] sm:$0xff]
    %v329 = vld [vmem:[#allocation2 + $0x798] sm:$0xff]
    %v330 = vld [vmem:[#allocation2 + $0x7a0] sm:$0xff]
    %v331 = vld [vmem:[#allocation2 + $0x7a8] sm:$0xff]
    %v332 = vld [vmem:[#allocation2 + $0x7b0] sm:$0xff]
    %v333 = vld [vmem:[#allocation2 + $0x7b8] sm:$0xff]
    %v334 = vld [vmem:[#allocation2 + $0x7c0] sm:$0xff]
    %v335 = vld [vmem:[#allocation2 + $0x7c8] sm:$0xff]
    %v336 = vld [vmem:[#allocation2 + $0x7d0] sm:$0xff]
    %v337 = vld [vmem:[#allocation2 + $0x7d8] sm:$0xff]
    %v338 = vld [vmem:[#allocation2 + $0x7e0] sm:$0xff]
    %v339 = vld [vmem:[#allocation2 + $0x7e8] sm:$0xff]
    %v340 = vld [vmem:[#allocation2 + $0x7f0] sm:$0xff]
    %v341 = vld [vmem:[#allocation2 + $0x7f8] sm:$0xff]
    %v342 = vld [vmem:[#allocation2 + $0x800] sm:$0xff]
    %v343 = vld [vmem:[#allocation2 + $0x808] sm:$0xff]
    %v344 = vld [vmem:[#allocation2 + $0x810] sm:$0xff]
    %v345 = vld [vmem:[#allocation2 + $0x818] sm:$0xff]
    %v346 = vld [vmem:[#allocation2 + $0x820] sm:$0xff]
    %v347 = vld [vmem:[#allocation2 + $0x828] sm:$0xff]
    %v348 = vld [vmem:[#allocation2 + $0x830] sm:$0xff]
    %v349 = vld [vmem:[#allocation2 + $0x838] sm:$0xff]
    %v350 = vld [vmem:[#allocation2 + $0x840] sm:$0xff]
    %v351 = vld [vmem:[#allocation2 + $0x848] sm:$0xff]
    %v352 = vld [vmem:[#allocation2 + $0x850] sm:$0xff]
    %v353 = vld [vmem:[#allocation2 + $0x858] sm:$0xff]
    %v354 = vld [vmem:[#allocation2 + $0x860] sm:$0xff]
    %v355 = vld [vmem:[#allocation2 + $0x868] sm:$0xff]
    %v356 = vld [vmem:[#allocation2 + $0x870] sm:$0xff]
    %v357 = vld [vmem:[#allocation2 + $0x878] sm:$0xff]
    %v358 = vld [vmem:[#allocation2 + $0x880] sm:$0xff]
    %v359 = vld [vmem:[#allocation2 + $0x888] sm:$0xff]
    %v360 = vld [vmem:[#allocation2 + $0x890] sm:$0xff]
    %v361 = vld [vmem:[#allocation2 + $0x898] sm:$0xff]
    %v362 = vld [vmem:[#allocation2 + $0x8a0] sm:$0xff]
    %v363 = vld [vmem:[#allocation2 + $0x8a8] sm:$0xff]
    %v364 = vld [vmem:[#allocation2 + $0x8b0] sm:$0xff]
    %v365 = vld [vmem:[#allocation2 + $0x8b8] sm:$0xff]
    %v366 = vld [vmem:[#allocation2 + $0x8c0] sm:$0xff]
    %v367 = vld [vmem:[#allocation2 + $0x8c8] sm:$0xff]
    %v368 = vld [vmem:[#allocation2 + $0x8d0] sm:$0xff]
    %v369 = vld [vmem:[#allocation2 + $0x8d8] sm:$0xff]
    %v370 = vld [vmem:[#allocation2 + $0x8e0] sm:$0xff]
    %v371 = vld [vmem:[#allocation2 + $0x8e8] sm:$0xff]
    %v372 = vld [vmem:[#allocation2 + $0x8f0] sm:$0xff]
    %v373 = vld [vmem:[#allocation2 + $0x8f8] sm:$0xff]
    %v374 = vld [vmem:[#allocation2 + $0x900] sm:$0xff]
    %v375 = vld [vmem:[#allocation2 + $0x908] sm:$0xff]
    %v376 = vld [vmem:[#allocation2 + $0x910] sm:$0xff]
    %v377 = vld [vmem:[#allocation2 + $0x918] sm:$0xff]
    %v378 = vld [vmem:[#allocation2 + $0x920] sm:$0xff]
    %v379 = vld [vmem:[#allocation2 + $0x928] sm:$0xff]
    %v380 = vld [vmem:[#allocation2 + $0x930] sm:$0xff]
    %v381 = vld [vmem:[#allocation2 + $0x938] sm:$0xff]
    %v382 = vld [vmem:[#allocation2 + $0x940] sm:$0xff]
    %v383 = vld [vmem:[#allocation2 + $0x948] sm:$0xff]
    %v384 = vld [vmem:[#allocation2 + $0x950] sm:$0xff]
    %v385 = vld [vmem:[#allocation2 + $0x958] sm:$0xff]
    %v386 = vld [vmem:[#allocation2 + $0x960] sm:$0xff]
    %v387 = vld [vmem:[#allocation2 + $0x968] sm:$0xff]
    %v388 = vld [vmem:[#allocation2 + $0x970] sm:$0xff]
    %v389 = vld [vmem:[#allocation2 + $0x978] sm:$0xff]
    %v390 = vld [vmem:[#allocation2 + $0x980] sm:$0xff]
    %v391 = vld [vmem:[#allocation2 + $0x988] sm:$0xff]
    %v392 = vld [vmem:[#allocation2 + $0x990] sm:$0xff]
    %v393 = vld [vmem:[#allocation2 + $0x998] sm:$0xff]
    %v394 = vld [vmem:[#allocation2 + $0x9a0] sm:$0xff]
    %v395 = vld [vmem:[#allocation2 + $0x9a8] sm:$0xff]
    %v396 = vld [vmem:[#allocation2 + $0x9b0] sm:$0xff]
    %v397 = vld [vmem:[#allocation2 + $0x9b8] sm:$0xff]
    %v398 = vld [vmem:[#allocation2 + $0x9c0] sm:$0xff]
    %v399 = vld [vmem:[#allocation2 + $0x9c8] sm:$0xff]
    %v400 = vld [vmem:[#allocation2 + $0x9d0] sm:$0xff]
    %v401 = vld [vmem:[#allocation2 + $0x9d8] sm:$0xff]
    %v402 = vld [vmem:[#allocation2 + $0x9e0] sm:$0xff]
    %v403 = vld [vmem:[#allocation2 + $0x9e8] sm:$0xff]
    %v404 = vld [vmem:[#allocation2 + $0x9f0] sm:$0xff]
    %v405 = vld [vmem:[#allocation2 + $0x9f8] sm:$0xff]
    %v406 = vld [vmem:[#allocation2 + $0xa00] sm:$0xff]
    %v407 = vld [vmem:[#allocation2 + $0xa08] sm:$0xff]
    %v408 = vld [vmem:[#allocation2 + $0xa10] sm:$0xff]
    %v409 = vld [vmem:[#allocation2 + $0xa18] sm:$0xff]
    %v410 = vld [vmem:[#allocation2 + $0xa20] sm:$0xff]
    %v411 = vld [vmem:[#allocation2 + $0xa28] sm:$0xff]
    %v412 = vld [vmem:[#allocation2 + $0xa30] sm:$0xff]
    %v413 = vld [vmem:[#allocation2 + $0xa38] sm:$0xff]
    %v414 = vld [vmem:[#allocation2 + $0xa40] sm:$0xff]
    %v415 = vld [vmem:[#allocation2 + $0xa48] sm:$0xff]
    %v416 = vld [vmem:[#allocation2 + $0xa50] sm:$0xff]
    %v417 = vld [vmem:[#allocation2 + $0xa58] sm:$0xff]
    %v418 = vld [vmem:[#allocation2 + $0xa60] sm:$0xff]
    %v419 = vld [vmem:[#allocation2 + $0xa68] sm:$0xff]
    %v420 = vld [vmem:[#allocation2 + $0xa70] sm:$0xff]
    %v421 = vld [vmem:[#allocation2 + $0xa78] sm:$0xff]
    %v422 = vld [vmem:[#allocation2 + $0xa80] sm:$0xff]
    %v423 = vld [vmem:[#allocation2 + $0xa88] sm:$0xff]
    %v424 = vld [vmem:[#allocation2 + $0xa90] sm:$0xff]
    %v425 = vld [vmem:[#allocation2 + $0xa98] sm:$0xff]
    %v426 = vld [vmem:[#allocation2 + $0xaa0] sm:$0xff]
    %v427 = vld [vmem:[#allocation2 + $0xaa8] sm:$0xff]
    %v428 = vld [vmem:[#allocation2 + $0xab0] sm:$0xff]
    %v429 = vld [vmem:[#allocation2 + $0xab8] sm:$0xff]
    %v430 = vld [vmem:[#allocation2 + $0xac0] sm:$0xff]
    %v431 = vld [vmem:[#allocation2 + $0xac8] sm:$0xff]
    %v432 = vld [vmem:[#allocation2 + $0xad0] sm:$0xff]
    %v433 = vld [vmem:[#allocation2 + $0xad8] sm:$0xff]
    %v434 = vld [vmem:[#allocation2 + $0xae0] sm:$0xff]
    %v435 = vld [vmem:[#allocation2 + $0xae8] sm:$0xff]
    %v436 = vld [vmem:[#allocation2 + $0xaf0] sm:$0xff]
    %v437 = vld [vmem:[#allocation2 + $0xaf8] sm:$0xff]
    %v438 = vld [vmem:[#allocation2 + $0xb00] sm:$0xff]
    %v439 = vld [vmem:[#allocation2 + $0xb08] sm:$0xff]
    %v440 = vld [vmem:[#allocation2 + $0xb10] sm:$0xff]
    %v441 = vld [vmem:[#allocation2 + $0xb18] sm:$0xff]
    %v442 = vld [vmem:[#allocation2 + $0xb20] sm:$0xff]
    %v443 = vld [vmem:[#allocation2 + $0xb28] sm:$0xff]
    %v444 = vld [vmem:[#allocation2 + $0xb30] sm:$0xff]
    %v445 = vld [vmem:[#allocation2 + $0xb38] sm:$0xff]
    %v446 = vld [vmem:[#allocation2 + $0xb40] sm:$0xff]
    %v447 = vld [vmem:[#allocation2 + $0xb48] sm:$0xff]
    %v448 = vld [vmem:[#allocation2 + $0xb50] sm:$0xff]
    %v449 = vld [vmem:[#allocation2 + $0xb58] sm:$0xff]
    %v450 = vld [vmem:[#allocation2 + $0xb60] sm:$0xff]
    %v451 = vld [vmem:[#allocation2 + $0xb68] sm:$0xff]
    %v452 = vld [vmem:[#allocation2 + $0xb70] sm:$0xff]
    %v453 = vld [vmem:[#allocation2 + $0xb78] sm:$0xff]
    %v454 = vld [vmem:[#allocation2 + $0xb80] sm:$0xff]
    %v455 = vld [vmem:[#allocation2 + $0xb88] sm:$0xff]
    %v456 = vld [vmem:[#allocation2 + $0xb90] sm:$0xff]
    %v457 = vld [vmem:[#allocation2 + $0xb98] sm:$0xff]
    %v458 = vld [vmem:[#allocation2 + $0xba0] sm:$0xff]
    %v459 = vld [vmem:[#allocation2 + $0xba8] sm:$0xff]
    %v460 = vld [vmem:[#allocation2 + $0xbb0] sm:$0xff]
    %v461 = vld [vmem:[#allocation2 + $0xbb8] sm:$0xff]
    %v462 = vld [vmem:[#allocation2 + $0xbc0] sm:$0xff]
    %v463 = vld [vmem:[#allocation2 + $0xbc8] sm:$0xff]
    %v464 = vld [vmem:[#allocation2 + $0xbd0] sm:$0xff]
    %v465 = vld [vmem:[#allocation2 + $0xbd8] sm:$0xff]
    %v466 = vld [vmem:[#allocation2 + $0xbe0] sm:$0xff]
    %v467 = vld [vmem:[#allocation2 + $0xbe8] sm:$0xff]
    %v468 = vld [vmem:[#allocation2 + $0xbf0] sm:$0xff]
    %v469 = vld [vmem:[#allocation2 + $0xbf8] sm:$0xff]
    %v470 = vld [vmem:[#allocation5] sm:$0xff]
    %v471 = vld [vmem:[#allocation5 + $0x8] sm:$0xff]
    %v472 = vld [vmem:[#allocation5 + $0x10] sm:$0xff]
    %v473 = vld [vmem:[#allocation5 + $0x18] sm:$0xff]
    %v474 = vld [vmem:[#allocation5 + $0x20] sm:$0xff]
    %v475 = vld [vmem:[#allocation5 + $0x28] sm:$0xff]
    %v476 = vld [vmem:[#allocation5 + $0x30] sm:$0xff]
    %v477 = vld [vmem:[#allocation5 + $0x38] sm:$0xff]
    %v478 = vld [vmem:[#allocation5 + $0x40] sm:$0xff]
    %v479 = vld [vmem:[#allocation5 + $0x48] sm:$0xff]
    %v480 = vld [vmem:[#allocation5 + $0x50] sm:$0xff]
    %v481 = vld [vmem:[#allocation5 + $0x58] sm:$0xff]
    %v482 = vld [vmem:[#allocation5 + $0x60] sm:$0xff]
    %v483 = vld [vmem:[#allocation5 + $0x68] sm:$0xff]
    %v484 = vld [vmem:[#allocation5 + $0x70] sm:$0xff]
    %v485 = vld [vmem:[#allocation5 + $0x78] sm:$0xff]
    %v486 = vld [vmem:[#allocation5 + $0x80] sm:$0xff]
    %v487 = vld [vmem:[#allocation5 + $0x88] sm:$0xff]
    %v488 = vld [vmem:[#allocation5 + $0x90] sm:$0xff]
    %v489 = vld [vmem:[#allocation5 + $0x98] sm:$0xff]
    %v490 = vld [vmem:[#allocation5 + $0xa0] sm:$0xff]
    %v491 = vld [vmem:[#allocation5 + $0xa8] sm:$0xff]
    %v492 = vld [vmem:[#allocation5 + $0xb0] sm:$0xff]
    %v493 = vld [vmem:[#allocation5 + $0xb8] sm:$0xff]
    %v494 = vld [vmem:[#allocation5 + $0xc0] sm:$0xff]
    %v495 = vld [vmem:[#allocation5 + $0xc8] sm:$0xff]
    %v496 = vld [vmem:[#allocation5 + $0xd0] sm:$0xff]
    %v497 = vld [vmem:[#allocation5 + $0xd8] sm:$0xff]
    %v498 = vld [vmem:[#allocation5 + $0xe0] sm:$0xff]
    %v499 = vld [vmem:[#allocation5 + $0xe8] sm:$0xff]
    %v500 = vld [vmem:[#allocation5 + $0xf0] sm:$0xff]
    %v501 = vld [vmem:[#allocation5 + $0xf8] sm:$0xff]
    %v502 = vld [vmem:[#allocation5 + $0x100] sm:$0xff]
    %v503 = vld [vmem:[#allocation5 + $0x108] sm:$0xff]
    %v504 = vld [vmem:[#allocation5 + $0x110] sm:$0xff]
    %v505 = vld [vmem:[#allocation5 + $0x118] sm:$0xff]
    %v506 = vld [vmem:[#allocation5 + $0x120] sm:$0xff]
    %v507 = vld [vmem:[#allocation5 + $0x128] sm:$0xff]
    %v508 = vld [vmem:[#allocation5 + $0x130] sm:$0xff]
    %v509 = vld [vmem:[#allocation5 + $0x138] sm:$0xff]
    %v510 = vld [vmem:[#allocation5 + $0x140] sm:$0xff]
    %v511 = vld [vmem:[#allocation5 + $0x148] sm:$0xff]
    %v512 = vld [vmem:[#allocation5 + $0x150] sm:$0xff]
    %v513 = vld [vmem:[#allocation5 + $0x158] sm:$0xff]
    %v514 = vld [vmem:[#allocation5 + $0x160] sm:$0xff]
    %v515 = vld [vmem:[#allocation5 + $0x168] sm:$0xff]
    %v516 = vld [vmem:[#allocation5 + $0x170] sm:$0xff]
    %v517 = vld [vmem:[#allocation5 + $0x178] sm:$0xff]
    %v518 = vld [vmem:[#allocation5 + $0x180] sm:$0xff]
    %v519 = vld [vmem:[#allocation5 + $0x188] sm:$0xff]
    %v520 = vld [vmem:[#allocation5 + $0x190] sm:$0xff]
    %v521 = vld [vmem:[#allocation5 + $0x198] sm:$0xff]
    %v522 = vld [vmem:[#allocation5 + $0x1a0] sm:$0xff]
    %v523 = vld [vmem:[#allocation5 + $0x1a8] sm:$0xff]
    %v524 = vld [vmem:[#allocation5 + $0x1b0] sm:$0xff]
    %v525 = vld [vmem:[#allocation5 + $0x1b8] sm:$0xff]
    %v526 = vld [vmem:[#allocation5 + $0x1c0] sm:$0xff]
    %v527 = vld [vmem:[#allocation5 + $0x1c8] sm:$0xff]
    %v528 = vld [vmem:[#allocation5 + $0x1d0] sm:$0xff]
    %v529 = vld [vmem:[#allocation5 + $0x1d8] sm:$0xff]
    %v530 = vld [vmem:[#allocation5 + $0x1e0] sm:$0xff]
    %v531 = vld [vmem:[#allocation5 + $0x1e8] sm:$0xff]
    %v532 = vld [vmem:[#allocation5 + $0x1f0] sm:$0xff]
    %v533 = vld [vmem:[#allocation5 + $0x1f8] sm:$0xff]
    %v534 = vld [vmem:[#allocation5 + $0x200] sm:$0xff]
    %v535 = vld [vmem:[#allocation5 + $0x208] sm:$0xff]
    %v536 = vld [vmem:[#allocation5 + $0x210] sm:$0xff]
    %v537 = vld [vmem:[#allocation5 + $0x218] sm:$0xff]
    %v538 = vld [vmem:[#allocation5 + $0x220] sm:$0xff]
    %v539 = vld [vmem:[#allocation5 + $0x228] sm:$0xff]
    %v540 = vld [vmem:[#allocation5 + $0x230] sm:$0xff]
    %v541 = vld [vmem:[#allocation5 + $0x238] sm:$0xff]
    %v542 = vld [vmem:[#allocation5 + $0x240] sm:$0xff]
    %v543 = vld [vmem:[#allocation5 + $0x248] sm:$0xff]
    %v544 = vld [vmem:[#allocation5 + $0x250] sm:$0xff]
    %v545 = vld [vmem:[#allocation5 + $0x258] sm:$0xff]
    %v546 = vld [vmem:[#allocation5 + $0x260] sm:$0xff]
    %v547 = vld [vmem:[#allocation5 + $0x268] sm:$0xff]
    %v548 = vld [vmem:[#allocation5 + $0x270] sm:$0xff]
    %v549 = vld [vmem:[#allocation5 + $0x278] sm:$0xff]
    %v550 = vld [vmem:[#allocation5 + $0x280] sm:$0xff]
    %v551 = vld [vmem:[#allocation5 + $0x288] sm:$0xff]
    %v552 = vld [vmem:[#allocation5 + $0x290] sm:$0xff]
    %v553 = vld [vmem:[#allocation5 + $0x298] sm:$0xff]
    %v554 = vld [vmem:[#allocation5 + $0x2a0] sm:$0xff]
    %v555 = vld [vmem:[#allocation5 + $0x2a8] sm:$0xff]
    %v556 = vld [vmem:[#allocation5 + $0x2b0] sm:$0xff]
    %v557 = vld [vmem:[#allocation5 + $0x2b8] sm:$0xff]
    %v558 = vld [vmem:[#allocation5 + $0x2c0] sm:$0xff]
    %v559 = vld [vmem:[#allocation5 + $0x2c8] sm:$0xff]
    %v560 = vld [vmem:[#allocation5 + $0x2d0] sm:$0xff]
    %v561 = vld [vmem:[#allocation5 + $0x2d8] sm:$0xff]
    %v562 = vld [vmem:[#allocation5 + $0x2e0] sm:$0xff]
    %v563 = vld [vmem:[#allocation5 + $0x2e8] sm:$0xff]
    %v564 = vld [vmem:[#allocation5 + $0x2f0] sm:$0xff]
    %v565 = vld [vmem:[#allocation5 + $0x2f8] sm:$0xff]
    %v566 = vld [vmem:[#allocation5 + $0x300] sm:$0xff]
    %v567 = vld [vmem:[#allocation5 + $0x308] sm:$0xff]
    %v568 = vld [vmem:[#allocation5 + $0x310] sm:$0xff]
    %v569 = vld [vmem:[#allocation5 + $0x318] sm:$0xff]
    %v570 = vld [vmem:[#allocation5 + $0x320] sm:$0xff]
    %v571 = vld [vmem:[#allocation5 + $0x328] sm:$0xff]
    %v572 = vld [vmem:[#allocation5 + $0x330] sm:$0xff]
    %v573 = vld [vmem:[#allocation5 + $0x338] sm:$0xff]
    %v574 = vld [vmem:[#allocation5 + $0x340] sm:$0xff]
    %v575 = vld [vmem:[#allocation5 + $0x348] sm:$0xff]
    %v576 = vld [vmem:[#allocation5 + $0x350] sm:$0xff]
    %v577 = vld [vmem:[#allocation5 + $0x358] sm:$0xff]
    %v578 = vld [vmem:[#allocation5 + $0x360] sm:$0xff]
    %v579 = vld [vmem:[#allocation5 + $0x368] sm:$0xff]
    %v580 = vld [vmem:[#allocation5 + $0x370] sm:$0xff]
    %v581 = vld [vmem:[#allocation5 + $0x378] sm:$0xff]
    %v582 = vld [vmem:[#allocation5 + $0x380] sm:$0xff]
    %v583 = vld [vmem:[#allocation5 + $0x388] sm:$0xff]
    %v584 = vld [vmem:[#allocation5 + $0x390] sm:$0xff]
    %v585 = vld [vmem:[#allocation5 + $0x398] sm:$0xff]
    %v586 = vld [vmem:[#allocation5 + $0x3a0] sm:$0xff]
    %v587 = vld [vmem:[#allocation5 + $0x3a8] sm:$0xff]
    %v588 = vld [vmem:[#allocation5 + $0x3b0] sm:$0xff]
    %v589 = vld [vmem:[#allocation5 + $0x3b8] sm:$0xff]
    %v590 = vld [vmem:[#allocation5 + $0x3c0] sm:$0xff]
    %v591 = vld [vmem:[#allocation5 + $0x3c8] sm:$0xff]
    %v592 = vld [vmem:[#allocation5 + $0x3d0] sm:$0xff]
    %v593 = vld [vmem:[#allocation5 + $0x3d8] sm:$0xff]
    %v594 = vld [vmem:[#allocation5 + $0x3e0] sm:$0xff]
    %v595 = vld [vmem:[#allocation5 + $0x3e8] sm:$0xff]
    %v596 = vld [vmem:[#allocation5 + $0x3f0] sm:$0xff]
    %v597 = vld [vmem:[#allocation5 + $0x3f8] sm:$0xff]
    %v598 = vld [vmem:[#allocation5 + $0x400] sm:$0xff]
    %v599 = vld [vmem:[#allocation5 + $0x408] sm:$0xff]
    %v600 = vld [vmem:[#allocation5 + $0x410] sm:$0xff]
    %v601 = vld [vmem:[#allocation5 + $0x418] sm:$0xff]
    %v602 = vld [vmem:[#allocation5 + $0x420] sm:$0xff]
    %v603 = vld [vmem:[#allocation5 + $0x428] sm:$0xff]
    %v604 = vld [vmem:[#allocation5 + $0x430] sm:$0xff]
    %v605 = vld [vmem:[#allocation5 + $0x438] sm:$0xff]
    %v606 = vld [vmem:[#allocation5 + $0x440] sm:$0xff]
    %v607 = vld [vmem:[#allocation5 + $0x448] sm:$0xff]
    %v608 = vld [vmem:[#allocation5 + $0x450] sm:$0xff]
    %v609 = vld [vmem:[#allocation5 + $0x458] sm:$0xff]
    %v610 = vld [vmem:[#allocation5 + $0x460] sm:$0xff]
    %v611 = vld [vmem:[#allocation5 + $0x468] sm:$0xff]
    %v612 = vld [vmem:[#allocation5 + $0x470] sm:$0xff]
    %v613 = vld [vmem:[#allocation5 + $0x478] sm:$0xff]
    %v614 = vld [vmem:[#allocation5 + $0x480] sm:$0xff]
    %v615 = vld [vmem:[#allocation5 + $0x488] sm:$0xff]
    %v616 = vld [vmem:[#allocation5 + $0x490] sm:$0xff]
    %v617 = vld [vmem:[#allocation5 + $0x498] sm:$0xff]
    %v618 = vld [vmem:[#allocation5 + $0x4a0] sm:$0xff]
    %v619 = vld [vmem:[#allocation5 + $0x4a8] sm:$0xff]
    %v620 = vld [vmem:[#allocation5 + $0x4b0] sm:$0xff]
    %v621 = vld [vmem:[#allocation5 + $0x4b8] sm:$0xff]
    %v622 = vld [vmem:[#allocation5 + $0x4c0] sm:$0xff]
    %v623 = vld [vmem:[#allocation5 + $0x4c8] sm:$0xff]
    %v624 = vld [vmem:[#allocation5 + $0x4d0] sm:$0xff]
    %v625 = vld [vmem:[#allocation5 + $0x4d8] sm:$0xff]
    %v626 = vld [vmem:[#allocation5 + $0x4e0] sm:$0xff]
    %v627 = vld [vmem:[#allocation5 + $0x4e8] sm:$0xff]
    %v628 = vld [vmem:[#allocation5 + $0x4f0] sm:$0xff]
    %v629 = vld [vmem:[#allocation5 + $0x4f8] sm:$0xff]
    %v630 = vld [vmem:[#allocation5 + $0x500] sm:$0xff]
    %v631 = vld [vmem:[#allocation5 + $0x508] sm:$0xff]
    %v632 = vld [vmem:[#allocation5 + $0x510] sm:$0xff]
    %v633 = vld [vmem:[#allocation5 + $0x518] sm:$0xff]
    %v634 = vld [vmem:[#allocation5 + $0x520] sm:$0xff]
    %v635 = vld [vmem:[#allocation5 + $0x528] sm:$0xff]
    %v636 = vld [vmem:[#allocation5 + $0x530] sm:$0xff]
    %v637 = vld [vmem:[#allocation5 + $0x538] sm:$0xff]
    %v638 = vld [vmem:[#allocation5 + $0x540] sm:$0xff]
    %v639 = vld [vmem:[#allocation5 + $0x548] sm:$0xff]
    %v640 = vld [vmem:[#allocation5 + $0x550] sm:$0xff]
    %v641 = vld [vmem:[#allocation5 + $0x558] sm:$0xff]
    %v642 = vld [vmem:[#allocation5 + $0x560] sm:$0xff]
    %v643 = vld [vmem:[#allocation5 + $0x568] sm:$0xff]
    %v644 = vld [vmem:[#allocation5 + $0x570] sm:$0xff]
    %v645 = vld [vmem:[#allocation5 + $0x578] sm:$0xff]
    %v646 = vld [vmem:[#allocation5 + $0x580] sm:$0xff]
    %v647 = vld [vmem:[#allocation5 + $0x588] sm:$0xff]
    %v648 = vld [vmem:[#allocation5 + $0x590] sm:$0xff]
    %v649 = vld [vmem:[#allocation5 + $0x598] sm:$0xff]
    %v650 = vld [vmem:[#allocation5 + $0x5a0] sm:$0xff]
    %v651 = vld [vmem:[#allocation5 + $0x5a8] sm:$0xff]
    %v652 = vld [vmem:[#allocation5 + $0x5b0] sm:$0xff]
    %v653 = vld [vmem:[#allocation5 + $0x5b8] sm:$0xff]
    %v654 = vld [vmem:[#allocation5 + $0x5c0] sm:$0xff]
    %v655 = vld [vmem:[#allocation5 + $0x5c8] sm:$0xff]
    %v656 = vld [vmem:[#allocation5 + $0x5d0] sm:$0xff]
    %v657 = vld [vmem:[#allocation5 + $0x5d8] sm:$0xff]
    %v658 = vld [vmem:[#allocation5 + $0x5e0] sm:$0xff]
    %v659 = vld [vmem:[#allocation5 + $0x5e8] sm:$0xff]
    %v660 = vld [vmem:[#allocation5 + $0x5f0] sm:$0xff]
    %v661 = vld [vmem:[#allocation5 + $0x5f8] sm:$0xff]
    %v662 = vld [vmem:[#allocation5 + $0x600] sm:$0xff]
    %v663 = vld [vmem:[#allocation5 + $0x608] sm:$0xff]
    %v664 = vld [vmem:[#allocation5 + $0x610] sm:$0xff]
    %v665 = vld [vmem:[#allocation5 + $0x618] sm:$0xff]
    %v666 = vld [vmem:[#allocation5 + $0x620] sm:$0xff]
    %v667 = vld [vmem:[#allocation5 + $0x628] sm:$0xff]
    %v668 = vld [vmem:[#allocation5 + $0x630] sm:$0xff]
    %v669 = vld [vmem:[#allocation5 + $0x638] sm:$0xff]
    %v670 = vld [vmem:[#allocation5 + $0x640] sm:$0xff]
    %v671 = vld [vmem:[#allocation5 + $0x648] sm:$0xff]
    %v672 = vld [vmem:[#allocation5 + $0x650] sm:$0xff]
    %v673 = vld [vmem:[#allocation5 + $0x658] sm:$0xff]
    %v674 = vld [vmem:[#allocation5 + $0x660] sm:$0xff]
    %v675 = vld [vmem:[#allocation5 + $0x668] sm:$0xff]
    %v676 = vld [vmem:[#allocation5 + $0x670] sm:$0xff]
    %v677 = vld [vmem:[#allocation5 + $0x678] sm:$0xff]
    %v678 = vld [vmem:[#allocation5 + $0x680] sm:$0xff]
    %v679 = vld [vmem:[#allocation5 + $0x688] sm:$0xff]
    %v680 = vld [vmem:[#allocation5 + $0x690] sm:$0xff]
    %v681 = vld [vmem:[#allocation5 + $0x698] sm:$0xff]
    %v682 = vld [vmem:[#allocation5 + $0x6a0] sm:$0xff]
    %v683 = vld [vmem:[#allocation5 + $0x6a8] sm:$0xff]
    %v684 = vld [vmem:[#allocation5 + $0x6b0] sm:$0xff]
    %v685 = vld [vmem:[#allocation5 + $0x6b8] sm:$0xff]
    %v686 = vld [vmem:[#allocation5 + $0x6c0] sm:$0xff]
    %v687 = vld [vmem:[#allocation5 + $0x6c8] sm:$0xff]
    %v688 = vld [vmem:[#allocation5 + $0x6d0] sm:$0xff]
    %v689 = vld [vmem:[#allocation5 + $0x6d8] sm:$0xff]
    %v690 = vld [vmem:[#allocation5 + $0x6e0] sm:$0xff]
    %v691 = vld [vmem:[#allocation5 + $0x6e8] sm:$0xff]
    %v692 = vld [vmem:[#allocation5 + $0x6f0] sm:$0xff]
    %v693 = vld [vmem:[#allocation5 + $0x6f8] sm:$0xff]
    %v694 = vld [vmem:[#allocation5 + $0x700] sm:$0xff]
    %v695 = vld [vmem:[#allocation5 + $0x708] sm:$0xff]
    %v696 = vld [vmem:[#allocation5 + $0x710] sm:$0xff]
    %v697 = vld [vmem:[#allocation5 + $0x718] sm:$0xff]
    %v698 = vld [vmem:[#allocation5 + $0x720] sm:$0xff]
    %v699 = vld [vmem:[#allocation5 + $0x728] sm:$0xff]
    %v700 = vld [vmem:[#allocation5 + $0x730] sm:$0xff]
    %v701 = vld [vmem:[#allocation5 + $0x738] sm:$0xff]
    %v702 = vld [vmem:[#allocation5 + $0x740] sm:$0xff]
    %v703 = vld [vmem:[#allocation5 + $0x748] sm:$0xff]
    %v704 = vld [vmem:[#allocation5 + $0x750] sm:$0xff]
    %v705 = vld [vmem:[#allocation5 + $0x758] sm:$0xff]
    %v706 = vld [vmem:[#allocation5 + $0x760] sm:$0xff]
    %v707 = vld [vmem:[#allocation5 + $0x768] sm:$0xff]
    %v708 = vld [vmem:[#allocation5 + $0x770] sm:$0xff]
    %v709 = vld [vmem:[#allocation5 + $0x778] sm:$0xff]
    %v710 = vld [vmem:[#allocation5 + $0x780] sm:$0xff]
    %v711 = vld [vmem:[#allocation5 + $0x788] sm:$0xff]
    %v712 = vld [vmem:[#allocation5 + $0x790] sm:$0xff]
    %v713 = vld [vmem:[#allocation5 + $0x798] sm:$0xff]
    %v714 = vld [vmem:[#allocation5 + $0x7a0] sm:$0xff]
    %v715 = vld [vmem:[#allocation5 + $0x7a8] sm:$0xff]
    %v716 = vld [vmem:[#allocation5 + $0x7b0] sm:$0xff]
    %v717 = vld [vmem:[#allocation5 + $0x7b8] sm:$0xff]
    %v718 = vld [vmem:[#allocation5 + $0x7c0] sm:$0xff]
    %v719 = vld [vmem:[#allocation5 + $0x7c8] sm:$0xff]
    %v720 = vld [vmem:[#allocation5 + $0x7d0] sm:$0xff]
    %v721 = vld [vmem:[#allocation5 + $0x7d8] sm:$0xff]
    %v722 = vld [vmem:[#allocation5 + $0x7e0] sm:$0xff]
    %v723 = vld [vmem:[#allocation5 + $0x7e8] sm:$0xff]
    %v724 = vld [vmem:[#allocation5 + $0x7f0] sm:$0xff]
    %v725 = vld [vmem:[#allocation5 + $0x7f8] sm:$0xff]
    %v726 = vld [vmem:[#allocation5 + $0x800] sm:$0xff]
    %v727 = vld [vmem:[#allocation5 + $0x808] sm:$0xff]
    %v728 = vld [vmem:[#allocation5 + $0x810] sm:$0xff]
    %v729 = vld [vmem:[#allocation5 + $0x818] sm:$0xff]
    %v730 = vld [vmem:[#allocation5 + $0x820] sm:$0xff]
    %v731 = vld [vmem:[#allocation5 + $0x828] sm:$0xff]
    %v732 = vld [vmem:[#allocation5 + $0x830] sm:$0xff]
    %v733 = vld [vmem:[#allocation5 + $0x838] sm:$0xff]
    %v734 = vld [vmem:[#allocation5 + $0x840] sm:$0xff]
    %v735 = vld [vmem:[#allocation5 + $0x848] sm:$0xff]
    %v736 = vld [vmem:[#allocation5 + $0x850] sm:$0xff]
    %v737 = vld [vmem:[#allocation5 + $0x858] sm:$0xff]
    %v738 = vld [vmem:[#allocation5 + $0x860] sm:$0xff]
    %v739 = vld [vmem:[#allocation5 + $0x868] sm:$0xff]
    %v740 = vld [vmem:[#allocation5 + $0x870] sm:$0xff]
    %v741 = vld [vmem:[#allocation5 + $0x878] sm:$0xff]
    %v742 = vld [vmem:[#allocation5 + $0x880] sm:$0xff]
    %v743 = vld [vmem:[#allocation5 + $0x888] sm:$0xff]
    %v744 = vld [vmem:[#allocation5 + $0x890] sm:$0xff]
    %v745 = vld [vmem:[#allocation5 + $0x898] sm:$0xff]
    %v746 = vld [vmem:[#allocation5 + $0x8a0] sm:$0xff]
    %v747 = vld [vmem:[#allocation5 + $0x8a8] sm:$0xff]
    %v748 = vld [vmem:[#allocation5 + $0x8b0] sm:$0xff]
    %v749 = vld [vmem:[#allocation5 + $0x8b8] sm:$0xff]
    %v750 = vld [vmem:[#allocation5 + $0x8c0] sm:$0xff]
    %v751 = vld [vmem:[#allocation5 + $0x8c8] sm:$0xff]
    %v752 = vld [vmem:[#allocation5 + $0x8d0] sm:$0xff]
    %v753 = vld [vmem:[#allocation5 + $0x8d8] sm:$0xff]
    %v754 = vld [vmem:[#allocation5 + $0x8e0] sm:$0xff]
    %v755 = vld [vmem:[#allocation5 + $0x8e8] sm:$0xff]
    %v756 = vld [vmem:[#allocation5 + $0x8f0] sm:$0xff]
    %v757 = vld [vmem:[#allocation5 + $0x8f8] sm:$0xff]
    %v758 = vld [vmem:[#allocation5 + $0x900] sm:$0xff]
    %v759 = vld [vmem:[#allocation5 + $0x908] sm:$0xff]
    %v760 = vld [vmem:[#allocation5 + $0x910] sm:$0xff]
    %v761 = vld [vmem:[#allocation5 + $0x918] sm:$0xff]
    %v762 = vld [vmem:[#allocation5 + $0x920] sm:$0xff]
    %v763 = vld [vmem:[#allocation5 + $0x928] sm:$0xff]
    %v764 = vld [vmem:[#allocation5 + $0x930] sm:$0xff]
    %v765 = vld [vmem:[#allocation5 + $0x938] sm:$0xff]
    %v766 = vld [vmem:[#allocation5 + $0x940] sm:$0xff]
    %v767 = vld [vmem:[#allocation5 + $0x948] sm:$0xff]
    %v768 = vld [vmem:[#allocation5 + $0x950] sm:$0xff]
    %v769 = vld [vmem:[#allocation5 + $0x958] sm:$0xff]
    %v770 = vld [vmem:[#allocation5 + $0x960] sm:$0xff]
    %v771 = vld [vmem:[#allocation5 + $0x968] sm:$0xff]
    %v772 = vld [vmem:[#allocation5 + $0x970] sm:$0xff]
    %v773 = vld [vmem:[#allocation5 + $0x978] sm:$0xff]
    %v774 = vld [vmem:[#allocation5 + $0x980] sm:$0xff]
    %v775 = vld [vmem:[#allocation5 + $0x988] sm:$0xff]
    %v776 = vld [vmem:[#allocation5 + $0x990] sm:$0xff]
    %v777 = vld [vmem:[#allocation5 + $0x998] sm:$0xff]
    %v778 = vld [vmem:[#allocation5 + $0x9a0] sm:$0xff]
    %v779 = vld [vmem:[#allocation5 + $0x9a8] sm:$0xff]
    %v780 = vld [vmem:[#allocation5 + $0x9b0] sm:$0xff]
    %v781 = vld [vmem:[#allocation5 + $0x9b8] sm:$0xff]
    %v782 = vld [vmem:[#allocation5 + $0x9c0] sm:$0xff]
    %v783 = vld [vmem:[#allocation5 + $0x9c8] sm:$0xff]
    %v784 = vld [vmem:[#allocation5 + $0x9d0] sm:$0xff]
    %v785 = vld [vmem:[#allocation5 + $0x9d8] sm:$0xff]
    %v786 = vld [vmem:[#allocation5 + $0x9e0] sm:$0xff]
    %v787 = vld [vmem:[#allocation5 + $0x9e8] sm:$0xff]
    %v788 = vld [vmem:[#allocation5 + $0x9f0] sm:$0xff]
    %v789 = vld [vmem:[#allocation5 + $0x9f8] sm:$0xff]
    %v790 = vld [vmem:[#allocation5 + $0xa00] sm:$0xff]
    %v791 = vld [vmem:[#allocation5 + $0xa08] sm:$0xff]
    %v792 = vld [vmem:[#allocation5 + $0xa10] sm:$0xff]
    %v793 = vld [vmem:[#allocation5 + $0xa18] sm:$0xff]
    %v794 = vld [vmem:[#allocation5 + $0xa20] sm:$0xff]
    %v795 = vld [vmem:[#allocation5 + $0xa28] sm:$0xff]
    %v796 = vld [vmem:[#allocation5 + $0xa30] sm:$0xff]
    %v797 = vld [vmem:[#allocation5 + $0xa38] sm:$0xff]
    %v798 = vld [vmem:[#allocation5 + $0xa40] sm:$0xff]
    %v799 = vld [vmem:[#allocation5 + $0xa48] sm:$0xff]
    %v800 = vld [vmem:[#allocation5 + $0xa50] sm:$0xff]
    %v801 = vld [vmem:[#allocation5 + $0xa58] sm:$0xff]
    %v802 = vld [vmem:[#allocation5 + $0xa60] sm:$0xff]
    %v803 = vld [vmem:[#allocation5 + $0xa68] sm:$0xff]
    %v804 = vld [vmem:[#allocation5 + $0xa70] sm:$0xff]
    %v805 = vld [vmem:[#allocation5 + $0xa78] sm:$0xff]
    %v806 = vld [vmem:[#allocation5 + $0xa80] sm:$0xff]
    %v807 = vld [vmem:[#allocation5 + $0xa88] sm:$0xff]
    %v808 = vld [vmem:[#allocation5 + $0xa90] sm:$0xff]
    %v809 = vld [vmem:[#allocation5 + $0xa98] sm:$0xff]
    %v810 = vld [vmem:[#allocation5 + $0xaa0] sm:$0xff]
    %v811 = vld [vmem:[#allocation5 + $0xaa8] sm:$0xff]
    %v812 = vld [vmem:[#allocation5 + $0xab0] sm:$0xff]
    %v813 = vld [vmem:[#allocation5 + $0xab8] sm:$0xff]
    %v814 = vld [vmem:[#allocation5 + $0xac0] sm:$0xff]
    %v815 = vld [vmem:[#allocation5 + $0xac8] sm:$0xff]
    %v816 = vld [vmem:[#allocation5 + $0xad0] sm:$0xff]
    %v817 = vld [vmem:[#allocation5 + $0xad8] sm:$0xff]
    %v818 = vld [vmem:[#allocation5 + $0xae0] sm:$0xff]
    %v819 = vld [vmem:[#allocation5 + $0xae8] sm:$0xff]
    %v820 = vld [vmem:[#allocation5 + $0xaf0] sm:$0xff]
    %v821 = vld [vmem:[#allocation5 + $0xaf8] sm:$0xff]
    %v822 = vld [vmem:[#allocation5 + $0xb00] sm:$0xff]
    %v823 = vld [vmem:[#allocation5 + $0xb08] sm:$0xff]
    %v824 = vld [vmem:[#allocation5 + $0xb10] sm:$0xff]
    %v825 = vld [vmem:[#allocation5 + $0xb18] sm:$0xff]
    %v826 = vld [vmem:[#allocation5 + $0xb20] sm:$0xff]
    %v827 = vld [vmem:[#allocation5 + $0xb28] sm:$0xff]
    %v828 = vld [vmem:[#allocation5 + $0xb30] sm:$0xff]
    %v829 = vld [vmem:[#allocation5 + $0xb38] sm:$0xff]
    %v830 = vld [vmem:[#allocation5 + $0xb40] sm:$0xff]
    %v831 = vld [vmem:[#allocation5 + $0xb48] sm:$0xff]
    %v832 = vld [vmem:[#allocation5 + $0xb50] sm:$0xff]
    %v833 = vld [vmem:[#allocation5 + $0xb58] sm:$0xff]
    %v834 = vld [vmem:[#allocation5 + $0xb60] sm:$0xff]
    %v835 = vld [vmem:[#allocation5 + $0xb68] sm:$0xff]
    %v836 = vld [vmem:[#allocation5 + $0xb70] sm:$0xff]
    %v837 = vld [vmem:[#allocation5 + $0xb78] sm:$0xff]
    %v838 = vld [vmem:[#allocation5 + $0xb80] sm:$0xff]
    %v839 = vld [vmem:[#allocation5 + $0xb88] sm:$0xff]
    %v840 = vld [vmem:[#allocation5 + $0xb90] sm:$0xff]
    %v841 = vld [vmem:[#allocation5 + $0xb98] sm:$0xff]
    %v842 = vld [vmem:[#allocation5 + $0xba0] sm:$0xff]
    %v843 = vld [vmem:[#allocation5 + $0xba8] sm:$0xff]
    %v844 = vld [vmem:[#allocation5 + $0xbb0] sm:$0xff]
    %v845 = vld [vmem:[#allocation5 + $0xbb8] sm:$0xff]
    %v846 = vld [vmem:[#allocation5 + $0xbc0] sm:$0xff]
    %v847 = vld [vmem:[#allocation5 + $0xbc8] sm:$0xff]
    %v848 = vld [vmem:[#allocation5 + $0xbd0] sm:$0xff]
    %v849 = vld [vmem:[#allocation5 + $0xbd8] sm:$0xff]
    %v850 = vld [vmem:[#allocation5 + $0xbe0] sm:$0xff]
    %v851 = vld [vmem:[#allocation5 + $0xbe8] sm:$0xff]
    %v852 = vld [vmem:[#allocation5 + $0xbf0] sm:$0xff]
    %v853 = vld [vmem:[#allocation5 + $0xbf8] sm:$0xff]
    %v854 = vld [vmem:[#allocation7] sm:$0x3]
    %v856 = vlaneseq
    %v857 = vshrl.u32 %v856, 7
    %v858 = vsub.s32 0, %v857
    %v859 = vrot.slane %v854, %v858
    %v860 = vlaneseq
    %v861 = vshrl.u32 %v860, 7
    %v862 = vsub.s32 1, %v861
    %v863 = vrot.slane %v854, %v862
    %v1250 = vunpack.c.l.b16 %v86
    %v1251 = vunpack.c.h.b16 %v86
    %v1252 = vunpack.c.l.b16 %v87
    %v1253 = vunpack.c.h.b16 %v87
    %v1254 = vunpack.c.l.b16 %v88
    %v1255 = vunpack.c.h.b16 %v88
    %v1256 = vunpack.c.l.b16 %v89
    %v1257 = vunpack.c.h.b16 %v89
    %v1258 = vunpack.c.l.b16 %v90
    %v1259 = vunpack.c.h.b16 %v90
    %v1260 = vunpack.c.l.b16 %v91
    %v1261 = vunpack.c.h.b16 %v91
    %v1262 = vunpack.c.l.b16 %v92
    %v1263 = vunpack.c.h.b16 %v92
    %v1264 = vunpack.c.l.b16 %v93
    %v1265 = vunpack.c.h.b16 %v93
    %v1266 = vunpack.c.l.b16 %v94
    %v1267 = vunpack.c.h.b16 %v94
    %v1268 = vunpack.c.l.b16 %v95
    %v1269 = vunpack.c.h.b16 %v95
    %v1270 = vunpack.c.l.b16 %v96
    %v1271 = vunpack.c.h.b16 %v96
    %v1272 = vunpack.c.l.b16 %v97
    %v1273 = vunpack.c.h.b16 %v97
    %v1274 = vunpack.c.l.b16 %v98
    %v1275 = vunpack.c.h.b16 %v98
    %v1276 = vunpack.c.l.b16 %v99
    %v1277 = vunpack.c.h.b16 %v99
    %v1278 = vunpack.c.l.b16 %v100
    %v1279 = vunpack.c.h.b16 %v100
    %v1280 = vunpack.c.l.b16 %v101
    %v1281 = vunpack.c.h.b16 %v101
    %v1282 = vunpack.c.l.b16 %v102
    %v1283 = vunpack.c.h.b16 %v102
    %v1284 = vunpack.c.l.b16 %v103
    %v1285 = vunpack.c.h.b16 %v103
    %v1286 = vunpack.c.l.b16 %v104
    %v1287 = vunpack.c.h.b16 %v104
    %v1288 = vunpack.c.l.b16 %v105
    %v1289 = vunpack.c.h.b16 %v105
    %v1290 = vunpack.c.l.b16 %v106
    %v1291 = vunpack.c.h.b16 %v106
    %v1292 = vunpack.c.l.b16 %v107
    %v1293 = vunpack.c.h.b16 %v107
    %v1294 = vunpack.c.l.b16 %v108
    %v1295 = vunpack.c.h.b16 %v108
    %v1296 = vunpack.c.l.b16 %v109
    %v1297 = vunpack.c.h.b16 %v109
    %v1298 = vunpack.c.l.b16 %v110
    %v1299 = vunpack.c.h.b16 %v110
    %v1300 = vunpack.c.l.b16 %v111
    %v1301 = vunpack.c.h.b16 %v111
    %v1302 = vunpack.c.l.b16 %v112
    %v1303 = vunpack.c.h.b16 %v112
    %v1304 = vunpack.c.l.b16 %v113
    %v1305 = vunpack.c.h.b16 %v113
    %v1306 = vunpack.c.l.b16 %v114
    %v1307 = vunpack.c.h.b16 %v114
    %v1308 = vunpack.c.l.b16 %v115
    %v1309 = vunpack.c.h.b16 %v115
    %v1310 = vunpack.c.l.b16 %v116
    %v1311 = vunpack.c.h.b16 %v116
    %v1312 = vunpack.c.l.b16 %v117
    %v1313 = vunpack.c.h.b16 %v117
    %v1314 = vunpack.c.l.b16 %v118
    %v1315 = vunpack.c.h.b16 %v118
    %v1316 = vunpack.c.l.b16 %v119
    %v1317 = vunpack.c.h.b16 %v119
    %v1318 = vunpack.c.l.b16 %v120
    %v1319 = vunpack.c.h.b16 %v120
    %v1320 = vunpack.c.l.b16 %v121
    %v1321 = vunpack.c.h.b16 %v121
    %v1322 = vunpack.c.l.b16 %v122
    %v1323 = vunpack.c.h.b16 %v122
    %v1324 = vunpack.c.l.b16 %v123
    %v1325 = vunpack.c.h.b16 %v123
    %v1326 = vunpack.c.l.b16 %v124
    %v1327 = vunpack.c.h.b16 %v124
    %v1328 = vunpack.c.l.b16 %v125
    %v1329 = vunpack.c.h.b16 %v125
    %v1330 = vunpack.c.l.b16 %v126
    %v1331 = vunpack.c.h.b16 %v126
    %v1332 = vunpack.c.l.b16 %v127
    %v1333 = vunpack.c.h.b16 %v127
    %v1334 = vunpack.c.l.b16 %v128
    %v1335 = vunpack.c.h.b16 %v128
    %v1336 = vunpack.c.l.b16 %v129
    %v1337 = vunpack.c.h.b16 %v129
    %v1338 = vunpack.c.l.b16 %v130
    %v1339 = vunpack.c.h.b16 %v130
    %v1340 = vunpack.c.l.b16 %v131
    %v1341 = vunpack.c.h.b16 %v131
    %v1342 = vunpack.c.l.b16 %v132
    %v1343 = vunpack.c.h.b16 %v132
    %v1344 = vunpack.c.l.b16 %v133
    %v1345 = vunpack.c.h.b16 %v133
    %v1346 = vunpack.c.l.b16 %v134
    %v1347 = vunpack.c.h.b16 %v134
    %v1348 = vunpack.c.l.b16 %v135
    %v1349 = vunpack.c.h.b16 %v135
    %v1350 = vunpack.c.l.b16 %v136
    %v1351 = vunpack.c.h.b16 %v136
    %v1352 = vunpack.c.l.b16 %v137
    %v1353 = vunpack.c.h.b16 %v137
    %v1354 = vunpack.c.l.b16 %v138
    %v1355 = vunpack.c.h.b16 %v138
    %v1356 = vunpack.c.l.b16 %v139
    %v1357 = vunpack.c.h.b16 %v139
    %v1358 = vunpack.c.l.b16 %v140
    %v1359 = vunpack.c.h.b16 %v140
    %v1360 = vunpack.c.l.b16 %v141
    %v1361 = vunpack.c.h.b16 %v141
    %v1362 = vunpack.c.l.b16 %v142
    %v1363 = vunpack.c.h.b16 %v142
    %v1364 = vunpack.c.l.b16 %v143
    %v1365 = vunpack.c.h.b16 %v143
    %v1366 = vunpack.c.l.b16 %v144
    %v1367 = vunpack.c.h.b16 %v144
    %v1368 = vunpack.c.l.b16 %v145
    %v1369 = vunpack.c.h.b16 %v145
    %v1370 = vunpack.c.l.b16 %v146
    %v1371 = vunpack.c.h.b16 %v146
    %v1372 = vunpack.c.l.b16 %v147
    %v1373 = vunpack.c.h.b16 %v147
    %v1374 = vunpack.c.l.b16 %v148
    %v1375 = vunpack.c.h.b16 %v148
    %v1376 = vunpack.c.l.b16 %v149
    %v1377 = vunpack.c.h.b16 %v149
    %v1378 = vunpack.c.l.b16 %v150
    %v1379 = vunpack.c.h.b16 %v150
    %v1380 = vunpack.c.l.b16 %v151
    %v1381 = vunpack.c.h.b16 %v151
    %v1382 = vunpack.c.l.b16 %v152
    %v1383 = vunpack.c.h.b16 %v152
    %v1384 = vunpack.c.l.b16 %v153
    %v1385 = vunpack.c.h.b16 %v153
    %v1386 = vunpack.c.l.b16 %v154
    %v1387 = vunpack.c.h.b16 %v154
    %v1388 = vunpack.c.l.b16 %v155
    %v1389 = vunpack.c.h.b16 %v155
    %v1390 = vunpack.c.l.b16 %v156
    %v1391 = vunpack.c.h.b16 %v156
    %v1392 = vunpack.c.l.b16 %v157
    %v1393 = vunpack.c.h.b16 %v157
    %v1394 = vunpack.c.l.b16 %v158
    %v1395 = vunpack.c.h.b16 %v158
    %v1396 = vunpack.c.l.b16 %v159
    %v1397 = vunpack.c.h.b16 %v159
    %v1398 = vunpack.c.l.b16 %v160
    %v1399 = vunpack.c.h.b16 %v160
    %v1400 = vunpack.c.l.b16 %v161
    %v1401 = vunpack.c.h.b16 %v161
    %v1402 = vunpack.c.l.b16 %v162
    %v1403 = vunpack.c.h.b16 %v162
    %v1404 = vunpack.c.l.b16 %v163
    %v1405 = vunpack.c.h.b16 %v163
    %v1406 = vunpack.c.l.b16 %v164
    %v1407 = vunpack.c.h.b16 %v164
    %v1408 = vunpack.c.l.b16 %v165
    %v1409 = vunpack.c.h.b16 %v165
    %v1410 = vunpack.c.l.b16 %v166
    %v1411 = vunpack.c.h.b16 %v166
    %v1412 = vunpack.c.l.b16 %v167
    %v1413 = vunpack.c.h.b16 %v167
    %v1414 = vunpack.c.l.b16 %v168
    %v1415 = vunpack.c.h.b16 %v168
    %v1416 = vunpack.c.l.b16 %v169
    %v1417 = vunpack.c.h.b16 %v169
    %v1418 = vunpack.c.l.b16 %v170
    %v1419 = vunpack.c.h.b16 %v170
    %v1420 = vunpack.c.l.b16 %v171
    %v1421 = vunpack.c.h.b16 %v171
    %v1422 = vunpack.c.l.b16 %v172
    %v1423 = vunpack.c.h.b16 %v172
    %v1424 = vunpack.c.l.b16 %v173
    %v1425 = vunpack.c.h.b16 %v173
    %v1426 = vunpack.c.l.b16 %v174
    %v1427 = vunpack.c.h.b16 %v174
    %v1428 = vunpack.c.l.b16 %v175
    %v1429 = vunpack.c.h.b16 %v175
    %v1430 = vunpack.c.l.b16 %v176
    %v1431 = vunpack.c.h.b16 %v176
    %v1432 = vunpack.c.l.b16 %v177
    %v1433 = vunpack.c.h.b16 %v177
    %v1434 = vunpack.c.l.b16 %v178
    %v1435 = vunpack.c.h.b16 %v178
    %v1436 = vunpack.c.l.b16 %v179
    %v1437 = vunpack.c.h.b16 %v179
    %v1438 = vunpack.c.l.b16 %v180
    %v1439 = vunpack.c.h.b16 %v180
    %v1440 = vunpack.c.l.b16 %v181
    %v1441 = vunpack.c.h.b16 %v181
    %v1442 = vunpack.c.l.b16 %v182
    %v1443 = vunpack.c.h.b16 %v182
    %v1444 = vunpack.c.l.b16 %v183
    %v1445 = vunpack.c.h.b16 %v183
    %v1446 = vunpack.c.l.b16 %v184
    %v1447 = vunpack.c.h.b16 %v184
    %v1448 = vunpack.c.l.b16 %v185
    %v1449 = vunpack.c.h.b16 %v185
    %v1450 = vunpack.c.l.b16 %v186
    %v1451 = vunpack.c.h.b16 %v186
    %v1452 = vunpack.c.l.b16 %v187
    %v1453 = vunpack.c.h.b16 %v187
    %v1454 = vunpack.c.l.b16 %v188
    %v1455 = vunpack.c.h.b16 %v188
    %v1456 = vunpack.c.l.b16 %v189
    %v1457 = vunpack.c.h.b16 %v189
    %v1458 = vunpack.c.l.b16 %v190
    %v1459 = vunpack.c.h.b16 %v190
    %v1460 = vunpack.c.l.b16 %v191
    %v1461 = vunpack.c.h.b16 %v191
    %v1462 = vunpack.c.l.b16 %v192
    %v1463 = vunpack.c.h.b16 %v192
    %v1464 = vunpack.c.l.b16 %v193
    %v1465 = vunpack.c.h.b16 %v193
    %v1466 = vunpack.c.l.b16 %v194
    %v1467 = vunpack.c.h.b16 %v194
    %v1468 = vunpack.c.l.b16 %v195
    %v1469 = vunpack.c.h.b16 %v195
    %v1470 = vunpack.c.l.b16 %v196
    %v1471 = vunpack.c.h.b16 %v196
    %v1472 = vunpack.c.l.b16 %v197
    %v1473 = vunpack.c.h.b16 %v197
    %v1474 = vunpack.c.l.b16 %v198
    %v1475 = vunpack.c.h.b16 %v198
    %v1476 = vunpack.c.l.b16 %v199
    %v1477 = vunpack.c.h.b16 %v199
    %v1478 = vunpack.c.l.b16 %v200
    %v1479 = vunpack.c.h.b16 %v200
    %v1480 = vunpack.c.l.b16 %v201
    %v1481 = vunpack.c.h.b16 %v201
    %v1482 = vunpack.c.l.b16 %v202
    %v1483 = vunpack.c.h.b16 %v202
    %v1484 = vunpack.c.l.b16 %v203
    %v1485 = vunpack.c.h.b16 %v203
    %v1486 = vunpack.c.l.b16 %v204
    %v1487 = vunpack.c.h.b16 %v204
    %v1488 = vunpack.c.l.b16 %v205
    %v1489 = vunpack.c.h.b16 %v205
    %v1490 = vunpack.c.l.b16 %v206
    %v1491 = vunpack.c.h.b16 %v206
    %v1492 = vunpack.c.l.b16 %v207
    %v1493 = vunpack.c.h.b16 %v207
    %v1494 = vunpack.c.l.b16 %v208
    %v1495 = vunpack.c.h.b16 %v208
    %v1496 = vunpack.c.l.b16 %v209
    %v1497 = vunpack.c.h.b16 %v209
    %v1498 = vunpack.c.l.b16 %v210
    %v1499 = vunpack.c.h.b16 %v210
    %v1500 = vunpack.c.l.b16 %v211
    %v1501 = vunpack.c.h.b16 %v211
    %v1502 = vunpack.c.l.b16 %v212
    %v1503 = vunpack.c.h.b16 %v212
    %v1504 = vunpack.c.l.b16 %v213
    %v1505 = vunpack.c.h.b16 %v213
    %v1506 = vunpack.c.l.b16 %v214
    %v1507 = vunpack.c.h.b16 %v214
    %v1508 = vunpack.c.l.b16 %v215
    %v1509 = vunpack.c.h.b16 %v215
    %v1510 = vunpack.c.l.b16 %v216
    %v1511 = vunpack.c.h.b16 %v216
    %v1512 = vunpack.c.l.b16 %v217
    %v1513 = vunpack.c.h.b16 %v217
    %v1514 = vunpack.c.l.b16 %v218
    %v1515 = vunpack.c.h.b16 %v218
    %v1516 = vunpack.c.l.b16 %v219
    %v1517 = vunpack.c.h.b16 %v219
    %v1518 = vunpack.c.l.b16 %v220
    %v1519 = vunpack.c.h.b16 %v220
    %v1520 = vunpack.c.l.b16 %v221
    %v1521 = vunpack.c.h.b16 %v221
    %v1522 = vunpack.c.l.b16 %v222
    %v1523 = vunpack.c.h.b16 %v222
    %v1524 = vunpack.c.l.b16 %v223
    %v1525 = vunpack.c.h.b16 %v223
    %v1526 = vunpack.c.l.b16 %v224
    %v1527 = vunpack.c.h.b16 %v224
    %v1528 = vunpack.c.l.b16 %v225
    %v1529 = vunpack.c.h.b16 %v225
    %v1530 = vunpack.c.l.b16 %v226
    %v1531 = vunpack.c.h.b16 %v226
    %v1532 = vunpack.c.l.b16 %v227
    %v1533 = vunpack.c.h.b16 %v227
    %v1534 = vunpack.c.l.b16 %v228
    %v1535 = vunpack.c.h.b16 %v228
    %v1536 = vunpack.c.l.b16 %v229
    %v1537 = vunpack.c.h.b16 %v229
    %v1538 = vunpack.c.l.b16 %v230
    %v1539 = vunpack.c.h.b16 %v230
    %v1540 = vunpack.c.l.b16 %v231
    %v1541 = vunpack.c.h.b16 %v231
    %v1542 = vunpack.c.l.b16 %v232
    %v1543 = vunpack.c.h.b16 %v232
    %v1544 = vunpack.c.l.b16 %v233
    %v1545 = vunpack.c.h.b16 %v233
    %v1546 = vunpack.c.l.b16 %v234
    %v1547 = vunpack.c.h.b16 %v234
    %v1548 = vunpack.c.l.b16 %v235
    %v1549 = vunpack.c.h.b16 %v235
    %v1550 = vunpack.c.l.b16 %v236
    %v1551 = vunpack.c.h.b16 %v236
    %v1552 = vunpack.c.l.b16 %v237
    %v1553 = vunpack.c.h.b16 %v237
    %v1554 = vunpack.c.l.b16 %v238
    %v1555 = vunpack.c.h.b16 %v238
    %v1556 = vunpack.c.l.b16 %v239
    %v1557 = vunpack.c.h.b16 %v239
    %v1558 = vunpack.c.l.b16 %v240
    %v1559 = vunpack.c.h.b16 %v240
    %v1560 = vunpack.c.l.b16 %v241
    %v1561 = vunpack.c.h.b16 %v241
    %v1562 = vunpack.c.l.b16 %v242
    %v1563 = vunpack.c.h.b16 %v242
    %v1564 = vunpack.c.l.b16 %v243
    %v1565 = vunpack.c.h.b16 %v243
    %v1566 = vunpack.c.l.b16 %v244
    %v1567 = vunpack.c.h.b16 %v244
    %v1568 = vunpack.c.l.b16 %v245
    %v1569 = vunpack.c.h.b16 %v245
    %v1570 = vunpack.c.l.b16 %v246
    %v1571 = vunpack.c.h.b16 %v246
    %v1572 = vunpack.c.l.b16 %v247
    %v1573 = vunpack.c.h.b16 %v247
    %v1574 = vunpack.c.l.b16 %v248
    %v1575 = vunpack.c.h.b16 %v248
    %v1576 = vunpack.c.l.b16 %v249
    %v1577 = vunpack.c.h.b16 %v249
    %v1578 = vunpack.c.l.b16 %v250
    %v1579 = vunpack.c.h.b16 %v250
    %v1580 = vunpack.c.l.b16 %v251
    %v1581 = vunpack.c.h.b16 %v251
    %v1582 = vunpack.c.l.b16 %v252
    %v1583 = vunpack.c.h.b16 %v252
    %v1584 = vunpack.c.l.b16 %v253
    %v1585 = vunpack.c.h.b16 %v253
    %v1586 = vunpack.c.l.b16 %v254
    %v1587 = vunpack.c.h.b16 %v254
    %v1588 = vunpack.c.l.b16 %v255
    %v1589 = vunpack.c.h.b16 %v255
    %v1590 = vunpack.c.l.b16 %v256
    %v1591 = vunpack.c.h.b16 %v256
    %v1592 = vunpack.c.l.b16 %v257
    %v1593 = vunpack.c.h.b16 %v257
    %v1594 = vunpack.c.l.b16 %v258
    %v1595 = vunpack.c.h.b16 %v258
    %v1596 = vunpack.c.l.b16 %v259
    %v1597 = vunpack.c.h.b16 %v259
    %v1598 = vunpack.c.l.b16 %v260
    %v1599 = vunpack.c.h.b16 %v260
    %v1600 = vunpack.c.l.b16 %v261
    %v1601 = vunpack.c.h.b16 %v261
    %v1602 = vunpack.c.l.b16 %v262
    %v1603 = vunpack.c.h.b16 %v262
    %v1604 = vunpack.c.l.b16 %v263
    %v1605 = vunpack.c.h.b16 %v263
    %v1606 = vunpack.c.l.b16 %v264
    %v1607 = vunpack.c.h.b16 %v264
    %v1608 = vunpack.c.l.b16 %v265
    %v1609 = vunpack.c.h.b16 %v265
    %v1610 = vunpack.c.l.b16 %v266
    %v1611 = vunpack.c.h.b16 %v266
    %v1612 = vunpack.c.l.b16 %v267
    %v1613 = vunpack.c.h.b16 %v267
    %v1614 = vunpack.c.l.b16 %v268
    %v1615 = vunpack.c.h.b16 %v268
    %v1616 = vunpack.c.l.b16 %v269
    %v1617 = vunpack.c.h.b16 %v269
    %v1618 = vunpack.c.l.b16 %v270
    %v1619 = vunpack.c.h.b16 %v270
    %v1620 = vunpack.c.l.b16 %v271
    %v1621 = vunpack.c.h.b16 %v271
    %v1622 = vunpack.c.l.b16 %v272
    %v1623 = vunpack.c.h.b16 %v272
    %v1624 = vunpack.c.l.b16 %v273
    %v1625 = vunpack.c.h.b16 %v273
    %v1626 = vunpack.c.l.b16 %v274
    %v1627 = vunpack.c.h.b16 %v274
    %v1628 = vunpack.c.l.b16 %v275
    %v1629 = vunpack.c.h.b16 %v275
    %v1630 = vunpack.c.l.b16 %v276
    %v1631 = vunpack.c.h.b16 %v276
    %v1632 = vunpack.c.l.b16 %v277
    %v1633 = vunpack.c.h.b16 %v277
    %v1634 = vunpack.c.l.b16 %v278
    %v1635 = vunpack.c.h.b16 %v278
    %v1636 = vunpack.c.l.b16 %v279
    %v1637 = vunpack.c.h.b16 %v279
    %v1638 = vunpack.c.l.b16 %v280
    %v1639 = vunpack.c.h.b16 %v280
    %v1640 = vunpack.c.l.b16 %v281
    %v1641 = vunpack.c.h.b16 %v281
    %v1642 = vunpack.c.l.b16 %v282
    %v1643 = vunpack.c.h.b16 %v282
    %v1644 = vunpack.c.l.b16 %v283
    %v1645 = vunpack.c.h.b16 %v283
    %v1646 = vunpack.c.l.b16 %v284
    %v1647 = vunpack.c.h.b16 %v284
    %v1648 = vunpack.c.l.b16 %v285
    %v1649 = vunpack.c.h.b16 %v285
    %v1650 = vunpack.c.l.b16 %v286
    %v1651 = vunpack.c.h.b16 %v286
    %v1652 = vunpack.c.l.b16 %v287
    %v1653 = vunpack.c.h.b16 %v287
    %v1654 = vunpack.c.l.b16 %v288
    %v1655 = vunpack.c.h.b16 %v288
    %v1656 = vunpack.c.l.b16 %v289
    %v1657 = vunpack.c.h.b16 %v289
    %v1658 = vunpack.c.l.b16 %v290
    %v1659 = vunpack.c.h.b16 %v290
    %v1660 = vunpack.c.l.b16 %v291
    %v1661 = vunpack.c.h.b16 %v291
    %v1662 = vunpack.c.l.b16 %v292
    %v1663 = vunpack.c.h.b16 %v292
    %v1664 = vunpack.c.l.b16 %v293
    %v1665 = vunpack.c.h.b16 %v293
    %v1666 = vunpack.c.l.b16 %v294
    %v1667 = vunpack.c.h.b16 %v294
    %v1668 = vunpack.c.l.b16 %v295
    %v1669 = vunpack.c.h.b16 %v295
    %v1670 = vunpack.c.l.b16 %v296
    %v1671 = vunpack.c.h.b16 %v296
    %v1672 = vunpack.c.l.b16 %v297
    %v1673 = vunpack.c.h.b16 %v297
    %v1674 = vunpack.c.l.b16 %v298
    %v1675 = vunpack.c.h.b16 %v298
    %v1676 = vunpack.c.l.b16 %v299
    %v1677 = vunpack.c.h.b16 %v299
    %v1678 = vunpack.c.l.b16 %v300
    %v1679 = vunpack.c.h.b16 %v300
    %v1680 = vunpack.c.l.b16 %v301
    %v1681 = vunpack.c.h.b16 %v301
    %v1682 = vunpack.c.l.b16 %v302
    %v1683 = vunpack.c.h.b16 %v302
    %v1684 = vunpack.c.l.b16 %v303
    %v1685 = vunpack.c.h.b16 %v303
    %v1686 = vunpack.c.l.b16 %v304
    %v1687 = vunpack.c.h.b16 %v304
    %v1688 = vunpack.c.l.b16 %v305
    %v1689 = vunpack.c.h.b16 %v305
    %v1690 = vunpack.c.l.b16 %v306
    %v1691 = vunpack.c.h.b16 %v306
    %v1692 = vunpack.c.l.b16 %v307
    %v1693 = vunpack.c.h.b16 %v307
    %v1694 = vunpack.c.l.b16 %v308
    %v1695 = vunpack.c.h.b16 %v308
    %v1696 = vunpack.c.l.b16 %v309
    %v1697 = vunpack.c.h.b16 %v309
    %v1698 = vunpack.c.l.b16 %v310
    %v1699 = vunpack.c.h.b16 %v310
    %v1700 = vunpack.c.l.b16 %v311
    %v1701 = vunpack.c.h.b16 %v311
    %v1702 = vunpack.c.l.b16 %v312
    %v1703 = vunpack.c.h.b16 %v312
    %v1704 = vunpack.c.l.b16 %v313
    %v1705 = vunpack.c.h.b16 %v313
    %v1706 = vunpack.c.l.b16 %v314
    %v1707 = vunpack.c.h.b16 %v314
    %v1708 = vunpack.c.l.b16 %v315
    %v1709 = vunpack.c.h.b16 %v315
    %v1710 = vunpack.c.l.b16 %v316
    %v1711 = vunpack.c.h.b16 %v316
    %v1712 = vunpack.c.l.b16 %v317
    %v1713 = vunpack.c.h.b16 %v317
    %v1714 = vunpack.c.l.b16 %v318
    %v1715 = vunpack.c.h.b16 %v318
    %v1716 = vunpack.c.l.b16 %v319
    %v1717 = vunpack.c.h.b16 %v319
    %v1718 = vunpack.c.l.b16 %v320
    %v1719 = vunpack.c.h.b16 %v320
    %v1720 = vunpack.c.l.b16 %v321
    %v1721 = vunpack.c.h.b16 %v321
    %v1722 = vunpack.c.l.b16 %v322
    %v1723 = vunpack.c.h.b16 %v322
    %v1724 = vunpack.c.l.b16 %v323
    %v1725 = vunpack.c.h.b16 %v323
    %v1726 = vunpack.c.l.b16 %v324
    %v1727 = vunpack.c.h.b16 %v324
    %v1728 = vunpack.c.l.b16 %v325
    %v1729 = vunpack.c.h.b16 %v325
    %v1730 = vunpack.c.l.b16 %v326
    %v1731 = vunpack.c.h.b16 %v326
    %v1732 = vunpack.c.l.b16 %v327
    %v1733 = vunpack.c.h.b16 %v327
    %v1734 = vunpack.c.l.b16 %v328
    %v1735 = vunpack.c.h.b16 %v328
    %v1736 = vunpack.c.l.b16 %v329
    %v1737 = vunpack.c.h.b16 %v329
    %v1738 = vunpack.c.l.b16 %v330
    %v1739 = vunpack.c.h.b16 %v330
    %v1740 = vunpack.c.l.b16 %v331
    %v1741 = vunpack.c.h.b16 %v331
    %v1742 = vunpack.c.l.b16 %v332
    %v1743 = vunpack.c.h.b16 %v332
    %v1744 = vunpack.c.l.b16 %v333
    %v1745 = vunpack.c.h.b16 %v333
    %v1746 = vunpack.c.l.b16 %v334
    %v1747 = vunpack.c.h.b16 %v334
    %v1748 = vunpack.c.l.b16 %v335
    %v1749 = vunpack.c.h.b16 %v335
    %v1750 = vunpack.c.l.b16 %v336
    %v1751 = vunpack.c.h.b16 %v336
    %v1752 = vunpack.c.l.b16 %v337
    %v1753 = vunpack.c.h.b16 %v337
    %v1754 = vunpack.c.l.b16 %v338
    %v1755 = vunpack.c.h.b16 %v338
    %v1756 = vunpack.c.l.b16 %v339
    %v1757 = vunpack.c.h.b16 %v339
    %v1758 = vunpack.c.l.b16 %v340
    %v1759 = vunpack.c.h.b16 %v340
    %v1760 = vunpack.c.l.b16 %v341
    %v1761 = vunpack.c.h.b16 %v341
    %v1762 = vunpack.c.l.b16 %v342
    %v1763 = vunpack.c.h.b16 %v342
    %v1764 = vunpack.c.l.b16 %v343
    %v1765 = vunpack.c.h.b16 %v343
    %v1766 = vunpack.c.l.b16 %v344
    %v1767 = vunpack.c.h.b16 %v344
    %v1768 = vunpack.c.l.b16 %v345
    %v1769 = vunpack.c.h.b16 %v345
    %v1770 = vunpack.c.l.b16 %v346
    %v1771 = vunpack.c.h.b16 %v346
    %v1772 = vunpack.c.l.b16 %v347
    %v1773 = vunpack.c.h.b16 %v347
    %v1774 = vunpack.c.l.b16 %v348
    %v1775 = vunpack.c.h.b16 %v348
    %v1776 = vunpack.c.l.b16 %v349
    %v1777 = vunpack.c.h.b16 %v349
    %v1778 = vunpack.c.l.b16 %v350
    %v1779 = vunpack.c.h.b16 %v350
    %v1780 = vunpack.c.l.b16 %v351
    %v1781 = vunpack.c.h.b16 %v351
    %v1782 = vunpack.c.l.b16 %v352
    %v1783 = vunpack.c.h.b16 %v352
    %v1784 = vunpack.c.l.b16 %v353
    %v1785 = vunpack.c.h.b16 %v353
    %v1786 = vunpack.c.l.b16 %v354
    %v1787 = vunpack.c.h.b16 %v354
    %v1788 = vunpack.c.l.b16 %v355
    %v1789 = vunpack.c.h.b16 %v355
    %v1790 = vunpack.c.l.b16 %v356
    %v1791 = vunpack.c.h.b16 %v356
    %v1792 = vunpack.c.l.b16 %v357
    %v1793 = vunpack.c.h.b16 %v357
    %v1794 = vunpack.c.l.b16 %v358
    %v1795 = vunpack.c.h.b16 %v358
    %v1796 = vunpack.c.l.b16 %v359
    %v1797 = vunpack.c.h.b16 %v359
    %v1798 = vunpack.c.l.b16 %v360
    %v1799 = vunpack.c.h.b16 %v360
    %v1800 = vunpack.c.l.b16 %v361
    %v1801 = vunpack.c.h.b16 %v361
    %v1802 = vunpack.c.l.b16 %v362
    %v1803 = vunpack.c.h.b16 %v362
    %v1804 = vunpack.c.l.b16 %v363
    %v1805 = vunpack.c.h.b16 %v363
    %v1806 = vunpack.c.l.b16 %v364
    %v1807 = vunpack.c.h.b16 %v364
    %v1808 = vunpack.c.l.b16 %v365
    %v1809 = vunpack.c.h.b16 %v365
    %v1810 = vunpack.c.l.b16 %v366
    %v1811 = vunpack.c.h.b16 %v366
    %v1812 = vunpack.c.l.b16 %v367
    %v1813 = vunpack.c.h.b16 %v367
    %v1814 = vunpack.c.l.b16 %v368
    %v1815 = vunpack.c.h.b16 %v368
    %v1816 = vunpack.c.l.b16 %v369
    %v1817 = vunpack.c.h.b16 %v369
    %v1818 = vunpack.c.l.b16 %v370
    %v1819 = vunpack.c.h.b16 %v370
    %v1820 = vunpack.c.l.b16 %v371
    %v1821 = vunpack.c.h.b16 %v371
    %v1822 = vunpack.c.l.b16 %v372
    %v1823 = vunpack.c.h.b16 %v372
    %v1824 = vunpack.c.l.b16 %v373
    %v1825 = vunpack.c.h.b16 %v373
    %v1826 = vunpack.c.l.b16 %v374
    %v1827 = vunpack.c.h.b16 %v374
    %v1828 = vunpack.c.l.b16 %v375
    %v1829 = vunpack.c.h.b16 %v375
    %v1830 = vunpack.c.l.b16 %v376
    %v1831 = vunpack.c.h.b16 %v376
    %v1832 = vunpack.c.l.b16 %v377
    %v1833 = vunpack.c.h.b16 %v377
    %v1834 = vunpack.c.l.b16 %v378
    %v1835 = vunpack.c.h.b16 %v378
    %v1836 = vunpack.c.l.b16 %v379
    %v1837 = vunpack.c.h.b16 %v379
    %v1838 = vunpack.c.l.b16 %v380
    %v1839 = vunpack.c.h.b16 %v380
    %v1840 = vunpack.c.l.b16 %v381
    %v1841 = vunpack.c.h.b16 %v381
    %v1842 = vunpack.c.l.b16 %v382
    %v1843 = vunpack.c.h.b16 %v382
    %v1844 = vunpack.c.l.b16 %v383
    %v1845 = vunpack.c.h.b16 %v383
    %v1846 = vunpack.c.l.b16 %v384
    %v1847 = vunpack.c.h.b16 %v384
    %v1848 = vunpack.c.l.b16 %v385
    %v1849 = vunpack.c.h.b16 %v385
    %v1850 = vunpack.c.l.b16 %v386
    %v1851 = vunpack.c.h.b16 %v386
    %v1852 = vunpack.c.l.b16 %v387
    %v1853 = vunpack.c.h.b16 %v387
    %v1854 = vunpack.c.l.b16 %v388
    %v1855 = vunpack.c.h.b16 %v388
    %v1856 = vunpack.c.l.b16 %v389
    %v1857 = vunpack.c.h.b16 %v389
    %v1858 = vunpack.c.l.b16 %v390
    %v1859 = vunpack.c.h.b16 %v390
    %v1860 = vunpack.c.l.b16 %v391
    %v1861 = vunpack.c.h.b16 %v391
    %v1862 = vunpack.c.l.b16 %v392
    %v1863 = vunpack.c.h.b16 %v392
    %v1864 = vunpack.c.l.b16 %v393
    %v1865 = vunpack.c.h.b16 %v393
    %v1866 = vunpack.c.l.b16 %v394
    %v1867 = vunpack.c.h.b16 %v394
    %v1868 = vunpack.c.l.b16 %v395
    %v1869 = vunpack.c.h.b16 %v395
    %v1870 = vunpack.c.l.b16 %v396
    %v1871 = vunpack.c.h.b16 %v396
    %v1872 = vunpack.c.l.b16 %v397
    %v1873 = vunpack.c.h.b16 %v397
    %v1874 = vunpack.c.l.b16 %v398
    %v1875 = vunpack.c.h.b16 %v398
    %v1876 = vunpack.c.l.b16 %v399
    %v1877 = vunpack.c.h.b16 %v399
    %v1878 = vunpack.c.l.b16 %v400
    %v1879 = vunpack.c.h.b16 %v400
    %v1880 = vunpack.c.l.b16 %v401
    %v1881 = vunpack.c.h.b16 %v401
    %v1882 = vunpack.c.l.b16 %v402
    %v1883 = vunpack.c.h.b16 %v402
    %v1884 = vunpack.c.l.b16 %v403
    %v1885 = vunpack.c.h.b16 %v403
    %v1886 = vunpack.c.l.b16 %v404
    %v1887 = vunpack.c.h.b16 %v404
    %v1888 = vunpack.c.l.b16 %v405
    %v1889 = vunpack.c.h.b16 %v405
    %v1890 = vunpack.c.l.b16 %v406
    %v1891 = vunpack.c.h.b16 %v406
    %v1892 = vunpack.c.l.b16 %v407
    %v1893 = vunpack.c.h.b16 %v407
    %v1894 = vunpack.c.l.b16 %v408
    %v1895 = vunpack.c.h.b16 %v408
    %v1896 = vunpack.c.l.b16 %v409
    %v1897 = vunpack.c.h.b16 %v409
    %v1898 = vunpack.c.l.b16 %v410
    %v1899 = vunpack.c.h.b16 %v410
    %v1900 = vunpack.c.l.b16 %v411
    %v1901 = vunpack.c.h.b16 %v411
    %v1902 = vunpack.c.l.b16 %v412
    %v1903 = vunpack.c.h.b16 %v412
    %v1904 = vunpack.c.l.b16 %v413
    %v1905 = vunpack.c.h.b16 %v413
    %v1906 = vunpack.c.l.b16 %v414
    %v1907 = vunpack.c.h.b16 %v414
    %v1908 = vunpack.c.l.b16 %v415
    %v1909 = vunpack.c.h.b16 %v415
    %v1910 = vunpack.c.l.b16 %v416
    %v1911 = vunpack.c.h.b16 %v416
    %v1912 = vunpack.c.l.b16 %v417
    %v1913 = vunpack.c.h.b16 %v417
    %v1914 = vunpack.c.l.b16 %v418
    %v1915 = vunpack.c.h.b16 %v418
    %v1916 = vunpack.c.l.b16 %v419
    %v1917 = vunpack.c.h.b16 %v419
    %v1918 = vunpack.c.l.b16 %v420
    %v1919 = vunpack.c.h.b16 %v420
    %v1920 = vunpack.c.l.b16 %v421
    %v1921 = vunpack.c.h.b16 %v421
    %v1922 = vunpack.c.l.b16 %v422
    %v1923 = vunpack.c.h.b16 %v422
    %v1924 = vunpack.c.l.b16 %v423
    %v1925 = vunpack.c.h.b16 %v423
    %v1926 = vunpack.c.l.b16 %v424
    %v1927 = vunpack.c.h.b16 %v424
    %v1928 = vunpack.c.l.b16 %v425
    %v1929 = vunpack.c.h.b16 %v425
    %v1930 = vunpack.c.l.b16 %v426
    %v1931 = vunpack.c.h.b16 %v426
    %v1932 = vunpack.c.l.b16 %v427
    %v1933 = vunpack.c.h.b16 %v427
    %v1934 = vunpack.c.l.b16 %v428
    %v1935 = vunpack.c.h.b16 %v428
    %v1936 = vunpack.c.l.b16 %v429
    %v1937 = vunpack.c.h.b16 %v429
    %v1938 = vunpack.c.l.b16 %v430
    %v1939 = vunpack.c.h.b16 %v430
    %v1940 = vunpack.c.l.b16 %v431
    %v1941 = vunpack.c.h.b16 %v431
    %v1942 = vunpack.c.l.b16 %v432
    %v1943 = vunpack.c.h.b16 %v432
    %v1944 = vunpack.c.l.b16 %v433
    %v1945 = vunpack.c.h.b16 %v433
    %v1946 = vunpack.c.l.b16 %v434
    %v1947 = vunpack.c.h.b16 %v434
    %v1948 = vunpack.c.l.b16 %v435
    %v1949 = vunpack.c.h.b16 %v435
    %v1950 = vunpack.c.l.b16 %v436
    %v1951 = vunpack.c.h.b16 %v436
    %v1952 = vunpack.c.l.b16 %v437
    %v1953 = vunpack.c.h.b16 %v437
    %v1954 = vunpack.c.l.b16 %v438
    %v1955 = vunpack.c.h.b16 %v438
    %v1956 = vunpack.c.l.b16 %v439
    %v1957 = vunpack.c.h.b16 %v439
    %v1958 = vunpack.c.l.b16 %v440
    %v1959 = vunpack.c.h.b16 %v440
    %v1960 = vunpack.c.l.b16 %v441
    %v1961 = vunpack.c.h.b16 %v441
    %v1962 = vunpack.c.l.b16 %v442
    %v1963 = vunpack.c.h.b16 %v442
    %v1964 = vunpack.c.l.b16 %v443
    %v1965 = vunpack.c.h.b16 %v443
    %v1966 = vunpack.c.l.b16 %v444
    %v1967 = vunpack.c.h.b16 %v444
    %v1968 = vunpack.c.l.b16 %v445
    %v1969 = vunpack.c.h.b16 %v445
    %v1970 = vunpack.c.l.b16 %v446
    %v1971 = vunpack.c.h.b16 %v446
    %v1972 = vunpack.c.l.b16 %v447
    %v1973 = vunpack.c.h.b16 %v447
    %v1974 = vunpack.c.l.b16 %v448
    %v1975 = vunpack.c.h.b16 %v448
    %v1976 = vunpack.c.l.b16 %v449
    %v1977 = vunpack.c.h.b16 %v449
    %v1978 = vunpack.c.l.b16 %v450
    %v1979 = vunpack.c.h.b16 %v450
    %v1980 = vunpack.c.l.b16 %v451
    %v1981 = vunpack.c.h.b16 %v451
    %v1982 = vunpack.c.l.b16 %v452
    %v1983 = vunpack.c.h.b16 %v452
    %v1984 = vunpack.c.l.b16 %v453
    %v1985 = vunpack.c.h.b16 %v453
    %v1986 = vunpack.c.l.b16 %v454
    %v1987 = vunpack.c.h.b16 %v454
    %v1988 = vunpack.c.l.b16 %v455
    %v1989 = vunpack.c.h.b16 %v455
    %v1990 = vunpack.c.l.b16 %v456
    %v1991 = vunpack.c.h.b16 %v456
    %v1992 = vunpack.c.l.b16 %v457
    %v1993 = vunpack.c.h.b16 %v457
    %v1994 = vunpack.c.l.b16 %v458
    %v1995 = vunpack.c.h.b16 %v458
    %v1996 = vunpack.c.l.b16 %v459
    %v1997 = vunpack.c.h.b16 %v459
    %v1998 = vunpack.c.l.b16 %v460
    %v1999 = vunpack.c.h.b16 %v460
    %v2000 = vunpack.c.l.b16 %v461
    %v2001 = vunpack.c.h.b16 %v461
    %v2002 = vunpack.c.l.b16 %v462
    %v2003 = vunpack.c.h.b16 %v462
    %v2004 = vunpack.c.l.b16 %v463
    %v2005 = vunpack.c.h.b16 %v463
    %v2006 = vunpack.c.l.b16 %v464
    %v2007 = vunpack.c.h.b16 %v464
    %v2008 = vunpack.c.l.b16 %v465
    %v2009 = vunpack.c.h.b16 %v465
    %v2010 = vunpack.c.l.b16 %v466
    %v2011 = vunpack.c.h.b16 %v466
    %v2012 = vunpack.c.l.b16 %v467
    %v2013 = vunpack.c.h.b16 %v467
    %v2014 = vunpack.c.l.b16 %v468
    %v2015 = vunpack.c.h.b16 %v468
    %v2016 = vunpack.c.l.b16 %v469
    %v2017 = vunpack.c.h.b16 %v469
    %v2018 = vpack.c.b16 %v1274, %v1250
    %v2019 = vpack.c.b16 %v1275, %v1251
    %v2020 = vpack.c.b16 %v1276, %v1252
    %v2021 = vpack.c.b16 %v1277, %v1253
    %v2022 = vpack.c.b16 %v1278, %v1254
    %v2023 = vpack.c.b16 %v1279, %v1255
    %v2024 = vpack.c.b16 %v1280, %v1256
    %v2025 = vpack.c.b16 %v1281, %v1257
    %v2026 = vpack.c.b16 %v1282, %v1258
    %v2027 = vpack.c.b16 %v1283, %v1259
    %v2028 = vpack.c.b16 %v1284, %v1260
    %v2029 = vpack.c.b16 %v1285, %v1261
    %v2030 = vpack.c.b16 %v1286, %v1262
    %v2031 = vpack.c.b16 %v1287, %v1263
    %v2032 = vpack.c.b16 %v1288, %v1264
    %v2033 = vpack.c.b16 %v1289, %v1265
    %v2034 = vpack.c.b16 %v1290, %v1266
    %v2035 = vpack.c.b16 %v1291, %v1267
    %v2036 = vpack.c.b16 %v1292, %v1268
    %v2037 = vpack.c.b16 %v1293, %v1269
    %v2038 = vpack.c.b16 %v1294, %v1270
    %v2039 = vpack.c.b16 %v1295, %v1271
    %v2040 = vpack.c.b16 %v1296, %v1272
    %v2041 = vpack.c.b16 %v1297, %v1273
    %v2042 = vpack.c.b16 %v1322, %v1298
    %v2043 = vpack.c.b16 %v1323, %v1299
    %v2044 = vpack.c.b16 %v1324, %v1300
    %v2045 = vpack.c.b16 %v1325, %v1301
    %v2046 = vpack.c.b16 %v1326, %v1302
    %v2047 = vpack.c.b16 %v1327, %v1303
    %v2048 = vpack.c.b16 %v1328, %v1304
    %v2049 = vpack.c.b16 %v1329, %v1305
    %v2050 = vpack.c.b16 %v1330, %v1306
    %v2051 = vpack.c.b16 %v1331, %v1307
    %v2052 = vpack.c.b16 %v1332, %v1308
    %v2053 = vpack.c.b16 %v1333, %v1309
    %v2054 = vpack.c.b16 %v1334, %v1310
    %v2055 = vpack.c.b16 %v1335, %v1311
    %v2056 = vpack.c.b16 %v1336, %v1312
    %v2057 = vpack.c.b16 %v1337, %v1313
    %v2058 = vpack.c.b16 %v1338, %v1314
    %v2059 = vpack.c.b16 %v1339, %v1315
    %v2060 = vpack.c.b16 %v1340, %v1316
    %v2061 = vpack.c.b16 %v1341, %v1317
    %v2062 = vpack.c.b16 %v1342, %v1318
    %v2063 = vpack.c.b16 %v1343, %v1319
    %v2064 = vpack.c.b16 %v1344, %v1320
    %v2065 = vpack.c.b16 %v1345, %v1321
    %v2066 = vpack.c.b16 %v1370, %v1346
    %v2067 = vpack.c.b16 %v1371, %v1347
    %v2068 = vpack.c.b16 %v1372, %v1348
    %v2069 = vpack.c.b16 %v1373, %v1349
    %v2070 = vpack.c.b16 %v1374, %v1350
    %v2071 = vpack.c.b16 %v1375, %v1351
    %v2072 = vpack.c.b16 %v1376, %v1352
    %v2073 = vpack.c.b16 %v1377, %v1353
    %v2074 = vpack.c.b16 %v1378, %v1354
    %v2075 = vpack.c.b16 %v1379, %v1355
    %v2076 = vpack.c.b16 %v1380, %v1356
    %v2077 = vpack.c.b16 %v1381, %v1357
    %v2078 = vpack.c.b16 %v1382, %v1358
    %v2079 = vpack.c.b16 %v1383, %v1359
    %v2080 = vpack.c.b16 %v1384, %v1360
    %v2081 = vpack.c.b16 %v1385, %v1361
    %v2082 = vpack.c.b16 %v1386, %v1362
    %v2083 = vpack.c.b16 %v1387, %v1363
    %v2084 = vpack.c.b16 %v1388, %v1364
    %v2085 = vpack.c.b16 %v1389, %v1365
    %v2086 = vpack.c.b16 %v1390, %v1366
    %v2087 = vpack.c.b16 %v1391, %v1367
    %v2088 = vpack.c.b16 %v1392, %v1368
    %v2089 = vpack.c.b16 %v1393, %v1369
    %v2090 = vpack.c.b16 %v1418, %v1394
    %v2091 = vpack.c.b16 %v1419, %v1395
    %v2092 = vpack.c.b16 %v1420, %v1396
    %v2093 = vpack.c.b16 %v1421, %v1397
    %v2094 = vpack.c.b16 %v1422, %v1398
    %v2095 = vpack.c.b16 %v1423, %v1399
    %v2096 = vpack.c.b16 %v1424, %v1400
    %v2097 = vpack.c.b16 %v1425, %v1401
    %v2098 = vpack.c.b16 %v1426, %v1402
    %v2099 = vpack.c.b16 %v1427, %v1403
    %v2100 = vpack.c.b16 %v1428, %v1404
    %v2101 = vpack.c.b16 %v1429, %v1405
    %v2102 = vpack.c.b16 %v1430, %v1406
    %v2103 = vpack.c.b16 %v1431, %v1407
    %v2104 = vpack.c.b16 %v1432, %v1408
    %v2105 = vpack.c.b16 %v1433, %v1409
    %v2106 = vpack.c.b16 %v1434, %v1410
    %v2107 = vpack.c.b16 %v1435, %v1411
    %v2108 = vpack.c.b16 %v1436, %v1412
    %v2109 = vpack.c.b16 %v1437, %v1413
    %v2110 = vpack.c.b16 %v1438, %v1414
    %v2111 = vpack.c.b16 %v1439, %v1415
    %v2112 = vpack.c.b16 %v1440, %v1416
    %v2113 = vpack.c.b16 %v1441, %v1417
    %v2114 = vpack.c.b16 %v1466, %v1442
    %v2115 = vpack.c.b16 %v1467, %v1443
    %v2116 = vpack.c.b16 %v1468, %v1444
    %v2117 = vpack.c.b16 %v1469, %v1445
    %v2118 = vpack.c.b16 %v1470, %v1446
    %v2119 = vpack.c.b16 %v1471, %v1447
    %v2120 = vpack.c.b16 %v1472, %v1448
    %v2121 = vpack.c.b16 %v1473, %v1449
    %v2122 = vpack.c.b16 %v1474, %v1450
    %v2123 = vpack.c.b16 %v1475, %v1451
    %v2124 = vpack.c.b16 %v1476, %v1452
    %v2125 = vpack.c.b16 %v1477, %v1453
    %v2126 = vpack.c.b16 %v1478, %v1454
    %v2127 = vpack.c.b16 %v1479, %v1455
    %v2128 = vpack.c.b16 %v1480, %v1456
    %v2129 = vpack.c.b16 %v1481, %v1457
    %v2130 = vpack.c.b16 %v1482, %v1458
    %v2131 = vpack.c.b16 %v1483, %v1459
    %v2132 = vpack.c.b16 %v1484, %v1460
    %v2133 = vpack.c.b16 %v1485, %v1461
    %v2134 = vpack.c.b16 %v1486, %v1462
    %v2135 = vpack.c.b16 %v1487, %v1463
    %v2136 = vpack.c.b16 %v1488, %v1464
    %v2137 = vpack.c.b16 %v1489, %v1465
    %v2138 = vpack.c.b16 %v1514, %v1490
    %v2139 = vpack.c.b16 %v1515, %v1491
    %v2140 = vpack.c.b16 %v1516, %v1492
    %v2141 = vpack.c.b16 %v1517, %v1493
    %v2142 = vpack.c.b16 %v1518, %v1494
    %v2143 = vpack.c.b16 %v1519, %v1495
    %v2144 = vpack.c.b16 %v1520, %v1496
    %v2145 = vpack.c.b16 %v1521, %v1497
    %v2146 = vpack.c.b16 %v1522, %v1498
    %v2147 = vpack.c.b16 %v1523, %v1499
    %v2148 = vpack.c.b16 %v1524, %v1500
    %v2149 = vpack.c.b16 %v1525, %v1501
    %v2150 = vpack.c.b16 %v1526, %v1502
    %v2151 = vpack.c.b16 %v1527, %v1503
    %v2152 = vpack.c.b16 %v1528, %v1504
    %v2153 = vpack.c.b16 %v1529, %v1505
    %v2154 = vpack.c.b16 %v1530, %v1506
    %v2155 = vpack.c.b16 %v1531, %v1507
    %v2156 = vpack.c.b16 %v1532, %v1508
    %v2157 = vpack.c.b16 %v1533, %v1509
    %v2158 = vpack.c.b16 %v1534, %v1510
    %v2159 = vpack.c.b16 %v1535, %v1511
    %v2160 = vpack.c.b16 %v1536, %v1512
    %v2161 = vpack.c.b16 %v1537, %v1513
    %v2162 = vpack.c.b16 %v1562, %v1538
    %v2163 = vpack.c.b16 %v1563, %v1539
    %v2164 = vpack.c.b16 %v1564, %v1540
    %v2165 = vpack.c.b16 %v1565, %v1541
    %v2166 = vpack.c.b16 %v1566, %v1542
    %v2167 = vpack.c.b16 %v1567, %v1543
    %v2168 = vpack.c.b16 %v1568, %v1544
    %v2169 = vpack.c.b16 %v1569, %v1545
    %v2170 = vpack.c.b16 %v1570, %v1546
    %v2171 = vpack.c.b16 %v1571, %v1547
    %v2172 = vpack.c.b16 %v1572, %v1548
    %v2173 = vpack.c.b16 %v1573, %v1549
    %v2174 = vpack.c.b16 %v1574, %v1550
    %v2175 = vpack.c.b16 %v1575, %v1551
    %v2176 = vpack.c.b16 %v1576, %v1552
    %v2177 = vpack.c.b16 %v1577, %v1553
    %v2178 = vpack.c.b16 %v1578, %v1554
    %v2179 = vpack.c.b16 %v1579, %v1555
    %v2180 = vpack.c.b16 %v1580, %v1556
    %v2181 = vpack.c.b16 %v1581, %v1557
    %v2182 = vpack.c.b16 %v1582, %v1558
    %v2183 = vpack.c.b16 %v1583, %v1559
    %v2184 = vpack.c.b16 %v1584, %v1560
    %v2185 = vpack.c.b16 %v1585, %v1561
    %v2186 = vpack.c.b16 %v1610, %v1586
    %v2187 = vpack.c.b16 %v1611, %v1587
    %v2188 = vpack.c.b16 %v1612, %v1588
    %v2189 = vpack.c.b16 %v1613, %v1589
    %v2190 = vpack.c.b16 %v1614, %v1590
    %v2191 = vpack.c.b16 %v1615, %v1591
    %v2192 = vpack.c.b16 %v1616, %v1592
    %v2193 = vpack.c.b16 %v1617, %v1593
    %v2194 = vpack.c.b16 %v1618, %v1594
    %v2195 = vpack.c.b16 %v1619, %v1595
    %v2196 = vpack.c.b16 %v1620, %v1596
    %v2197 = vpack.c.b16 %v1621, %v1597
    %v2198 = vpack.c.b16 %v1622, %v1598
    %v2199 = vpack.c.b16 %v1623, %v1599
    %v2200 = vpack.c.b16 %v1624, %v1600
    %v2201 = vpack.c.b16 %v1625, %v1601
    %v2202 = vpack.c.b16 %v1626, %v1602
    %v2203 = vpack.c.b16 %v1627, %v1603
    %v2204 = vpack.c.b16 %v1628, %v1604
    %v2205 = vpack.c.b16 %v1629, %v1605
    %v2206 = vpack.c.b16 %v1630, %v1606
    %v2207 = vpack.c.b16 %v1631, %v1607
    %v2208 = vpack.c.b16 %v1632, %v1608
    %v2209 = vpack.c.b16 %v1633, %v1609
    %v2210 = vpack.c.b16 %v1658, %v1634
    %v2211 = vpack.c.b16 %v1659, %v1635
    %v2212 = vpack.c.b16 %v1660, %v1636
    %v2213 = vpack.c.b16 %v1661, %v1637
    %v2214 = vpack.c.b16 %v1662, %v1638
    %v2215 = vpack.c.b16 %v1663, %v1639
    %v2216 = vpack.c.b16 %v1664, %v1640
    %v2217 = vpack.c.b16 %v1665, %v1641
    %v2218 = vpack.c.b16 %v1666, %v1642
    %v2219 = vpack.c.b16 %v1667, %v1643
    %v2220 = vpack.c.b16 %v1668, %v1644
    %v2221 = vpack.c.b16 %v1669, %v1645
    %v2222 = vpack.c.b16 %v1670, %v1646
    %v2223 = vpack.c.b16 %v1671, %v1647
    %v2224 = vpack.c.b16 %v1672, %v1648
    %v2225 = vpack.c.b16 %v1673, %v1649
    %v2226 = vpack.c.b16 %v1674, %v1650
    %v2227 = vpack.c.b16 %v1675, %v1651
    %v2228 = vpack.c.b16 %v1676, %v1652
    %v2229 = vpack.c.b16 %v1677, %v1653
    %v2230 = vpack.c.b16 %v1678, %v1654
    %v2231 = vpack.c.b16 %v1679, %v1655
    %v2232 = vpack.c.b16 %v1680, %v1656
    %v2233 = vpack.c.b16 %v1681, %v1657
    %v2234 = vpack.c.b16 %v1706, %v1682
    %v2235 = vpack.c.b16 %v1707, %v1683
    %v2236 = vpack.c.b16 %v1708, %v1684
    %v2237 = vpack.c.b16 %v1709, %v1685
    %v2238 = vpack.c.b16 %v1710, %v1686
    %v2239 = vpack.c.b16 %v1711, %v1687
    %v2240 = vpack.c.b16 %v1712, %v1688
    %v2241 = vpack.c.b16 %v1713, %v1689
    %v2242 = vpack.c.b16 %v1714, %v1690
    %v2243 = vpack.c.b16 %v1715, %v1691
    %v2244 = vpack.c.b16 %v1716, %v1692
    %v2245 = vpack.c.b16 %v1717, %v1693
    %v2246 = vpack.c.b16 %v1718, %v1694
    %v2247 = vpack.c.b16 %v1719, %v1695
    %v2248 = vpack.c.b16 %v1720, %v1696
    %v2249 = vpack.c.b16 %v1721, %v1697
    %v2250 = vpack.c.b16 %v1722, %v1698
    %v2251 = vpack.c.b16 %v1723, %v1699
    %v2252 = vpack.c.b16 %v1724, %v1700
    %v2253 = vpack.c.b16 %v1725, %v1701
    %v2254 = vpack.c.b16 %v1726, %v1702
    %v2255 = vpack.c.b16 %v1727, %v1703
    %v2256 = vpack.c.b16 %v1728, %v1704
    %v2257 = vpack.c.b16 %v1729, %v1705
    %v2258 = vpack.c.b16 %v1754, %v1730
    %v2259 = vpack.c.b16 %v1755, %v1731
    %v2260 = vpack.c.b16 %v1756, %v1732
    %v2261 = vpack.c.b16 %v1757, %v1733
    %v2262 = vpack.c.b16 %v1758, %v1734
    %v2263 = vpack.c.b16 %v1759, %v1735
    %v2264 = vpack.c.b16 %v1760, %v1736
    %v2265 = vpack.c.b16 %v1761, %v1737
    %v2266 = vpack.c.b16 %v1762, %v1738
    %v2267 = vpack.c.b16 %v1763, %v1739
    %v2268 = vpack.c.b16 %v1764, %v1740
    %v2269 = vpack.c.b16 %v1765, %v1741
    %v2270 = vpack.c.b16 %v1766, %v1742
    %v2271 = vpack.c.b16 %v1767, %v1743
    %v2272 = vpack.c.b16 %v1768, %v1744
    %v2273 = vpack.c.b16 %v1769, %v1745
    %v2274 = vpack.c.b16 %v1770, %v1746
    %v2275 = vpack.c.b16 %v1771, %v1747
    %v2276 = vpack.c.b16 %v1772, %v1748
    %v2277 = vpack.c.b16 %v1773, %v1749
    %v2278 = vpack.c.b16 %v1774, %v1750
    %v2279 = vpack.c.b16 %v1775, %v1751
    %v2280 = vpack.c.b16 %v1776, %v1752
    %v2281 = vpack.c.b16 %v1777, %v1753
    %v2282 = vpack.c.b16 %v1802, %v1778
    %v2283 = vpack.c.b16 %v1803, %v1779
    %v2284 = vpack.c.b16 %v1804, %v1780
    %v2285 = vpack.c.b16 %v1805, %v1781
    %v2286 = vpack.c.b16 %v1806, %v1782
    %v2287 = vpack.c.b16 %v1807, %v1783
    %v2288 = vpack.c.b16 %v1808, %v1784
    %v2289 = vpack.c.b16 %v1809, %v1785
    %v2290 = vpack.c.b16 %v1810, %v1786
    %v2291 = vpack.c.b16 %v1811, %v1787
    %v2292 = vpack.c.b16 %v1812, %v1788
    %v2293 = vpack.c.b16 %v1813, %v1789
    %v2294 = vpack.c.b16 %v1814, %v1790
    %v2295 = vpack.c.b16 %v1815, %v1791
    %v2296 = vpack.c.b16 %v1816, %v1792
    %v2297 = vpack.c.b16 %v1817, %v1793
    %v2298 = vpack.c.b16 %v1818, %v1794
    %v2299 = vpack.c.b16 %v1819, %v1795
    %v2300 = vpack.c.b16 %v1820, %v1796
    %v2301 = vpack.c.b16 %v1821, %v1797
    %v2302 = vpack.c.b16 %v1822, %v1798
    %v2303 = vpack.c.b16 %v1823, %v1799
    %v2304 = vpack.c.b16 %v1824, %v1800
    %v2305 = vpack.c.b16 %v1825, %v1801
    %v2306 = vpack.c.b16 %v1850, %v1826
    %v2307 = vpack.c.b16 %v1851, %v1827
    %v2308 = vpack.c.b16 %v1852, %v1828
    %v2309 = vpack.c.b16 %v1853, %v1829
    %v2310 = vpack.c.b16 %v1854, %v1830
    %v2311 = vpack.c.b16 %v1855, %v1831
    %v2312 = vpack.c.b16 %v1856, %v1832
    %v2313 = vpack.c.b16 %v1857, %v1833
    %v2314 = vpack.c.b16 %v1858, %v1834
    %v2315 = vpack.c.b16 %v1859, %v1835
    %v2316 = vpack.c.b16 %v1860, %v1836
    %v2317 = vpack.c.b16 %v1861, %v1837
    %v2318 = vpack.c.b16 %v1862, %v1838
    %v2319 = vpack.c.b16 %v1863, %v1839
    %v2320 = vpack.c.b16 %v1864, %v1840
    %v2321 = vpack.c.b16 %v1865, %v1841
    %v2322 = vpack.c.b16 %v1866, %v1842
    %v2323 = vpack.c.b16 %v1867, %v1843
    %v2324 = vpack.c.b16 %v1868, %v1844
    %v2325 = vpack.c.b16 %v1869, %v1845
    %v2326 = vpack.c.b16 %v1870, %v1846
    %v2327 = vpack.c.b16 %v1871, %v1847
    %v2328 = vpack.c.b16 %v1872, %v1848
    %v2329 = vpack.c.b16 %v1873, %v1849
    %v2330 = vpack.c.b16 %v1898, %v1874
    %v2331 = vpack.c.b16 %v1899, %v1875
    %v2332 = vpack.c.b16 %v1900, %v1876
    %v2333 = vpack.c.b16 %v1901, %v1877
    %v2334 = vpack.c.b16 %v1902, %v1878
    %v2335 = vpack.c.b16 %v1903, %v1879
    %v2336 = vpack.c.b16 %v1904, %v1880
    %v2337 = vpack.c.b16 %v1905, %v1881
    %v2338 = vpack.c.b16 %v1906, %v1882
    %v2339 = vpack.c.b16 %v1907, %v1883
    %v2340 = vpack.c.b16 %v1908, %v1884
    %v2341 = vpack.c.b16 %v1909, %v1885
    %v2342 = vpack.c.b16 %v1910, %v1886
    %v2343 = vpack.c.b16 %v1911, %v1887
    %v2344 = vpack.c.b16 %v1912, %v1888
    %v2345 = vpack.c.b16 %v1913, %v1889
    %v2346 = vpack.c.b16 %v1914, %v1890
    %v2347 = vpack.c.b16 %v1915, %v1891
    %v2348 = vpack.c.b16 %v1916, %v1892
    %v2349 = vpack.c.b16 %v1917, %v1893
    %v2350 = vpack.c.b16 %v1918, %v1894
    %v2351 = vpack.c.b16 %v1919, %v1895
    %v2352 = vpack.c.b16 %v1920, %v1896
    %v2353 = vpack.c.b16 %v1921, %v1897
    %v2354 = vpack.c.b16 %v1946, %v1922
    %v2355 = vpack.c.b16 %v1947, %v1923
    %v2356 = vpack.c.b16 %v1948, %v1924
    %v2357 = vpack.c.b16 %v1949, %v1925
    %v2358 = vpack.c.b16 %v1950, %v1926
    %v2359 = vpack.c.b16 %v1951, %v1927
    %v2360 = vpack.c.b16 %v1952, %v1928
    %v2361 = vpack.c.b16 %v1953, %v1929
    %v2362 = vpack.c.b16 %v1954, %v1930
    %v2363 = vpack.c.b16 %v1955, %v1931
    %v2364 = vpack.c.b16 %v1956, %v1932
    %v2365 = vpack.c.b16 %v1957, %v1933
    %v2366 = vpack.c.b16 %v1958, %v1934
    %v2367 = vpack.c.b16 %v1959, %v1935
    %v2368 = vpack.c.b16 %v1960, %v1936
    %v2369 = vpack.c.b16 %v1961, %v1937
    %v2370 = vpack.c.b16 %v1962, %v1938
    %v2371 = vpack.c.b16 %v1963, %v1939
    %v2372 = vpack.c.b16 %v1964, %v1940
    %v2373 = vpack.c.b16 %v1965, %v1941
    %v2374 = vpack.c.b16 %v1966, %v1942
    %v2375 = vpack.c.b16 %v1967, %v1943
    %v2376 = vpack.c.b16 %v1968, %v1944
    %v2377 = vpack.c.b16 %v1969, %v1945
    %v2378 = vpack.c.b16 %v1994, %v1970
    %v2379 = vpack.c.b16 %v1995, %v1971
    %v2380 = vpack.c.b16 %v1996, %v1972
    %v2381 = vpack.c.b16 %v1997, %v1973
    %v2382 = vpack.c.b16 %v1998, %v1974
    %v2383 = vpack.c.b16 %v1999, %v1975
    %v2384 = vpack.c.b16 %v2000, %v1976
    %v2385 = vpack.c.b16 %v2001, %v1977
    %v2386 = vpack.c.b16 %v2002, %v1978
    %v2387 = vpack.c.b16 %v2003, %v1979
    %v2388 = vpack.c.b16 %v2004, %v1980
    %v2389 = vpack.c.b16 %v2005, %v1981
    %v2390 = vpack.c.b16 %v2006, %v1982
    %v2391 = vpack.c.b16 %v2007, %v1983
    %v2392 = vpack.c.b16 %v2008, %v1984
    %v2393 = vpack.c.b16 %v2009, %v1985
    %v2394 = vpack.c.b16 %v2010, %v1986
    %v2395 = vpack.c.b16 %v2011, %v1987
    %v2396 = vpack.c.b16 %v2012, %v1988
    %v2397 = vpack.c.b16 %v2013, %v1989
    %v2398 = vpack.c.b16 %v2014, %v1990
    %v2399 = vpack.c.b16 %v2015, %v1991
    %v2400 = vpack.c.b16 %v2016, %v1992
    %v2401 = vpack.c.b16 %v2017, %v1993
    %v3170 = vunpack.c.l.b16 %v470
    %v3171 = vunpack.c.h.b16 %v470
    %v3172 = vunpack.c.l.b16 %v471
    %v3173 = vunpack.c.h.b16 %v471
    %v3174 = vunpack.c.l.b16 %v472
    %v3175 = vunpack.c.h.b16 %v472
    %v3176 = vunpack.c.l.b16 %v473
    %v3177 = vunpack.c.h.b16 %v473
    %v3178 = vunpack.c.l.b16 %v474
    %v3179 = vunpack.c.h.b16 %v474
    %v3180 = vunpack.c.l.b16 %v475
    %v3181 = vunpack.c.h.b16 %v475
    %v3182 = vunpack.c.l.b16 %v476
    %v3183 = vunpack.c.h.b16 %v476
    %v3184 = vunpack.c.l.b16 %v477
    %v3185 = vunpack.c.h.b16 %v477
    %v3186 = vunpack.c.l.b16 %v478
    %v3187 = vunpack.c.h.b16 %v478
    %v3188 = vunpack.c.l.b16 %v479
    %v3189 = vunpack.c.h.b16 %v479
    %v3190 = vunpack.c.l.b16 %v480
    %v3191 = vunpack.c.h.b16 %v480
    %v3192 = vunpack.c.l.b16 %v481
    %v3193 = vunpack.c.h.b16 %v481
    %v3194 = vunpack.c.l.b16 %v482
    %v3195 = vunpack.c.h.b16 %v482
    %v3196 = vunpack.c.l.b16 %v483
    %v3197 = vunpack.c.h.b16 %v483
    %v3198 = vunpack.c.l.b16 %v484
    %v3199 = vunpack.c.h.b16 %v484
    %v3200 = vunpack.c.l.b16 %v485
    %v3201 = vunpack.c.h.b16 %v485
    %v3202 = vunpack.c.l.b16 %v486
    %v3203 = vunpack.c.h.b16 %v486
    %v3204 = vunpack.c.l.b16 %v487
    %v3205 = vunpack.c.h.b16 %v487
    %v3206 = vunpack.c.l.b16 %v488
    %v3207 = vunpack.c.h.b16 %v488
    %v3208 = vunpack.c.l.b16 %v489
    %v3209 = vunpack.c.h.b16 %v489
    %v3210 = vunpack.c.l.b16 %v490
    %v3211 = vunpack.c.h.b16 %v490
    %v3212 = vunpack.c.l.b16 %v491
    %v3213 = vunpack.c.h.b16 %v491
    %v3214 = vunpack.c.l.b16 %v492
    %v3215 = vunpack.c.h.b16 %v492
    %v3216 = vunpack.c.l.b16 %v493
    %v3217 = vunpack.c.h.b16 %v493
    %v3218 = vunpack.c.l.b16 %v494
    %v3219 = vunpack.c.h.b16 %v494
    %v3220 = vunpack.c.l.b16 %v495
    %v3221 = vunpack.c.h.b16 %v495
    %v3222 = vunpack.c.l.b16 %v496
    %v3223 = vunpack.c.h.b16 %v496
    %v3224 = vunpack.c.l.b16 %v497
    %v3225 = vunpack.c.h.b16 %v497
    %v3226 = vunpack.c.l.b16 %v498
    %v3227 = vunpack.c.h.b16 %v498
    %v3228 = vunpack.c.l.b16 %v499
    %v3229 = vunpack.c.h.b16 %v499
    %v3230 = vunpack.c.l.b16 %v500
    %v3231 = vunpack.c.h.b16 %v500
    %v3232 = vunpack.c.l.b16 %v501
    %v3233 = vunpack.c.h.b16 %v501
    %v3234 = vunpack.c.l.b16 %v502
    %v3235 = vunpack.c.h.b16 %v502
    %v3236 = vunpack.c.l.b16 %v503
    %v3237 = vunpack.c.h.b16 %v503
    %v3238 = vunpack.c.l.b16 %v504
    %v3239 = vunpack.c.h.b16 %v504
    %v3240 = vunpack.c.l.b16 %v505
    %v3241 = vunpack.c.h.b16 %v505
    %v3242 = vunpack.c.l.b16 %v506
    %v3243 = vunpack.c.h.b16 %v506
    %v3244 = vunpack.c.l.b16 %v507
    %v3245 = vunpack.c.h.b16 %v507
    %v3246 = vunpack.c.l.b16 %v508
    %v3247 = vunpack.c.h.b16 %v508
    %v3248 = vunpack.c.l.b16 %v509
    %v3249 = vunpack.c.h.b16 %v509
    %v3250 = vunpack.c.l.b16 %v510
    %v3251 = vunpack.c.h.b16 %v510
    %v3252 = vunpack.c.l.b16 %v511
    %v3253 = vunpack.c.h.b16 %v511
    %v3254 = vunpack.c.l.b16 %v512
    %v3255 = vunpack.c.h.b16 %v512
    %v3256 = vunpack.c.l.b16 %v513
    %v3257 = vunpack.c.h.b16 %v513
    %v3258 = vunpack.c.l.b16 %v514
    %v3259 = vunpack.c.h.b16 %v514
    %v3260 = vunpack.c.l.b16 %v515
    %v3261 = vunpack.c.h.b16 %v515
    %v3262 = vunpack.c.l.b16 %v516
    %v3263 = vunpack.c.h.b16 %v516
    %v3264 = vunpack.c.l.b16 %v517
    %v3265 = vunpack.c.h.b16 %v517
    %v3266 = vunpack.c.l.b16 %v518
    %v3267 = vunpack.c.h.b16 %v518
    %v3268 = vunpack.c.l.b16 %v519
    %v3269 = vunpack.c.h.b16 %v519
    %v3270 = vunpack.c.l.b16 %v520
    %v3271 = vunpack.c.h.b16 %v520
    %v3272 = vunpack.c.l.b16 %v521
    %v3273 = vunpack.c.h.b16 %v521
    %v3274 = vunpack.c.l.b16 %v522
    %v3275 = vunpack.c.h.b16 %v522
    %v3276 = vunpack.c.l.b16 %v523
    %v3277 = vunpack.c.h.b16 %v523
    %v3278 = vunpack.c.l.b16 %v524
    %v3279 = vunpack.c.h.b16 %v524
    %v3280 = vunpack.c.l.b16 %v525
    %v3281 = vunpack.c.h.b16 %v525
    %v3282 = vunpack.c.l.b16 %v526
    %v3283 = vunpack.c.h.b16 %v526
    %v3284 = vunpack.c.l.b16 %v527
    %v3285 = vunpack.c.h.b16 %v527
    %v3286 = vunpack.c.l.b16 %v528
    %v3287 = vunpack.c.h.b16 %v528
    %v3288 = vunpack.c.l.b16 %v529
    %v3289 = vunpack.c.h.b16 %v529
    %v3290 = vunpack.c.l.b16 %v530
    %v3291 = vunpack.c.h.b16 %v530
    %v3292 = vunpack.c.l.b16 %v531
    %v3293 = vunpack.c.h.b16 %v531
    %v3294 = vunpack.c.l.b16 %v532
    %v3295 = vunpack.c.h.b16 %v532
    %v3296 = vunpack.c.l.b16 %v533
    %v3297 = vunpack.c.h.b16 %v533
    %v3298 = vunpack.c.l.b16 %v534
    %v3299 = vunpack.c.h.b16 %v534
    %v3300 = vunpack.c.l.b16 %v535
    %v3301 = vunpack.c.h.b16 %v535
    %v3302 = vunpack.c.l.b16 %v536
    %v3303 = vunpack.c.h.b16 %v536
    %v3304 = vunpack.c.l.b16 %v537
    %v3305 = vunpack.c.h.b16 %v537
    %v3306 = vunpack.c.l.b16 %v538
    %v3307 = vunpack.c.h.b16 %v538
    %v3308 = vunpack.c.l.b16 %v539
    %v3309 = vunpack.c.h.b16 %v539
    %v3310 = vunpack.c.l.b16 %v540
    %v3311 = vunpack.c.h.b16 %v540
    %v3312 = vunpack.c.l.b16 %v541
    %v3313 = vunpack.c.h.b16 %v541
    %v3314 = vunpack.c.l.b16 %v542
    %v3315 = vunpack.c.h.b16 %v542
    %v3316 = vunpack.c.l.b16 %v543
    %v3317 = vunpack.c.h.b16 %v543
    %v3318 = vunpack.c.l.b16 %v544
    %v3319 = vunpack.c.h.b16 %v544
    %v3320 = vunpack.c.l.b16 %v545
    %v3321 = vunpack.c.h.b16 %v545
    %v3322 = vunpack.c.l.b16 %v546
    %v3323 = vunpack.c.h.b16 %v546
    %v3324 = vunpack.c.l.b16 %v547
    %v3325 = vunpack.c.h.b16 %v547
    %v3326 = vunpack.c.l.b16 %v548
    %v3327 = vunpack.c.h.b16 %v548
    %v3328 = vunpack.c.l.b16 %v549
    %v3329 = vunpack.c.h.b16 %v549
    %v3330 = vunpack.c.l.b16 %v550
    %v3331 = vunpack.c.h.b16 %v550
    %v3332 = vunpack.c.l.b16 %v551
    %v3333 = vunpack.c.h.b16 %v551
    %v3334 = vunpack.c.l.b16 %v552
    %v3335 = vunpack.c.h.b16 %v552
    %v3336 = vunpack.c.l.b16 %v553
    %v3337 = vunpack.c.h.b16 %v553
    %v3338 = vunpack.c.l.b16 %v554
    %v3339 = vunpack.c.h.b16 %v554
    %v3340 = vunpack.c.l.b16 %v555
    %v3341 = vunpack.c.h.b16 %v555
    %v3342 = vunpack.c.l.b16 %v556
    %v3343 = vunpack.c.h.b16 %v556
    %v3344 = vunpack.c.l.b16 %v557
    %v3345 = vunpack.c.h.b16 %v557
    %v3346 = vunpack.c.l.b16 %v558
    %v3347 = vunpack.c.h.b16 %v558
    %v3348 = vunpack.c.l.b16 %v559
    %v3349 = vunpack.c.h.b16 %v559
    %v3350 = vunpack.c.l.b16 %v560
    %v3351 = vunpack.c.h.b16 %v560
    %v3352 = vunpack.c.l.b16 %v561
    %v3353 = vunpack.c.h.b16 %v561
    %v3354 = vunpack.c.l.b16 %v562
    %v3355 = vunpack.c.h.b16 %v562
    %v3356 = vunpack.c.l.b16 %v563
    %v3357 = vunpack.c.h.b16 %v563
    %v3358 = vunpack.c.l.b16 %v564
    %v3359 = vunpack.c.h.b16 %v564
    %v3360 = vunpack.c.l.b16 %v565
    %v3361 = vunpack.c.h.b16 %v565
    %v3362 = vunpack.c.l.b16 %v566
    %v3363 = vunpack.c.h.b16 %v566
    %v3364 = vunpack.c.l.b16 %v567
    %v3365 = vunpack.c.h.b16 %v567
    %v3366 = vunpack.c.l.b16 %v568
    %v3367 = vunpack.c.h.b16 %v568
    %v3368 = vunpack.c.l.b16 %v569
    %v3369 = vunpack.c.h.b16 %v569
    %v3370 = vunpack.c.l.b16 %v570
    %v3371 = vunpack.c.h.b16 %v570
    %v3372 = vunpack.c.l.b16 %v571
    %v3373 = vunpack.c.h.b16 %v571
    %v3374 = vunpack.c.l.b16 %v572
    %v3375 = vunpack.c.h.b16 %v572
    %v3376 = vunpack.c.l.b16 %v573
    %v3377 = vunpack.c.h.b16 %v573
    %v3378 = vunpack.c.l.b16 %v574
    %v3379 = vunpack.c.h.b16 %v574
    %v3380 = vunpack.c.l.b16 %v575
    %v3381 = vunpack.c.h.b16 %v575
    %v3382 = vunpack.c.l.b16 %v576
    %v3383 = vunpack.c.h.b16 %v576
    %v3384 = vunpack.c.l.b16 %v577
    %v3385 = vunpack.c.h.b16 %v577
    %v3386 = vunpack.c.l.b16 %v578
    %v3387 = vunpack.c.h.b16 %v578
    %v3388 = vunpack.c.l.b16 %v579
    %v3389 = vunpack.c.h.b16 %v579
    %v3390 = vunpack.c.l.b16 %v580
    %v3391 = vunpack.c.h.b16 %v580
    %v3392 = vunpack.c.l.b16 %v581
    %v3393 = vunpack.c.h.b16 %v581
    %v3394 = vunpack.c.l.b16 %v582
    %v3395 = vunpack.c.h.b16 %v582
    %v3396 = vunpack.c.l.b16 %v583
    %v3397 = vunpack.c.h.b16 %v583
    %v3398 = vunpack.c.l.b16 %v584
    %v3399 = vunpack.c.h.b16 %v584
    %v3400 = vunpack.c.l.b16 %v585
    %v3401 = vunpack.c.h.b16 %v585
    %v3402 = vunpack.c.l.b16 %v586
    %v3403 = vunpack.c.h.b16 %v586
    %v3404 = vunpack.c.l.b16 %v587
    %v3405 = vunpack.c.h.b16 %v587
    %v3406 = vunpack.c.l.b16 %v588
    %v3407 = vunpack.c.h.b16 %v588
    %v3408 = vunpack.c.l.b16 %v589
    %v3409 = vunpack.c.h.b16 %v589
    %v3410 = vunpack.c.l.b16 %v590
    %v3411 = vunpack.c.h.b16 %v590
    %v3412 = vunpack.c.l.b16 %v591
    %v3413 = vunpack.c.h.b16 %v591
    %v3414 = vunpack.c.l.b16 %v592
    %v3415 = vunpack.c.h.b16 %v592
    %v3416 = vunpack.c.l.b16 %v593
    %v3417 = vunpack.c.h.b16 %v593
    %v3418 = vunpack.c.l.b16 %v594
    %v3419 = vunpack.c.h.b16 %v594
    %v3420 = vunpack.c.l.b16 %v595
    %v3421 = vunpack.c.h.b16 %v595
    %v3422 = vunpack.c.l.b16 %v596
    %v3423 = vunpack.c.h.b16 %v596
    %v3424 = vunpack.c.l.b16 %v597
    %v3425 = vunpack.c.h.b16 %v597
    %v3426 = vunpack.c.l.b16 %v598
    %v3427 = vunpack.c.h.b16 %v598
    %v3428 = vunpack.c.l.b16 %v599
    %v3429 = vunpack.c.h.b16 %v599
    %v3430 = vunpack.c.l.b16 %v600
    %v3431 = vunpack.c.h.b16 %v600
    %v3432 = vunpack.c.l.b16 %v601
    %v3433 = vunpack.c.h.b16 %v601
    %v3434 = vunpack.c.l.b16 %v602
    %v3435 = vunpack.c.h.b16 %v602
    %v3436 = vunpack.c.l.b16 %v603
    %v3437 = vunpack.c.h.b16 %v603
    %v3438 = vunpack.c.l.b16 %v604
    %v3439 = vunpack.c.h.b16 %v604
    %v3440 = vunpack.c.l.b16 %v605
    %v3441 = vunpack.c.h.b16 %v605
    %v3442 = vunpack.c.l.b16 %v606
    %v3443 = vunpack.c.h.b16 %v606
    %v3444 = vunpack.c.l.b16 %v607
    %v3445 = vunpack.c.h.b16 %v607
    %v3446 = vunpack.c.l.b16 %v608
    %v3447 = vunpack.c.h.b16 %v608
    %v3448 = vunpack.c.l.b16 %v609
    %v3449 = vunpack.c.h.b16 %v609
    %v3450 = vunpack.c.l.b16 %v610
    %v3451 = vunpack.c.h.b16 %v610
    %v3452 = vunpack.c.l.b16 %v611
    %v3453 = vunpack.c.h.b16 %v611
    %v3454 = vunpack.c.l.b16 %v612
    %v3455 = vunpack.c.h.b16 %v612
    %v3456 = vunpack.c.l.b16 %v613
    %v3457 = vunpack.c.h.b16 %v613
    %v3458 = vunpack.c.l.b16 %v614
    %v3459 = vunpack.c.h.b16 %v614
    %v3460 = vunpack.c.l.b16 %v615
    %v3461 = vunpack.c.h.b16 %v615
    %v3462 = vunpack.c.l.b16 %v616
    %v3463 = vunpack.c.h.b16 %v616
    %v3464 = vunpack.c.l.b16 %v617
    %v3465 = vunpack.c.h.b16 %v617
    %v3466 = vunpack.c.l.b16 %v618
    %v3467 = vunpack.c.h.b16 %v618
    %v3468 = vunpack.c.l.b16 %v619
    %v3469 = vunpack.c.h.b16 %v619
    %v3470 = vunpack.c.l.b16 %v620
    %v3471 = vunpack.c.h.b16 %v620
    %v3472 = vunpack.c.l.b16 %v621
    %v3473 = vunpack.c.h.b16 %v621
    %v3474 = vunpack.c.l.b16 %v622
    %v3475 = vunpack.c.h.b16 %v622
    %v3476 = vunpack.c.l.b16 %v623
    %v3477 = vunpack.c.h.b16 %v623
    %v3478 = vunpack.c.l.b16 %v624
    %v3479 = vunpack.c.h.b16 %v624
    %v3480 = vunpack.c.l.b16 %v625
    %v3481 = vunpack.c.h.b16 %v625
    %v3482 = vunpack.c.l.b16 %v626
    %v3483 = vunpack.c.h.b16 %v626
    %v3484 = vunpack.c.l.b16 %v627
    %v3485 = vunpack.c.h.b16 %v627
    %v3486 = vunpack.c.l.b16 %v628
    %v3487 = vunpack.c.h.b16 %v628
    %v3488 = vunpack.c.l.b16 %v629
    %v3489 = vunpack.c.h.b16 %v629
    %v3490 = vunpack.c.l.b16 %v630
    %v3491 = vunpack.c.h.b16 %v630
    %v3492 = vunpack.c.l.b16 %v631
    %v3493 = vunpack.c.h.b16 %v631
    %v3494 = vunpack.c.l.b16 %v632
    %v3495 = vunpack.c.h.b16 %v632
    %v3496 = vunpack.c.l.b16 %v633
    %v3497 = vunpack.c.h.b16 %v633
    %v3498 = vunpack.c.l.b16 %v634
    %v3499 = vunpack.c.h.b16 %v634
    %v3500 = vunpack.c.l.b16 %v635
    %v3501 = vunpack.c.h.b16 %v635
    %v3502 = vunpack.c.l.b16 %v636
    %v3503 = vunpack.c.h.b16 %v636
    %v3504 = vunpack.c.l.b16 %v637
    %v3505 = vunpack.c.h.b16 %v637
    %v3506 = vunpack.c.l.b16 %v638
    %v3507 = vunpack.c.h.b16 %v638
    %v3508 = vunpack.c.l.b16 %v639
    %v3509 = vunpack.c.h.b16 %v639
    %v3510 = vunpack.c.l.b16 %v640
    %v3511 = vunpack.c.h.b16 %v640
    %v3512 = vunpack.c.l.b16 %v641
    %v3513 = vunpack.c.h.b16 %v641
    %v3514 = vunpack.c.l.b16 %v642
    %v3515 = vunpack.c.h.b16 %v642
    %v3516 = vunpack.c.l.b16 %v643
    %v3517 = vunpack.c.h.b16 %v643
    %v3518 = vunpack.c.l.b16 %v644
    %v3519 = vunpack.c.h.b16 %v644
    %v3520 = vunpack.c.l.b16 %v645
    %v3521 = vunpack.c.h.b16 %v645
    %v3522 = vunpack.c.l.b16 %v646
    %v3523 = vunpack.c.h.b16 %v646
    %v3524 = vunpack.c.l.b16 %v647
    %v3525 = vunpack.c.h.b16 %v647
    %v3526 = vunpack.c.l.b16 %v648
    %v3527 = vunpack.c.h.b16 %v648
    %v3528 = vunpack.c.l.b16 %v649
    %v3529 = vunpack.c.h.b16 %v649
    %v3530 = vunpack.c.l.b16 %v650
    %v3531 = vunpack.c.h.b16 %v650
    %v3532 = vunpack.c.l.b16 %v651
    %v3533 = vunpack.c.h.b16 %v651
    %v3534 = vunpack.c.l.b16 %v652
    %v3535 = vunpack.c.h.b16 %v652
    %v3536 = vunpack.c.l.b16 %v653
    %v3537 = vunpack.c.h.b16 %v653
    %v3538 = vunpack.c.l.b16 %v654
    %v3539 = vunpack.c.h.b16 %v654
    %v3540 = vunpack.c.l.b16 %v655
    %v3541 = vunpack.c.h.b16 %v655
    %v3542 = vunpack.c.l.b16 %v656
    %v3543 = vunpack.c.h.b16 %v656
    %v3544 = vunpack.c.l.b16 %v657
    %v3545 = vunpack.c.h.b16 %v657
    %v3546 = vunpack.c.l.b16 %v658
    %v3547 = vunpack.c.h.b16 %v658
    %v3548 = vunpack.c.l.b16 %v659
    %v3549 = vunpack.c.h.b16 %v659
    %v3550 = vunpack.c.l.b16 %v660
    %v3551 = vunpack.c.h.b16 %v660
    %v3552 = vunpack.c.l.b16 %v661
    %v3553 = vunpack.c.h.b16 %v661
    %v3554 = vunpack.c.l.b16 %v662
    %v3555 = vunpack.c.h.b16 %v662
    %v3556 = vunpack.c.l.b16 %v663
    %v3557 = vunpack.c.h.b16 %v663
    %v3558 = vunpack.c.l.b16 %v664
    %v3559 = vunpack.c.h.b16 %v664
    %v3560 = vunpack.c.l.b16 %v665
    %v3561 = vunpack.c.h.b16 %v665
    %v3562 = vunpack.c.l.b16 %v666
    %v3563 = vunpack.c.h.b16 %v666
    %v3564 = vunpack.c.l.b16 %v667
    %v3565 = vunpack.c.h.b16 %v667
    %v3566 = vunpack.c.l.b16 %v668
    %v3567 = vunpack.c.h.b16 %v668
    %v3568 = vunpack.c.l.b16 %v669
    %v3569 = vunpack.c.h.b16 %v669
    %v3570 = vunpack.c.l.b16 %v670
    %v3571 = vunpack.c.h.b16 %v670
    %v3572 = vunpack.c.l.b16 %v671
    %v3573 = vunpack.c.h.b16 %v671
    %v3574 = vunpack.c.l.b16 %v672
    %v3575 = vunpack.c.h.b16 %v672
    %v3576 = vunpack.c.l.b16 %v673
    %v3577 = vunpack.c.h.b16 %v673
    %v3578 = vunpack.c.l.b16 %v674
    %v3579 = vunpack.c.h.b16 %v674
    %v3580 = vunpack.c.l.b16 %v675
    %v3581 = vunpack.c.h.b16 %v675
    %v3582 = vunpack.c.l.b16 %v676
    %v3583 = vunpack.c.h.b16 %v676
    %v3584 = vunpack.c.l.b16 %v677
    %v3585 = vunpack.c.h.b16 %v677
    %v3586 = vunpack.c.l.b16 %v678
    %v3587 = vunpack.c.h.b16 %v678
    %v3588 = vunpack.c.l.b16 %v679
    %v3589 = vunpack.c.h.b16 %v679
    %v3590 = vunpack.c.l.b16 %v680
    %v3591 = vunpack.c.h.b16 %v680
    %v3592 = vunpack.c.l.b16 %v681
    %v3593 = vunpack.c.h.b16 %v681
    %v3594 = vunpack.c.l.b16 %v682
    %v3595 = vunpack.c.h.b16 %v682
    %v3596 = vunpack.c.l.b16 %v683
    %v3597 = vunpack.c.h.b16 %v683
    %v3598 = vunpack.c.l.b16 %v684
    %v3599 = vunpack.c.h.b16 %v684
    %v3600 = vunpack.c.l.b16 %v685
    %v3601 = vunpack.c.h.b16 %v685
    %v3602 = vunpack.c.l.b16 %v686
    %v3603 = vunpack.c.h.b16 %v686
    %v3604 = vunpack.c.l.b16 %v687
    %v3605 = vunpack.c.h.b16 %v687
    %v3606 = vunpack.c.l.b16 %v688
    %v3607 = vunpack.c.h.b16 %v688
    %v3608 = vunpack.c.l.b16 %v689
    %v3609 = vunpack.c.h.b16 %v689
    %v3610 = vunpack.c.l.b16 %v690
    %v3611 = vunpack.c.h.b16 %v690
    %v3612 = vunpack.c.l.b16 %v691
    %v3613 = vunpack.c.h.b16 %v691
    %v3614 = vunpack.c.l.b16 %v692
    %v3615 = vunpack.c.h.b16 %v692
    %v3616 = vunpack.c.l.b16 %v693
    %v3617 = vunpack.c.h.b16 %v693
    %v3618 = vunpack.c.l.b16 %v694
    %v3619 = vunpack.c.h.b16 %v694
    %v3620 = vunpack.c.l.b16 %v695
    %v3621 = vunpack.c.h.b16 %v695
    %v3622 = vunpack.c.l.b16 %v696
    %v3623 = vunpack.c.h.b16 %v696
    %v3624 = vunpack.c.l.b16 %v697
    %v3625 = vunpack.c.h.b16 %v697
    %v3626 = vunpack.c.l.b16 %v698
    %v3627 = vunpack.c.h.b16 %v698
    %v3628 = vunpack.c.l.b16 %v699
    %v3629 = vunpack.c.h.b16 %v699
    %v3630 = vunpack.c.l.b16 %v700
    %v3631 = vunpack.c.h.b16 %v700
    %v3632 = vunpack.c.l.b16 %v701
    %v3633 = vunpack.c.h.b16 %v701
    %v3634 = vunpack.c.l.b16 %v702
    %v3635 = vunpack.c.h.b16 %v702
    %v3636 = vunpack.c.l.b16 %v703
    %v3637 = vunpack.c.h.b16 %v703
    %v3638 = vunpack.c.l.b16 %v704
    %v3639 = vunpack.c.h.b16 %v704
    %v3640 = vunpack.c.l.b16 %v705
    %v3641 = vunpack.c.h.b16 %v705
    %v3642 = vunpack.c.l.b16 %v706
    %v3643 = vunpack.c.h.b16 %v706
    %v3644 = vunpack.c.l.b16 %v707
    %v3645 = vunpack.c.h.b16 %v707
    %v3646 = vunpack.c.l.b16 %v708
    %v3647 = vunpack.c.h.b16 %v708
    %v3648 = vunpack.c.l.b16 %v709
    %v3649 = vunpack.c.h.b16 %v709
    %v3650 = vunpack.c.l.b16 %v710
    %v3651 = vunpack.c.h.b16 %v710
    %v3652 = vunpack.c.l.b16 %v711
    %v3653 = vunpack.c.h.b16 %v711
    %v3654 = vunpack.c.l.b16 %v712
    %v3655 = vunpack.c.h.b16 %v712
    %v3656 = vunpack.c.l.b16 %v713
    %v3657 = vunpack.c.h.b16 %v713
    %v3658 = vunpack.c.l.b16 %v714
    %v3659 = vunpack.c.h.b16 %v714
    %v3660 = vunpack.c.l.b16 %v715
    %v3661 = vunpack.c.h.b16 %v715
    %v3662 = vunpack.c.l.b16 %v716
    %v3663 = vunpack.c.h.b16 %v716
    %v3664 = vunpack.c.l.b16 %v717
    %v3665 = vunpack.c.h.b16 %v717
    %v3666 = vunpack.c.l.b16 %v718
    %v3667 = vunpack.c.h.b16 %v718
    %v3668 = vunpack.c.l.b16 %v719
    %v3669 = vunpack.c.h.b16 %v719
    %v3670 = vunpack.c.l.b16 %v720
    %v3671 = vunpack.c.h.b16 %v720
    %v3672 = vunpack.c.l.b16 %v721
    %v3673 = vunpack.c.h.b16 %v721
    %v3674 = vunpack.c.l.b16 %v722
    %v3675 = vunpack.c.h.b16 %v722
    %v3676 = vunpack.c.l.b16 %v723
    %v3677 = vunpack.c.h.b16 %v723
    %v3678 = vunpack.c.l.b16 %v724
    %v3679 = vunpack.c.h.b16 %v724
    %v3680 = vunpack.c.l.b16 %v725
    %v3681 = vunpack.c.h.b16 %v725
    %v3682 = vunpack.c.l.b16 %v726
    %v3683 = vunpack.c.h.b16 %v726
    %v3684 = vunpack.c.l.b16 %v727
    %v3685 = vunpack.c.h.b16 %v727
    %v3686 = vunpack.c.l.b16 %v728
    %v3687 = vunpack.c.h.b16 %v728
    %v3688 = vunpack.c.l.b16 %v729
    %v3689 = vunpack.c.h.b16 %v729
    %v3690 = vunpack.c.l.b16 %v730
    %v3691 = vunpack.c.h.b16 %v730
    %v3692 = vunpack.c.l.b16 %v731
    %v3693 = vunpack.c.h.b16 %v731
    %v3694 = vunpack.c.l.b16 %v732
    %v3695 = vunpack.c.h.b16 %v732
    %v3696 = vunpack.c.l.b16 %v733
    %v3697 = vunpack.c.h.b16 %v733
    %v3698 = vunpack.c.l.b16 %v734
    %v3699 = vunpack.c.h.b16 %v734
    %v3700 = vunpack.c.l.b16 %v735
    %v3701 = vunpack.c.h.b16 %v735
    %v3702 = vunpack.c.l.b16 %v736
    %v3703 = vunpack.c.h.b16 %v736
    %v3704 = vunpack.c.l.b16 %v737
    %v3705 = vunpack.c.h.b16 %v737
    %v3706 = vunpack.c.l.b16 %v738
    %v3707 = vunpack.c.h.b16 %v738
    %v3708 = vunpack.c.l.b16 %v739
    %v3709 = vunpack.c.h.b16 %v739
    %v3710 = vunpack.c.l.b16 %v740
    %v3711 = vunpack.c.h.b16 %v740
    %v3712 = vunpack.c.l.b16 %v741
    %v3713 = vunpack.c.h.b16 %v741
    %v3714 = vunpack.c.l.b16 %v742
    %v3715 = vunpack.c.h.b16 %v742
    %v3716 = vunpack.c.l.b16 %v743
    %v3717 = vunpack.c.h.b16 %v743
    %v3718 = vunpack.c.l.b16 %v744
    %v3719 = vunpack.c.h.b16 %v744
    %v3720 = vunpack.c.l.b16 %v745
    %v3721 = vunpack.c.h.b16 %v745
    %v3722 = vunpack.c.l.b16 %v746
    %v3723 = vunpack.c.h.b16 %v746
    %v3724 = vunpack.c.l.b16 %v747
    %v3725 = vunpack.c.h.b16 %v747
    %v3726 = vunpack.c.l.b16 %v748
    %v3727 = vunpack.c.h.b16 %v748
    %v3728 = vunpack.c.l.b16 %v749
    %v3729 = vunpack.c.h.b16 %v749
    %v3730 = vunpack.c.l.b16 %v750
    %v3731 = vunpack.c.h.b16 %v750
    %v3732 = vunpack.c.l.b16 %v751
    %v3733 = vunpack.c.h.b16 %v751
    %v3734 = vunpack.c.l.b16 %v752
    %v3735 = vunpack.c.h.b16 %v752
    %v3736 = vunpack.c.l.b16 %v753
    %v3737 = vunpack.c.h.b16 %v753
    %v3738 = vunpack.c.l.b16 %v754
    %v3739 = vunpack.c.h.b16 %v754
    %v3740 = vunpack.c.l.b16 %v755
    %v3741 = vunpack.c.h.b16 %v755
    %v3742 = vunpack.c.l.b16 %v756
    %v3743 = vunpack.c.h.b16 %v756
    %v3744 = vunpack.c.l.b16 %v757
    %v3745 = vunpack.c.h.b16 %v757
    %v3746 = vunpack.c.l.b16 %v758
    %v3747 = vunpack.c.h.b16 %v758
    %v3748 = vunpack.c.l.b16 %v759
    %v3749 = vunpack.c.h.b16 %v759
    %v3750 = vunpack.c.l.b16 %v760
    %v3751 = vunpack.c.h.b16 %v760
    %v3752 = vunpack.c.l.b16 %v761
    %v3753 = vunpack.c.h.b16 %v761
    %v3754 = vunpack.c.l.b16 %v762
    %v3755 = vunpack.c.h.b16 %v762
    %v3756 = vunpack.c.l.b16 %v763
    %v3757 = vunpack.c.h.b16 %v763
    %v3758 = vunpack.c.l.b16 %v764
    %v3759 = vunpack.c.h.b16 %v764
    %v3760 = vunpack.c.l.b16 %v765
    %v3761 = vunpack.c.h.b16 %v765
    %v3762 = vunpack.c.l.b16 %v766
    %v3763 = vunpack.c.h.b16 %v766
    %v3764 = vunpack.c.l.b16 %v767
    %v3765 = vunpack.c.h.b16 %v767
    %v3766 = vunpack.c.l.b16 %v768
    %v3767 = vunpack.c.h.b16 %v768
    %v3768 = vunpack.c.l.b16 %v769
    %v3769 = vunpack.c.h.b16 %v769
    %v3770 = vunpack.c.l.b16 %v770
    %v3771 = vunpack.c.h.b16 %v770
    %v3772 = vunpack.c.l.b16 %v771
    %v3773 = vunpack.c.h.b16 %v771
    %v3774 = vunpack.c.l.b16 %v772
    %v3775 = vunpack.c.h.b16 %v772
    %v3776 = vunpack.c.l.b16 %v773
    %v3777 = vunpack.c.h.b16 %v773
    %v3778 = vunpack.c.l.b16 %v774
    %v3779 = vunpack.c.h.b16 %v774
    %v3780 = vunpack.c.l.b16 %v775
    %v3781 = vunpack.c.h.b16 %v775
    %v3782 = vunpack.c.l.b16 %v776
    %v3783 = vunpack.c.h.b16 %v776
    %v3784 = vunpack.c.l.b16 %v777
    %v3785 = vunpack.c.h.b16 %v777
    %v3786 = vunpack.c.l.b16 %v778
    %v3787 = vunpack.c.h.b16 %v778
    %v3788 = vunpack.c.l.b16 %v779
    %v3789 = vunpack.c.h.b16 %v779
    %v3790 = vunpack.c.l.b16 %v780
    %v3791 = vunpack.c.h.b16 %v780
    %v3792 = vunpack.c.l.b16 %v781
    %v3793 = vunpack.c.h.b16 %v781
    %v3794 = vunpack.c.l.b16 %v782
    %v3795 = vunpack.c.h.b16 %v782
    %v3796 = vunpack.c.l.b16 %v783
    %v3797 = vunpack.c.h.b16 %v783
    %v3798 = vunpack.c.l.b16 %v784
    %v3799 = vunpack.c.h.b16 %v784
    %v3800 = vunpack.c.l.b16 %v785
    %v3801 = vunpack.c.h.b16 %v785
    %v3802 = vunpack.c.l.b16 %v786
    %v3803 = vunpack.c.h.b16 %v786
    %v3804 = vunpack.c.l.b16 %v787
    %v3805 = vunpack.c.h.b16 %v787
    %v3806 = vunpack.c.l.b16 %v788
    %v3807 = vunpack.c.h.b16 %v788
    %v3808 = vunpack.c.l.b16 %v789
    %v3809 = vunpack.c.h.b16 %v789
    %v3810 = vunpack.c.l.b16 %v790
    %v3811 = vunpack.c.h.b16 %v790
    %v3812 = vunpack.c.l.b16 %v791
    %v3813 = vunpack.c.h.b16 %v791
    %v3814 = vunpack.c.l.b16 %v792
    %v3815 = vunpack.c.h.b16 %v792
    %v3816 = vunpack.c.l.b16 %v793
    %v3817 = vunpack.c.h.b16 %v793
    %v3818 = vunpack.c.l.b16 %v794
    %v3819 = vunpack.c.h.b16 %v794
    %v3820 = vunpack.c.l.b16 %v795
    %v3821 = vunpack.c.h.b16 %v795
    %v3822 = vunpack.c.l.b16 %v796
    %v3823 = vunpack.c.h.b16 %v796
    %v3824 = vunpack.c.l.b16 %v797
    %v3825 = vunpack.c.h.b16 %v797
    %v3826 = vunpack.c.l.b16 %v798
    %v3827 = vunpack.c.h.b16 %v798
    %v3828 = vunpack.c.l.b16 %v799
    %v3829 = vunpack.c.h.b16 %v799
    %v3830 = vunpack.c.l.b16 %v800
    %v3831 = vunpack.c.h.b16 %v800
    %v3832 = vunpack.c.l.b16 %v801
    %v3833 = vunpack.c.h.b16 %v801
    %v3834 = vunpack.c.l.b16 %v802
    %v3835 = vunpack.c.h.b16 %v802
    %v3836 = vunpack.c.l.b16 %v803
    %v3837 = vunpack.c.h.b16 %v803
    %v3838 = vunpack.c.l.b16 %v804
    %v3839 = vunpack.c.h.b16 %v804
    %v3840 = vunpack.c.l.b16 %v805
    %v3841 = vunpack.c.h.b16 %v805
    %v3842 = vunpack.c.l.b16 %v806
    %v3843 = vunpack.c.h.b16 %v806
    %v3844 = vunpack.c.l.b16 %v807
    %v3845 = vunpack.c.h.b16 %v807
    %v3846 = vunpack.c.l.b16 %v808
    %v3847 = vunpack.c.h.b16 %v808
    %v3848 = vunpack.c.l.b16 %v809
    %v3849 = vunpack.c.h.b16 %v809
    %v3850 = vunpack.c.l.b16 %v810
    %v3851 = vunpack.c.h.b16 %v810
    %v3852 = vunpack.c.l.b16 %v811
    %v3853 = vunpack.c.h.b16 %v811
    %v3854 = vunpack.c.l.b16 %v812
    %v3855 = vunpack.c.h.b16 %v812
    %v3856 = vunpack.c.l.b16 %v813
    %v3857 = vunpack.c.h.b16 %v813
    %v3858 = vunpack.c.l.b16 %v814
    %v3859 = vunpack.c.h.b16 %v814
    %v3860 = vunpack.c.l.b16 %v815
    %v3861 = vunpack.c.h.b16 %v815
    %v3862 = vunpack.c.l.b16 %v816
    %v3863 = vunpack.c.h.b16 %v816
    %v3864 = vunpack.c.l.b16 %v817
    %v3865 = vunpack.c.h.b16 %v817
    %v3866 = vunpack.c.l.b16 %v818
    %v3867 = vunpack.c.h.b16 %v818
    %v3868 = vunpack.c.l.b16 %v819
    %v3869 = vunpack.c.h.b16 %v819
    %v3870 = vunpack.c.l.b16 %v820
    %v3871 = vunpack.c.h.b16 %v820
    %v3872 = vunpack.c.l.b16 %v821
    %v3873 = vunpack.c.h.b16 %v821
    %v3874 = vunpack.c.l.b16 %v822
    %v3875 = vunpack.c.h.b16 %v822
    %v3876 = vunpack.c.l.b16 %v823
    %v3877 = vunpack.c.h.b16 %v823
    %v3878 = vunpack.c.l.b16 %v824
    %v3879 = vunpack.c.h.b16 %v824
    %v3880 = vunpack.c.l.b16 %v825
    %v3881 = vunpack.c.h.b16 %v825
    %v3882 = vunpack.c.l.b16 %v826
    %v3883 = vunpack.c.h.b16 %v826
    %v3884 = vunpack.c.l.b16 %v827
    %v3885 = vunpack.c.h.b16 %v827
    %v3886 = vunpack.c.l.b16 %v828
    %v3887 = vunpack.c.h.b16 %v828
    %v3888 = vunpack.c.l.b16 %v829
    %v3889 = vunpack.c.h.b16 %v829
    %v3890 = vunpack.c.l.b16 %v830
    %v3891 = vunpack.c.h.b16 %v830
    %v3892 = vunpack.c.l.b16 %v831
    %v3893 = vunpack.c.h.b16 %v831
    %v3894 = vunpack.c.l.b16 %v832
    %v3895 = vunpack.c.h.b16 %v832
    %v3896 = vunpack.c.l.b16 %v833
    %v3897 = vunpack.c.h.b16 %v833
    %v3898 = vunpack.c.l.b16 %v834
    %v3899 = vunpack.c.h.b16 %v834
    %v3900 = vunpack.c.l.b16 %v835
    %v3901 = vunpack.c.h.b16 %v835
    %v3902 = vunpack.c.l.b16 %v836
    %v3903 = vunpack.c.h.b16 %v836
    %v3904 = vunpack.c.l.b16 %v837
    %v3905 = vunpack.c.h.b16 %v837
    %v3906 = vunpack.c.l.b16 %v838
    %v3907 = vunpack.c.h.b16 %v838
    %v3908 = vunpack.c.l.b16 %v839
    %v3909 = vunpack.c.h.b16 %v839
    %v3910 = vunpack.c.l.b16 %v840
    %v3911 = vunpack.c.h.b16 %v840
    %v3912 = vunpack.c.l.b16 %v841
    %v3913 = vunpack.c.h.b16 %v841
    %v3914 = vunpack.c.l.b16 %v842
    %v3915 = vunpack.c.h.b16 %v842
    %v3916 = vunpack.c.l.b16 %v843
    %v3917 = vunpack.c.h.b16 %v843
    %v3918 = vunpack.c.l.b16 %v844
    %v3919 = vunpack.c.h.b16 %v844
    %v3920 = vunpack.c.l.b16 %v845
    %v3921 = vunpack.c.h.b16 %v845
    %v3922 = vunpack.c.l.b16 %v846
    %v3923 = vunpack.c.h.b16 %v846
    %v3924 = vunpack.c.l.b16 %v847
    %v3925 = vunpack.c.h.b16 %v847
    %v3926 = vunpack.c.l.b16 %v848
    %v3927 = vunpack.c.h.b16 %v848
    %v3928 = vunpack.c.l.b16 %v849
    %v3929 = vunpack.c.h.b16 %v849
    %v3930 = vunpack.c.l.b16 %v850
    %v3931 = vunpack.c.h.b16 %v850
    %v3932 = vunpack.c.l.b16 %v851
    %v3933 = vunpack.c.h.b16 %v851
    %v3934 = vunpack.c.l.b16 %v852
    %v3935 = vunpack.c.h.b16 %v852
    %v3936 = vunpack.c.l.b16 %v853
    %v3937 = vunpack.c.h.b16 %v853
    %v3938 = vpack.c.b16 %v3172, %v3170
    %v3939 = vpack.c.b16 %v3173, %v3171
    %v3940 = vpack.c.b16 %v3176, %v3174
    %v3941 = vpack.c.b16 %v3177, %v3175
    %v3942 = vpack.c.b16 %v3180, %v3178
    %v3943 = vpack.c.b16 %v3181, %v3179
    %v3944 = vpack.c.b16 %v3184, %v3182
    %v3945 = vpack.c.b16 %v3185, %v3183
    %v3946 = vpack.c.b16 %v3188, %v3186
    %v3947 = vpack.c.b16 %v3189, %v3187
    %v3948 = vpack.c.b16 %v3192, %v3190
    %v3949 = vpack.c.b16 %v3193, %v3191
    %v3950 = vpack.c.b16 %v3196, %v3194
    %v3951 = vpack.c.b16 %v3197, %v3195
    %v3952 = vpack.c.b16 %v3200, %v3198
    %v3953 = vpack.c.b16 %v3201, %v3199
    %v3954 = vpack.c.b16 %v3204, %v3202
    %v3955 = vpack.c.b16 %v3205, %v3203
    %v3956 = vpack.c.b16 %v3208, %v3206
    %v3957 = vpack.c.b16 %v3209, %v3207
    %v3958 = vpack.c.b16 %v3212, %v3210
    %v3959 = vpack.c.b16 %v3213, %v3211
    %v3960 = vpack.c.b16 %v3216, %v3214
    %v3961 = vpack.c.b16 %v3217, %v3215
    %v3962 = vpack.c.b16 %v3220, %v3218
    %v3963 = vpack.c.b16 %v3221, %v3219
    %v3964 = vpack.c.b16 %v3224, %v3222
    %v3965 = vpack.c.b16 %v3225, %v3223
    %v3966 = vpack.c.b16 %v3228, %v3226
    %v3967 = vpack.c.b16 %v3229, %v3227
    %v3968 = vpack.c.b16 %v3232, %v3230
    %v3969 = vpack.c.b16 %v3233, %v3231
    %v3970 = vpack.c.b16 %v3236, %v3234
    %v3971 = vpack.c.b16 %v3237, %v3235
    %v3972 = vpack.c.b16 %v3240, %v3238
    %v3973 = vpack.c.b16 %v3241, %v3239
    %v3974 = vpack.c.b16 %v3244, %v3242
    %v3975 = vpack.c.b16 %v3245, %v3243
    %v3976 = vpack.c.b16 %v3248, %v3246
    %v3977 = vpack.c.b16 %v3249, %v3247
    %v3978 = vpack.c.b16 %v3252, %v3250
    %v3979 = vpack.c.b16 %v3253, %v3251
    %v3980 = vpack.c.b16 %v3256, %v3254
    %v3981 = vpack.c.b16 %v3257, %v3255
    %v3982 = vpack.c.b16 %v3260, %v3258
    %v3983 = vpack.c.b16 %v3261, %v3259
    %v3984 = vpack.c.b16 %v3264, %v3262
    %v3985 = vpack.c.b16 %v3265, %v3263
    %v3986 = vpack.c.b16 %v3268, %v3266
    %v3987 = vpack.c.b16 %v3269, %v3267
    %v3988 = vpack.c.b16 %v3272, %v3270
    %v3989 = vpack.c.b16 %v3273, %v3271
    %v3990 = vpack.c.b16 %v3276, %v3274
    %v3991 = vpack.c.b16 %v3277, %v3275
    %v3992 = vpack.c.b16 %v3280, %v3278
    %v3993 = vpack.c.b16 %v3281, %v3279
    %v3994 = vpack.c.b16 %v3284, %v3282
    %v3995 = vpack.c.b16 %v3285, %v3283
    %v3996 = vpack.c.b16 %v3288, %v3286
    %v3997 = vpack.c.b16 %v3289, %v3287
    %v3998 = vpack.c.b16 %v3292, %v3290
    %v3999 = vpack.c.b16 %v3293, %v3291
    %v4000 = vpack.c.b16 %v3296, %v3294
    %v4001 = vpack.c.b16 %v3297, %v3295
    %v4002 = vpack.c.b16 %v3300, %v3298
    %v4003 = vpack.c.b16 %v3301, %v3299
    %v4004 = vpack.c.b16 %v3304, %v3302
    %v4005 = vpack.c.b16 %v3305, %v3303
    %v4006 = vpack.c.b16 %v3308, %v3306
    %v4007 = vpack.c.b16 %v3309, %v3307
    %v4008 = vpack.c.b16 %v3312, %v3310
    %v4009 = vpack.c.b16 %v3313, %v3311
    %v4010 = vpack.c.b16 %v3316, %v3314
    %v4011 = vpack.c.b16 %v3317, %v3315
    %v4012 = vpack.c.b16 %v3320, %v3318
    %v4013 = vpack.c.b16 %v3321, %v3319
    %v4014 = vpack.c.b16 %v3324, %v3322
    %v4015 = vpack.c.b16 %v3325, %v3323
    %v4016 = vpack.c.b16 %v3328, %v3326
    %v4017 = vpack.c.b16 %v3329, %v3327
    %v4018 = vpack.c.b16 %v3332, %v3330
    %v4019 = vpack.c.b16 %v3333, %v3331
    %v4020 = vpack.c.b16 %v3336, %v3334
    %v4021 = vpack.c.b16 %v3337, %v3335
    %v4022 = vpack.c.b16 %v3340, %v3338
    %v4023 = vpack.c.b16 %v3341, %v3339
    %v4024 = vpack.c.b16 %v3344, %v3342
    %v4025 = vpack.c.b16 %v3345, %v3343
    %v4026 = vpack.c.b16 %v3348, %v3346
    %v4027 = vpack.c.b16 %v3349, %v3347
    %v4028 = vpack.c.b16 %v3352, %v3350
    %v4029 = vpack.c.b16 %v3353, %v3351
    %v4030 = vpack.c.b16 %v3356, %v3354
    %v4031 = vpack.c.b16 %v3357, %v3355
    %v4032 = vpack.c.b16 %v3360, %v3358
    %v4033 = vpack.c.b16 %v3361, %v3359
    %v4034 = vpack.c.b16 %v3364, %v3362
    %v4035 = vpack.c.b16 %v3365, %v3363
    %v4036 = vpack.c.b16 %v3368, %v3366
    %v4037 = vpack.c.b16 %v3369, %v3367
    %v4038 = vpack.c.b16 %v3372, %v3370
    %v4039 = vpack.c.b16 %v3373, %v3371
    %v4040 = vpack.c.b16 %v3376, %v3374
    %v4041 = vpack.c.b16 %v3377, %v3375
    %v4042 = vpack.c.b16 %v3380, %v3378
    %v4043 = vpack.c.b16 %v3381, %v3379
    %v4044 = vpack.c.b16 %v3384, %v3382
    %v4045 = vpack.c.b16 %v3385, %v3383
    %v4046 = vpack.c.b16 %v3388, %v3386
    %v4047 = vpack.c.b16 %v3389, %v3387
    %v4048 = vpack.c.b16 %v3392, %v3390
    %v4049 = vpack.c.b16 %v3393, %v3391
    %v4050 = vpack.c.b16 %v3396, %v3394
    %v4051 = vpack.c.b16 %v3397, %v3395
    %v4052 = vpack.c.b16 %v3400, %v3398
    %v4053 = vpack.c.b16 %v3401, %v3399
    %v4054 = vpack.c.b16 %v3404, %v3402
    %v4055 = vpack.c.b16 %v3405, %v3403
    %v4056 = vpack.c.b16 %v3408, %v3406
    %v4057 = vpack.c.b16 %v3409, %v3407
    %v4058 = vpack.c.b16 %v3412, %v3410
    %v4059 = vpack.c.b16 %v3413, %v3411
    %v4060 = vpack.c.b16 %v3416, %v3414
    %v4061 = vpack.c.b16 %v3417, %v3415
    %v4062 = vpack.c.b16 %v3420, %v3418
    %v4063 = vpack.c.b16 %v3421, %v3419
    %v4064 = vpack.c.b16 %v3424, %v3422
    %v4065 = vpack.c.b16 %v3425, %v3423
    %v4066 = vpack.c.b16 %v3428, %v3426
    %v4067 = vpack.c.b16 %v3429, %v3427
    %v4068 = vpack.c.b16 %v3432, %v3430
    %v4069 = vpack.c.b16 %v3433, %v3431
    %v4070 = vpack.c.b16 %v3436, %v3434
    %v4071 = vpack.c.b16 %v3437, %v3435
    %v4072 = vpack.c.b16 %v3440, %v3438
    %v4073 = vpack.c.b16 %v3441, %v3439
    %v4074 = vpack.c.b16 %v3444, %v3442
    %v4075 = vpack.c.b16 %v3445, %v3443
    %v4076 = vpack.c.b16 %v3448, %v3446
    %v4077 = vpack.c.b16 %v3449, %v3447
    %v4078 = vpack.c.b16 %v3452, %v3450
    %v4079 = vpack.c.b16 %v3453, %v3451
    %v4080 = vpack.c.b16 %v3456, %v3454
    %v4081 = vpack.c.b16 %v3457, %v3455
    %v4082 = vpack.c.b16 %v3460, %v3458
    %v4083 = vpack.c.b16 %v3461, %v3459
    %v4084 = vpack.c.b16 %v3464, %v3462
    %v4085 = vpack.c.b16 %v3465, %v3463
    %v4086 = vpack.c.b16 %v3468, %v3466
    %v4087 = vpack.c.b16 %v3469, %v3467
    %v4088 = vpack.c.b16 %v3472, %v3470
    %v4089 = vpack.c.b16 %v3473, %v3471
    %v4090 = vpack.c.b16 %v3476, %v3474
    %v4091 = vpack.c.b16 %v3477, %v3475
    %v4092 = vpack.c.b16 %v3480, %v3478
    %v4093 = vpack.c.b16 %v3481, %v3479
    %v4094 = vpack.c.b16 %v3484, %v3482
    %v4095 = vpack.c.b16 %v3485, %v3483
    %v4096 = vpack.c.b16 %v3488, %v3486
    %v4097 = vpack.c.b16 %v3489, %v3487
    %v4098 = vpack.c.b16 %v3492, %v3490
    %v4099 = vpack.c.b16 %v3493, %v3491
    %v4100 = vpack.c.b16 %v3496, %v3494
    %v4101 = vpack.c.b16 %v3497, %v3495
    %v4102 = vpack.c.b16 %v3500, %v3498
    %v4103 = vpack.c.b16 %v3501, %v3499
    %v4104 = vpack.c.b16 %v3504, %v3502
    %v4105 = vpack.c.b16 %v3505, %v3503
    %v4106 = vpack.c.b16 %v3508, %v3506
    %v4107 = vpack.c.b16 %v3509, %v3507
    %v4108 = vpack.c.b16 %v3512, %v3510
    %v4109 = vpack.c.b16 %v3513, %v3511
    %v4110 = vpack.c.b16 %v3516, %v3514
    %v4111 = vpack.c.b16 %v3517, %v3515
    %v4112 = vpack.c.b16 %v3520, %v3518
    %v4113 = vpack.c.b16 %v3521, %v3519
    %v4114 = vpack.c.b16 %v3524, %v3522
    %v4115 = vpack.c.b16 %v3525, %v3523
    %v4116 = vpack.c.b16 %v3528, %v3526
    %v4117 = vpack.c.b16 %v3529, %v3527
    %v4118 = vpack.c.b16 %v3532, %v3530
    %v4119 = vpack.c.b16 %v3533, %v3531
    %v4120 = vpack.c.b16 %v3536, %v3534
    %v4121 = vpack.c.b16 %v3537, %v3535
    %v4122 = vpack.c.b16 %v3540, %v3538
    %v4123 = vpack.c.b16 %v3541, %v3539
    %v4124 = vpack.c.b16 %v3544, %v3542
    %v4125 = vpack.c.b16 %v3545, %v3543
    %v4126 = vpack.c.b16 %v3548, %v3546
    %v4127 = vpack.c.b16 %v3549, %v3547
    %v4128 = vpack.c.b16 %v3552, %v3550
    %v4129 = vpack.c.b16 %v3553, %v3551
    %v4130 = vpack.c.b16 %v3556, %v3554
    %v4131 = vpack.c.b16 %v3557, %v3555
    %v4132 = vpack.c.b16 %v3560, %v3558
    %v4133 = vpack.c.b16 %v3561, %v3559
    %v4134 = vpack.c.b16 %v3564, %v3562
    %v4135 = vpack.c.b16 %v3565, %v3563
    %v4136 = vpack.c.b16 %v3568, %v3566
    %v4137 = vpack.c.b16 %v3569, %v3567
    %v4138 = vpack.c.b16 %v3572, %v3570
    %v4139 = vpack.c.b16 %v3573, %v3571
    %v4140 = vpack.c.b16 %v3576, %v3574
    %v4141 = vpack.c.b16 %v3577, %v3575
    %v4142 = vpack.c.b16 %v3580, %v3578
    %v4143 = vpack.c.b16 %v3581, %v3579
    %v4144 = vpack.c.b16 %v3584, %v3582
    %v4145 = vpack.c.b16 %v3585, %v3583
    %v4146 = vpack.c.b16 %v3588, %v3586
    %v4147 = vpack.c.b16 %v3589, %v3587
    %v4148 = vpack.c.b16 %v3592, %v3590
    %v4149 = vpack.c.b16 %v3593, %v3591
    %v4150 = vpack.c.b16 %v3596, %v3594
    %v4151 = vpack.c.b16 %v3597, %v3595
    %v4152 = vpack.c.b16 %v3600, %v3598
    %v4153 = vpack.c.b16 %v3601, %v3599
    %v4154 = vpack.c.b16 %v3604, %v3602
    %v4155 = vpack.c.b16 %v3605, %v3603
    %v4156 = vpack.c.b16 %v3608, %v3606
    %v4157 = vpack.c.b16 %v3609, %v3607
    %v4158 = vpack.c.b16 %v3612, %v3610
    %v4159 = vpack.c.b16 %v3613, %v3611
    %v4160 = vpack.c.b16 %v3616, %v3614
    %v4161 = vpack.c.b16 %v3617, %v3615
    %v4162 = vpack.c.b16 %v3620, %v3618
    %v4163 = vpack.c.b16 %v3621, %v3619
    %v4164 = vpack.c.b16 %v3624, %v3622
    %v4165 = vpack.c.b16 %v3625, %v3623
    %v4166 = vpack.c.b16 %v3628, %v3626
    %v4167 = vpack.c.b16 %v3629, %v3627
    %v4168 = vpack.c.b16 %v3632, %v3630
    %v4169 = vpack.c.b16 %v3633, %v3631
    %v4170 = vpack.c.b16 %v3636, %v3634
    %v4171 = vpack.c.b16 %v3637, %v3635
    %v4172 = vpack.c.b16 %v3640, %v3638
    %v4173 = vpack.c.b16 %v3641, %v3639
    %v4174 = vpack.c.b16 %v3644, %v3642
    %v4175 = vpack.c.b16 %v3645, %v3643
    %v4176 = vpack.c.b16 %v3648, %v3646
    %v4177 = vpack.c.b16 %v3649, %v3647
    %v4178 = vpack.c.b16 %v3652, %v3650
    %v4179 = vpack.c.b16 %v3653, %v3651
    %v4180 = vpack.c.b16 %v3656, %v3654
    %v4181 = vpack.c.b16 %v3657, %v3655
    %v4182 = vpack.c.b16 %v3660, %v3658
    %v4183 = vpack.c.b16 %v3661, %v3659
    %v4184 = vpack.c.b16 %v3664, %v3662
    %v4185 = vpack.c.b16 %v3665, %v3663
    %v4186 = vpack.c.b16 %v3668, %v3666
    %v4187 = vpack.c.b16 %v3669, %v3667
    %v4188 = vpack.c.b16 %v3672, %v3670
    %v4189 = vpack.c.b16 %v3673, %v3671
    %v4190 = vpack.c.b16 %v3676, %v3674
    %v4191 = vpack.c.b16 %v3677, %v3675
    %v4192 = vpack.c.b16 %v3680, %v3678
    %v4193 = vpack.c.b16 %v3681, %v3679
    %v4194 = vpack.c.b16 %v3684, %v3682
    %v4195 = vpack.c.b16 %v3685, %v3683
    %v4196 = vpack.c.b16 %v3688, %v3686
    %v4197 = vpack.c.b16 %v3689, %v3687
    %v4198 = vpack.c.b16 %v3692, %v3690
    %v4199 = vpack.c.b16 %v3693, %v3691
    %v4200 = vpack.c.b16 %v3696, %v3694
    %v4201 = vpack.c.b16 %v3697, %v3695
    %v4202 = vpack.c.b16 %v3700, %v3698
    %v4203 = vpack.c.b16 %v3701, %v3699
    %v4204 = vpack.c.b16 %v3704, %v3702
    %v4205 = vpack.c.b16 %v3705, %v3703
    %v4206 = vpack.c.b16 %v3708, %v3706
    %v4207 = vpack.c.b16 %v3709, %v3707
    %v4208 = vpack.c.b16 %v3712, %v3710
    %v4209 = vpack.c.b16 %v3713, %v3711
    %v4210 = vpack.c.b16 %v3716, %v3714
    %v4211 = vpack.c.b16 %v3717, %v3715
    %v4212 = vpack.c.b16 %v3720, %v3718
    %v4213 = vpack.c.b16 %v3721, %v3719
    %v4214 = vpack.c.b16 %v3724, %v3722
    %v4215 = vpack.c.b16 %v3725, %v3723
    %v4216 = vpack.c.b16 %v3728, %v3726
    %v4217 = vpack.c.b16 %v3729, %v3727
    %v4218 = vpack.c.b16 %v3732, %v3730
    %v4219 = vpack.c.b16 %v3733, %v3731
    %v4220 = vpack.c.b16 %v3736, %v3734
    %v4221 = vpack.c.b16 %v3737, %v3735
    %v4222 = vpack.c.b16 %v3740, %v3738
    %v4223 = vpack.c.b16 %v3741, %v3739
    %v4224 = vpack.c.b16 %v3744, %v3742
    %v4225 = vpack.c.b16 %v3745, %v3743
    %v4226 = vpack.c.b16 %v3748, %v3746
    %v4227 = vpack.c.b16 %v3749, %v3747
    %v4228 = vpack.c.b16 %v3752, %v3750
    %v4229 = vpack.c.b16 %v3753, %v3751
    %v4230 = vpack.c.b16 %v3756, %v3754
    %v4231 = vpack.c.b16 %v3757, %v3755
    %v4232 = vpack.c.b16 %v3760, %v3758
    %v4233 = vpack.c.b16 %v3761, %v3759
    %v4234 = vpack.c.b16 %v3764, %v3762
    %v4235 = vpack.c.b16 %v3765, %v3763
    %v4236 = vpack.c.b16 %v3768, %v3766
    %v4237 = vpack.c.b16 %v3769, %v3767
    %v4238 = vpack.c.b16 %v3772, %v3770
    %v4239 = vpack.c.b16 %v3773, %v3771
    %v4240 = vpack.c.b16 %v3776, %v3774
    %v4241 = vpack.c.b16 %v3777, %v3775
    %v4242 = vpack.c.b16 %v3780, %v3778
    %v4243 = vpack.c.b16 %v3781, %v3779
    %v4244 = vpack.c.b16 %v3784, %v3782
    %v4245 = vpack.c.b16 %v3785, %v3783
    %v4246 = vpack.c.b16 %v3788, %v3786
    %v4247 = vpack.c.b16 %v3789, %v3787
    %v4248 = vpack.c.b16 %v3792, %v3790
    %v4249 = vpack.c.b16 %v3793, %v3791
    %v4250 = vpack.c.b16 %v3796, %v3794
    %v4251 = vpack.c.b16 %v3797, %v3795
    %v4252 = vpack.c.b16 %v3800, %v3798
    %v4253 = vpack.c.b16 %v3801, %v3799
    %v4254 = vpack.c.b16 %v3804, %v3802
    %v4255 = vpack.c.b16 %v3805, %v3803
    %v4256 = vpack.c.b16 %v3808, %v3806
    %v4257 = vpack.c.b16 %v3809, %v3807
    %v4258 = vpack.c.b16 %v3812, %v3810
    %v4259 = vpack.c.b16 %v3813, %v3811
    %v4260 = vpack.c.b16 %v3816, %v3814
    %v4261 = vpack.c.b16 %v3817, %v3815
    %v4262 = vpack.c.b16 %v3820, %v3818
    %v4263 = vpack.c.b16 %v3821, %v3819
    %v4264 = vpack.c.b16 %v3824, %v3822
    %v4265 = vpack.c.b16 %v3825, %v3823
    %v4266 = vpack.c.b16 %v3828, %v3826
    %v4267 = vpack.c.b16 %v3829, %v3827
    %v4268 = vpack.c.b16 %v3832, %v3830
    %v4269 = vpack.c.b16 %v3833, %v3831
    %v4270 = vpack.c.b16 %v3836, %v3834
    %v4271 = vpack.c.b16 %v3837, %v3835
    %v4272 = vpack.c.b16 %v3840, %v3838
    %v4273 = vpack.c.b16 %v3841, %v3839
    %v4274 = vpack.c.b16 %v3844, %v3842
    %v4275 = vpack.c.b16 %v3845, %v3843
    %v4276 = vpack.c.b16 %v3848, %v3846
    %v4277 = vpack.c.b16 %v3849, %v3847
    %v4278 = vpack.c.b16 %v3852, %v3850
    %v4279 = vpack.c.b16 %v3853, %v3851
    %v4280 = vpack.c.b16 %v3856, %v3854
    %v4281 = vpack.c.b16 %v3857, %v3855
    %v4282 = vpack.c.b16 %v3860, %v3858
    %v4283 = vpack.c.b16 %v3861, %v3859
    %v4284 = vpack.c.b16 %v3864, %v3862
    %v4285 = vpack.c.b16 %v3865, %v3863
    %v4286 = vpack.c.b16 %v3868, %v3866
    %v4287 = vpack.c.b16 %v3869, %v3867
    %v4288 = vpack.c.b16 %v3872, %v3870
    %v4289 = vpack.c.b16 %v3873, %v3871
    %v4290 = vpack.c.b16 %v3876, %v3874
    %v4291 = vpack.c.b16 %v3877, %v3875
    %v4292 = vpack.c.b16 %v3880, %v3878
    %v4293 = vpack.c.b16 %v3881, %v3879
    %v4294 = vpack.c.b16 %v3884, %v3882
    %v4295 = vpack.c.b16 %v3885, %v3883
    %v4296 = vpack.c.b16 %v3888, %v3886
    %v4297 = vpack.c.b16 %v3889, %v3887
    %v4298 = vpack.c.b16 %v3892, %v3890
    %v4299 = vpack.c.b16 %v3893, %v3891
    %v4300 = vpack.c.b16 %v3896, %v3894
    %v4301 = vpack.c.b16 %v3897, %v3895
    %v4302 = vpack.c.b16 %v3900, %v3898
    %v4303 = vpack.c.b16 %v3901, %v3899
    %v4304 = vpack.c.b16 %v3904, %v3902
    %v4305 = vpack.c.b16 %v3905, %v3903
    %v4306 = vpack.c.b16 %v3908, %v3906
    %v4307 = vpack.c.b16 %v3909, %v3907
    %v4308 = vpack.c.b16 %v3912, %v3910
    %v4309 = vpack.c.b16 %v3913, %v3911
    %v4310 = vpack.c.b16 %v3916, %v3914
    %v4311 = vpack.c.b16 %v3917, %v3915
    %v4312 = vpack.c.b16 %v3920, %v3918
    %v4313 = vpack.c.b16 %v3921, %v3919
    %v4314 = vpack.c.b16 %v3924, %v3922
    %v4315 = vpack.c.b16 %v3925, %v3923
    %v4316 = vpack.c.b16 %v3928, %v3926
    %v4317 = vpack.c.b16 %v3929, %v3927
    %v4318 = vpack.c.b16 %v3932, %v3930
    %v4319 = vpack.c.b16 %v3933, %v3931
    %v4320 = vpack.c.b16 %v3936, %v3934
    %v4321 = vpack.c.b16 %v3937, %v3935
    %4706 = vmatprep.subr.bf16.mxu0 %v3953
    %4707 = vmatpush1.bf16.msra.mxu0 %v3952
    %4708 = vmatprep.subr.bf16.mxu0 %v3951
    %4709 = vmatpush1.bf16.msra.mxu0 %v3950
    %4710 = vmatprep.subr.bf16.mxu0 %v3949
    %4711 = vmatpush1.bf16.msra.mxu0 %v3948
    %4712 = vmatprep.subr.bf16.mxu0 %v3947
    %4713 = vmatpush1.bf16.msra.mxu0 %v3946
    %4714 = vmatprep.subr.bf16.mxu0 %v3945
    %4715 = vmatpush1.bf16.msra.mxu0 %v3944
    %4716 = vmatprep.subr.bf16.mxu0 %v3943
    %4717 = vmatpush1.bf16.msra.mxu0 %v3942
    %4718 = vmatprep.subr.bf16.mxu0 %v3941
    %4719 = vmatpush1.bf16.msra.mxu0 %v3940
    %4720 = vmatprep.subr.bf16.mxu0 %v3939
    %4721 = vmatpush1.bf16.msra.mxu0 %v3938
    %4722 = vmatprep.subr.bf16.mxu0 %v3969
    %4723 = vmatpush2.bf16.msra.mxu0 %v3968
    %4724 = vmatprep.subr.bf16.mxu0 %v3967
    %4725 = vmatpush2.bf16.msra.mxu0 %v3966
    %4726 = vmatprep.subr.bf16.mxu0 %v3965
    %4727 = vmatpush2.bf16.msra.mxu0 %v3964
    %4728 = vmatprep.subr.bf16.mxu0 %v3963
    %4729 = vmatpush2.bf16.msra.mxu0 %v3962
    %4730 = vmatprep.subr.bf16.mxu0 %v3961
    %4731 = vmatpush2.bf16.msra.mxu0 %v3960
    %4732 = vmatprep.subr.bf16.mxu0 %v3959
    %4733 = vmatpush2.bf16.msra.mxu0 %v3958
    %4734 = vmatprep.subr.bf16.mxu0 %v3957
    %4735 = vmatpush2.bf16.msra.mxu0 %v3956
    %4736 = vmatprep.subr.bf16.mxu0 %v3955
    %4737 = vmatpush2.bf16.msra.mxu0 %v3954
    %4738 = vmatprep.mubr.bf16.mxu0 %v2019
    %4739 = vmatmul.mubr.bf16.gmra.mxu0 %v2018
    %v4740 = vpop.f32.mrf.mxu0
    %v4741 = vadd.f32 %v859, %v4740
    %v4742 = vpop.f32.mrf.mxu0
    %v4743 = vadd.f32 %v863, %v4742
    %v4744 = vpop.f32.mrf.mxu0
    %v4745 = vadd.f32 %v859, %v4744
    %v4746 = vpop.f32.mrf.mxu0
    %v4747 = vadd.f32 %v863, %v4746
    %4748 = vmatprep.mubr.bf16.mxu0 %v2043
    %4749 = vmatmul.mubr.bf16.gmra.mxu0 %v2042
    %v4750 = vpop.f32.mrf.mxu0
    %v4751 = vadd.f32 %v859, %v4750
    %v4752 = vpop.f32.mrf.mxu0
    %v4753 = vadd.f32 %v863, %v4752
    %v4754 = vpop.f32.mrf.mxu0
    %v4755 = vadd.f32 %v859, %v4754
    %v4756 = vpop.f32.mrf.mxu0
    %v4757 = vadd.f32 %v863, %v4756
    %4758 = vmatprep.mubr.bf16.mxu0 %v2067
    %4759 = vmatmul.mubr.bf16.gmra.mxu0 %v2066
    %v4760 = vpop.f32.mrf.mxu0
    %v4761 = vadd.f32 %v859, %v4760
    %v4762 = vpop.f32.mrf.mxu0
    %v4763 = vadd.f32 %v863, %v4762
    %v4764 = vpop.f32.mrf.mxu0
    %v4765 = vadd.f32 %v859, %v4764
    %v4766 = vpop.f32.mrf.mxu0
    %v4767 = vadd.f32 %v863, %v4766
    %4768 = vmatprep.mubr.bf16.mxu0 %v2091
    %4769 = vmatmul.mubr.bf16.gmra.mxu0 %v2090
    %v4770 = vpop.f32.mrf.mxu0
    %v4771 = vadd.f32 %v859, %v4770
    %v4772 = vpop.f32.mrf.mxu0
    %v4773 = vadd.f32 %v863, %v4772
    %v4774 = vpop.f32.mrf.mxu0
    %v4775 = vadd.f32 %v859, %v4774
    %v4776 = vpop.f32.mrf.mxu0
    %v4777 = vadd.f32 %v863, %v4776
    %4778 = vmatprep.mubr.bf16.mxu0 %v2115
    %4779 = vmatmul.mubr.bf16.gmra.mxu0 %v2114
    %v4780 = vpop.f32.mrf.mxu0
    %v4781 = vadd.f32 %v859, %v4780
    %v4782 = vpop.f32.mrf.mxu0
    %v4783 = vadd.f32 %v863, %v4782
    %v4784 = vpop.f32.mrf.mxu0
    %v4785 = vadd.f32 %v859, %v4784
    %v4786 = vpop.f32.mrf.mxu0
    %v4787 = vadd.f32 %v863, %v4786
    %4788 = vmatprep.mubr.bf16.mxu0 %v2139
    %4789 = vmatmul.mubr.bf16.gmra.mxu0 %v2138
    %v4790 = vpop.f32.mrf.mxu0
    %v4791 = vadd.f32 %v859, %v4790
    %v4792 = vpop.f32.mrf.mxu0
    %v4793 = vadd.f32 %v863, %v4792
    %v4794 = vpop.f32.mrf.mxu0
    %v4795 = vadd.f32 %v859, %v4794
    %v4796 = vpop.f32.mrf.mxu0
    %v4797 = vadd.f32 %v863, %v4796
    %4798 = vmatprep.mubr.bf16.mxu0 %v2163
    %4799 = vmatmul.mubr.bf16.gmra.mxu0 %v2162
    %v4800 = vpop.f32.mrf.mxu0
    %v4801 = vadd.f32 %v859, %v4800
    %v4802 = vpop.f32.mrf.mxu0
    %v4803 = vadd.f32 %v863, %v4802
    %v4804 = vpop.f32.mrf.mxu0
    %v4805 = vadd.f32 %v859, %v4804
    %v4806 = vpop.f32.mrf.mxu0
    %v4807 = vadd.f32 %v863, %v4806
    %4808 = vmatprep.mubr.bf16.mxu0 %v2187
    %4809 = vmatmul.mubr.bf16.gmra.mxu0 %v2186
    %v4810 = vpop.f32.mrf.mxu0
    %v4811 = vadd.f32 %v859, %v4810
    %v4812 = vpop.f32.mrf.mxu0
    %v4813 = vadd.f32 %v863, %v4812
    %v4814 = vpop.f32.mrf.mxu0
    %v4815 = vadd.f32 %v859, %v4814
    %v4816 = vpop.f32.mrf.mxu0
    %v4817 = vadd.f32 %v863, %v4816
    %4818 = vmatprep.mubr.bf16.mxu0 %v2211
    %4819 = vmatmul.mubr.bf16.gmra.mxu0 %v2210
    %v4820 = vpop.f32.mrf.mxu0
    %v4821 = vadd.f32 %v859, %v4820
    %v4822 = vpop.f32.mrf.mxu0
    %v4823 = vadd.f32 %v863, %v4822
    %v4824 = vpop.f32.mrf.mxu0
    %v4825 = vadd.f32 %v859, %v4824
    %v4826 = vpop.f32.mrf.mxu0
    %v4827 = vadd.f32 %v863, %v4826
    %4828 = vmatprep.mubr.bf16.mxu0 %v2235
    %4829 = vmatmul.mubr.bf16.gmra.mxu0 %v2234
    %v4830 = vpop.f32.mrf.mxu0
    %v4831 = vadd.f32 %v859, %v4830
    %v4832 = vpop.f32.mrf.mxu0
    %v4833 = vadd.f32 %v863, %v4832
    %v4834 = vpop.f32.mrf.mxu0
    %v4835 = vadd.f32 %v859, %v4834
    %v4836 = vpop.f32.mrf.mxu0
    %v4837 = vadd.f32 %v863, %v4836
    %4838 = vmatprep.mubr.bf16.mxu0 %v2259
    %4839 = vmatmul.mubr.bf16.gmra.mxu0 %v2258
    %v4840 = vpop.f32.mrf.mxu0
    %v4841 = vadd.f32 %v859, %v4840
    %v4842 = vpop.f32.mrf.mxu0
    %v4843 = vadd.f32 %v863, %v4842
    %v4844 = vpop.f32.mrf.mxu0
    %v4845 = vadd.f32 %v859, %v4844
    %v4846 = vpop.f32.mrf.mxu0
    %v4847 = vadd.f32 %v863, %v4846
    %4848 = vmatprep.mubr.bf16.mxu0 %v2283
    %4849 = vmatmul.mubr.bf16.gmra.mxu0 %v2282
    %v4850 = vpop.f32.mrf.mxu0
    %v4851 = vadd.f32 %v859, %v4850
    %v4852 = vpop.f32.mrf.mxu0
    %v4853 = vadd.f32 %v863, %v4852
    %v4854 = vpop.f32.mrf.mxu0
    %v4855 = vadd.f32 %v859, %v4854
    %v4856 = vpop.f32.mrf.mxu0
    %v4857 = vadd.f32 %v863, %v4856
    %4858 = vmatprep.mubr.bf16.mxu0 %v2307
    %4859 = vmatmul.mubr.bf16.gmra.mxu0 %v2306
    %v4860 = vpop.f32.mrf.mxu0
    %v4861 = vadd.f32 %v859, %v4860
    %v4862 = vpop.f32.mrf.mxu0
    %v4863 = vadd.f32 %v863, %v4862
    %v4864 = vpop.f32.mrf.mxu0
    %v4865 = vadd.f32 %v859, %v4864
    %v4866 = vpop.f32.mrf.mxu0
    %v4867 = vadd.f32 %v863, %v4866
    %4868 = vmatprep.mubr.bf16.mxu0 %v2331
    %4869 = vmatmul.mubr.bf16.gmra.mxu0 %v2330
    %v4870 = vpop.f32.mrf.mxu0
    %v4871 = vadd.f32 %v859, %v4870
    %v4872 = vpop.f32.mrf.mxu0
    %v4873 = vadd.f32 %v863, %v4872
    %v4874 = vpop.f32.mrf.mxu0
    %v4875 = vadd.f32 %v859, %v4874
    %v4876 = vpop.f32.mrf.mxu0
    %v4877 = vadd.f32 %v863, %v4876
    %4878 = vmatprep.mubr.bf16.mxu0 %v2355
    %4879 = vmatmul.mubr.bf16.gmra.mxu0 %v2354
    %v4880 = vpop.f32.mrf.mxu0
    %v4881 = vadd.f32 %v859, %v4880
    %v4882 = vpop.f32.mrf.mxu0
    %v4883 = vadd.f32 %v863, %v4882
    %v4884 = vpop.f32.mrf.mxu0
    %v4885 = vadd.f32 %v859, %v4884
    %v4886 = vpop.f32.mrf.mxu0
    %v4887 = vadd.f32 %v863, %v4886
    %4888 = vmatprep.mubr.bf16.mxu0 %v2379
    %4889 = vmatmul.mubr.bf16.gmra.mxu0 %v2378
    %v4890 = vpop.f32.mrf.mxu0
    %v4891 = vadd.f32 %v859, %v4890
    %v4892 = vpop.f32.mrf.mxu0
    %v4893 = vadd.f32 %v863, %v4892
    %v4894 = vpop.f32.mrf.mxu0
    %v4895 = vadd.f32 %v859, %v4894
    %v4896 = vpop.f32.mrf.mxu0
    %v4897 = vadd.f32 %v863, %v4896
    %4898 = vdwg.mxu0
    %4899 = vmatprep.subr.bf16.mxu0 %v3985
    %4900 = vmatpush1.bf16.msra.mxu0 %v3984
    %4901 = vmatprep.subr.bf16.mxu0 %v3983
    %4902 = vmatpush1.bf16.msra.mxu0 %v3982
    %4903 = vmatprep.subr.bf16.mxu0 %v3981
    %4904 = vmatpush1.bf16.msra.mxu0 %v3980
    %4905 = vmatprep.subr.bf16.mxu0 %v3979
    %4906 = vmatpush1.bf16.msra.mxu0 %v3978
    %4907 = vmatprep.subr.bf16.mxu0 %v3977
    %4908 = vmatpush1.bf16.msra.mxu0 %v3976
    %4909 = vmatprep.subr.bf16.mxu0 %v3975
    %4910 = vmatpush1.bf16.msra.mxu0 %v3974
    %4911 = vmatprep.subr.bf16.mxu0 %v3973
    %4912 = vmatpush1.bf16.msra.mxu0 %v3972
    %4913 = vmatprep.subr.bf16.mxu0 %v3971
    %4914 = vmatpush1.bf16.msra.mxu0 %v3970
    %4915 = vmatprep.subr.bf16.mxu0 %v4001
    %4916 = vmatpush2.bf16.msra.mxu0 %v4000
    %4917 = vmatprep.subr.bf16.mxu0 %v3999
    %4918 = vmatpush2.bf16.msra.mxu0 %v3998
    %4919 = vmatprep.subr.bf16.mxu0 %v3997
    %4920 = vmatpush2.bf16.msra.mxu0 %v3996
    %4921 = vmatprep.subr.bf16.mxu0 %v3995
    %4922 = vmatpush2.bf16.msra.mxu0 %v3994
    %4923 = vmatprep.subr.bf16.mxu0 %v3993
    %4924 = vmatpush2.bf16.msra.mxu0 %v3992
    %4925 = vmatprep.subr.bf16.mxu0 %v3991
    %4926 = vmatpush2.bf16.msra.mxu0 %v3990
    %4927 = vmatprep.subr.bf16.mxu0 %v3989
    %4928 = vmatpush2.bf16.msra.mxu0 %v3988
    %4929 = vmatprep.subr.bf16.mxu0 %v3987
    %4930 = vmatpush2.bf16.msra.mxu0 %v3986
    %4931 = vmatprep.mubr.bf16.mxu0 %v2021
    %4932 = vmatmul.mubr.bf16.gmra.mxu0 %v2020
    %v4933 = vpop.f32.mrf.mxu0
    %v4934 = vadd.f32 %v4741, %v4933
    %v4935 = vpop.f32.mrf.mxu0
    %v4936 = vadd.f32 %v4743, %v4935
    %v4937 = vpop.f32.mrf.mxu0
    %v4938 = vadd.f32 %v4745, %v4937
    %v4939 = vpop.f32.mrf.mxu0
    %v4940 = vadd.f32 %v4747, %v4939
    %4941 = vmatprep.mubr.bf16.mxu0 %v2045
    %4942 = vmatmul.mubr.bf16.gmra.mxu0 %v2044
    %v4943 = vpop.f32.mrf.mxu0
    %v4944 = vadd.f32 %v4751, %v4943
    %v4945 = vpop.f32.mrf.mxu0
    %v4946 = vadd.f32 %v4753, %v4945
    %v4947 = vpop.f32.mrf.mxu0
    %v4948 = vadd.f32 %v4755, %v4947
    %v4949 = vpop.f32.mrf.mxu0
    %v4950 = vadd.f32 %v4757, %v4949
    %4951 = vmatprep.mubr.bf16.mxu0 %v2069
    %4952 = vmatmul.mubr.bf16.gmra.mxu0 %v2068
    %v4953 = vpop.f32.mrf.mxu0
    %v4954 = vadd.f32 %v4761, %v4953
    %v4955 = vpop.f32.mrf.mxu0
    %v4956 = vadd.f32 %v4763, %v4955
    %v4957 = vpop.f32.mrf.mxu0
    %v4958 = vadd.f32 %v4765, %v4957
    %v4959 = vpop.f32.mrf.mxu0
    %v4960 = vadd.f32 %v4767, %v4959
    %4961 = vmatprep.mubr.bf16.mxu0 %v2093
    %4962 = vmatmul.mubr.bf16.gmra.mxu0 %v2092
    %v4963 = vpop.f32.mrf.mxu0
    %v4964 = vadd.f32 %v4771, %v4963
    %v4965 = vpop.f32.mrf.mxu0
    %v4966 = vadd.f32 %v4773, %v4965
    %v4967 = vpop.f32.mrf.mxu0
    %v4968 = vadd.f32 %v4775, %v4967
    %v4969 = vpop.f32.mrf.mxu0
    %v4970 = vadd.f32 %v4777, %v4969
    %4971 = vmatprep.mubr.bf16.mxu0 %v2117
    %4972 = vmatmul.mubr.bf16.gmra.mxu0 %v2116
    %v4973 = vpop.f32.mrf.mxu0
    %v4974 = vadd.f32 %v4781, %v4973
    %v4975 = vpop.f32.mrf.mxu0
    %v4976 = vadd.f32 %v4783, %v4975
    %v4977 = vpop.f32.mrf.mxu0
    %v4978 = vadd.f32 %v4785, %v4977
    %v4979 = vpop.f32.mrf.mxu0
    %v4980 = vadd.f32 %v4787, %v4979
    %4981 = vmatprep.mubr.bf16.mxu0 %v2141
    %4982 = vmatmul.mubr.bf16.gmra.mxu0 %v2140
    %v4983 = vpop.f32.mrf.mxu0
    %v4984 = vadd.f32 %v4791, %v4983
    %v4985 = vpop.f32.mrf.mxu0
    %v4986 = vadd.f32 %v4793, %v4985
    %v4987 = vpop.f32.mrf.mxu0
    %v4988 = vadd.f32 %v4795, %v4987
    %v4989 = vpop.f32.mrf.mxu0
    %v4990 = vadd.f32 %v4797, %v4989
    %4991 = vmatprep.mubr.bf16.mxu0 %v2165
    %4992 = vmatmul.mubr.bf16.gmra.mxu0 %v2164
    %v4993 = vpop.f32.mrf.mxu0
    %v4994 = vadd.f32 %v4801, %v4993
    %v4995 = vpop.f32.mrf.mxu0
    %v4996 = vadd.f32 %v4803, %v4995
    %v4997 = vpop.f32.mrf.mxu0
    %v4998 = vadd.f32 %v4805, %v4997
    %v4999 = vpop.f32.mrf.mxu0
    %v5000 = vadd.f32 %v4807, %v4999
    %5001 = vmatprep.mubr.bf16.mxu0 %v2189
    %5002 = vmatmul.mubr.bf16.gmra.mxu0 %v2188
    %v5003 = vpop.f32.mrf.mxu0
    %v5004 = vadd.f32 %v4811, %v5003
    %v5005 = vpop.f32.mrf.mxu0
    %v5006 = vadd.f32 %v4813, %v5005
    %v5007 = vpop.f32.mrf.mxu0
    %v5008 = vadd.f32 %v4815, %v5007
    %v5009 = vpop.f32.mrf.mxu0
    %v5010 = vadd.f32 %v4817, %v5009
    %5011 = vmatprep.mubr.bf16.mxu0 %v2213
    %5012 = vmatmul.mubr.bf16.gmra.mxu0 %v2212
    %v5013 = vpop.f32.mrf.mxu0
    %v5014 = vadd.f32 %v4821, %v5013
    %v5015 = vpop.f32.mrf.mxu0
    %v5016 = vadd.f32 %v4823, %v5015
    %v5017 = vpop.f32.mrf.mxu0
    %v5018 = vadd.f32 %v4825, %v5017
    %v5019 = vpop.f32.mrf.mxu0
    %v5020 = vadd.f32 %v4827, %v5019
    %5021 = vmatprep.mubr.bf16.mxu0 %v2237
    %5022 = vmatmul.mubr.bf16.gmra.mxu0 %v2236
    %v5023 = vpop.f32.mrf.mxu0
    %v5024 = vadd.f32 %v4831, %v5023
    %v5025 = vpop.f32.mrf.mxu0
    %v5026 = vadd.f32 %v4833, %v5025
    %v5027 = vpop.f32.mrf.mxu0
    %v5028 = vadd.f32 %v4835, %v5027
    %v5029 = vpop.f32.mrf.mxu0
    %v5030 = vadd.f32 %v4837, %v5029
    %5031 = vmatprep.mubr.bf16.mxu0 %v2261
    %5032 = vmatmul.mubr.bf16.gmra.mxu0 %v2260
    %v5033 = vpop.f32.mrf.mxu0
    %v5034 = vadd.f32 %v4841, %v5033
    %v5035 = vpop.f32.mrf.mxu0
    %v5036 = vadd.f32 %v4843, %v5035
    %v5037 = vpop.f32.mrf.mxu0
    %v5038 = vadd.f32 %v4845, %v5037
    %v5039 = vpop.f32.mrf.mxu0
    %v5040 = vadd.f32 %v4847, %v5039
    %5041 = vmatprep.mubr.bf16.mxu0 %v2285
    %5042 = vmatmul.mubr.bf16.gmra.mxu0 %v2284
    %v5043 = vpop.f32.mrf.mxu0
    %v5044 = vadd.f32 %v4851, %v5043
    %v5045 = vpop.f32.mrf.mxu0
    %v5046 = vadd.f32 %v4853, %v5045
    %v5047 = vpop.f32.mrf.mxu0
    %v5048 = vadd.f32 %v4855, %v5047
    %v5049 = vpop.f32.mrf.mxu0
    %v5050 = vadd.f32 %v4857, %v5049
    %5051 = vmatprep.mubr.bf16.mxu0 %v2309
    %5052 = vmatmul.mubr.bf16.gmra.mxu0 %v2308
    %v5053 = vpop.f32.mrf.mxu0
    %v5054 = vadd.f32 %v4861, %v5053
    %v5055 = vpop.f32.mrf.mxu0
    %v5056 = vadd.f32 %v4863, %v5055
    %v5057 = vpop.f32.mrf.mxu0
    %v5058 = vadd.f32 %v4865, %v5057
    %v5059 = vpop.f32.mrf.mxu0
    %v5060 = vadd.f32 %v4867, %v5059
    %5061 = vmatprep.mubr.bf16.mxu0 %v2333
    %5062 = vmatmul.mubr.bf16.gmra.mxu0 %v2332
    %v5063 = vpop.f32.mrf.mxu0
    %v5064 = vadd.f32 %v4871, %v5063
    %v5065 = vpop.f32.mrf.mxu0
    %v5066 = vadd.f32 %v4873, %v5065
    %v5067 = vpop.f32.mrf.mxu0
    %v5068 = vadd.f32 %v4875, %v5067
    %v5069 = vpop.f32.mrf.mxu0
    %v5070 = vadd.f32 %v4877, %v5069
    %5071 = vmatprep.mubr.bf16.mxu0 %v2357
    %5072 = vmatmul.mubr.bf16.gmra.mxu0 %v2356
    %v5073 = vpop.f32.mrf.mxu0
    %v5074 = vadd.f32 %v4881, %v5073
    %v5075 = vpop.f32.mrf.mxu0
    %v5076 = vadd.f32 %v4883, %v5075
    %v5077 = vpop.f32.mrf.mxu0
    %v5078 = vadd.f32 %v4885, %v5077
    %v5079 = vpop.f32.mrf.mxu0
    %v5080 = vadd.f32 %v4887, %v5079
    %5081 = vmatprep.mubr.bf16.mxu0 %v2381
    %5082 = vmatmul.mubr.bf16.gmra.mxu0 %v2380
    %v5083 = vpop.f32.mrf.mxu0
    %v5084 = vadd.f32 %v4891, %v5083
    %v5085 = vpop.f32.mrf.mxu0
    %v5086 = vadd.f32 %v4893, %v5085
    %v5087 = vpop.f32.mrf.mxu0
    %v5088 = vadd.f32 %v4895, %v5087
    %v5089 = vpop.f32.mrf.mxu0
    %v5090 = vadd.f32 %v4897, %v5089
    %5091 = vdwg.mxu0
    %5092 = vmatprep.subr.bf16.mxu0 %v4017
    %5093 = vmatpush1.bf16.msra.mxu0 %v4016
    %5094 = vmatprep.subr.bf16.mxu0 %v4015
    %5095 = vmatpush1.bf16.msra.mxu0 %v4014
    %5096 = vmatprep.subr.bf16.mxu0 %v4013
    %5097 = vmatpush1.bf16.msra.mxu0 %v4012
    %5098 = vmatprep.subr.bf16.mxu0 %v4011
    %5099 = vmatpush1.bf16.msra.mxu0 %v4010
    %5100 = vmatprep.subr.bf16.mxu0 %v4009
    %5101 = vmatpush1.bf16.msra.mxu0 %v4008
    %5102 = vmatprep.subr.bf16.mxu0 %v4007
    %5103 = vmatpush1.bf16.msra.mxu0 %v4006
    %5104 = vmatprep.subr.bf16.mxu0 %v4005
    %5105 = vmatpush1.bf16.msra.mxu0 %v4004
    %5106 = vmatprep.subr.bf16.mxu0 %v4003
    %5107 = vmatpush1.bf16.msra.mxu0 %v4002
    %5108 = vmatprep.subr.bf16.mxu0 %v4033
    %5109 = vmatpush2.bf16.msra.mxu0 %v4032
    %5110 = vmatprep.subr.bf16.mxu0 %v4031
    %5111 = vmatpush2.bf16.msra.mxu0 %v4030
    %5112 = vmatprep.subr.bf16.mxu0 %v4029
    %5113 = vmatpush2.bf16.msra.mxu0 %v4028
    %5114 = vmatprep.subr.bf16.mxu0 %v4027
    %5115 = vmatpush2.bf16.msra.mxu0 %v4026
    %5116 = vmatprep.subr.bf16.mxu0 %v4025
    %5117 = vmatpush2.bf16.msra.mxu0 %v4024
    %5118 = vmatprep.subr.bf16.mxu0 %v4023
    %5119 = vmatpush2.bf16.msra.mxu0 %v4022
    %5120 = vmatprep.subr.bf16.mxu0 %v4021
    %5121 = vmatpush2.bf16.msra.mxu0 %v4020
    %5122 = vmatprep.subr.bf16.mxu0 %v4019
    %5123 = vmatpush2.bf16.msra.mxu0 %v4018
    %5124 = vmatprep.mubr.bf16.mxu0 %v2023
    %5125 = vmatmul.mubr.bf16.gmra.mxu0 %v2022
    %v5126 = vpop.f32.mrf.mxu0
    %v5127 = vadd.f32 %v4934, %v5126
    %v5128 = vpop.f32.mrf.mxu0
    %v5129 = vadd.f32 %v4936, %v5128
    %v5130 = vpop.f32.mrf.mxu0
    %v5131 = vadd.f32 %v4938, %v5130
    %v5132 = vpop.f32.mrf.mxu0
    %v5133 = vadd.f32 %v4940, %v5132
    %5134 = vmatprep.mubr.bf16.mxu0 %v2047
    %5135 = vmatmul.mubr.bf16.gmra.mxu0 %v2046
    %v5136 = vpop.f32.mrf.mxu0
    %v5137 = vadd.f32 %v4944, %v5136
    %v5138 = vpop.f32.mrf.mxu0
    %v5139 = vadd.f32 %v4946, %v5138
    %v5140 = vpop.f32.mrf.mxu0
    %v5141 = vadd.f32 %v4948, %v5140
    %v5142 = vpop.f32.mrf.mxu0
    %v5143 = vadd.f32 %v4950, %v5142
    %5144 = vmatprep.mubr.bf16.mxu0 %v2071
    %5145 = vmatmul.mubr.bf16.gmra.mxu0 %v2070
    %v5146 = vpop.f32.mrf.mxu0
    %v5147 = vadd.f32 %v4954, %v5146
    %v5148 = vpop.f32.mrf.mxu0
    %v5149 = vadd.f32 %v4956, %v5148
    %v5150 = vpop.f32.mrf.mxu0
    %v5151 = vadd.f32 %v4958, %v5150
    %v5152 = vpop.f32.mrf.mxu0
    %v5153 = vadd.f32 %v4960, %v5152
    %5154 = vmatprep.mubr.bf16.mxu0 %v2095
    %5155 = vmatmul.mubr.bf16.gmra.mxu0 %v2094
    %v5156 = vpop.f32.mrf.mxu0
    %v5157 = vadd.f32 %v4964, %v5156
    %v5158 = vpop.f32.mrf.mxu0
    %v5159 = vadd.f32 %v4966, %v5158
    %v5160 = vpop.f32.mrf.mxu0
    %v5161 = vadd.f32 %v4968, %v5160
    %v5162 = vpop.f32.mrf.mxu0
    %v5163 = vadd.f32 %v4970, %v5162
    %5164 = vmatprep.mubr.bf16.mxu0 %v2119
    %5165 = vmatmul.mubr.bf16.gmra.mxu0 %v2118
    %v5166 = vpop.f32.mrf.mxu0
    %v5167 = vadd.f32 %v4974, %v5166
    %v5168 = vpop.f32.mrf.mxu0
    %v5169 = vadd.f32 %v4976, %v5168
    %v5170 = vpop.f32.mrf.mxu0
    %v5171 = vadd.f32 %v4978, %v5170
    %v5172 = vpop.f32.mrf.mxu0
    %v5173 = vadd.f32 %v4980, %v5172
    %5174 = vmatprep.mubr.bf16.mxu0 %v2143
    %5175 = vmatmul.mubr.bf16.gmra.mxu0 %v2142
    %v5176 = vpop.f32.mrf.mxu0
    %v5177 = vadd.f32 %v4984, %v5176
    %v5178 = vpop.f32.mrf.mxu0
    %v5179 = vadd.f32 %v4986, %v5178
    %v5180 = vpop.f32.mrf.mxu0
    %v5181 = vadd.f32 %v4988, %v5180
    %v5182 = vpop.f32.mrf.mxu0
    %v5183 = vadd.f32 %v4990, %v5182
    %5184 = vmatprep.mubr.bf16.mxu0 %v2167
    %5185 = vmatmul.mubr.bf16.gmra.mxu0 %v2166
    %v5186 = vpop.f32.mrf.mxu0
    %v5187 = vadd.f32 %v4994, %v5186
    %v5188 = vpop.f32.mrf.mxu0
    %v5189 = vadd.f32 %v4996, %v5188
    %v5190 = vpop.f32.mrf.mxu0
    %v5191 = vadd.f32 %v4998, %v5190
    %v5192 = vpop.f32.mrf.mxu0
    %v5193 = vadd.f32 %v5000, %v5192
    %5194 = vmatprep.mubr.bf16.mxu0 %v2191
    %5195 = vmatmul.mubr.bf16.gmra.mxu0 %v2190
    %v5196 = vpop.f32.mrf.mxu0
    %v5197 = vadd.f32 %v5004, %v5196
    %v5198 = vpop.f32.mrf.mxu0
    %v5199 = vadd.f32 %v5006, %v5198
    %v5200 = vpop.f32.mrf.mxu0
    %v5201 = vadd.f32 %v5008, %v5200
    %v5202 = vpop.f32.mrf.mxu0
    %v5203 = vadd.f32 %v5010, %v5202
    %5204 = vmatprep.mubr.bf16.mxu0 %v2215
    %5205 = vmatmul.mubr.bf16.gmra.mxu0 %v2214
    %v5206 = vpop.f32.mrf.mxu0
    %v5207 = vadd.f32 %v5014, %v5206
    %v5208 = vpop.f32.mrf.mxu0
    %v5209 = vadd.f32 %v5016, %v5208
    %v5210 = vpop.f32.mrf.mxu0
    %v5211 = vadd.f32 %v5018, %v5210
    %v5212 = vpop.f32.mrf.mxu0
    %v5213 = vadd.f32 %v5020, %v5212
    %5214 = vmatprep.mubr.bf16.mxu0 %v2239
    %5215 = vmatmul.mubr.bf16.gmra.mxu0 %v2238
    %v5216 = vpop.f32.mrf.mxu0
    %v5217 = vadd.f32 %v5024, %v5216
    %v5218 = vpop.f32.mrf.mxu0
    %v5219 = vadd.f32 %v5026, %v5218
    %v5220 = vpop.f32.mrf.mxu0
    %v5221 = vadd.f32 %v5028, %v5220
    %v5222 = vpop.f32.mrf.mxu0
    %v5223 = vadd.f32 %v5030, %v5222
    %5224 = vmatprep.mubr.bf16.mxu0 %v2263
    %5225 = vmatmul.mubr.bf16.gmra.mxu0 %v2262
    %v5226 = vpop.f32.mrf.mxu0
    %v5227 = vadd.f32 %v5034, %v5226
    %v5228 = vpop.f32.mrf.mxu0
    %v5229 = vadd.f32 %v5036, %v5228
    %v5230 = vpop.f32.mrf.mxu0
    %v5231 = vadd.f32 %v5038, %v5230
    %v5232 = vpop.f32.mrf.mxu0
    %v5233 = vadd.f32 %v5040, %v5232
    %5234 = vmatprep.mubr.bf16.mxu0 %v2287
    %5235 = vmatmul.mubr.bf16.gmra.mxu0 %v2286
    %v5236 = vpop.f32.mrf.mxu0
    %v5237 = vadd.f32 %v5044, %v5236
    %v5238 = vpop.f32.mrf.mxu0
    %v5239 = vadd.f32 %v5046, %v5238
    %v5240 = vpop.f32.mrf.mxu0
    %v5241 = vadd.f32 %v5048, %v5240
    %v5242 = vpop.f32.mrf.mxu0
    %v5243 = vadd.f32 %v5050, %v5242
    %5244 = vmatprep.mubr.bf16.mxu0 %v2311
    %5245 = vmatmul.mubr.bf16.gmra.mxu0 %v2310
    %v5246 = vpop.f32.mrf.mxu0
    %v5247 = vadd.f32 %v5054, %v5246
    %v5248 = vpop.f32.mrf.mxu0
    %v5249 = vadd.f32 %v5056, %v5248
    %v5250 = vpop.f32.mrf.mxu0
    %v5251 = vadd.f32 %v5058, %v5250
    %v5252 = vpop.f32.mrf.mxu0
    %v5253 = vadd.f32 %v5060, %v5252
    %5254 = vmatprep.mubr.bf16.mxu0 %v2335
    %5255 = vmatmul.mubr.bf16.gmra.mxu0 %v2334
    %v5256 = vpop.f32.mrf.mxu0
    %v5257 = vadd.f32 %v5064, %v5256
    %v5258 = vpop.f32.mrf.mxu0
    %v5259 = vadd.f32 %v5066, %v5258
    %v5260 = vpop.f32.mrf.mxu0
    %v5261 = vadd.f32 %v5068, %v5260
    %v5262 = vpop.f32.mrf.mxu0
    %v5263 = vadd.f32 %v5070, %v5262
    %5264 = vmatprep.mubr.bf16.mxu0 %v2359
    %5265 = vmatmul.mubr.bf16.gmra.mxu0 %v2358
    %v5266 = vpop.f32.mrf.mxu0
    %v5267 = vadd.f32 %v5074, %v5266
    %v5268 = vpop.f32.mrf.mxu0
    %v5269 = vadd.f32 %v5076, %v5268
    %v5270 = vpop.f32.mrf.mxu0
    %v5271 = vadd.f32 %v5078, %v5270
    %v5272 = vpop.f32.mrf.mxu0
    %v5273 = vadd.f32 %v5080, %v5272
    %5274 = vmatprep.mubr.bf16.mxu0 %v2383
    %5275 = vmatmul.mubr.bf16.gmra.mxu0 %v2382
    %v5276 = vpop.f32.mrf.mxu0
    %v5277 = vadd.f32 %v5084, %v5276
    %v5278 = vpop.f32.mrf.mxu0
    %v5279 = vadd.f32 %v5086, %v5278
    %v5280 = vpop.f32.mrf.mxu0
    %v5281 = vadd.f32 %v5088, %v5280
    %v5282 = vpop.f32.mrf.mxu0
    %v5283 = vadd.f32 %v5090, %v5282
    %5284 = vdwg.mxu0
    %5285 = vmatprep.subr.bf16.mxu0 %v4049
    %5286 = vmatpush1.bf16.msra.mxu0 %v4048
    %5287 = vmatprep.subr.bf16.mxu0 %v4047
    %5288 = vmatpush1.bf16.msra.mxu0 %v4046
    %5289 = vmatprep.subr.bf16.mxu0 %v4045
    %5290 = vmatpush1.bf16.msra.mxu0 %v4044
    %5291 = vmatprep.subr.bf16.mxu0 %v4043
    %5292 = vmatpush1.bf16.msra.mxu0 %v4042
    %5293 = vmatprep.subr.bf16.mxu0 %v4041
    %5294 = vmatpush1.bf16.msra.mxu0 %v4040
    %5295 = vmatprep.subr.bf16.mxu0 %v4039
    %5296 = vmatpush1.bf16.msra.mxu0 %v4038
    %5297 = vmatprep.subr.bf16.mxu0 %v4037
    %5298 = vmatpush1.bf16.msra.mxu0 %v4036
    %5299 = vmatprep.subr.bf16.mxu0 %v4035
    %5300 = vmatpush1.bf16.msra.mxu0 %v4034
    %5301 = vmatprep.subr.bf16.mxu0 %v4065
    %5302 = vmatpush2.bf16.msra.mxu0 %v4064
    %5303 = vmatprep.subr.bf16.mxu0 %v4063
    %5304 = vmatpush2.bf16.msra.mxu0 %v4062
    %5305 = vmatprep.subr.bf16.mxu0 %v4061
    %5306 = vmatpush2.bf16.msra.mxu0 %v4060
    %5307 = vmatprep.subr.bf16.mxu0 %v4059
    %5308 = vmatpush2.bf16.msra.mxu0 %v4058
    %5309 = vmatprep.subr.bf16.mxu0 %v4057
    %5310 = vmatpush2.bf16.msra.mxu0 %v4056
    %5311 = vmatprep.subr.bf16.mxu0 %v4055
    %5312 = vmatpush2.bf16.msra.mxu0 %v4054
    %5313 = vmatprep.subr.bf16.mxu0 %v4053
    %5314 = vmatpush2.bf16.msra.mxu0 %v4052
    %5315 = vmatprep.subr.bf16.mxu0 %v4051
    %5316 = vmatpush2.bf16.msra.mxu0 %v4050
    %5317 = vmatprep.mubr.bf16.mxu0 %v2025
    %5318 = vmatmul.mubr.bf16.gmra.mxu0 %v2024
    %v5319 = vpop.f32.mrf.mxu0
    %v5320 = vadd.f32 %v5127, %v5319
    %v5321 = vpop.f32.mrf.mxu0
    %v5322 = vadd.f32 %v5129, %v5321
    %v5323 = vpop.f32.mrf.mxu0
    %v5324 = vadd.f32 %v5131, %v5323
    %v5325 = vpop.f32.mrf.mxu0
    %v5326 = vadd.f32 %v5133, %v5325
    %5327 = vmatprep.mubr.bf16.mxu0 %v2049
    %5328 = vmatmul.mubr.bf16.gmra.mxu0 %v2048
    %v5329 = vpop.f32.mrf.mxu0
    %v5330 = vadd.f32 %v5137, %v5329
    %v5331 = vpop.f32.mrf.mxu0
    %v5332 = vadd.f32 %v5139, %v5331
    %v5333 = vpop.f32.mrf.mxu0
    %v5334 = vadd.f32 %v5141, %v5333
    %v5335 = vpop.f32.mrf.mxu0
    %v5336 = vadd.f32 %v5143, %v5335
    %5337 = vmatprep.mubr.bf16.mxu0 %v2073
    %5338 = vmatmul.mubr.bf16.gmra.mxu0 %v2072
    %v5339 = vpop.f32.mrf.mxu0
    %v5340 = vadd.f32 %v5147, %v5339
    %v5341 = vpop.f32.mrf.mxu0
    %v5342 = vadd.f32 %v5149, %v5341
    %v5343 = vpop.f32.mrf.mxu0
    %v5344 = vadd.f32 %v5151, %v5343
    %v5345 = vpop.f32.mrf.mxu0
    %v5346 = vadd.f32 %v5153, %v5345
    %5347 = vmatprep.mubr.bf16.mxu0 %v2097
    %5348 = vmatmul.mubr.bf16.gmra.mxu0 %v2096
    %v5349 = vpop.f32.mrf.mxu0
    %v5350 = vadd.f32 %v5157, %v5349
    %v5351 = vpop.f32.mrf.mxu0
    %v5352 = vadd.f32 %v5159, %v5351
    %v5353 = vpop.f32.mrf.mxu0
    %v5354 = vadd.f32 %v5161, %v5353
    %v5355 = vpop.f32.mrf.mxu0
    %v5356 = vadd.f32 %v5163, %v5355
    %5357 = vmatprep.mubr.bf16.mxu0 %v2121
    %5358 = vmatmul.mubr.bf16.gmra.mxu0 %v2120
    %v5359 = vpop.f32.mrf.mxu0
    %v5360 = vadd.f32 %v5167, %v5359
    %v5361 = vpop.f32.mrf.mxu0
    %v5362 = vadd.f32 %v5169, %v5361
    %v5363 = vpop.f32.mrf.mxu0
    %v5364 = vadd.f32 %v5171, %v5363
    %v5365 = vpop.f32.mrf.mxu0
    %v5366 = vadd.f32 %v5173, %v5365
    %5367 = vmatprep.mubr.bf16.mxu0 %v2145
    %5368 = vmatmul.mubr.bf16.gmra.mxu0 %v2144
    %v5369 = vpop.f32.mrf.mxu0
    %v5370 = vadd.f32 %v5177, %v5369
    %v5371 = vpop.f32.mrf.mxu0
    %v5372 = vadd.f32 %v5179, %v5371
    %v5373 = vpop.f32.mrf.mxu0
    %v5374 = vadd.f32 %v5181, %v5373
    %v5375 = vpop.f32.mrf.mxu0
    %v5376 = vadd.f32 %v5183, %v5375
    %5377 = vmatprep.mubr.bf16.mxu0 %v2169
    %5378 = vmatmul.mubr.bf16.gmra.mxu0 %v2168
    %v5379 = vpop.f32.mrf.mxu0
    %v5380 = vadd.f32 %v5187, %v5379
    %v5381 = vpop.f32.mrf.mxu0
    %v5382 = vadd.f32 %v5189, %v5381
    %v5383 = vpop.f32.mrf.mxu0
    %v5384 = vadd.f32 %v5191, %v5383
    %v5385 = vpop.f32.mrf.mxu0
    %v5386 = vadd.f32 %v5193, %v5385
    %5387 = vmatprep.mubr.bf16.mxu0 %v2193
    %5388 = vmatmul.mubr.bf16.gmra.mxu0 %v2192
    %v5389 = vpop.f32.mrf.mxu0
    %v5390 = vadd.f32 %v5197, %v5389
    %v5391 = vpop.f32.mrf.mxu0
    %v5392 = vadd.f32 %v5199, %v5391
    %v5393 = vpop.f32.mrf.mxu0
    %v5394 = vadd.f32 %v5201, %v5393
    %v5395 = vpop.f32.mrf.mxu0
    %v5396 = vadd.f32 %v5203, %v5395
    %5397 = vmatprep.mubr.bf16.mxu0 %v2217
    %5398 = vmatmul.mubr.bf16.gmra.mxu0 %v2216
    %v5399 = vpop.f32.mrf.mxu0
    %v5400 = vadd.f32 %v5207, %v5399
    %v5401 = vpop.f32.mrf.mxu0
    %v5402 = vadd.f32 %v5209, %v5401
    %v5403 = vpop.f32.mrf.mxu0
    %v5404 = vadd.f32 %v5211, %v5403
    %v5405 = vpop.f32.mrf.mxu0
    %v5406 = vadd.f32 %v5213, %v5405
    %5407 = vmatprep.mubr.bf16.mxu0 %v2241
    %5408 = vmatmul.mubr.bf16.gmra.mxu0 %v2240
    %v5409 = vpop.f32.mrf.mxu0
    %v5410 = vadd.f32 %v5217, %v5409
    %v5411 = vpop.f32.mrf.mxu0
    %v5412 = vadd.f32 %v5219, %v5411
    %v5413 = vpop.f32.mrf.mxu0
    %v5414 = vadd.f32 %v5221, %v5413
    %v5415 = vpop.f32.mrf.mxu0
    %v5416 = vadd.f32 %v5223, %v5415
    %5417 = vmatprep.mubr.bf16.mxu0 %v2265
    %5418 = vmatmul.mubr.bf16.gmra.mxu0 %v2264
    %v5419 = vpop.f32.mrf.mxu0
    %v5420 = vadd.f32 %v5227, %v5419
    %v5421 = vpop.f32.mrf.mxu0
    %v5422 = vadd.f32 %v5229, %v5421
    %v5423 = vpop.f32.mrf.mxu0
    %v5424 = vadd.f32 %v5231, %v5423
    %v5425 = vpop.f32.mrf.mxu0
    %v5426 = vadd.f32 %v5233, %v5425
    %5427 = vmatprep.mubr.bf16.mxu0 %v2289
    %5428 = vmatmul.mubr.bf16.gmra.mxu0 %v2288
    %v5429 = vpop.f32.mrf.mxu0
    %v5430 = vadd.f32 %v5237, %v5429
    %v5431 = vpop.f32.mrf.mxu0
    %v5432 = vadd.f32 %v5239, %v5431
    %v5433 = vpop.f32.mrf.mxu0
    %v5434 = vadd.f32 %v5241, %v5433
    %v5435 = vpop.f32.mrf.mxu0
    %v5436 = vadd.f32 %v5243, %v5435
    %5437 = vmatprep.mubr.bf16.mxu0 %v2313
    %5438 = vmatmul.mubr.bf16.gmra.mxu0 %v2312
    %v5439 = vpop.f32.mrf.mxu0
    %v5440 = vadd.f32 %v5247, %v5439
    %v5441 = vpop.f32.mrf.mxu0
    %v5442 = vadd.f32 %v5249, %v5441
    %v5443 = vpop.f32.mrf.mxu0
    %v5444 = vadd.f32 %v5251, %v5443
    %v5445 = vpop.f32.mrf.mxu0
    %v5446 = vadd.f32 %v5253, %v5445
    %5447 = vmatprep.mubr.bf16.mxu0 %v2337
    %5448 = vmatmul.mubr.bf16.gmra.mxu0 %v2336
    %v5449 = vpop.f32.mrf.mxu0
    %v5450 = vadd.f32 %v5257, %v5449
    %v5451 = vpop.f32.mrf.mxu0
    %v5452 = vadd.f32 %v5259, %v5451
    %v5453 = vpop.f32.mrf.mxu0
    %v5454 = vadd.f32 %v5261, %v5453
    %v5455 = vpop.f32.mrf.mxu0
    %v5456 = vadd.f32 %v5263, %v5455
    %5457 = vmatprep.mubr.bf16.mxu0 %v2361
    %5458 = vmatmul.mubr.bf16.gmra.mxu0 %v2360
    %v5459 = vpop.f32.mrf.mxu0
    %v5460 = vadd.f32 %v5267, %v5459
    %v5461 = vpop.f32.mrf.mxu0
    %v5462 = vadd.f32 %v5269, %v5461
    %v5463 = vpop.f32.mrf.mxu0
    %v5464 = vadd.f32 %v5271, %v5463
    %v5465 = vpop.f32.mrf.mxu0
    %v5466 = vadd.f32 %v5273, %v5465
    %5467 = vmatprep.mubr.bf16.mxu0 %v2385
    %5468 = vmatmul.mubr.bf16.gmra.mxu0 %v2384
    %v5469 = vpop.f32.mrf.mxu0
    %v5470 = vadd.f32 %v5277, %v5469
    %v5471 = vpop.f32.mrf.mxu0
    %v5472 = vadd.f32 %v5279, %v5471
    %v5473 = vpop.f32.mrf.mxu0
    %v5474 = vadd.f32 %v5281, %v5473
    %v5475 = vpop.f32.mrf.mxu0
    %v5476 = vadd.f32 %v5283, %v5475
    %5477 = vdwg.mxu0
    %5478 = vmatprep.subr.bf16.mxu0 %v4081
    %5479 = vmatpush1.bf16.msra.mxu0 %v4080
    %5480 = vmatprep.subr.bf16.mxu0 %v4079
    %5481 = vmatpush1.bf16.msra.mxu0 %v4078
    %5482 = vmatprep.subr.bf16.mxu0 %v4077
    %5483 = vmatpush1.bf16.msra.mxu0 %v4076
    %5484 = vmatprep.subr.bf16.mxu0 %v4075
    %5485 = vmatpush1.bf16.msra.mxu0 %v4074
    %5486 = vmatprep.subr.bf16.mxu0 %v4073
    %5487 = vmatpush1.bf16.msra.mxu0 %v4072
    %5488 = vmatprep.subr.bf16.mxu0 %v4071
    %5489 = vmatpush1.bf16.msra.mxu0 %v4070
    %5490 = vmatprep.subr.bf16.mxu0 %v4069
    %5491 = vmatpush1.bf16.msra.mxu0 %v4068
    %5492 = vmatprep.subr.bf16.mxu0 %v4067
    %5493 = vmatpush1.bf16.msra.mxu0 %v4066
    %5494 = vmatprep.subr.bf16.mxu0 %v4097
    %5495 = vmatpush2.bf16.msra.mxu0 %v4096
    %5496 = vmatprep.subr.bf16.mxu0 %v4095
    %5497 = vmatpush2.bf16.msra.mxu0 %v4094
    %5498 = vmatprep.subr.bf16.mxu0 %v4093
    %5499 = vmatpush2.bf16.msra.mxu0 %v4092
    %5500 = vmatprep.subr.bf16.mxu0 %v4091
    %5501 = vmatpush2.bf16.msra.mxu0 %v4090
    %5502 = vmatprep.subr.bf16.mxu0 %v4089
    %5503 = vmatpush2.bf16.msra.mxu0 %v4088
    %5504 = vmatprep.subr.bf16.mxu0 %v4087
    %5505 = vmatpush2.bf16.msra.mxu0 %v4086
    %5506 = vmatprep.subr.bf16.mxu0 %v4085
    %5507 = vmatpush2.bf16.msra.mxu0 %v4084
    %5508 = vmatprep.subr.bf16.mxu0 %v4083
    %5509 = vmatpush2.bf16.msra.mxu0 %v4082
    %5510 = vmatprep.mubr.bf16.mxu0 %v2027
    %5511 = vmatmul.mubr.bf16.gmra.mxu0 %v2026
    %v5512 = vpop.f32.mrf.mxu0
    %v5513 = vadd.f32 %v5320, %v5512
    %v5514 = vpop.f32.mrf.mxu0
    %v5515 = vadd.f32 %v5322, %v5514
    %v5516 = vpop.f32.mrf.mxu0
    %v5517 = vadd.f32 %v5324, %v5516
    %v5518 = vpop.f32.mrf.mxu0
    %v5519 = vadd.f32 %v5326, %v5518
    %5520 = vmatprep.mubr.bf16.mxu0 %v2051
    %5521 = vmatmul.mubr.bf16.gmra.mxu0 %v2050
    %v5522 = vpop.f32.mrf.mxu0
    %v5523 = vadd.f32 %v5330, %v5522
    %v5524 = vpop.f32.mrf.mxu0
    %v5525 = vadd.f32 %v5332, %v5524
    %v5526 = vpop.f32.mrf.mxu0
    %v5527 = vadd.f32 %v5334, %v5526
    %v5528 = vpop.f32.mrf.mxu0
    %v5529 = vadd.f32 %v5336, %v5528
    %5530 = vmatprep.mubr.bf16.mxu0 %v2075
    %5531 = vmatmul.mubr.bf16.gmra.mxu0 %v2074
    %v5532 = vpop.f32.mrf.mxu0
    %v5533 = vadd.f32 %v5340, %v5532
    %v5534 = vpop.f32.mrf.mxu0
    %v5535 = vadd.f32 %v5342, %v5534
    %v5536 = vpop.f32.mrf.mxu0
    %v5537 = vadd.f32 %v5344, %v5536
    %v5538 = vpop.f32.mrf.mxu0
    %v5539 = vadd.f32 %v5346, %v5538
    %5540 = vmatprep.mubr.bf16.mxu0 %v2099
    %5541 = vmatmul.mubr.bf16.gmra.mxu0 %v2098
    %v5542 = vpop.f32.mrf.mxu0
    %v5543 = vadd.f32 %v5350, %v5542
    %v5544 = vpop.f32.mrf.mxu0
    %v5545 = vadd.f32 %v5352, %v5544
    %v5546 = vpop.f32.mrf.mxu0
    %v5547 = vadd.f32 %v5354, %v5546
    %v5548 = vpop.f32.mrf.mxu0
    %v5549 = vadd.f32 %v5356, %v5548
    %5550 = vmatprep.mubr.bf16.mxu0 %v2123
    %5551 = vmatmul.mubr.bf16.gmra.mxu0 %v2122
    %v5552 = vpop.f32.mrf.mxu0
    %v5553 = vadd.f32 %v5360, %v5552
    %v5554 = vpop.f32.mrf.mxu0
    %v5555 = vadd.f32 %v5362, %v5554
    %v5556 = vpop.f32.mrf.mxu0
    %v5557 = vadd.f32 %v5364, %v5556
    %v5558 = vpop.f32.mrf.mxu0
    %v5559 = vadd.f32 %v5366, %v5558
    %5560 = vmatprep.mubr.bf16.mxu0 %v2147
    %5561 = vmatmul.mubr.bf16.gmra.mxu0 %v2146
    %v5562 = vpop.f32.mrf.mxu0
    %v5563 = vadd.f32 %v5370, %v5562
    %v5564 = vpop.f32.mrf.mxu0
    %v5565 = vadd.f32 %v5372, %v5564
    %v5566 = vpop.f32.mrf.mxu0
    %v5567 = vadd.f32 %v5374, %v5566
    %v5568 = vpop.f32.mrf.mxu0
    %v5569 = vadd.f32 %v5376, %v5568
    %5570 = vmatprep.mubr.bf16.mxu0 %v2171
    %5571 = vmatmul.mubr.bf16.gmra.mxu0 %v2170
    %v5572 = vpop.f32.mrf.mxu0
    %v5573 = vadd.f32 %v5380, %v5572
    %v5574 = vpop.f32.mrf.mxu0
    %v5575 = vadd.f32 %v5382, %v5574
    %v5576 = vpop.f32.mrf.mxu0
    %v5577 = vadd.f32 %v5384, %v5576
    %v5578 = vpop.f32.mrf.mxu0
    %v5579 = vadd.f32 %v5386, %v5578
    %5580 = vmatprep.mubr.bf16.mxu0 %v2195
    %5581 = vmatmul.mubr.bf16.gmra.mxu0 %v2194
    %v5582 = vpop.f32.mrf.mxu0
    %v5583 = vadd.f32 %v5390, %v5582
    %v5584 = vpop.f32.mrf.mxu0
    %v5585 = vadd.f32 %v5392, %v5584
    %v5586 = vpop.f32.mrf.mxu0
    %v5587 = vadd.f32 %v5394, %v5586
    %v5588 = vpop.f32.mrf.mxu0
    %v5589 = vadd.f32 %v5396, %v5588
    %5590 = vmatprep.mubr.bf16.mxu0 %v2219
    %5591 = vmatmul.mubr.bf16.gmra.mxu0 %v2218
    %v5592 = vpop.f32.mrf.mxu0
    %v5593 = vadd.f32 %v5400, %v5592
    %v5594 = vpop.f32.mrf.mxu0
    %v5595 = vadd.f32 %v5402, %v5594
    %v5596 = vpop.f32.mrf.mxu0
    %v5597 = vadd.f32 %v5404, %v5596
    %v5598 = vpop.f32.mrf.mxu0
    %v5599 = vadd.f32 %v5406, %v5598
    %5600 = vmatprep.mubr.bf16.mxu0 %v2243
    %5601 = vmatmul.mubr.bf16.gmra.mxu0 %v2242
    %v5602 = vpop.f32.mrf.mxu0
    %v5603 = vadd.f32 %v5410, %v5602
    %v5604 = vpop.f32.mrf.mxu0
    %v5605 = vadd.f32 %v5412, %v5604
    %v5606 = vpop.f32.mrf.mxu0
    %v5607 = vadd.f32 %v5414, %v5606
    %v5608 = vpop.f32.mrf.mxu0
    %v5609 = vadd.f32 %v5416, %v5608
    %5610 = vmatprep.mubr.bf16.mxu0 %v2267
    %5611 = vmatmul.mubr.bf16.gmra.mxu0 %v2266
    %v5612 = vpop.f32.mrf.mxu0
    %v5613 = vadd.f32 %v5420, %v5612
    %v5614 = vpop.f32.mrf.mxu0
    %v5615 = vadd.f32 %v5422, %v5614
    %v5616 = vpop.f32.mrf.mxu0
    %v5617 = vadd.f32 %v5424, %v5616
    %v5618 = vpop.f32.mrf.mxu0
    %v5619 = vadd.f32 %v5426, %v5618
    %5620 = vmatprep.mubr.bf16.mxu0 %v2291
    %5621 = vmatmul.mubr.bf16.gmra.mxu0 %v2290
    %v5622 = vpop.f32.mrf.mxu0
    %v5623 = vadd.f32 %v5430, %v5622
    %v5624 = vpop.f32.mrf.mxu0
    %v5625 = vadd.f32 %v5432, %v5624
    %v5626 = vpop.f32.mrf.mxu0
    %v5627 = vadd.f32 %v5434, %v5626
    %v5628 = vpop.f32.mrf.mxu0
    %v5629 = vadd.f32 %v5436, %v5628
    %5630 = vmatprep.mubr.bf16.mxu0 %v2315
    %5631 = vmatmul.mubr.bf16.gmra.mxu0 %v2314
    %v5632 = vpop.f32.mrf.mxu0
    %v5633 = vadd.f32 %v5440, %v5632
    %v5634 = vpop.f32.mrf.mxu0
    %v5635 = vadd.f32 %v5442, %v5634
    %v5636 = vpop.f32.mrf.mxu0
    %v5637 = vadd.f32 %v5444, %v5636
    %v5638 = vpop.f32.mrf.mxu0
    %v5639 = vadd.f32 %v5446, %v5638
    %5640 = vmatprep.mubr.bf16.mxu0 %v2339
    %5641 = vmatmul.mubr.bf16.gmra.mxu0 %v2338
    %v5642 = vpop.f32.mrf.mxu0
    %v5643 = vadd.f32 %v5450, %v5642
    %v5644 = vpop.f32.mrf.mxu0
    %v5645 = vadd.f32 %v5452, %v5644
    %v5646 = vpop.f32.mrf.mxu0
    %v5647 = vadd.f32 %v5454, %v5646
    %v5648 = vpop.f32.mrf.mxu0
    %v5649 = vadd.f32 %v5456, %v5648
    %5650 = vmatprep.mubr.bf16.mxu0 %v2363
    %5651 = vmatmul.mubr.bf16.gmra.mxu0 %v2362
    %v5652 = vpop.f32.mrf.mxu0
    %v5653 = vadd.f32 %v5460, %v5652
    %v5654 = vpop.f32.mrf.mxu0
    %v5655 = vadd.f32 %v5462, %v5654
    %v5656 = vpop.f32.mrf.mxu0
    %v5657 = vadd.f32 %v5464, %v5656
    %v5658 = vpop.f32.mrf.mxu0
    %v5659 = vadd.f32 %v5466, %v5658
    %5660 = vmatprep.mubr.bf16.mxu0 %v2387
    %5661 = vmatmul.mubr.bf16.gmra.mxu0 %v2386
    %v5662 = vpop.f32.mrf.mxu0
    %v5663 = vadd.f32 %v5470, %v5662
    %v5664 = vpop.f32.mrf.mxu0
    %v5665 = vadd.f32 %v5472, %v5664
    %v5666 = vpop.f32.mrf.mxu0
    %v5667 = vadd.f32 %v5474, %v5666
    %v5668 = vpop.f32.mrf.mxu0
    %v5669 = vadd.f32 %v5476, %v5668
    %5670 = vdwg.mxu0
    %5671 = vmatprep.subr.bf16.mxu0 %v4113
    %5672 = vmatpush1.bf16.msra.mxu0 %v4112
    %5673 = vmatprep.subr.bf16.mxu0 %v4111
    %5674 = vmatpush1.bf16.msra.mxu0 %v4110
    %5675 = vmatprep.subr.bf16.mxu0 %v4109
    %5676 = vmatpush1.bf16.msra.mxu0 %v4108
    %5677 = vmatprep.subr.bf16.mxu0 %v4107
    %5678 = vmatpush1.bf16.msra.mxu0 %v4106
    %5679 = vmatprep.subr.bf16.mxu0 %v4105
    %5680 = vmatpush1.bf16.msra.mxu0 %v4104
    %5681 = vmatprep.subr.bf16.mxu0 %v4103
    %5682 = vmatpush1.bf16.msra.mxu0 %v4102
    %5683 = vmatprep.subr.bf16.mxu0 %v4101
    %5684 = vmatpush1.bf16.msra.mxu0 %v4100
    %5685 = vmatprep.subr.bf16.mxu0 %v4099
    %5686 = vmatpush1.bf16.msra.mxu0 %v4098
    %5687 = vmatprep.subr.bf16.mxu0 %v4129
    %5688 = vmatpush2.bf16.msra.mxu0 %v4128
    %5689 = vmatprep.subr.bf16.mxu0 %v4127
    %5690 = vmatpush2.bf16.msra.mxu0 %v4126
    %5691 = vmatprep.subr.bf16.mxu0 %v4125
    %5692 = vmatpush2.bf16.msra.mxu0 %v4124
    %5693 = vmatprep.subr.bf16.mxu0 %v4123
    %5694 = vmatpush2.bf16.msra.mxu0 %v4122
    %5695 = vmatprep.subr.bf16.mxu0 %v4121
    %5696 = vmatpush2.bf16.msra.mxu0 %v4120
    %5697 = vmatprep.subr.bf16.mxu0 %v4119
    %5698 = vmatpush2.bf16.msra.mxu0 %v4118
    %5699 = vmatprep.subr.bf16.mxu0 %v4117
    %5700 = vmatpush2.bf16.msra.mxu0 %v4116
    %5701 = vmatprep.subr.bf16.mxu0 %v4115
    %5702 = vmatpush2.bf16.msra.mxu0 %v4114
    %5703 = vmatprep.mubr.bf16.mxu0 %v2029
    %5704 = vmatmul.mubr.bf16.gmra.mxu0 %v2028
    %v5705 = vpop.f32.mrf.mxu0
    %v5706 = vadd.f32 %v5513, %v5705
    %v5707 = vpop.f32.mrf.mxu0
    %v5708 = vadd.f32 %v5515, %v5707
    %v5709 = vpop.f32.mrf.mxu0
    %v5710 = vadd.f32 %v5517, %v5709
    %v5711 = vpop.f32.mrf.mxu0
    %v5712 = vadd.f32 %v5519, %v5711
    %5713 = vmatprep.mubr.bf16.mxu0 %v2053
    %5714 = vmatmul.mubr.bf16.gmra.mxu0 %v2052
    %v5715 = vpop.f32.mrf.mxu0
    %v5716 = vadd.f32 %v5523, %v5715
    %v5717 = vpop.f32.mrf.mxu0
    %v5718 = vadd.f32 %v5525, %v5717
    %v5719 = vpop.f32.mrf.mxu0
    %v5720 = vadd.f32 %v5527, %v5719
    %v5721 = vpop.f32.mrf.mxu0
    %v5722 = vadd.f32 %v5529, %v5721
    %5723 = vmatprep.mubr.bf16.mxu0 %v2077
    %5724 = vmatmul.mubr.bf16.gmra.mxu0 %v2076
    %v5725 = vpop.f32.mrf.mxu0
    %v5726 = vadd.f32 %v5533, %v5725
    %v5727 = vpop.f32.mrf.mxu0
    %v5728 = vadd.f32 %v5535, %v5727
    %v5729 = vpop.f32.mrf.mxu0
    %v5730 = vadd.f32 %v5537, %v5729
    %v5731 = vpop.f32.mrf.mxu0
    %v5732 = vadd.f32 %v5539, %v5731
    %5733 = vmatprep.mubr.bf16.mxu0 %v2101
    %5734 = vmatmul.mubr.bf16.gmra.mxu0 %v2100
    %v5735 = vpop.f32.mrf.mxu0
    %v5736 = vadd.f32 %v5543, %v5735
    %v5737 = vpop.f32.mrf.mxu0
    %v5738 = vadd.f32 %v5545, %v5737
    %v5739 = vpop.f32.mrf.mxu0
    %v5740 = vadd.f32 %v5547, %v5739
    %v5741 = vpop.f32.mrf.mxu0
    %v5742 = vadd.f32 %v5549, %v5741
    %5743 = vmatprep.mubr.bf16.mxu0 %v2125
    %5744 = vmatmul.mubr.bf16.gmra.mxu0 %v2124
    %v5745 = vpop.f32.mrf.mxu0
    %v5746 = vadd.f32 %v5553, %v5745
    %v5747 = vpop.f32.mrf.mxu0
    %v5748 = vadd.f32 %v5555, %v5747
    %v5749 = vpop.f32.mrf.mxu0
    %v5750 = vadd.f32 %v5557, %v5749
    %v5751 = vpop.f32.mrf.mxu0
    %v5752 = vadd.f32 %v5559, %v5751
    %5753 = vmatprep.mubr.bf16.mxu0 %v2149
    %5754 = vmatmul.mubr.bf16.gmra.mxu0 %v2148
    %v5755 = vpop.f32.mrf.mxu0
    %v5756 = vadd.f32 %v5563, %v5755
    %v5757 = vpop.f32.mrf.mxu0
    %v5758 = vadd.f32 %v5565, %v5757
    %v5759 = vpop.f32.mrf.mxu0
    %v5760 = vadd.f32 %v5567, %v5759
    %v5761 = vpop.f32.mrf.mxu0
    %v5762 = vadd.f32 %v5569, %v5761
    %5763 = vmatprep.mubr.bf16.mxu0 %v2173
    %5764 = vmatmul.mubr.bf16.gmra.mxu0 %v2172
    %v5765 = vpop.f32.mrf.mxu0
    %v5766 = vadd.f32 %v5573, %v5765
    %v5767 = vpop.f32.mrf.mxu0
    %v5768 = vadd.f32 %v5575, %v5767
    %v5769 = vpop.f32.mrf.mxu0
    %v5770 = vadd.f32 %v5577, %v5769
    %v5771 = vpop.f32.mrf.mxu0
    %v5772 = vadd.f32 %v5579, %v5771
    %5773 = vmatprep.mubr.bf16.mxu0 %v2197
    %5774 = vmatmul.mubr.bf16.gmra.mxu0 %v2196
    %v5775 = vpop.f32.mrf.mxu0
    %v5776 = vadd.f32 %v5583, %v5775
    %v5777 = vpop.f32.mrf.mxu0
    %v5778 = vadd.f32 %v5585, %v5777
    %v5779 = vpop.f32.mrf.mxu0
    %v5780 = vadd.f32 %v5587, %v5779
    %v5781 = vpop.f32.mrf.mxu0
    %v5782 = vadd.f32 %v5589, %v5781
    %5783 = vmatprep.mubr.bf16.mxu0 %v2221
    %5784 = vmatmul.mubr.bf16.gmra.mxu0 %v2220
    %v5785 = vpop.f32.mrf.mxu0
    %v5786 = vadd.f32 %v5593, %v5785
    %v5787 = vpop.f32.mrf.mxu0
    %v5788 = vadd.f32 %v5595, %v5787
    %v5789 = vpop.f32.mrf.mxu0
    %v5790 = vadd.f32 %v5597, %v5789
    %v5791 = vpop.f32.mrf.mxu0
    %v5792 = vadd.f32 %v5599, %v5791
    %5793 = vmatprep.mubr.bf16.mxu0 %v2245
    %5794 = vmatmul.mubr.bf16.gmra.mxu0 %v2244
    %v5795 = vpop.f32.mrf.mxu0
    %v5796 = vadd.f32 %v5603, %v5795
    %v5797 = vpop.f32.mrf.mxu0
    %v5798 = vadd.f32 %v5605, %v5797
    %v5799 = vpop.f32.mrf.mxu0
    %v5800 = vadd.f32 %v5607, %v5799
    %v5801 = vpop.f32.mrf.mxu0
    %v5802 = vadd.f32 %v5609, %v5801
    %5803 = vmatprep.mubr.bf16.mxu0 %v2269
    %5804 = vmatmul.mubr.bf16.gmra.mxu0 %v2268
    %v5805 = vpop.f32.mrf.mxu0
    %v5806 = vadd.f32 %v5613, %v5805
    %v5807 = vpop.f32.mrf.mxu0
    %v5808 = vadd.f32 %v5615, %v5807
    %v5809 = vpop.f32.mrf.mxu0
    %v5810 = vadd.f32 %v5617, %v5809
    %v5811 = vpop.f32.mrf.mxu0
    %v5812 = vadd.f32 %v5619, %v5811
    %5813 = vmatprep.mubr.bf16.mxu0 %v2293
    %5814 = vmatmul.mubr.bf16.gmra.mxu0 %v2292
    %v5815 = vpop.f32.mrf.mxu0
    %v5816 = vadd.f32 %v5623, %v5815
    %v5817 = vpop.f32.mrf.mxu0
    %v5818 = vadd.f32 %v5625, %v5817
    %v5819 = vpop.f32.mrf.mxu0
    %v5820 = vadd.f32 %v5627, %v5819
    %v5821 = vpop.f32.mrf.mxu0
    %v5822 = vadd.f32 %v5629, %v5821
    %5823 = vmatprep.mubr.bf16.mxu0 %v2317
    %5824 = vmatmul.mubr.bf16.gmra.mxu0 %v2316
    %v5825 = vpop.f32.mrf.mxu0
    %v5826 = vadd.f32 %v5633, %v5825
    %v5827 = vpop.f32.mrf.mxu0
    %v5828 = vadd.f32 %v5635, %v5827
    %v5829 = vpop.f32.mrf.mxu0
    %v5830 = vadd.f32 %v5637, %v5829
    %v5831 = vpop.f32.mrf.mxu0
    %v5832 = vadd.f32 %v5639, %v5831
    %5833 = vmatprep.mubr.bf16.mxu0 %v2341
    %5834 = vmatmul.mubr.bf16.gmra.mxu0 %v2340
    %v5835 = vpop.f32.mrf.mxu0
    %v5836 = vadd.f32 %v5643, %v5835
    %v5837 = vpop.f32.mrf.mxu0
    %v5838 = vadd.f32 %v5645, %v5837
    %v5839 = vpop.f32.mrf.mxu0
    %v5840 = vadd.f32 %v5647, %v5839
    %v5841 = vpop.f32.mrf.mxu0
    %v5842 = vadd.f32 %v5649, %v5841
    %5843 = vmatprep.mubr.bf16.mxu0 %v2365
    %5844 = vmatmul.mubr.bf16.gmra.mxu0 %v2364
    %v5845 = vpop.f32.mrf.mxu0
    %v5846 = vadd.f32 %v5653, %v5845
    %v5847 = vpop.f32.mrf.mxu0
    %v5848 = vadd.f32 %v5655, %v5847
    %v5849 = vpop.f32.mrf.mxu0
    %v5850 = vadd.f32 %v5657, %v5849
    %v5851 = vpop.f32.mrf.mxu0
    %v5852 = vadd.f32 %v5659, %v5851
    %5853 = vmatprep.mubr.bf16.mxu0 %v2389
    %5854 = vmatmul.mubr.bf16.gmra.mxu0 %v2388
    %v5855 = vpop.f32.mrf.mxu0
    %v5856 = vadd.f32 %v5663, %v5855
    %v5857 = vpop.f32.mrf.mxu0
    %v5858 = vadd.f32 %v5665, %v5857
    %v5859 = vpop.f32.mrf.mxu0
    %v5860 = vadd.f32 %v5667, %v5859
    %v5861 = vpop.f32.mrf.mxu0
    %v5862 = vadd.f32 %v5669, %v5861
    %5863 = vdwg.mxu0
    %5864 = vmatprep.subr.bf16.mxu0 %v4145
    %5865 = vmatpush1.bf16.msra.mxu0 %v4144
    %5866 = vmatprep.subr.bf16.mxu0 %v4143
    %5867 = vmatpush1.bf16.msra.mxu0 %v4142
    %5868 = vmatprep.subr.bf16.mxu0 %v4141
    %5869 = vmatpush1.bf16.msra.mxu0 %v4140
    %5870 = vmatprep.subr.bf16.mxu0 %v4139
    %5871 = vmatpush1.bf16.msra.mxu0 %v4138
    %5872 = vmatprep.subr.bf16.mxu0 %v4137
    %5873 = vmatpush1.bf16.msra.mxu0 %v4136
    %5874 = vmatprep.subr.bf16.mxu0 %v4135
    %5875 = vmatpush1.bf16.msra.mxu0 %v4134
    %5876 = vmatprep.subr.bf16.mxu0 %v4133
    %5877 = vmatpush1.bf16.msra.mxu0 %v4132
    %5878 = vmatprep.subr.bf16.mxu0 %v4131
    %5879 = vmatpush1.bf16.msra.mxu0 %v4130
    %5880 = vmatprep.subr.bf16.mxu0 %v4161
    %5881 = vmatpush2.bf16.msra.mxu0 %v4160
    %5882 = vmatprep.subr.bf16.mxu0 %v4159
    %5883 = vmatpush2.bf16.msra.mxu0 %v4158
    %5884 = vmatprep.subr.bf16.mxu0 %v4157
    %5885 = vmatpush2.bf16.msra.mxu0 %v4156
    %5886 = vmatprep.subr.bf16.mxu0 %v4155
    %5887 = vmatpush2.bf16.msra.mxu0 %v4154
    %5888 = vmatprep.subr.bf16.mxu0 %v4153
    %5889 = vmatpush2.bf16.msra.mxu0 %v4152
    %5890 = vmatprep.subr.bf16.mxu0 %v4151
    %5891 = vmatpush2.bf16.msra.mxu0 %v4150
    %5892 = vmatprep.subr.bf16.mxu0 %v4149
    %5893 = vmatpush2.bf16.msra.mxu0 %v4148
    %5894 = vmatprep.subr.bf16.mxu0 %v4147
    %5895 = vmatpush2.bf16.msra.mxu0 %v4146
    %5896 = vmatprep.mubr.bf16.mxu0 %v2031
    %5897 = vmatmul.mubr.bf16.gmra.mxu0 %v2030
    %v5898 = vpop.f32.mrf.mxu0
    %v5899 = vadd.f32 %v5706, %v5898
    %v5900 = vpop.f32.mrf.mxu0
    %v5901 = vadd.f32 %v5708, %v5900
    %v5902 = vpop.f32.mrf.mxu0
    %v5903 = vadd.f32 %v5710, %v5902
    %v5904 = vpop.f32.mrf.mxu0
    %v5905 = vadd.f32 %v5712, %v5904
    %5906 = vmatprep.mubr.bf16.mxu0 %v2055
    %5907 = vmatmul.mubr.bf16.gmra.mxu0 %v2054
    %v5908 = vpop.f32.mrf.mxu0
    %v5909 = vadd.f32 %v5716, %v5908
    %v5910 = vpop.f32.mrf.mxu0
    %v5911 = vadd.f32 %v5718, %v5910
    %v5912 = vpop.f32.mrf.mxu0
    %v5913 = vadd.f32 %v5720, %v5912
    %v5914 = vpop.f32.mrf.mxu0
    %v5915 = vadd.f32 %v5722, %v5914
    %5916 = vmatprep.mubr.bf16.mxu0 %v2079
    %5917 = vmatmul.mubr.bf16.gmra.mxu0 %v2078
    %v5918 = vpop.f32.mrf.mxu0
    %v5919 = vadd.f32 %v5726, %v5918
    %v5920 = vpop.f32.mrf.mxu0
    %v5921 = vadd.f32 %v5728, %v5920
    %v5922 = vpop.f32.mrf.mxu0
    %v5923 = vadd.f32 %v5730, %v5922
    %v5924 = vpop.f32.mrf.mxu0
    %v5925 = vadd.f32 %v5732, %v5924
    %5926 = vmatprep.mubr.bf16.mxu0 %v2103
    %5927 = vmatmul.mubr.bf16.gmra.mxu0 %v2102
    %v5928 = vpop.f32.mrf.mxu0
    %v5929 = vadd.f32 %v5736, %v5928
    %v5930 = vpop.f32.mrf.mxu0
    %v5931 = vadd.f32 %v5738, %v5930
    %v5932 = vpop.f32.mrf.mxu0
    %v5933 = vadd.f32 %v5740, %v5932
    %v5934 = vpop.f32.mrf.mxu0
    %v5935 = vadd.f32 %v5742, %v5934
    %5936 = vmatprep.mubr.bf16.mxu0 %v2127
    %5937 = vmatmul.mubr.bf16.gmra.mxu0 %v2126
    %v5938 = vpop.f32.mrf.mxu0
    %v5939 = vadd.f32 %v5746, %v5938
    %v5940 = vpop.f32.mrf.mxu0
    %v5941 = vadd.f32 %v5748, %v5940
    %v5942 = vpop.f32.mrf.mxu0
    %v5943 = vadd.f32 %v5750, %v5942
    %v5944 = vpop.f32.mrf.mxu0
    %v5945 = vadd.f32 %v5752, %v5944
    %5946 = vmatprep.mubr.bf16.mxu0 %v2151
    %5947 = vmatmul.mubr.bf16.gmra.mxu0 %v2150
    %v5948 = vpop.f32.mrf.mxu0
    %v5949 = vadd.f32 %v5756, %v5948
    %v5950 = vpop.f32.mrf.mxu0
    %v5951 = vadd.f32 %v5758, %v5950
    %v5952 = vpop.f32.mrf.mxu0
    %v5953 = vadd.f32 %v5760, %v5952
    %v5954 = vpop.f32.mrf.mxu0
    %v5955 = vadd.f32 %v5762, %v5954
    %5956 = vmatprep.mubr.bf16.mxu0 %v2175
    %5957 = vmatmul.mubr.bf16.gmra.mxu0 %v2174
    %v5958 = vpop.f32.mrf.mxu0
    %v5959 = vadd.f32 %v5766, %v5958
    %v5960 = vpop.f32.mrf.mxu0
    %v5961 = vadd.f32 %v5768, %v5960
    %v5962 = vpop.f32.mrf.mxu0
    %v5963 = vadd.f32 %v5770, %v5962
    %v5964 = vpop.f32.mrf.mxu0
    %v5965 = vadd.f32 %v5772, %v5964
    %5966 = vmatprep.mubr.bf16.mxu0 %v2199
    %5967 = vmatmul.mubr.bf16.gmra.mxu0 %v2198
    %v5968 = vpop.f32.mrf.mxu0
    %v5969 = vadd.f32 %v5776, %v5968
    %v5970 = vpop.f32.mrf.mxu0
    %v5971 = vadd.f32 %v5778, %v5970
    %v5972 = vpop.f32.mrf.mxu0
    %v5973 = vadd.f32 %v5780, %v5972
    %v5974 = vpop.f32.mrf.mxu0
    %v5975 = vadd.f32 %v5782, %v5974
    %5976 = vmatprep.mubr.bf16.mxu0 %v2223
    %5977 = vmatmul.mubr.bf16.gmra.mxu0 %v2222
    %v5978 = vpop.f32.mrf.mxu0
    %v5979 = vadd.f32 %v5786, %v5978
    %v5980 = vpop.f32.mrf.mxu0
    %v5981 = vadd.f32 %v5788, %v5980
    %v5982 = vpop.f32.mrf.mxu0
    %v5983 = vadd.f32 %v5790, %v5982
    %v5984 = vpop.f32.mrf.mxu0
    %v5985 = vadd.f32 %v5792, %v5984
    %5986 = vmatprep.mubr.bf16.mxu0 %v2247
    %5987 = vmatmul.mubr.bf16.gmra.mxu0 %v2246
    %v5988 = vpop.f32.mrf.mxu0
    %v5989 = vadd.f32 %v5796, %v5988
    %v5990 = vpop.f32.mrf.mxu0
    %v5991 = vadd.f32 %v5798, %v5990
    %v5992 = vpop.f32.mrf.mxu0
    %v5993 = vadd.f32 %v5800, %v5992
    %v5994 = vpop.f32.mrf.mxu0
    %v5995 = vadd.f32 %v5802, %v5994
    %5996 = vmatprep.mubr.bf16.mxu0 %v2271
    %5997 = vmatmul.mubr.bf16.gmra.mxu0 %v2270
    %v5998 = vpop.f32.mrf.mxu0
    %v5999 = vadd.f32 %v5806, %v5998
    %v6000 = vpop.f32.mrf.mxu0
    %v6001 = vadd.f32 %v5808, %v6000
    %v6002 = vpop.f32.mrf.mxu0
    %v6003 = vadd.f32 %v5810, %v6002
    %v6004 = vpop.f32.mrf.mxu0
    %v6005 = vadd.f32 %v5812, %v6004
    %6006 = vmatprep.mubr.bf16.mxu0 %v2295
    %6007 = vmatmul.mubr.bf16.gmra.mxu0 %v2294
    %v6008 = vpop.f32.mrf.mxu0
    %v6009 = vadd.f32 %v5816, %v6008
    %v6010 = vpop.f32.mrf.mxu0
    %v6011 = vadd.f32 %v5818, %v6010
    %v6012 = vpop.f32.mrf.mxu0
    %v6013 = vadd.f32 %v5820, %v6012
    %v6014 = vpop.f32.mrf.mxu0
    %v6015 = vadd.f32 %v5822, %v6014
    %6016 = vmatprep.mubr.bf16.mxu0 %v2319
    %6017 = vmatmul.mubr.bf16.gmra.mxu0 %v2318
    %v6018 = vpop.f32.mrf.mxu0
    %v6019 = vadd.f32 %v5826, %v6018
    %v6020 = vpop.f32.mrf.mxu0
    %v6021 = vadd.f32 %v5828, %v6020
    %v6022 = vpop.f32.mrf.mxu0
    %v6023 = vadd.f32 %v5830, %v6022
    %v6024 = vpop.f32.mrf.mxu0
    %v6025 = vadd.f32 %v5832, %v6024
    %6026 = vmatprep.mubr.bf16.mxu0 %v2343
    %6027 = vmatmul.mubr.bf16.gmra.mxu0 %v2342
    %v6028 = vpop.f32.mrf.mxu0
    %v6029 = vadd.f32 %v5836, %v6028
    %v6030 = vpop.f32.mrf.mxu0
    %v6031 = vadd.f32 %v5838, %v6030
    %v6032 = vpop.f32.mrf.mxu0
    %v6033 = vadd.f32 %v5840, %v6032
    %v6034 = vpop.f32.mrf.mxu0
    %v6035 = vadd.f32 %v5842, %v6034
    %6036 = vmatprep.mubr.bf16.mxu0 %v2367
    %6037 = vmatmul.mubr.bf16.gmra.mxu0 %v2366
    %v6038 = vpop.f32.mrf.mxu0
    %v6039 = vadd.f32 %v5846, %v6038
    %v6040 = vpop.f32.mrf.mxu0
    %v6041 = vadd.f32 %v5848, %v6040
    %v6042 = vpop.f32.mrf.mxu0
    %v6043 = vadd.f32 %v5850, %v6042
    %v6044 = vpop.f32.mrf.mxu0
    %v6045 = vadd.f32 %v5852, %v6044
    %6046 = vmatprep.mubr.bf16.mxu0 %v2391
    %6047 = vmatmul.mubr.bf16.gmra.mxu0 %v2390
    %v6048 = vpop.f32.mrf.mxu0
    %v6049 = vadd.f32 %v5856, %v6048
    %v6050 = vpop.f32.mrf.mxu0
    %v6051 = vadd.f32 %v5858, %v6050
    %v6052 = vpop.f32.mrf.mxu0
    %v6053 = vadd.f32 %v5860, %v6052
    %v6054 = vpop.f32.mrf.mxu0
    %v6055 = vadd.f32 %v5862, %v6054
    %6056 = vdwg.mxu0
    %6057 = vmatprep.subr.bf16.mxu0 %v4177
    %6058 = vmatpush1.bf16.msra.mxu0 %v4176
    %6059 = vmatprep.subr.bf16.mxu0 %v4175
    %6060 = vmatpush1.bf16.msra.mxu0 %v4174
    %6061 = vmatprep.subr.bf16.mxu0 %v4173
    %6062 = vmatpush1.bf16.msra.mxu0 %v4172
    %6063 = vmatprep.subr.bf16.mxu0 %v4171
    %6064 = vmatpush1.bf16.msra.mxu0 %v4170
    %6065 = vmatprep.subr.bf16.mxu0 %v4169
    %6066 = vmatpush1.bf16.msra.mxu0 %v4168
    %6067 = vmatprep.subr.bf16.mxu0 %v4167
    %6068 = vmatpush1.bf16.msra.mxu0 %v4166
    %6069 = vmatprep.subr.bf16.mxu0 %v4165
    %6070 = vmatpush1.bf16.msra.mxu0 %v4164
    %6071 = vmatprep.subr.bf16.mxu0 %v4163
    %6072 = vmatpush1.bf16.msra.mxu0 %v4162
    %6073 = vmatprep.subr.bf16.mxu0 %v4193
    %6074 = vmatpush2.bf16.msra.mxu0 %v4192
    %6075 = vmatprep.subr.bf16.mxu0 %v4191
    %6076 = vmatpush2.bf16.msra.mxu0 %v4190
    %6077 = vmatprep.subr.bf16.mxu0 %v4189
    %6078 = vmatpush2.bf16.msra.mxu0 %v4188
    %6079 = vmatprep.subr.bf16.mxu0 %v4187
    %6080 = vmatpush2.bf16.msra.mxu0 %v4186
    %6081 = vmatprep.subr.bf16.mxu0 %v4185
    %6082 = vmatpush2.bf16.msra.mxu0 %v4184
    %6083 = vmatprep.subr.bf16.mxu0 %v4183
    %6084 = vmatpush2.bf16.msra.mxu0 %v4182
    %6085 = vmatprep.subr.bf16.mxu0 %v4181
    %6086 = vmatpush2.bf16.msra.mxu0 %v4180
    %6087 = vmatprep.subr.bf16.mxu0 %v4179
    %6088 = vmatpush2.bf16.msra.mxu0 %v4178
    %6089 = vmatprep.mubr.bf16.mxu0 %v2033
    %6090 = vmatmul.mubr.bf16.gmra.mxu0 %v2032
    %v6091 = vpop.f32.mrf.mxu0
    %v6092 = vadd.f32 %v5899, %v6091
    %v6093 = vpop.f32.mrf.mxu0
    %v6094 = vadd.f32 %v5901, %v6093
    %v6095 = vpop.f32.mrf.mxu0
    %v6096 = vadd.f32 %v5903, %v6095
    %v6097 = vpop.f32.mrf.mxu0
    %v6098 = vadd.f32 %v5905, %v6097
    %6099 = vmatprep.mubr.bf16.mxu0 %v2057
    %6100 = vmatmul.mubr.bf16.gmra.mxu0 %v2056
    %v6101 = vpop.f32.mrf.mxu0
    %v6102 = vadd.f32 %v5909, %v6101
    %v6103 = vpop.f32.mrf.mxu0
    %v6104 = vadd.f32 %v5911, %v6103
    %v6105 = vpop.f32.mrf.mxu0
    %v6106 = vadd.f32 %v5913, %v6105
    %v6107 = vpop.f32.mrf.mxu0
    %v6108 = vadd.f32 %v5915, %v6107
    %6109 = vmatprep.mubr.bf16.mxu0 %v2081
    %6110 = vmatmul.mubr.bf16.gmra.mxu0 %v2080
    %v6111 = vpop.f32.mrf.mxu0
    %v6112 = vadd.f32 %v5919, %v6111
    %v6113 = vpop.f32.mrf.mxu0
    %v6114 = vadd.f32 %v5921, %v6113
    %v6115 = vpop.f32.mrf.mxu0
    %v6116 = vadd.f32 %v5923, %v6115
    %v6117 = vpop.f32.mrf.mxu0
    %v6118 = vadd.f32 %v5925, %v6117
    %6119 = vmatprep.mubr.bf16.mxu0 %v2105
    %6120 = vmatmul.mubr.bf16.gmra.mxu0 %v2104
    %v6121 = vpop.f32.mrf.mxu0
    %v6122 = vadd.f32 %v5929, %v6121
    %v6123 = vpop.f32.mrf.mxu0
    %v6124 = vadd.f32 %v5931, %v6123
    %v6125 = vpop.f32.mrf.mxu0
    %v6126 = vadd.f32 %v5933, %v6125
    %v6127 = vpop.f32.mrf.mxu0
    %v6128 = vadd.f32 %v5935, %v6127
    %6129 = vmatprep.mubr.bf16.mxu0 %v2129
    %6130 = vmatmul.mubr.bf16.gmra.mxu0 %v2128
    %v6131 = vpop.f32.mrf.mxu0
    %v6132 = vadd.f32 %v5939, %v6131
    %v6133 = vpop.f32.mrf.mxu0
    %v6134 = vadd.f32 %v5941, %v6133
    %v6135 = vpop.f32.mrf.mxu0
    %v6136 = vadd.f32 %v5943, %v6135
    %v6137 = vpop.f32.mrf.mxu0
    %v6138 = vadd.f32 %v5945, %v6137
    %6139 = vmatprep.mubr.bf16.mxu0 %v2153
    %6140 = vmatmul.mubr.bf16.gmra.mxu0 %v2152
    %v6141 = vpop.f32.mrf.mxu0
    %v6142 = vadd.f32 %v5949, %v6141
    %v6143 = vpop.f32.mrf.mxu0
    %v6144 = vadd.f32 %v5951, %v6143
    %v6145 = vpop.f32.mrf.mxu0
    %v6146 = vadd.f32 %v5953, %v6145
    %v6147 = vpop.f32.mrf.mxu0
    %v6148 = vadd.f32 %v5955, %v6147
    %6149 = vmatprep.mubr.bf16.mxu0 %v2177
    %6150 = vmatmul.mubr.bf16.gmra.mxu0 %v2176
    %v6151 = vpop.f32.mrf.mxu0
    %v6152 = vadd.f32 %v5959, %v6151
    %v6153 = vpop.f32.mrf.mxu0
    %v6154 = vadd.f32 %v5961, %v6153
    %v6155 = vpop.f32.mrf.mxu0
    %v6156 = vadd.f32 %v5963, %v6155
    %v6157 = vpop.f32.mrf.mxu0
    %v6158 = vadd.f32 %v5965, %v6157
    %6159 = vmatprep.mubr.bf16.mxu0 %v2201
    %6160 = vmatmul.mubr.bf16.gmra.mxu0 %v2200
    %v6161 = vpop.f32.mrf.mxu0
    %v6162 = vadd.f32 %v5969, %v6161
    %v6163 = vpop.f32.mrf.mxu0
    %v6164 = vadd.f32 %v5971, %v6163
    %v6165 = vpop.f32.mrf.mxu0
    %v6166 = vadd.f32 %v5973, %v6165
    %v6167 = vpop.f32.mrf.mxu0
    %v6168 = vadd.f32 %v5975, %v6167
    %6169 = vmatprep.mubr.bf16.mxu0 %v2225
    %6170 = vmatmul.mubr.bf16.gmra.mxu0 %v2224
    %v6171 = vpop.f32.mrf.mxu0
    %v6172 = vadd.f32 %v5979, %v6171
    %v6173 = vpop.f32.mrf.mxu0
    %v6174 = vadd.f32 %v5981, %v6173
    %v6175 = vpop.f32.mrf.mxu0
    %v6176 = vadd.f32 %v5983, %v6175
    %v6177 = vpop.f32.mrf.mxu0
    %v6178 = vadd.f32 %v5985, %v6177
    %6179 = vmatprep.mubr.bf16.mxu0 %v2249
    %6180 = vmatmul.mubr.bf16.gmra.mxu0 %v2248
    %v6181 = vpop.f32.mrf.mxu0
    %v6182 = vadd.f32 %v5989, %v6181
    %v6183 = vpop.f32.mrf.mxu0
    %v6184 = vadd.f32 %v5991, %v6183
    %v6185 = vpop.f32.mrf.mxu0
    %v6186 = vadd.f32 %v5993, %v6185
    %v6187 = vpop.f32.mrf.mxu0
    %v6188 = vadd.f32 %v5995, %v6187
    %6189 = vmatprep.mubr.bf16.mxu0 %v2273
    %6190 = vmatmul.mubr.bf16.gmra.mxu0 %v2272
    %v6191 = vpop.f32.mrf.mxu0
    %v6192 = vadd.f32 %v5999, %v6191
    %v6193 = vpop.f32.mrf.mxu0
    %v6194 = vadd.f32 %v6001, %v6193
    %v6195 = vpop.f32.mrf.mxu0
    %v6196 = vadd.f32 %v6003, %v6195
    %v6197 = vpop.f32.mrf.mxu0
    %v6198 = vadd.f32 %v6005, %v6197
    %6199 = vmatprep.mubr.bf16.mxu0 %v2297
    %6200 = vmatmul.mubr.bf16.gmra.mxu0 %v2296
    %v6201 = vpop.f32.mrf.mxu0
    %v6202 = vadd.f32 %v6009, %v6201
    %v6203 = vpop.f32.mrf.mxu0
    %v6204 = vadd.f32 %v6011, %v6203
    %v6205 = vpop.f32.mrf.mxu0
    %v6206 = vadd.f32 %v6013, %v6205
    %v6207 = vpop.f32.mrf.mxu0
    %v6208 = vadd.f32 %v6015, %v6207
    %6209 = vmatprep.mubr.bf16.mxu0 %v2321
    %6210 = vmatmul.mubr.bf16.gmra.mxu0 %v2320
    %v6211 = vpop.f32.mrf.mxu0
    %v6212 = vadd.f32 %v6019, %v6211
    %v6213 = vpop.f32.mrf.mxu0
    %v6214 = vadd.f32 %v6021, %v6213
    %v6215 = vpop.f32.mrf.mxu0
    %v6216 = vadd.f32 %v6023, %v6215
    %v6217 = vpop.f32.mrf.mxu0
    %v6218 = vadd.f32 %v6025, %v6217
    %6219 = vmatprep.mubr.bf16.mxu0 %v2345
    %6220 = vmatmul.mubr.bf16.gmra.mxu0 %v2344
    %v6221 = vpop.f32.mrf.mxu0
    %v6222 = vadd.f32 %v6029, %v6221
    %v6223 = vpop.f32.mrf.mxu0
    %v6224 = vadd.f32 %v6031, %v6223
    %v6225 = vpop.f32.mrf.mxu0
    %v6226 = vadd.f32 %v6033, %v6225
    %v6227 = vpop.f32.mrf.mxu0
    %v6228 = vadd.f32 %v6035, %v6227
    %6229 = vmatprep.mubr.bf16.mxu0 %v2369
    %6230 = vmatmul.mubr.bf16.gmra.mxu0 %v2368
    %v6231 = vpop.f32.mrf.mxu0
    %v6232 = vadd.f32 %v6039, %v6231
    %v6233 = vpop.f32.mrf.mxu0
    %v6234 = vadd.f32 %v6041, %v6233
    %v6235 = vpop.f32.mrf.mxu0
    %v6236 = vadd.f32 %v6043, %v6235
    %v6237 = vpop.f32.mrf.mxu0
    %v6238 = vadd.f32 %v6045, %v6237
    %6239 = vmatprep.mubr.bf16.mxu0 %v2393
    %6240 = vmatmul.mubr.bf16.gmra.mxu0 %v2392
    %v6241 = vpop.f32.mrf.mxu0
    %v6242 = vadd.f32 %v6049, %v6241
    %v6243 = vpop.f32.mrf.mxu0
    %v6244 = vadd.f32 %v6051, %v6243
    %v6245 = vpop.f32.mrf.mxu0
    %v6246 = vadd.f32 %v6053, %v6245
    %v6247 = vpop.f32.mrf.mxu0
    %v6248 = vadd.f32 %v6055, %v6247
    %6249 = vdwg.mxu0
    %6250 = vmatprep.subr.bf16.mxu0 %v4209
    %6251 = vmatpush1.bf16.msra.mxu0 %v4208
    %6252 = vmatprep.subr.bf16.mxu0 %v4207
    %6253 = vmatpush1.bf16.msra.mxu0 %v4206
    %6254 = vmatprep.subr.bf16.mxu0 %v4205
    %6255 = vmatpush1.bf16.msra.mxu0 %v4204
    %6256 = vmatprep.subr.bf16.mxu0 %v4203
    %6257 = vmatpush1.bf16.msra.mxu0 %v4202
    %6258 = vmatprep.subr.bf16.mxu0 %v4201
    %6259 = vmatpush1.bf16.msra.mxu0 %v4200
    %6260 = vmatprep.subr.bf16.mxu0 %v4199
    %6261 = vmatpush1.bf16.msra.mxu0 %v4198
    %6262 = vmatprep.subr.bf16.mxu0 %v4197
    %6263 = vmatpush1.bf16.msra.mxu0 %v4196
    %6264 = vmatprep.subr.bf16.mxu0 %v4195
    %6265 = vmatpush1.bf16.msra.mxu0 %v4194
    %6266 = vmatprep.subr.bf16.mxu0 %v4225
    %6267 = vmatpush2.bf16.msra.mxu0 %v4224
    %6268 = vmatprep.subr.bf16.mxu0 %v4223
    %6269 = vmatpush2.bf16.msra.mxu0 %v4222
    %6270 = vmatprep.subr.bf16.mxu0 %v4221
    %6271 = vmatpush2.bf16.msra.mxu0 %v4220
    %6272 = vmatprep.subr.bf16.mxu0 %v4219
    %6273 = vmatpush2.bf16.msra.mxu0 %v4218
    %6274 = vmatprep.subr.bf16.mxu0 %v4217
    %6275 = vmatpush2.bf16.msra.mxu0 %v4216
    %6276 = vmatprep.subr.bf16.mxu0 %v4215
    %6277 = vmatpush2.bf16.msra.mxu0 %v4214
    %6278 = vmatprep.subr.bf16.mxu0 %v4213
    %6279 = vmatpush2.bf16.msra.mxu0 %v4212
    %6280 = vmatprep.subr.bf16.mxu0 %v4211
    %6281 = vmatpush2.bf16.msra.mxu0 %v4210
    %6282 = vmatprep.mubr.bf16.mxu0 %v2035
    %6283 = vmatmul.mubr.bf16.gmra.mxu0 %v2034
    %v6284 = vpop.f32.mrf.mxu0
    %v6285 = vadd.f32 %v6092, %v6284
    %v6286 = vpop.f32.mrf.mxu0
    %v6287 = vadd.f32 %v6094, %v6286
    %v6288 = vpop.f32.mrf.mxu0
    %v6289 = vadd.f32 %v6096, %v6288
    %v6290 = vpop.f32.mrf.mxu0
    %v6291 = vadd.f32 %v6098, %v6290
    %6292 = vmatprep.mubr.bf16.mxu0 %v2059
    %6293 = vmatmul.mubr.bf16.gmra.mxu0 %v2058
    %v6294 = vpop.f32.mrf.mxu0
    %v6295 = vadd.f32 %v6102, %v6294
    %v6296 = vpop.f32.mrf.mxu0
    %v6297 = vadd.f32 %v6104, %v6296
    %v6298 = vpop.f32.mrf.mxu0
    %v6299 = vadd.f32 %v6106, %v6298
    %v6300 = vpop.f32.mrf.mxu0
    %v6301 = vadd.f32 %v6108, %v6300
    %6302 = vmatprep.mubr.bf16.mxu0 %v2083
    %6303 = vmatmul.mubr.bf16.gmra.mxu0 %v2082
    %v6304 = vpop.f32.mrf.mxu0
    %v6305 = vadd.f32 %v6112, %v6304
    %v6306 = vpop.f32.mrf.mxu0
    %v6307 = vadd.f32 %v6114, %v6306
    %v6308 = vpop.f32.mrf.mxu0
    %v6309 = vadd.f32 %v6116, %v6308
    %v6310 = vpop.f32.mrf.mxu0
    %v6311 = vadd.f32 %v6118, %v6310
    %6312 = vmatprep.mubr.bf16.mxu0 %v2107
    %6313 = vmatmul.mubr.bf16.gmra.mxu0 %v2106
    %v6314 = vpop.f32.mrf.mxu0
    %v6315 = vadd.f32 %v6122, %v6314
    %v6316 = vpop.f32.mrf.mxu0
    %v6317 = vadd.f32 %v6124, %v6316
    %v6318 = vpop.f32.mrf.mxu0
    %v6319 = vadd.f32 %v6126, %v6318
    %v6320 = vpop.f32.mrf.mxu0
    %v6321 = vadd.f32 %v6128, %v6320
    %6322 = vmatprep.mubr.bf16.mxu0 %v2131
    %6323 = vmatmul.mubr.bf16.gmra.mxu0 %v2130
    %v6324 = vpop.f32.mrf.mxu0
    %v6325 = vadd.f32 %v6132, %v6324
    %v6326 = vpop.f32.mrf.mxu0
    %v6327 = vadd.f32 %v6134, %v6326
    %v6328 = vpop.f32.mrf.mxu0
    %v6329 = vadd.f32 %v6136, %v6328
    %v6330 = vpop.f32.mrf.mxu0
    %v6331 = vadd.f32 %v6138, %v6330
    %6332 = vmatprep.mubr.bf16.mxu0 %v2155
    %6333 = vmatmul.mubr.bf16.gmra.mxu0 %v2154
    %v6334 = vpop.f32.mrf.mxu0
    %v6335 = vadd.f32 %v6142, %v6334
    %v6336 = vpop.f32.mrf.mxu0
    %v6337 = vadd.f32 %v6144, %v6336
    %v6338 = vpop.f32.mrf.mxu0
    %v6339 = vadd.f32 %v6146, %v6338
    %v6340 = vpop.f32.mrf.mxu0
    %v6341 = vadd.f32 %v6148, %v6340
    %6342 = vmatprep.mubr.bf16.mxu0 %v2179
    %6343 = vmatmul.mubr.bf16.gmra.mxu0 %v2178
    %v6344 = vpop.f32.mrf.mxu0
    %v6345 = vadd.f32 %v6152, %v6344
    %v6346 = vpop.f32.mrf.mxu0
    %v6347 = vadd.f32 %v6154, %v6346
    %v6348 = vpop.f32.mrf.mxu0
    %v6349 = vadd.f32 %v6156, %v6348
    %v6350 = vpop.f32.mrf.mxu0
    %v6351 = vadd.f32 %v6158, %v6350
    %6352 = vmatprep.mubr.bf16.mxu0 %v2203
    %6353 = vmatmul.mubr.bf16.gmra.mxu0 %v2202
    %v6354 = vpop.f32.mrf.mxu0
    %v6355 = vadd.f32 %v6162, %v6354
    %v6356 = vpop.f32.mrf.mxu0
    %v6357 = vadd.f32 %v6164, %v6356
    %v6358 = vpop.f32.mrf.mxu0
    %v6359 = vadd.f32 %v6166, %v6358
    %v6360 = vpop.f32.mrf.mxu0
    %v6361 = vadd.f32 %v6168, %v6360
    %6362 = vmatprep.mubr.bf16.mxu0 %v2227
    %6363 = vmatmul.mubr.bf16.gmra.mxu0 %v2226
    %v6364 = vpop.f32.mrf.mxu0
    %v6365 = vadd.f32 %v6172, %v6364
    %v6366 = vpop.f32.mrf.mxu0
    %v6367 = vadd.f32 %v6174, %v6366
    %v6368 = vpop.f32.mrf.mxu0
    %v6369 = vadd.f32 %v6176, %v6368
    %v6370 = vpop.f32.mrf.mxu0
    %v6371 = vadd.f32 %v6178, %v6370
    %6372 = vmatprep.mubr.bf16.mxu0 %v2251
    %6373 = vmatmul.mubr.bf16.gmra.mxu0 %v2250
    %v6374 = vpop.f32.mrf.mxu0
    %v6375 = vadd.f32 %v6182, %v6374
    %v6376 = vpop.f32.mrf.mxu0
    %v6377 = vadd.f32 %v6184, %v6376
    %v6378 = vpop.f32.mrf.mxu0
    %v6379 = vadd.f32 %v6186, %v6378
    %v6380 = vpop.f32.mrf.mxu0
    %v6381 = vadd.f32 %v6188, %v6380
    %6382 = vmatprep.mubr.bf16.mxu0 %v2275
    %6383 = vmatmul.mubr.bf16.gmra.mxu0 %v2274
    %v6384 = vpop.f32.mrf.mxu0
    %v6385 = vadd.f32 %v6192, %v6384
    %v6386 = vpop.f32.mrf.mxu0
    %v6387 = vadd.f32 %v6194, %v6386
    %v6388 = vpop.f32.mrf.mxu0
    %v6389 = vadd.f32 %v6196, %v6388
    %v6390 = vpop.f32.mrf.mxu0
    %v6391 = vadd.f32 %v6198, %v6390
    %6392 = vmatprep.mubr.bf16.mxu0 %v2299
    %6393 = vmatmul.mubr.bf16.gmra.mxu0 %v2298
    %v6394 = vpop.f32.mrf.mxu0
    %v6395 = vadd.f32 %v6202, %v6394
    %v6396 = vpop.f32.mrf.mxu0
    %v6397 = vadd.f32 %v6204, %v6396
    %v6398 = vpop.f32.mrf.mxu0
    %v6399 = vadd.f32 %v6206, %v6398
    %v6400 = vpop.f32.mrf.mxu0
    %v6401 = vadd.f32 %v6208, %v6400
    %6402 = vmatprep.mubr.bf16.mxu0 %v2323
    %6403 = vmatmul.mubr.bf16.gmra.mxu0 %v2322
    %v6404 = vpop.f32.mrf.mxu0
    %v6405 = vadd.f32 %v6212, %v6404
    %v6406 = vpop.f32.mrf.mxu0
    %v6407 = vadd.f32 %v6214, %v6406
    %v6408 = vpop.f32.mrf.mxu0
    %v6409 = vadd.f32 %v6216, %v6408
    %v6410 = vpop.f32.mrf.mxu0
    %v6411 = vadd.f32 %v6218, %v6410
    %6412 = vmatprep.mubr.bf16.mxu0 %v2347
    %6413 = vmatmul.mubr.bf16.gmra.mxu0 %v2346
    %v6414 = vpop.f32.mrf.mxu0
    %v6415 = vadd.f32 %v6222, %v6414
    %v6416 = vpop.f32.mrf.mxu0
    %v6417 = vadd.f32 %v6224, %v6416
    %v6418 = vpop.f32.mrf.mxu0
    %v6419 = vadd.f32 %v6226, %v6418
    %v6420 = vpop.f32.mrf.mxu0
    %v6421 = vadd.f32 %v6228, %v6420
    %6422 = vmatprep.mubr.bf16.mxu0 %v2371
    %6423 = vmatmul.mubr.bf16.gmra.mxu0 %v2370
    %v6424 = vpop.f32.mrf.mxu0
    %v6425 = vadd.f32 %v6232, %v6424
    %v6426 = vpop.f32.mrf.mxu0
    %v6427 = vadd.f32 %v6234, %v6426
    %v6428 = vpop.f32.mrf.mxu0
    %v6429 = vadd.f32 %v6236, %v6428
    %v6430 = vpop.f32.mrf.mxu0
    %v6431 = vadd.f32 %v6238, %v6430
    %6432 = vmatprep.mubr.bf16.mxu0 %v2395
    %6433 = vmatmul.mubr.bf16.gmra.mxu0 %v2394
    %v6434 = vpop.f32.mrf.mxu0
    %v6435 = vadd.f32 %v6242, %v6434
    %v6436 = vpop.f32.mrf.mxu0
    %v6437 = vadd.f32 %v6244, %v6436
    %v6438 = vpop.f32.mrf.mxu0
    %v6439 = vadd.f32 %v6246, %v6438
    %v6440 = vpop.f32.mrf.mxu0
    %v6441 = vadd.f32 %v6248, %v6440
    %6442 = vdwg.mxu0
    %6443 = vmatprep.subr.bf16.mxu0 %v4241
    %6444 = vmatpush1.bf16.msra.mxu0 %v4240
    %6445 = vmatprep.subr.bf16.mxu0 %v4239
    %6446 = vmatpush1.bf16.msra.mxu0 %v4238
    %6447 = vmatprep.subr.bf16.mxu0 %v4237
    %6448 = vmatpush1.bf16.msra.mxu0 %v4236
    %6449 = vmatprep.subr.bf16.mxu0 %v4235
    %6450 = vmatpush1.bf16.msra.mxu0 %v4234
    %6451 = vmatprep.subr.bf16.mxu0 %v4233
    %6452 = vmatpush1.bf16.msra.mxu0 %v4232
    %6453 = vmatprep.subr.bf16.mxu0 %v4231
    %6454 = vmatpush1.bf16.msra.mxu0 %v4230
    %6455 = vmatprep.subr.bf16.mxu0 %v4229
    %6456 = vmatpush1.bf16.msra.mxu0 %v4228
    %6457 = vmatprep.subr.bf16.mxu0 %v4227
    %6458 = vmatpush1.bf16.msra.mxu0 %v4226
    %6459 = vmatprep.subr.bf16.mxu0 %v4257
    %6460 = vmatpush2.bf16.msra.mxu0 %v4256
    %6461 = vmatprep.subr.bf16.mxu0 %v4255
    %6462 = vmatpush2.bf16.msra.mxu0 %v4254
    %6463 = vmatprep.subr.bf16.mxu0 %v4253
    %6464 = vmatpush2.bf16.msra.mxu0 %v4252
    %6465 = vmatprep.subr.bf16.mxu0 %v4251
    %6466 = vmatpush2.bf16.msra.mxu0 %v4250
    %6467 = vmatprep.subr.bf16.mxu0 %v4249
    %6468 = vmatpush2.bf16.msra.mxu0 %v4248
    %6469 = vmatprep.subr.bf16.mxu0 %v4247
    %6470 = vmatpush2.bf16.msra.mxu0 %v4246
    %6471 = vmatprep.subr.bf16.mxu0 %v4245
    %6472 = vmatpush2.bf16.msra.mxu0 %v4244
    %6473 = vmatprep.subr.bf16.mxu0 %v4243
    %6474 = vmatpush2.bf16.msra.mxu0 %v4242
    %6475 = vmatprep.mubr.bf16.mxu0 %v2037
    %6476 = vmatmul.mubr.bf16.gmra.mxu0 %v2036
    %v6477 = vpop.f32.mrf.mxu0
    %v6478 = vadd.f32 %v6285, %v6477
    %v6479 = vpop.f32.mrf.mxu0
    %v6480 = vadd.f32 %v6287, %v6479
    %v6481 = vpop.f32.mrf.mxu0
    %v6482 = vadd.f32 %v6289, %v6481
    %v6483 = vpop.f32.mrf.mxu0
    %v6484 = vadd.f32 %v6291, %v6483
    %6485 = vmatprep.mubr.bf16.mxu0 %v2061
    %6486 = vmatmul.mubr.bf16.gmra.mxu0 %v2060
    %v6487 = vpop.f32.mrf.mxu0
    %v6488 = vadd.f32 %v6295, %v6487
    %v6489 = vpop.f32.mrf.mxu0
    %v6490 = vadd.f32 %v6297, %v6489
    %v6491 = vpop.f32.mrf.mxu0
    %v6492 = vadd.f32 %v6299, %v6491
    %v6493 = vpop.f32.mrf.mxu0
    %v6494 = vadd.f32 %v6301, %v6493
    %6495 = vmatprep.mubr.bf16.mxu0 %v2085
    %6496 = vmatmul.mubr.bf16.gmra.mxu0 %v2084
    %v6497 = vpop.f32.mrf.mxu0
    %v6498 = vadd.f32 %v6305, %v6497
    %v6499 = vpop.f32.mrf.mxu0
    %v6500 = vadd.f32 %v6307, %v6499
    %v6501 = vpop.f32.mrf.mxu0
    %v6502 = vadd.f32 %v6309, %v6501
    %v6503 = vpop.f32.mrf.mxu0
    %v6504 = vadd.f32 %v6311, %v6503
    %6505 = vmatprep.mubr.bf16.mxu0 %v2109
    %6506 = vmatmul.mubr.bf16.gmra.mxu0 %v2108
    %v6507 = vpop.f32.mrf.mxu0
    %v6508 = vadd.f32 %v6315, %v6507
    %v6509 = vpop.f32.mrf.mxu0
    %v6510 = vadd.f32 %v6317, %v6509
    %v6511 = vpop.f32.mrf.mxu0
    %v6512 = vadd.f32 %v6319, %v6511
    %v6513 = vpop.f32.mrf.mxu0
    %v6514 = vadd.f32 %v6321, %v6513
    %6515 = vmatprep.mubr.bf16.mxu0 %v2133
    %6516 = vmatmul.mubr.bf16.gmra.mxu0 %v2132
    %v6517 = vpop.f32.mrf.mxu0
    %v6518 = vadd.f32 %v6325, %v6517
    %v6519 = vpop.f32.mrf.mxu0
    %v6520 = vadd.f32 %v6327, %v6519
    %v6521 = vpop.f32.mrf.mxu0
    %v6522 = vadd.f32 %v6329, %v6521
    %v6523 = vpop.f32.mrf.mxu0
    %v6524 = vadd.f32 %v6331, %v6523
    %6525 = vmatprep.mubr.bf16.mxu0 %v2157
    %6526 = vmatmul.mubr.bf16.gmra.mxu0 %v2156
    %v6527 = vpop.f32.mrf.mxu0
    %v6528 = vadd.f32 %v6335, %v6527
    %v6529 = vpop.f32.mrf.mxu0
    %v6530 = vadd.f32 %v6337, %v6529
    %v6531 = vpop.f32.mrf.mxu0
    %v6532 = vadd.f32 %v6339, %v6531
    %v6533 = vpop.f32.mrf.mxu0
    %v6534 = vadd.f32 %v6341, %v6533
    %6535 = vmatprep.mubr.bf16.mxu0 %v2181
    %6536 = vmatmul.mubr.bf16.gmra.mxu0 %v2180
    %v6537 = vpop.f32.mrf.mxu0
    %v6538 = vadd.f32 %v6345, %v6537
    %v6539 = vpop.f32.mrf.mxu0
    %v6540 = vadd.f32 %v6347, %v6539
    %v6541 = vpop.f32.mrf.mxu0
    %v6542 = vadd.f32 %v6349, %v6541
    %v6543 = vpop.f32.mrf.mxu0
    %v6544 = vadd.f32 %v6351, %v6543
    %6545 = vmatprep.mubr.bf16.mxu0 %v2205
    %6546 = vmatmul.mubr.bf16.gmra.mxu0 %v2204
    %v6547 = vpop.f32.mrf.mxu0
    %v6548 = vadd.f32 %v6355, %v6547
    %v6549 = vpop.f32.mrf.mxu0
    %v6550 = vadd.f32 %v6357, %v6549
    %v6551 = vpop.f32.mrf.mxu0
    %v6552 = vadd.f32 %v6359, %v6551
    %v6553 = vpop.f32.mrf.mxu0
    %v6554 = vadd.f32 %v6361, %v6553
    %6555 = vmatprep.mubr.bf16.mxu0 %v2229
    %6556 = vmatmul.mubr.bf16.gmra.mxu0 %v2228
    %v6557 = vpop.f32.mrf.mxu0
    %v6558 = vadd.f32 %v6365, %v6557
    %v6559 = vpop.f32.mrf.mxu0
    %v6560 = vadd.f32 %v6367, %v6559
    %v6561 = vpop.f32.mrf.mxu0
    %v6562 = vadd.f32 %v6369, %v6561
    %v6563 = vpop.f32.mrf.mxu0
    %v6564 = vadd.f32 %v6371, %v6563
    %6565 = vmatprep.mubr.bf16.mxu0 %v2253
    %6566 = vmatmul.mubr.bf16.gmra.mxu0 %v2252
    %v6567 = vpop.f32.mrf.mxu0
    %v6568 = vadd.f32 %v6375, %v6567
    %v6569 = vpop.f32.mrf.mxu0
    %v6570 = vadd.f32 %v6377, %v6569
    %v6571 = vpop.f32.mrf.mxu0
    %v6572 = vadd.f32 %v6379, %v6571
    %v6573 = vpop.f32.mrf.mxu0
    %v6574 = vadd.f32 %v6381, %v6573
    %6575 = vmatprep.mubr.bf16.mxu0 %v2277
    %6576 = vmatmul.mubr.bf16.gmra.mxu0 %v2276
    %v6577 = vpop.f32.mrf.mxu0
    %v6578 = vadd.f32 %v6385, %v6577
    %v6579 = vpop.f32.mrf.mxu0
    %v6580 = vadd.f32 %v6387, %v6579
    %v6581 = vpop.f32.mrf.mxu0
    %v6582 = vadd.f32 %v6389, %v6581
    %v6583 = vpop.f32.mrf.mxu0
    %v6584 = vadd.f32 %v6391, %v6583
    %6585 = vmatprep.mubr.bf16.mxu0 %v2301
    %6586 = vmatmul.mubr.bf16.gmra.mxu0 %v2300
    %v6587 = vpop.f32.mrf.mxu0
    %v6588 = vadd.f32 %v6395, %v6587
    %v6589 = vpop.f32.mrf.mxu0
    %v6590 = vadd.f32 %v6397, %v6589
    %v6591 = vpop.f32.mrf.mxu0
    %v6592 = vadd.f32 %v6399, %v6591
    %v6593 = vpop.f32.mrf.mxu0
    %v6594 = vadd.f32 %v6401, %v6593
    %6595 = vmatprep.mubr.bf16.mxu0 %v2325
    %6596 = vmatmul.mubr.bf16.gmra.mxu0 %v2324
    %v6597 = vpop.f32.mrf.mxu0
    %v6598 = vadd.f32 %v6405, %v6597
    %v6599 = vpop.f32.mrf.mxu0
    %v6600 = vadd.f32 %v6407, %v6599
    %v6601 = vpop.f32.mrf.mxu0
    %v6602 = vadd.f32 %v6409, %v6601
    %v6603 = vpop.f32.mrf.mxu0
    %v6604 = vadd.f32 %v6411, %v6603
    %6605 = vmatprep.mubr.bf16.mxu0 %v2349
    %6606 = vmatmul.mubr.bf16.gmra.mxu0 %v2348
    %v6607 = vpop.f32.mrf.mxu0
    %v6608 = vadd.f32 %v6415, %v6607
    %v6609 = vpop.f32.mrf.mxu0
    %v6610 = vadd.f32 %v6417, %v6609
    %v6611 = vpop.f32.mrf.mxu0
    %v6612 = vadd.f32 %v6419, %v6611
    %v6613 = vpop.f32.mrf.mxu0
    %v6614 = vadd.f32 %v6421, %v6613
    %6615 = vmatprep.mubr.bf16.mxu0 %v2373
    %6616 = vmatmul.mubr.bf16.gmra.mxu0 %v2372
    %v6617 = vpop.f32.mrf.mxu0
    %v6618 = vadd.f32 %v6425, %v6617
    %v6619 = vpop.f32.mrf.mxu0
    %v6620 = vadd.f32 %v6427, %v6619
    %v6621 = vpop.f32.mrf.mxu0
    %v6622 = vadd.f32 %v6429, %v6621
    %v6623 = vpop.f32.mrf.mxu0
    %v6624 = vadd.f32 %v6431, %v6623
    %6625 = vmatprep.mubr.bf16.mxu0 %v2397
    %6626 = vmatmul.mubr.bf16.gmra.mxu0 %v2396
    %v6627 = vpop.f32.mrf.mxu0
    %v6628 = vadd.f32 %v6435, %v6627
    %v6629 = vpop.f32.mrf.mxu0
    %v6630 = vadd.f32 %v6437, %v6629
    %v6631 = vpop.f32.mrf.mxu0
    %v6632 = vadd.f32 %v6439, %v6631
    %v6633 = vpop.f32.mrf.mxu0
    %v6634 = vadd.f32 %v6441, %v6633
    %6635 = vdwg.mxu0
    %6636 = vmatprep.subr.bf16.mxu0 %v4273
    %6637 = vmatpush1.bf16.msra.mxu0 %v4272
    %6638 = vmatprep.subr.bf16.mxu0 %v4271
    %6639 = vmatpush1.bf16.msra.mxu0 %v4270
    %6640 = vmatprep.subr.bf16.mxu0 %v4269
    %6641 = vmatpush1.bf16.msra.mxu0 %v4268
    %6642 = vmatprep.subr.bf16.mxu0 %v4267
    %6643 = vmatpush1.bf16.msra.mxu0 %v4266
    %6644 = vmatprep.subr.bf16.mxu0 %v4265
    %6645 = vmatpush1.bf16.msra.mxu0 %v4264
    %6646 = vmatprep.subr.bf16.mxu0 %v4263
    %6647 = vmatpush1.bf16.msra.mxu0 %v4262
    %6648 = vmatprep.subr.bf16.mxu0 %v4261
    %6649 = vmatpush1.bf16.msra.mxu0 %v4260
    %6650 = vmatprep.subr.bf16.mxu0 %v4259
    %6651 = vmatpush1.bf16.msra.mxu0 %v4258
    %6652 = vmatprep.subr.bf16.mxu0 %v4289
    %6653 = vmatpush2.bf16.msra.mxu0 %v4288
    %6654 = vmatprep.subr.bf16.mxu0 %v4287
    %6655 = vmatpush2.bf16.msra.mxu0 %v4286
    %6656 = vmatprep.subr.bf16.mxu0 %v4285
    %6657 = vmatpush2.bf16.msra.mxu0 %v4284
    %6658 = vmatprep.subr.bf16.mxu0 %v4283
    %6659 = vmatpush2.bf16.msra.mxu0 %v4282
    %6660 = vmatprep.subr.bf16.mxu0 %v4281
    %6661 = vmatpush2.bf16.msra.mxu0 %v4280
    %6662 = vmatprep.subr.bf16.mxu0 %v4279
    %6663 = vmatpush2.bf16.msra.mxu0 %v4278
    %6664 = vmatprep.subr.bf16.mxu0 %v4277
    %6665 = vmatpush2.bf16.msra.mxu0 %v4276
    %6666 = vmatprep.subr.bf16.mxu0 %v4275
    %6667 = vmatpush2.bf16.msra.mxu0 %v4274
    %6668 = vmatprep.mubr.bf16.mxu0 %v2039
    %6669 = vmatmul.mubr.bf16.gmra.mxu0 %v2038
    %v6670 = vpop.f32.mrf.mxu0
    %v6671 = vadd.f32 %v6478, %v6670
    %v6672 = vpop.f32.mrf.mxu0
    %v6673 = vadd.f32 %v6480, %v6672
    %v6674 = vpop.f32.mrf.mxu0
    %v6675 = vadd.f32 %v6482, %v6674
    %v6676 = vpop.f32.mrf.mxu0
    %v6677 = vadd.f32 %v6484, %v6676
    %6678 = vmatprep.mubr.bf16.mxu0 %v2063
    %6679 = vmatmul.mubr.bf16.gmra.mxu0 %v2062
    %v6680 = vpop.f32.mrf.mxu0
    %v6681 = vadd.f32 %v6488, %v6680
    %v6682 = vpop.f32.mrf.mxu0
    %v6683 = vadd.f32 %v6490, %v6682
    %v6684 = vpop.f32.mrf.mxu0
    %v6685 = vadd.f32 %v6492, %v6684
    %v6686 = vpop.f32.mrf.mxu0
    %v6687 = vadd.f32 %v6494, %v6686
    %6688 = vmatprep.mubr.bf16.mxu0 %v2087
    %6689 = vmatmul.mubr.bf16.gmra.mxu0 %v2086
    %v6690 = vpop.f32.mrf.mxu0
    %v6691 = vadd.f32 %v6498, %v6690
    %v6692 = vpop.f32.mrf.mxu0
    %v6693 = vadd.f32 %v6500, %v6692
    %v6694 = vpop.f32.mrf.mxu0
    %v6695 = vadd.f32 %v6502, %v6694
    %v6696 = vpop.f32.mrf.mxu0
    %v6697 = vadd.f32 %v6504, %v6696
    %6698 = vmatprep.mubr.bf16.mxu0 %v2111
    %6699 = vmatmul.mubr.bf16.gmra.mxu0 %v2110
    %v6700 = vpop.f32.mrf.mxu0
    %v6701 = vadd.f32 %v6508, %v6700
    %v6702 = vpop.f32.mrf.mxu0
    %v6703 = vadd.f32 %v6510, %v6702
    %v6704 = vpop.f32.mrf.mxu0
    %v6705 = vadd.f32 %v6512, %v6704
    %v6706 = vpop.f32.mrf.mxu0
    %v6707 = vadd.f32 %v6514, %v6706
    %6708 = vmatprep.mubr.bf16.mxu0 %v2135
    %6709 = vmatmul.mubr.bf16.gmra.mxu0 %v2134
    %v6710 = vpop.f32.mrf.mxu0
    %v6711 = vadd.f32 %v6518, %v6710
    %v6712 = vpop.f32.mrf.mxu0
    %v6713 = vadd.f32 %v6520, %v6712
    %v6714 = vpop.f32.mrf.mxu0
    %v6715 = vadd.f32 %v6522, %v6714
    %v6716 = vpop.f32.mrf.mxu0
    %v6717 = vadd.f32 %v6524, %v6716
    %6718 = vmatprep.mubr.bf16.mxu0 %v2159
    %6719 = vmatmul.mubr.bf16.gmra.mxu0 %v2158
    %v6720 = vpop.f32.mrf.mxu0
    %v6721 = vadd.f32 %v6528, %v6720
    %v6722 = vpop.f32.mrf.mxu0
    %v6723 = vadd.f32 %v6530, %v6722
    %v6724 = vpop.f32.mrf.mxu0
    %v6725 = vadd.f32 %v6532, %v6724
    %v6726 = vpop.f32.mrf.mxu0
    %v6727 = vadd.f32 %v6534, %v6726
    %6728 = vmatprep.mubr.bf16.mxu0 %v2183
    %6729 = vmatmul.mubr.bf16.gmra.mxu0 %v2182
    %v6730 = vpop.f32.mrf.mxu0
    %v6731 = vadd.f32 %v6538, %v6730
    %v6732 = vpop.f32.mrf.mxu0
    %v6733 = vadd.f32 %v6540, %v6732
    %v6734 = vpop.f32.mrf.mxu0
    %v6735 = vadd.f32 %v6542, %v6734
    %v6736 = vpop.f32.mrf.mxu0
    %v6737 = vadd.f32 %v6544, %v6736
    %6738 = vmatprep.mubr.bf16.mxu0 %v2207
    %6739 = vmatmul.mubr.bf16.gmra.mxu0 %v2206
    %v6740 = vpop.f32.mrf.mxu0
    %v6741 = vadd.f32 %v6548, %v6740
    %v6742 = vpop.f32.mrf.mxu0
    %v6743 = vadd.f32 %v6550, %v6742
    %v6744 = vpop.f32.mrf.mxu0
    %v6745 = vadd.f32 %v6552, %v6744
    %v6746 = vpop.f32.mrf.mxu0
    %v6747 = vadd.f32 %v6554, %v6746
    %6748 = vmatprep.mubr.bf16.mxu0 %v2231
    %6749 = vmatmul.mubr.bf16.gmra.mxu0 %v2230
    %v6750 = vpop.f32.mrf.mxu0
    %v6751 = vadd.f32 %v6558, %v6750
    %v6752 = vpop.f32.mrf.mxu0
    %v6753 = vadd.f32 %v6560, %v6752
    %v6754 = vpop.f32.mrf.mxu0
    %v6755 = vadd.f32 %v6562, %v6754
    %v6756 = vpop.f32.mrf.mxu0
    %v6757 = vadd.f32 %v6564, %v6756
    %6758 = vmatprep.mubr.bf16.mxu0 %v2255
    %6759 = vmatmul.mubr.bf16.gmra.mxu0 %v2254
    %v6760 = vpop.f32.mrf.mxu0
    %v6761 = vadd.f32 %v6568, %v6760
    %v6762 = vpop.f32.mrf.mxu0
    %v6763 = vadd.f32 %v6570, %v6762
    %v6764 = vpop.f32.mrf.mxu0
    %v6765 = vadd.f32 %v6572, %v6764
    %v6766 = vpop.f32.mrf.mxu0
    %v6767 = vadd.f32 %v6574, %v6766
    %6768 = vmatprep.mubr.bf16.mxu0 %v2279
    %6769 = vmatmul.mubr.bf16.gmra.mxu0 %v2278
    %v6770 = vpop.f32.mrf.mxu0
    %v6771 = vadd.f32 %v6578, %v6770
    %v6772 = vpop.f32.mrf.mxu0
    %v6773 = vadd.f32 %v6580, %v6772
    %v6774 = vpop.f32.mrf.mxu0
    %v6775 = vadd.f32 %v6582, %v6774
    %v6776 = vpop.f32.mrf.mxu0
    %v6777 = vadd.f32 %v6584, %v6776
    %6778 = vmatprep.mubr.bf16.mxu0 %v2303
    %6779 = vmatmul.mubr.bf16.gmra.mxu0 %v2302
    %v6780 = vpop.f32.mrf.mxu0
    %v6781 = vadd.f32 %v6588, %v6780
    %v6782 = vpop.f32.mrf.mxu0
    %v6783 = vadd.f32 %v6590, %v6782
    %v6784 = vpop.f32.mrf.mxu0
    %v6785 = vadd.f32 %v6592, %v6784
    %v6786 = vpop.f32.mrf.mxu0
    %v6787 = vadd.f32 %v6594, %v6786
    %6788 = vmatprep.mubr.bf16.mxu0 %v2327
    %6789 = vmatmul.mubr.bf16.gmra.mxu0 %v2326
    %v6790 = vpop.f32.mrf.mxu0
    %v6791 = vadd.f32 %v6598, %v6790
    %v6792 = vpop.f32.mrf.mxu0
    %v6793 = vadd.f32 %v6600, %v6792
    %v6794 = vpop.f32.mrf.mxu0
    %v6795 = vadd.f32 %v6602, %v6794
    %v6796 = vpop.f32.mrf.mxu0
    %v6797 = vadd.f32 %v6604, %v6796
    %6798 = vmatprep.mubr.bf16.mxu0 %v2351
    %6799 = vmatmul.mubr.bf16.gmra.mxu0 %v2350
    %v6800 = vpop.f32.mrf.mxu0
    %v6801 = vadd.f32 %v6608, %v6800
    %v6802 = vpop.f32.mrf.mxu0
    %v6803 = vadd.f32 %v6610, %v6802
    %v6804 = vpop.f32.mrf.mxu0
    %v6805 = vadd.f32 %v6612, %v6804
    %v6806 = vpop.f32.mrf.mxu0
    %v6807 = vadd.f32 %v6614, %v6806
    %6808 = vmatprep.mubr.bf16.mxu0 %v2375
    %6809 = vmatmul.mubr.bf16.gmra.mxu0 %v2374
    %v6810 = vpop.f32.mrf.mxu0
    %v6811 = vadd.f32 %v6618, %v6810
    %v6812 = vpop.f32.mrf.mxu0
    %v6813 = vadd.f32 %v6620, %v6812
    %v6814 = vpop.f32.mrf.mxu0
    %v6815 = vadd.f32 %v6622, %v6814
    %v6816 = vpop.f32.mrf.mxu0
    %v6817 = vadd.f32 %v6624, %v6816
    %6818 = vmatprep.mubr.bf16.mxu0 %v2399
    %6819 = vmatmul.mubr.bf16.gmra.mxu0 %v2398
    %v6820 = vpop.f32.mrf.mxu0
    %v6821 = vadd.f32 %v6628, %v6820
    %v6822 = vpop.f32.mrf.mxu0
    %v6823 = vadd.f32 %v6630, %v6822
    %v6824 = vpop.f32.mrf.mxu0
    %v6825 = vadd.f32 %v6632, %v6824
    %v6826 = vpop.f32.mrf.mxu0
    %v6827 = vadd.f32 %v6634, %v6826
    %6828 = vdwg.mxu0
    %6829 = vmatprep.subr.bf16.mxu0 %v4305
    %6830 = vmatpush1.bf16.msra.mxu0 %v4304
    %6831 = vmatprep.subr.bf16.mxu0 %v4303
    %6832 = vmatpush1.bf16.msra.mxu0 %v4302
    %6833 = vmatprep.subr.bf16.mxu0 %v4301
    %6834 = vmatpush1.bf16.msra.mxu0 %v4300
    %6835 = vmatprep.subr.bf16.mxu0 %v4299
    %6836 = vmatpush1.bf16.msra.mxu0 %v4298
    %6837 = vmatprep.subr.bf16.mxu0 %v4297
    %6838 = vmatpush1.bf16.msra.mxu0 %v4296
    %6839 = vmatprep.subr.bf16.mxu0 %v4295
    %6840 = vmatpush1.bf16.msra.mxu0 %v4294
    %6841 = vmatprep.subr.bf16.mxu0 %v4293
    %6842 = vmatpush1.bf16.msra.mxu0 %v4292
    %6843 = vmatprep.subr.bf16.mxu0 %v4291
    %6844 = vmatpush1.bf16.msra.mxu0 %v4290
    %6845 = vmatprep.subr.bf16.mxu0 %v4321
    %6846 = vmatpush2.bf16.msra.mxu0 %v4320
    %6847 = vmatprep.subr.bf16.mxu0 %v4319
    %6848 = vmatpush2.bf16.msra.mxu0 %v4318
    %6849 = vmatprep.subr.bf16.mxu0 %v4317
    %6850 = vmatpush2.bf16.msra.mxu0 %v4316
    %6851 = vmatprep.subr.bf16.mxu0 %v4315
    %6852 = vmatpush2.bf16.msra.mxu0 %v4314
    %6853 = vmatprep.subr.bf16.mxu0 %v4313
    %6854 = vmatpush2.bf16.msra.mxu0 %v4312
    %6855 = vmatprep.subr.bf16.mxu0 %v4311
    %6856 = vmatpush2.bf16.msra.mxu0 %v4310
    %6857 = vmatprep.subr.bf16.mxu0 %v4309
    %6858 = vmatpush2.bf16.msra.mxu0 %v4308
    %6859 = vmatprep.subr.bf16.mxu0 %v4307
    %6860 = vmatpush2.bf16.msra.mxu0 %v4306
    %6861 = vmatprep.mubr.bf16.mxu0 %v2041
    %6862 = vmatmul.mubr.bf16.gmra.mxu0 %v2040
    %v6863 = vpop.f32.mrf.mxu0
    %v6864 = vadd.f32 %v6671, %v6863
    %v6865 = vpop.f32.mrf.mxu0
    %v6866 = vadd.f32 %v6673, %v6865
    %v6867 = vpop.f32.mrf.mxu0
    %v6868 = vadd.f32 %v6675, %v6867
    %v6869 = vpop.f32.mrf.mxu0
    %v6870 = vadd.f32 %v6677, %v6869
    %6871 = vmatprep.mubr.bf16.mxu0 %v2065
    %6872 = vmatmul.mubr.bf16.gmra.mxu0 %v2064
    %v6873 = vpop.f32.mrf.mxu0
    %v6874 = vadd.f32 %v6681, %v6873
    %v6875 = vpop.f32.mrf.mxu0
    %v6876 = vadd.f32 %v6683, %v6875
    %v6877 = vpop.f32.mrf.mxu0
    %v6878 = vadd.f32 %v6685, %v6877
    %v6879 = vpop.f32.mrf.mxu0
    %v6880 = vadd.f32 %v6687, %v6879
    %6881 = vmatprep.mubr.bf16.mxu0 %v2089
    %6882 = vmatmul.mubr.bf16.gmra.mxu0 %v2088
    %v6883 = vpop.f32.mrf.mxu0
    %v6884 = vadd.f32 %v6691, %v6883
    %v6885 = vpop.f32.mrf.mxu0
    %v6886 = vadd.f32 %v6693, %v6885
    %v6887 = vpop.f32.mrf.mxu0
    %v6888 = vadd.f32 %v6695, %v6887
    %v6889 = vpop.f32.mrf.mxu0
    %v6890 = vadd.f32 %v6697, %v6889
    %6891 = vmatprep.mubr.bf16.mxu0 %v2113
    %6892 = vmatmul.mubr.bf16.gmra.mxu0 %v2112
    %v6893 = vpop.f32.mrf.mxu0
    %v6894 = vadd.f32 %v6701, %v6893
    %v6895 = vpop.f32.mrf.mxu0
    %v6896 = vadd.f32 %v6703, %v6895
    %v6897 = vpop.f32.mrf.mxu0
    %v6898 = vadd.f32 %v6705, %v6897
    %v6899 = vpop.f32.mrf.mxu0
    %v6900 = vadd.f32 %v6707, %v6899
    %6901 = vmatprep.mubr.bf16.mxu0 %v2137
    %6902 = vmatmul.mubr.bf16.gmra.mxu0 %v2136
    %v6903 = vpop.f32.mrf.mxu0
    %v6904 = vadd.f32 %v6711, %v6903
    %v6905 = vpop.f32.mrf.mxu0
    %v6906 = vadd.f32 %v6713, %v6905
    %v6907 = vpop.f32.mrf.mxu0
    %v6908 = vadd.f32 %v6715, %v6907
    %v6909 = vpop.f32.mrf.mxu0
    %v6910 = vadd.f32 %v6717, %v6909
    %6911 = vmatprep.mubr.bf16.mxu0 %v2161
    %6912 = vmatmul.mubr.bf16.gmra.mxu0 %v2160
    %v6913 = vpop.f32.mrf.mxu0
    %v6914 = vadd.f32 %v6721, %v6913
    %v6915 = vpop.f32.mrf.mxu0
    %v6916 = vadd.f32 %v6723, %v6915
    %v6917 = vpop.f32.mrf.mxu0
    %v6918 = vadd.f32 %v6725, %v6917
    %v6919 = vpop.f32.mrf.mxu0
    %v6920 = vadd.f32 %v6727, %v6919
    %6921 = vmatprep.mubr.bf16.mxu0 %v2185
    %6922 = vmatmul.mubr.bf16.gmra.mxu0 %v2184
    %v6923 = vpop.f32.mrf.mxu0
    %v6924 = vadd.f32 %v6731, %v6923
    %v6925 = vpop.f32.mrf.mxu0
    %v6926 = vadd.f32 %v6733, %v6925
    %v6927 = vpop.f32.mrf.mxu0
    %v6928 = vadd.f32 %v6735, %v6927
    %v6929 = vpop.f32.mrf.mxu0
    %v6930 = vadd.f32 %v6737, %v6929
    %6931 = vmatprep.mubr.bf16.mxu0 %v2209
    %6932 = vmatmul.mubr.bf16.gmra.mxu0 %v2208
    %v6933 = vpop.f32.mrf.mxu0
    %v6934 = vadd.f32 %v6741, %v6933
    %v6935 = vpop.f32.mrf.mxu0
    %v6936 = vadd.f32 %v6743, %v6935
    %v6937 = vpop.f32.mrf.mxu0
    %v6938 = vadd.f32 %v6745, %v6937
    %v6939 = vpop.f32.mrf.mxu0
    %v6940 = vadd.f32 %v6747, %v6939
    %6941 = vmatprep.mubr.bf16.mxu0 %v2233
    %6942 = vmatmul.mubr.bf16.gmra.mxu0 %v2232
    %v6943 = vpop.f32.mrf.mxu0
    %v6944 = vadd.f32 %v6751, %v6943
    %v6945 = vpop.f32.mrf.mxu0
    %v6946 = vadd.f32 %v6753, %v6945
    %v6947 = vpop.f32.mrf.mxu0
    %v6948 = vadd.f32 %v6755, %v6947
    %v6949 = vpop.f32.mrf.mxu0
    %v6950 = vadd.f32 %v6757, %v6949
    %6951 = vmatprep.mubr.bf16.mxu0 %v2257
    %6952 = vmatmul.mubr.bf16.gmra.mxu0 %v2256
    %v6953 = vpop.f32.mrf.mxu0
    %v6954 = vadd.f32 %v6761, %v6953
    %v6955 = vpop.f32.mrf.mxu0
    %v6956 = vadd.f32 %v6763, %v6955
    %v6957 = vpop.f32.mrf.mxu0
    %v6958 = vadd.f32 %v6765, %v6957
    %v6959 = vpop.f32.mrf.mxu0
    %v6960 = vadd.f32 %v6767, %v6959
    %6961 = vmatprep.mubr.bf16.mxu0 %v2281
    %6962 = vmatmul.mubr.bf16.gmra.mxu0 %v2280
    %v6963 = vpop.f32.mrf.mxu0
    %v6964 = vadd.f32 %v6771, %v6963
    %v6965 = vpop.f32.mrf.mxu0
    %v6966 = vadd.f32 %v6773, %v6965
    %v6967 = vpop.f32.mrf.mxu0
    %v6968 = vadd.f32 %v6775, %v6967
    %v6969 = vpop.f32.mrf.mxu0
    %v6970 = vadd.f32 %v6777, %v6969
    %6971 = vmatprep.mubr.bf16.mxu0 %v2305
    %6972 = vmatmul.mubr.bf16.gmra.mxu0 %v2304
    %v6973 = vpop.f32.mrf.mxu0
    %v6974 = vadd.f32 %v6781, %v6973
    %v6975 = vpop.f32.mrf.mxu0
    %v6976 = vadd.f32 %v6783, %v6975
    %v6977 = vpop.f32.mrf.mxu0
    %v6978 = vadd.f32 %v6785, %v6977
    %v6979 = vpop.f32.mrf.mxu0
    %v6980 = vadd.f32 %v6787, %v6979
    %6981 = vmatprep.mubr.bf16.mxu0 %v2329
    %6982 = vmatmul.mubr.bf16.gmra.mxu0 %v2328
    %v6983 = vpop.f32.mrf.mxu0
    %v6984 = vadd.f32 %v6791, %v6983
    %v6985 = vpop.f32.mrf.mxu0
    %v6986 = vadd.f32 %v6793, %v6985
    %v6987 = vpop.f32.mrf.mxu0
    %v6988 = vadd.f32 %v6795, %v6987
    %v6989 = vpop.f32.mrf.mxu0
    %v6990 = vadd.f32 %v6797, %v6989
    %6991 = vmatprep.mubr.bf16.mxu0 %v2353
    %6992 = vmatmul.mubr.bf16.gmra.mxu0 %v2352
    %v6993 = vpop.f32.mrf.mxu0
    %v6994 = vadd.f32 %v6801, %v6993
    %v6995 = vpop.f32.mrf.mxu0
    %v6996 = vadd.f32 %v6803, %v6995
    %v6997 = vpop.f32.mrf.mxu0
    %v6998 = vadd.f32 %v6805, %v6997
    %v6999 = vpop.f32.mrf.mxu0
    %v7000 = vadd.f32 %v6807, %v6999
    %7001 = vmatprep.mubr.bf16.mxu0 %v2377
    %7002 = vmatmul.mubr.bf16.gmra.mxu0 %v2376
    %v7003 = vpop.f32.mrf.mxu0
    %v7004 = vadd.f32 %v6811, %v7003
    %v7005 = vpop.f32.mrf.mxu0
    %v7006 = vadd.f32 %v6813, %v7005
    %v7007 = vpop.f32.mrf.mxu0
    %v7008 = vadd.f32 %v6815, %v7007
    %v7009 = vpop.f32.mrf.mxu0
    %v7010 = vadd.f32 %v6817, %v7009
    %7011 = vmatprep.mubr.bf16.mxu0 %v2401
    %7012 = vmatmul.mubr.bf16.gmra.mxu0 %v2400
    %v7013 = vpop.f32.mrf.mxu0
    %v7014 = vadd.f32 %v6821, %v7013
    %v7015 = vpop.f32.mrf.mxu0
    %v7016 = vadd.f32 %v6823, %v7015
    %v7017 = vpop.f32.mrf.mxu0
    %v7018 = vadd.f32 %v6825, %v7017
    %v7019 = vpop.f32.mrf.mxu0
    %v7020 = vadd.f32 %v6827, %v7019
    %7021 = vdwg.mxu0
    %v7022 = vmax.f32 %v6864, 0.0
    %v7023 = vmax.f32 %v6866, 0.0
    %v7024 = vmax.f32 %v6868, 0.0
    %v7025 = vmax.f32 %v6870, 0.0
    %v7026 = vmax.f32 %v6874, 0.0
    %v7027 = vmax.f32 %v6876, 0.0
    %v7028 = vmax.f32 %v6878, 0.0
    %v7029 = vmax.f32 %v6880, 0.0
    %v7030 = vmax.f32 %v6884, 0.0
    %v7031 = vmax.f32 %v6886, 0.0
    %v7032 = vmax.f32 %v6888, 0.0
    %v7033 = vmax.f32 %v6890, 0.0
    %v7034 = vmax.f32 %v6894, 0.0
    %v7035 = vmax.f32 %v6896, 0.0
    %v7036 = vmax.f32 %v6898, 0.0
    %v7037 = vmax.f32 %v6900, 0.0
    %v7038 = vmax.f32 %v6904, 0.0
    %v7039 = vmax.f32 %v6906, 0.0
    %v7040 = vmax.f32 %v6908, 0.0
    %v7041 = vmax.f32 %v6910, 0.0
    %v7042 = vmax.f32 %v6914, 0.0
    %v7043 = vmax.f32 %v6916, 0.0
    %v7044 = vmax.f32 %v6918, 0.0
    %v7045 = vmax.f32 %v6920, 0.0
    %v7046 = vmax.f32 %v6924, 0.0
    %v7047 = vmax.f32 %v6926, 0.0
    %v7048 = vmax.f32 %v6928, 0.0
    %v7049 = vmax.f32 %v6930, 0.0
    %v7050 = vmax.f32 %v6934, 0.0
    %v7051 = vmax.f32 %v6936, 0.0
    %v7052 = vmax.f32 %v6938, 0.0
    %v7053 = vmax.f32 %v6940, 0.0
    %v7054 = vmax.f32 %v6944, 0.0
    %v7055 = vmax.f32 %v6946, 0.0
    %v7056 = vmax.f32 %v6948, 0.0
    %v7057 = vmax.f32 %v6950, 0.0
    %v7058 = vmax.f32 %v6954, 0.0
    %v7059 = vmax.f32 %v6956, 0.0
    %v7060 = vmax.f32 %v6958, 0.0
    %v7061 = vmax.f32 %v6960, 0.0
    %v7062 = vmax.f32 %v6964, 0.0
    %v7063 = vmax.f32 %v6966, 0.0
    %v7064 = vmax.f32 %v6968, 0.0
    %v7065 = vmax.f32 %v6970, 0.0
    %v7066 = vmax.f32 %v6974, 0.0
    %v7067 = vmax.f32 %v6976, 0.0
    %v7068 = vmax.f32 %v6978, 0.0
    %v7069 = vmax.f32 %v6980, 0.0
    %v7070 = vmax.f32 %v6984, 0.0
    %v7071 = vmax.f32 %v6986, 0.0
    %v7072 = vmax.f32 %v6988, 0.0
    %v7073 = vmax.f32 %v6990, 0.0
    %v7074 = vmax.f32 %v6994, 0.0
    %v7075 = vmax.f32 %v6996, 0.0
    %v7076 = vmax.f32 %v6998, 0.0
    %v7077 = vmax.f32 %v7000, 0.0
    %v7078 = vmax.f32 %v7004, 0.0
    %v7079 = vmax.f32 %v7006, 0.0
    %v7080 = vmax.f32 %v7008, 0.0
    %v7081 = vmax.f32 %v7010, 0.0
    %v7082 = vmax.f32 %v7014, 0.0
    %v7083 = vmax.f32 %v7016, 0.0
    %v7084 = vmax.f32 %v7018, 0.0
    %v7085 = vmax.f32 %v7020, 0.0
    %v7086 = vpack.c.bf16 %v7024, %v7022
    %v7087 = vpack.c.bf16 %v7025, %v7023
    %v7088 = vpack.c.bf16 %v7028, %v7026
    %v7089 = vpack.c.bf16 %v7029, %v7027
    %v7090 = vpack.c.bf16 %v7032, %v7030
    %v7091 = vpack.c.bf16 %v7033, %v7031
    %v7092 = vpack.c.bf16 %v7036, %v7034
    %v7093 = vpack.c.bf16 %v7037, %v7035
    %v7094 = vpack.c.bf16 %v7040, %v7038
    %v7095 = vpack.c.bf16 %v7041, %v7039
    %v7096 = vpack.c.bf16 %v7044, %v7042
    %v7097 = vpack.c.bf16 %v7045, %v7043
    %v7098 = vpack.c.bf16 %v7048, %v7046
    %v7099 = vpack.c.bf16 %v7049, %v7047
    %v7100 = vpack.c.bf16 %v7052, %v7050
    %v7101 = vpack.c.bf16 %v7053, %v7051
    %v7102 = vpack.c.bf16 %v7056, %v7054
    %v7103 = vpack.c.bf16 %v7057, %v7055
    %v7104 = vpack.c.bf16 %v7060, %v7058
    %v7105 = vpack.c.bf16 %v7061, %v7059
    %v7106 = vpack.c.bf16 %v7064, %v7062
    %v7107 = vpack.c.bf16 %v7065, %v7063
    %v7108 = vpack.c.bf16 %v7068, %v7066
    %v7109 = vpack.c.bf16 %v7069, %v7067
    %v7110 = vpack.c.bf16 %v7072, %v7070
    %v7111 = vpack.c.bf16 %v7073, %v7071
    %v7112 = vpack.c.bf16 %v7076, %v7074
    %v7113 = vpack.c.bf16 %v7077, %v7075
    %v7114 = vpack.c.bf16 %v7080, %v7078
    %v7115 = vpack.c.bf16 %v7081, %v7079
    %v7116 = vpack.c.bf16 %v7084, %v7082
    %v7117 = vpack.c.bf16 %v7085, %v7083
    %v7118 = vld [vmem:[#allocation8] sm:$0xf]
    %v7119 = vld [vmem:[#allocation8 + $0x4] sm:$0xf]
    %v7120 = vld [vmem:[#allocation8 + $0x8] sm:$0xf]
    %v7121 = vld [vmem:[#allocation8 + $0xc] sm:$0xf]
    %v7122 = vld [vmem:[#allocation8 + $0x10] sm:$0xf]
    %v7123 = vld [vmem:[#allocation8 + $0x14] sm:$0xf]
    %v7124 = vld [vmem:[#allocation8 + $0x18] sm:$0xf]
    %v7125 = vld [vmem:[#allocation8 + $0x1c] sm:$0xf]
    %v7126 = vld [vmem:[#allocation8 + $0x20] sm:$0xf]
    %v7127 = vld [vmem:[#allocation8 + $0x24] sm:$0xf]
    %v7128 = vld [vmem:[#allocation8 + $0x28] sm:$0xf]
    %v7129 = vld [vmem:[#allocation8 + $0x2c] sm:$0xf]
    %v7130 = vld [vmem:[#allocation8 + $0x30] sm:$0xf]
    %v7131 = vld [vmem:[#allocation8 + $0x34] sm:$0xf]
    %v7132 = vld [vmem:[#allocation8 + $0x38] sm:$0xf]
    %v7133 = vld [vmem:[#allocation8 + $0x3c] sm:$0xf]
    %v7134 = vld [vmem:[#allocation8 + $0x40] sm:$0xf]
    %v7135 = vld [vmem:[#allocation8 + $0x44] sm:$0xf]
    %v7136 = vld [vmem:[#allocation8 + $0x48] sm:$0xf]
    %v7137 = vld [vmem:[#allocation8 + $0x4c] sm:$0xf]
    %v7138 = vld [vmem:[#allocation8 + $0x50] sm:$0xf]
    %v7139 = vld [vmem:[#allocation8 + $0x54] sm:$0xf]
    %v7140 = vld [vmem:[#allocation8 + $0x58] sm:$0xf]
    %v7141 = vld [vmem:[#allocation8 + $0x5c] sm:$0xf]
    %v7142 = vld [vmem:[#allocation8 + $0x60] sm:$0xf]
    %v7143 = vld [vmem:[#allocation8 + $0x64] sm:$0xf]
    %v7144 = vld [vmem:[#allocation8 + $0x68] sm:$0xf]
    %v7145 = vld [vmem:[#allocation8 + $0x6c] sm:$0xf]
    %v7146 = vld [vmem:[#allocation8 + $0x70] sm:$0xf]
    %v7147 = vld [vmem:[#allocation8 + $0x74] sm:$0xf]
    %v7148 = vld [vmem:[#allocation8 + $0x78] sm:$0xf]
    %v7149 = vld [vmem:[#allocation8 + $0x7c] sm:$0xf]
    %v7150 = vld [vmem:[#allocation10] sm:$0x1]
    %v7152 = vlaneseq
    %v7153 = vshrl.u32 %v7152, 7
    %v7154 = vsub.s32 0, %v7153
    %v7155 = vrot.slane %v7150, %v7154
    %v7189 = vunpack.c.l.b16 %v7118
    %v7190 = vunpack.c.l.b16 %v7119
    %v7191 = vunpack.c.l.b16 %v7120
    %v7192 = vunpack.c.l.b16 %v7121
    %v7193 = vunpack.c.l.b16 %v7122
    %v7194 = vunpack.c.l.b16 %v7123
    %v7195 = vunpack.c.l.b16 %v7124
    %v7196 = vunpack.c.l.b16 %v7125
    %v7197 = vunpack.c.l.b16 %v7126
    %v7198 = vunpack.c.l.b16 %v7127
    %v7199 = vunpack.c.l.b16 %v7128
    %v7200 = vunpack.c.l.b16 %v7129
    %v7201 = vunpack.c.l.b16 %v7130
    %v7202 = vunpack.c.l.b16 %v7131
    %v7203 = vunpack.c.l.b16 %v7132
    %v7204 = vunpack.c.l.b16 %v7133
    %v7205 = vunpack.c.l.b16 %v7134
    %v7206 = vunpack.c.l.b16 %v7135
    %v7207 = vunpack.c.l.b16 %v7136
    %v7208 = vunpack.c.l.b16 %v7137
    %v7209 = vunpack.c.l.b16 %v7138
    %v7210 = vunpack.c.l.b16 %v7139
    %v7211 = vunpack.c.l.b16 %v7140
    %v7212 = vunpack.c.l.b16 %v7141
    %v7213 = vunpack.c.l.b16 %v7142
    %v7214 = vunpack.c.l.b16 %v7143
    %v7215 = vunpack.c.l.b16 %v7144
    %v7216 = vunpack.c.l.b16 %v7145
    %v7217 = vunpack.c.l.b16 %v7146
    %v7218 = vunpack.c.l.b16 %v7147
    %v7219 = vunpack.c.l.b16 %v7148
    %v7220 = vunpack.c.l.b16 %v7149
    %v7221 = vpack.c.b16 %v7190, %v7189
    %v7222 = vpack.c.b16 %v7192, %v7191
    %v7223 = vpack.c.b16 %v7194, %v7193
    %v7224 = vpack.c.b16 %v7196, %v7195
    %v7225 = vpack.c.b16 %v7198, %v7197
    %v7226 = vpack.c.b16 %v7200, %v7199
    %v7227 = vpack.c.b16 %v7202, %v7201
    %v7228 = vpack.c.b16 %v7204, %v7203
    %v7229 = vpack.c.b16 %v7206, %v7205
    %v7230 = vpack.c.b16 %v7208, %v7207
    %v7231 = vpack.c.b16 %v7210, %v7209
    %v7232 = vpack.c.b16 %v7212, %v7211
    %v7233 = vpack.c.b16 %v7214, %v7213
    %v7234 = vpack.c.b16 %v7216, %v7215
    %v7235 = vpack.c.b16 %v7218, %v7217
    %v7236 = vpack.c.b16 %v7220, %v7219
    %7253 = vmatprep.subr.bf16.mxu0 0
    %7254 = vmatpush1.bf16.msra.mxu0 %v7228
    %7255 = vmatprep.subr.bf16.mxu0 0
    %7256 = vmatpush1.bf16.msra.mxu0 %v7227
    %7257 = vmatprep.subr.bf16.mxu0 0
    %7258 = vmatpush1.bf16.msra.mxu0 %v7226
    %7259 = vmatprep.subr.bf16.mxu0 0
    %7260 = vmatpush1.bf16.msra.mxu0 %v7225
    %7261 = vmatprep.subr.bf16.mxu0 0
    %7262 = vmatpush1.bf16.msra.mxu0 %v7224
    %7263 = vmatprep.subr.bf16.mxu0 0
    %7264 = vmatpush1.bf16.msra.mxu0 %v7223
    %7265 = vmatprep.subr.bf16.mxu0 0
    %7266 = vmatpush1.bf16.msra.mxu0 %v7222
    %7267 = vmatprep.subr.bf16.mxu0 0
    %7268 = vmatpush1.bf16.msra.mxu0 %v7221
    %7269 = vmatprep.subr.bf16.mxu0 0
    %7270 = vmatpush2.bf16.msra.mxu0 %v7236
    %7271 = vmatprep.subr.bf16.mxu0 0
    %7272 = vmatpush2.bf16.msra.mxu0 %v7235
    %7273 = vmatprep.subr.bf16.mxu0 0
    %7274 = vmatpush2.bf16.msra.mxu0 %v7234
    %7275 = vmatprep.subr.bf16.mxu0 0
    %7276 = vmatpush2.bf16.msra.mxu0 %v7233
    %7277 = vmatprep.subr.bf16.mxu0 0
    %7278 = vmatpush2.bf16.msra.mxu0 %v7232
    %7279 = vmatprep.subr.bf16.mxu0 0
    %7280 = vmatpush2.bf16.msra.mxu0 %v7231
    %7281 = vmatprep.subr.bf16.mxu0 0
    %7282 = vmatpush2.bf16.msra.mxu0 %v7230
    %7283 = vmatprep.subr.bf16.mxu0 0
    %7284 = vmatpush2.bf16.msra.mxu0 %v7229
    %7285 = vmatprep.mubr.bf16.mxu0 %v7087
    %7286 = vmatmul.mubr.bf16.gmra.mxu0 %v7086
    %v7287 = vpop.f32.mrf.mxu0
    %v7288 = vadd.f32 %v7155, %v7287
    %v7289 = vpop.f32.mrf.mxu0
    %v7290 = vpop.f32.mrf.mxu0
    %v7291 = vadd.f32 %v7155, %v7290
    %v7292 = vpop.f32.mrf.mxu0
    %7293 = vmatprep.mubr.bf16.mxu0 %v7089
    %7294 = vmatmul.mubr.bf16.gmra.mxu0 %v7088
    %v7295 = vpop.f32.mrf.mxu0
    %v7296 = vadd.f32 %v7155, %v7295
    %v7297 = vpop.f32.mrf.mxu0
    %v7298 = vpop.f32.mrf.mxu0
    %v7299 = vadd.f32 %v7155, %v7298
    %v7300 = vpop.f32.mrf.mxu0
    %7301 = vmatprep.mubr.bf16.mxu0 %v7091
    %7302 = vmatmul.mubr.bf16.gmra.mxu0 %v7090
    %v7303 = vpop.f32.mrf.mxu0
    %v7304 = vadd.f32 %v7155, %v7303
    %v7305 = vpop.f32.mrf.mxu0
    %v7306 = vpop.f32.mrf.mxu0
    %v7307 = vadd.f32 %v7155, %v7306
    %v7308 = vpop.f32.mrf.mxu0
    %7309 = vmatprep.mubr.bf16.mxu0 %v7093
    %7310 = vmatmul.mubr.bf16.gmra.mxu0 %v7092
    %v7311 = vpop.f32.mrf.mxu0
    %v7312 = vadd.f32 %v7155, %v7311
    %v7313 = vpop.f32.mrf.mxu0
    %v7314 = vpop.f32.mrf.mxu0
    %v7315 = vadd.f32 %v7155, %v7314
    %v7316 = vpop.f32.mrf.mxu0
    %7317 = vmatprep.mubr.bf16.mxu0 %v7095
    %7318 = vmatmul.mubr.bf16.gmra.mxu0 %v7094
    %v7319 = vpop.f32.mrf.mxu0
    %v7320 = vadd.f32 %v7155, %v7319
    %v7321 = vpop.f32.mrf.mxu0
    %v7322 = vpop.f32.mrf.mxu0
    %v7323 = vadd.f32 %v7155, %v7322
    %v7324 = vpop.f32.mrf.mxu0
    %7325 = vmatprep.mubr.bf16.mxu0 %v7097
    %7326 = vmatmul.mubr.bf16.gmra.mxu0 %v7096
    %v7327 = vpop.f32.mrf.mxu0
    %v7328 = vadd.f32 %v7155, %v7327
    %v7329 = vpop.f32.mrf.mxu0
    %v7330 = vpop.f32.mrf.mxu0
    %v7331 = vadd.f32 %v7155, %v7330
    %v7332 = vpop.f32.mrf.mxu0
    %7333 = vmatprep.mubr.bf16.mxu0 %v7099
    %7334 = vmatmul.mubr.bf16.gmra.mxu0 %v7098
    %v7335 = vpop.f32.mrf.mxu0
    %v7336 = vadd.f32 %v7155, %v7335
    %v7337 = vpop.f32.mrf.mxu0
    %v7338 = vpop.f32.mrf.mxu0
    %v7339 = vadd.f32 %v7155, %v7338
    %v7340 = vpop.f32.mrf.mxu0
    %7341 = vmatprep.mubr.bf16.mxu0 %v7101
    %7342 = vmatmul.mubr.bf16.gmra.mxu0 %v7100
    %v7343 = vpop.f32.mrf.mxu0
    %v7344 = vadd.f32 %v7155, %v7343
    %v7345 = vpop.f32.mrf.mxu0
    %v7346 = vpop.f32.mrf.mxu0
    %v7347 = vadd.f32 %v7155, %v7346
    %v7348 = vpop.f32.mrf.mxu0
    %7349 = vmatprep.mubr.bf16.mxu0 %v7103
    %7350 = vmatmul.mubr.bf16.gmra.mxu0 %v7102
    %v7351 = vpop.f32.mrf.mxu0
    %v7352 = vadd.f32 %v7155, %v7351
    %v7353 = vpop.f32.mrf.mxu0
    %v7354 = vpop.f32.mrf.mxu0
    %v7355 = vadd.f32 %v7155, %v7354
    %v7356 = vpop.f32.mrf.mxu0
    %7357 = vmatprep.mubr.bf16.mxu0 %v7105
    %7358 = vmatmul.mubr.bf16.gmra.mxu0 %v7104
    %v7359 = vpop.f32.mrf.mxu0
    %v7360 = vadd.f32 %v7155, %v7359
    %v7361 = vpop.f32.mrf.mxu0
    %v7362 = vpop.f32.mrf.mxu0
    %v7363 = vadd.f32 %v7155, %v7362
    %v7364 = vpop.f32.mrf.mxu0
    %7365 = vmatprep.mubr.bf16.mxu0 %v7107
    %7366 = vmatmul.mubr.bf16.gmra.mxu0 %v7106
    %v7367 = vpop.f32.mrf.mxu0
    %v7368 = vadd.f32 %v7155, %v7367
    %v7369 = vpop.f32.mrf.mxu0
    %v7370 = vpop.f32.mrf.mxu0
    %v7371 = vadd.f32 %v7155, %v7370
    %v7372 = vpop.f32.mrf.mxu0
    %7373 = vmatprep.mubr.bf16.mxu0 %v7109
    %7374 = vmatmul.mubr.bf16.gmra.mxu0 %v7108
    %v7375 = vpop.f32.mrf.mxu0
    %v7376 = vadd.f32 %v7155, %v7375
    %v7377 = vpop.f32.mrf.mxu0
    %v7378 = vpop.f32.mrf.mxu0
    %v7379 = vadd.f32 %v7155, %v7378
    %v7380 = vpop.f32.mrf.mxu0
    %7381 = vmatprep.mubr.bf16.mxu0 %v7111
    %7382 = vmatmul.mubr.bf16.gmra.mxu0 %v7110
    %v7383 = vpop.f32.mrf.mxu0
    %v7384 = vadd.f32 %v7155, %v7383
    %v7385 = vpop.f32.mrf.mxu0
    %v7386 = vpop.f32.mrf.mxu0
    %v7387 = vadd.f32 %v7155, %v7386
    %v7388 = vpop.f32.mrf.mxu0
    %7389 = vmatprep.mubr.bf16.mxu0 %v7113
    %7390 = vmatmul.mubr.bf16.gmra.mxu0 %v7112
    %v7391 = vpop.f32.mrf.mxu0
    %v7392 = vadd.f32 %v7155, %v7391
    %v7393 = vpop.f32.mrf.mxu0
    %v7394 = vpop.f32.mrf.mxu0
    %v7395 = vadd.f32 %v7155, %v7394
    %v7396 = vpop.f32.mrf.mxu0
    %7397 = vmatprep.mubr.bf16.mxu0 %v7115
    %7398 = vmatmul.mubr.bf16.gmra.mxu0 %v7114
    %v7399 = vpop.f32.mrf.mxu0
    %v7400 = vadd.f32 %v7155, %v7399
    %v7401 = vpop.f32.mrf.mxu0
    %v7402 = vpop.f32.mrf.mxu0
    %v7403 = vadd.f32 %v7155, %v7402
    %v7404 = vpop.f32.mrf.mxu0
    %7405 = vmatprep.mubr.bf16.mxu0 %v7117
    %7406 = vmatmul.mubr.bf16.gmra.mxu0 %v7116
    %v7407 = vpop.f32.mrf.mxu0
    %v7408 = vadd.f32 %v7155, %v7407
    %v7409 = vpop.f32.mrf.mxu0
    %v7410 = vpop.f32.mrf.mxu0
    %v7411 = vadd.f32 %v7155, %v7410
    %v7412 = vpop.f32.mrf.mxu0
    %7413 = vdwg.mxu0
    %7414 = vst [vmem:[#allocation11] sm:$0xff] %v7288
    %7415 = vst [vmem:[#allocation11 + $0x8] sm:$0xff] %v7291
    %7416 = vst [vmem:[#allocation11 + $0x10] sm:$0xff] %v7296
    %7417 = vst [vmem:[#allocation11 + $0x18] sm:$0xff] %v7299
    %7418 = vst [vmem:[#allocation11 + $0x20] sm:$0xff] %v7304
    %7419 = vst [vmem:[#allocation11 + $0x28] sm:$0xff] %v7307
    %7420 = vst [vmem:[#allocation11 + $0x30] sm:$0xff] %v7312
    %7421 = vst [vmem:[#allocation11 + $0x38] sm:$0xff] %v7315
    %7422 = vst [vmem:[#allocation11 + $0x40] sm:$0xff] %v7320
    %7423 = vst [vmem:[#allocation11 + $0x48] sm:$0xff] %v7323
    %7424 = vst [vmem:[#allocation11 + $0x50] sm:$0xff] %v7328
    %7425 = vst [vmem:[#allocation11 + $0x58] sm:$0xff] %v7331
    %7426 = vst [vmem:[#allocation11 + $0x60] sm:$0xff] %v7336
    %7427 = vst [vmem:[#allocation11 + $0x68] sm:$0xff] %v7339
    %7428 = vst [vmem:[#allocation11 + $0x70] sm:$0xff] %v7344
    %7429 = vst [vmem:[#allocation11 + $0x78] sm:$0xff] %v7347
    %7430 = vst [vmem:[#allocation11 + $0x80] sm:$0xff] %v7352
    %7431 = vst [vmem:[#allocation11 + $0x88] sm:$0xff] %v7355
    %7432 = vst [vmem:[#allocation11 + $0x90] sm:$0xff] %v7360
    %7433 = vst [vmem:[#allocation11 + $0x98] sm:$0xff] %v7363
    %7434 = vst [vmem:[#allocation11 + $0xa0] sm:$0xff] %v7368
    %7435 = vst [vmem:[#allocation11 + $0xa8] sm:$0xff] %v7371
    %7436 = vst [vmem:[#allocation11 + $0xb0] sm:$0xff] %v7376
    %7437 = vst [vmem:[#allocation11 + $0xb8] sm:$0xff] %v7379
    %7438 = vst [vmem:[#allocation11 + $0xc0] sm:$0xff] %v7384
    %7439 = vst [vmem:[#allocation11 + $0xc8] sm:$0xff] %v7387
    %7440 = vst [vmem:[#allocation11 + $0xd0] sm:$0xff] %v7392
    %7441 = vst [vmem:[#allocation11 + $0xd8] sm:$0xff] %v7395
    %7442 = vst [vmem:[#allocation11 + $0xe0] sm:$0xff] %v7400
    %7443 = vst [vmem:[#allocation11 + $0xe8] sm:$0xff] %v7403
    %7444 = vst [vmem:[#allocation11 + $0xf0] sm:$0xff] %v7408
    %7445 = vst [vmem:[#allocation11 + $0xf8] sm:$0xff] %v7411
    // Predicated region
    $region42: #{tpu_custom_call.1} parent=1 // pred_check
      _
    $region43: #{tpu_custom_call.1} parent=1 // pred_check_branch
      %7447 = sbr.rel (0) target = $region45
    $region44: #{tpu_custom_call.1} parent=1 // pred_region
      %s7449 = ssub.s32 4096, 4096
      %7450 = vsyncadd [#allocation4], %s7449
      %s7451 = sshll.u32 [#allocation11], 4
      %s7452 = int_to_ptr.vmem [resolvable:$true] %s7451
      %7457 = dma.vmem_to_hbm [thread:$0]  %s7452, 4096, %s5, [#allocation4], 128, 128, 8
    $region45: #{tpu_custom_call.1} parent=1 // pred_fallthru
      _
    // Predicated region
    $region46: #{tpu_custom_call.1} parent=1 // pred_check
      _
    $region47: #{tpu_custom_call.1} parent=1 // pred_check_branch
      %7459 = sbr.rel (0) target = $region49
    $region48: #{tpu_custom_call.1} parent=1 // pred_region
      %7460 = dma.done [#allocation4], 4096
    $region49: #{tpu_custom_call.1} parent=1 // pred_fallthru
      _
    %7461 = vsyncpa [#allocation3], 1
    %7462 = vsyncpa [#allocation6], 1
    %7463 = vsyncpa [#allocation9], 1
    %7464 = vsyncpa [#allocation4], 1

// kernel: tpu_custom_call.1
$region0: #{tpu_custom_call.1}
  #allocation0 [shape = 'u32[]', space=smem, size = 0x4, offset = 0x4, fixed_abs, tag = 'smem constant byte address 0x4 - core index']
  #allocation1 [shape = 'u32[144,128]{1,0:T(1,128)}', space=vmem, size = 0x12000, scoped, tag = 'internal scratch']
  %s0 = inlined_call_operand.hbm [shape: bf16[256,3072], index: 0, kind: input, shape index: {}]
  %s1 = inlined_call_operand.hbm [shape: bf16[3072,256], index: 1, kind: input, shape index: {}]
  %s2 = inlined_call_operand.hbm [shape: f32[1,256], index: 2, kind: input, shape index: {}]
  %s3 = inlined_call_operand.hbm [shape: bf16[256,128], index: 3, kind: input, shape index: {}]
  %s4 = inlined_call_operand.hbm [shape: f32[1,128], index: 4, kind: input, shape index: {}]
  %s5 = inlined_call_operand.hbm [shape: f32[256,128], index: 5, kind: output, shape index: {}]
  %s6 = sld [smem:[#allocation0]]
  $region50: #{tpu_custom_call.1} parent=0
    _
  %s8 = ssub.s32 1, %s6
  %s9 = scalar_select 0, %s8, %s6
  $region1: #{tpu_custom_call.1} parent=0
    #allocation2 [shape = 'u8[1572864]{0}', space=vmem, size = 0x180000, scoped, tag = 'input window, operand 0, single buffered']
    #allocation3 [shape = 's32[1]{0}', space=sflag, size = 0x4, scoped, tag = 'scoped memory for tpu_custom_call.1']
    #allocation4 [shape = 's32[1]{0}', space=sflag, size = 0x4, scoped, tag = 'scoped memory for tpu_custom_call.1']
    #allocation5 [shape = 'u8[1572864]{0}', space=vmem, size = 0x180000, scoped, tag = 'input window, operand 1, single buffered']
    #allocation6 [shape = 's32[1]{0}', space=sflag, size = 0x4, scoped, tag = 'scoped memory for tpu_custom_call.1']
    #allocation7 [shape = 'u8[1024]{0}', space=vmem, size = 0x400, scoped, tag = 'input window, operand 2, single buffered']
    #allocation8 [shape = 'u8[65536]{0}', space=vmem, size = 0x10000, scoped, tag = 'input window, operand 3, single buffered']
    #allocation9 [shape = 's32[1]{0}', space=sflag, size = 0x4, scoped, tag = 'scoped memory for tpu_custom_call.1']
    #allocation10 [shape = 'u8[512]{0}', space=vmem, size = 0x400, scoped, tag = 'input window, operand 4, single buffered']
    #allocation11 [shape = 'u8[131072]{0}', space=vmem, size = 0x20000, scoped, tag = 'output window, operand 0, single buffered']
    %10 = vsyncpa [#allocation3], 0
    %11 = vsyncpa [#allocation6], 0
    %12 = vsyncpa [#allocation9], 0
    %13 = vsyncpa [#allocation4], 0
    // Predicated region
    $region2: #{tpu_custom_call.1} parent=1 // pred_check
      _
    $region3: #{tpu_custom_call.1} parent=1 // pred_check_branch
      %15 = sbr.rel (0) target = $region5
    $region4: #{tpu_custom_call.1} parent=1 // pred_region
      %s17 = ssub.s32 49152, 49152
      %18 = vsyncadd [#allocation3], %s17
      %s19 = sshll.u32 [#allocation2], 4
      %s20 = int_to_ptr.vmem [resolvable:$true] %s19
      %25 = dma.hbm_to_vmem [thread:$0]  %s0, 49152, %s20, [#allocation3], 1536, 1536, 96
    $region5: #{tpu_custom_call.1} parent=1 // pred_fallthru
      _
    // Predicated region
    $region6: #{tpu_custom_call.1} parent=1 // pred_check
      _
    $region7: #{tpu_custom_call.1} parent=1 // pred_check_branch
      %27 = sbr.rel (0) target = $region9
    $region8: #{tpu_custom_call.1} parent=1 // pred_region
      %s29 = ssub.s32 49152, 49152
      %30 = vsyncadd [#allocation6], %s29
      %s31 = sshll.u32 [#allocation5], 4
      %s32 = int_to_ptr.vmem [resolvable:$true] %s31
      %37 = dma.hbm_to_vmem [thread:$0]  %s1, 49152, %s32, [#allocation6], 128, 128, 8
    $region9: #{tpu_custom_call.1} parent=1 // pred_fallthru
      _
    // Predicated region
    $region10: #{tpu_custom_call.1} parent=1 // pred_check
      _
    $region11: #{tpu_custom_call.1} parent=1 // pred_check_branch
      %39 = sbr.rel (0) target = $region13
    $region12: #{tpu_custom_call.1} parent=1 // pred_region
      %s41 = ssub.s32 32, 32
      %42 = vsyncadd [#allocation6], %s41
      %s44 = sshll.u32 [#allocation7], 4
      %s45 = int_to_ptr.vmem [resolvable:$true] %s44
      %47 = dma.hbm_to_vmem [thread:$0]  %s2, 32, %s45, [#allocation6]
    $region13: #{tpu_custom_call.1} parent=1 // pred_fallthru
      _
    // Predicated region
    $region14: #{tpu_custom_call.1} parent=1 // pred_check
      _
    $region15: #{tpu_custom_call.1} parent=1 // pred_check_branch
      %49 = sbr.rel (0) target = $region17
    $region16: #{tpu_custom_call.1} parent=1 // pred_region
      %s51 = ssub.s32 2048, 2048
      %52 = vsyncadd [#allocation9], %s51
      %s53 = sshll.u32 [#allocation8], 4
      %s54 = int_to_ptr.vmem [resolvable:$true] %s53
      %59 = dma.hbm_to_vmem [thread:$0]  %s3, 2048, %s54, [#allocation9], 64, 64, 4
    $region17: #{tpu_custom_call.1} parent=1 // pred_fallthru
      _
    // Predicated region
    $region18: #{tpu_custom_call.1} parent=1 // pred_check
      _
    $region19: #{tpu_custom_call.1} parent=1 // pred_check_branch
      %61 = sbr.rel (0) target = $region21
    $region20: #{tpu_custom_call.1} parent=1 // pred_region
      %s63 = ssub.s32 16, 16
      %64 = vsyncadd [#allocation9], %s63
      %s66 = sshll.u32 [#allocation10], 4
      %s67 = int_to_ptr.vmem [resolvable:$true] %s66
      %69 = dma.hbm_to_vmem [thread:$0]  %s4, 16, %s67, [#allocation9]
    $region21: #{tpu_custom_call.1} parent=1 // pred_fallthru
      _
    // Predicated region
    $region22: #{tpu_custom_call.1} parent=1 // pred_check
      _
    $region23: #{tpu_custom_call.1} parent=1 // pred_check_branch
      %71 = sbr.rel (0) target = $region25
    $region24: #{tpu_custom_call.1} parent=1 // pred_region
      %72 = dma.done [#allocation3], 49152
    $region25: #{tpu_custom_call.1} parent=1 // pred_fallthru
      _
    // Predicated region
    $region26: #{tpu_custom_call.1} parent=1 // pred_check
      _
    $region27: #{tpu_custom_call.1} parent=1 // pred_check_branch
      %74 = sbr.rel (0) target = $region29
    $region28: #{tpu_custom_call.1} parent=1 // pred_region
      %75 = dma.done [#allocation6], 49152
    $region29: #{tpu_custom_call.1} parent=1 // pred_fallthru
      _
    // Predicated region
    $region30: #{tpu_custom_call.1} parent=1 // pred_check
      _
    $region31: #{tpu_custom_call.1} parent=1 // pred_check_branch
      %77 = sbr.rel (0) target = $region33
    $region32: #{tpu_custom_call.1} parent=1 // pred_region
      %78 = dma.done [#allocation6], 32
    $region33: #{tpu_custom_call.1} parent=1 // pred_fallthru
      _
    // Predicated region
    $region34: #{tpu_custom_call.1} parent=1 // pred_check
      _
    $region35: #{tpu_custom_call.1} parent=1 // pred_check_branch
      %80 = sbr.rel (0) target = $region37
    $region36: #{tpu_custom_call.1} parent=1 // pred_region
      %81 = dma.done [#allocation9], 2048
    $region37: #{tpu_custom_call.1} parent=1 // pred_fallthru
      _
    // Predicated region
    $region38: #{tpu_custom_call.1} parent=1 // pred_check
      _
    $region39: #{tpu_custom_call.1} parent=1 // pred_check_branch
      %83 = sbr.rel (0) target = $region41
    $region40: #{tpu_custom_call.1} parent=1 // pred_region
      %84 = dma.done [#allocation9], 16
    $region41: #{tpu_custom_call.1} parent=1 // pred_fallthru
      _
    %v86 = vld [vmem:[#allocation2] sm:$0xff]
    %v87 = vld [vmem:[#allocation2 + $0x8] sm:$0xff]
    %v88 = vld [vmem:[#allocation2 + $0x10] sm:$0xff]
    %v89 = vld [vmem:[#allocation2 + $0x18] sm:$0xff]
    %v90 = vld [vmem:[#allocation2 + $0x20] sm:$0xff]
    %v91 = vld [vmem:[#allocation2 + $0x28] sm:$0xff]
    %v92 = vld [vmem:[#allocation2 + $0x30] sm:$0xff]
    %v93 = vld [vmem:[#allocation2 + $0x38] sm:$0xff]
    %v94 = vld [vmem:[#allocation2 + $0x40] sm:$0xff]
    %v95 = vld [vmem:[#allocation2 + $0x48] sm:$0xff]
    %v96 = vld [vmem:[#allocation2 + $0x50] sm:$0xff]
    %v97 = vld [vmem:[#allocation2 + $0x58] sm:$0xff]
    %v98 = vld [vmem:[#allocation2 + $0x60] sm:$0xff]
    %v99 = vld [vmem:[#allocation2 + $0x68] sm:$0xff]
    %v100 = vld [vmem:[#allocation2 + $0x70] sm:$0xff]
    %v101 = vld [vmem:[#allocation2 + $0x78] sm:$0xff]
    %v102 = vld [vmem:[#allocation2 + $0x80] sm:$0xff]
    %v103 = vld [vmem:[#allocation2 + $0x88] sm:$0xff]
    %v104 = vld [vmem:[#allocation2 + $0x90] sm:$0xff]
    %v105 = vld [vmem:[#allocation2 + $0x98] sm:$0xff]
    %v106 = vld [vmem:[#allocation2 + $0xa0] sm:$0xff]
    %v107 = vld [vmem:[#allocation2 + $0xa8] sm:$0xff]
    %v108 = vld [vmem:[#allocation2 + $0xb0] sm:$0xff]
    %v109 = vld [vmem:[#allocation2 + $0xb8] sm:$0xff]
    %v110 = vld [vmem:[#allocation2 + $0xc0] sm:$0xff]
    %v111 = vld [vmem:[#allocation2 + $0xc8] sm:$0xff]
    %v112 = vld [vmem:[#allocation2 + $0xd0] sm:$0xff]
    %v113 = vld [vmem:[#allocation2 + $0xd8] sm:$0xff]
    %v114 = vld [vmem:[#allocation2 + $0xe0] sm:$0xff]
    %v115 = vld [vmem:[#allocation2 + $0xe8] sm:$0xff]
    %v116 = vld [vmem:[#allocation2 + $0xf0] sm:$0xff]
    %v117 = vld [vmem:[#allocation2 + $0xf8] sm:$0xff]
    %v118 = vld [vmem:[#allocation2 + $0x100] sm:$0xff]
    %v119 = vld [vmem:[#allocation2 + $0x108] sm:$0xff]
    %v120 = vld [vmem:[#allocation2 + $0x110] sm:$0xff]
    %v121 = vld [vmem:[#allocation2 + $0x118] sm:$0xff]
    %v122 = vld [vmem:[#allocation2 + $0x120] sm:$0xff]
    %v123 = vld [vmem:[#allocation2 + $0x128] sm:$0xff]
    %v124 = vld [vmem:[#allocation2 + $0x130] sm:$0xff]
    %v125 = vld [vmem:[#allocation2 + $0x138] sm:$0xff]
    %v126 = vld [vmem:[#allocation2 + $0x140] sm:$0xff]
    %v127 = vld [vmem:[#allocation2 + $0x148] sm:$0xff]
    %v128 = vld [vmem:[#allocation2 + $0x150] sm:$0xff]
    %v129 = vld [vmem:[#allocation2 + $0x158] sm:$0xff]
    %v130 = vld [vmem:[#allocation2 + $0x160] sm:$0xff]
    %v131 = vld [vmem:[#allocation2 + $0x168] sm:$0xff]
    %v132 = vld [vmem:[#allocation2 + $0x170] sm:$0xff]
    %v133 = vld [vmem:[#allocation2 + $0x178] sm:$0xff]
    %v134 = vld [vmem:[#allocation2 + $0x180] sm:$0xff]
    %v135 = vld [vmem:[#allocation2 + $0x188] sm:$0xff]
    %v136 = vld [vmem:[#allocation2 + $0x190] sm:$0xff]
    %v137 = vld [vmem:[#allocation2 + $0x198] sm:$0xff]
    %v138 = vld [vmem:[#allocation2 + $0x1a0] sm:$0xff]
    %v139 = vld [vmem:[#allocation2 + $0x1a8] sm:$0xff]
    %v140 = vld [vmem:[#allocation2 + $0x1b0] sm:$0xff]
    %v141 = vld [vmem:[#allocation2 + $0x1b8] sm:$0xff]
    %v142 = vld [vmem:[#allocation2 + $0x1c0] sm:$0xff]
    %v143 = vld [vmem:[#allocation2 + $0x1c8] sm:$0xff]
    %v144 = vld [vmem:[#allocation2 + $0x1d0] sm:$0xff]
    %v145 = vld [vmem:[#allocation2 + $0x1d8] sm:$0xff]
    %v146 = vld [vmem:[#allocation2 + $0x1e0] sm:$0xff]
    %v147 = vld [vmem:[#allocation2 + $0x1e8] sm:$0xff]
    %v148 = vld [vmem:[#allocation2 + $0x1f0] sm:$0xff]
    %v149 = vld [vmem:[#allocation2 + $0x1f8] sm:$0xff]
    %v150 = vld [vmem:[#allocation2 + $0x200] sm:$0xff]
    %v151 = vld [vmem:[#allocation2 + $0x208] sm:$0xff]
    %v152 = vld [vmem:[#allocation2 + $0x210] sm:$0xff]
    %v153 = vld [vmem:[#allocation2 + $0x218] sm:$0xff]
    %v154 = vld [vmem:[#allocation2 + $0x220] sm:$0xff]
    %v155 = vld [vmem:[#allocation2 + $0x228] sm:$0xff]
    %v156 = vld [vmem:[#allocation2 + $0x230] sm:$0xff]
    %v157 = vld [vmem:[#allocation2 + $0x238] sm:$0xff]
    %v158 = vld [vmem:[#allocation2 + $0x240] sm:$0xff]
    %v159 = vld [vmem:[#allocation2 + $0x248] sm:$0xff]
    %v160 = vld [vmem:[#allocation2 + $0x250] sm:$0xff]
    %v161 = vld [vmem:[#allocation2 + $0x258] sm:$0xff]
    %v162 = vld [vmem:[#allocation2 + $0x260] sm:$0xff]
    %v163 = vld [vmem:[#allocation2 + $0x268] sm:$0xff]
    %v164 = vld [vmem:[#allocation2 + $0x270] sm:$0xff]
    %v165 = vld [vmem:[#allocation2 + $0x278] sm:$0xff]
    %v166 = vld [vmem:[#allocation2 + $0x280] sm:$0xff]
    %v167 = vld [vmem:[#allocation2 + $0x288] sm:$0xff]
    %v168 = vld [vmem:[#allocation2 + $0x290] sm:$0xff]
    %v169 = vld [vmem:[#allocation2 + $0x298] sm:$0xff]
    %v170 = vld [vmem:[#allocation2 + $0x2a0] sm:$0xff]
    %v171 = vld [vmem:[#allocation2 + $0x2a8] sm:$0xff]
    %v172 = vld [vmem:[#allocation2 + $0x2b0] sm:$0xff]
    %v173 = vld [vmem:[#allocation2 + $0x2b8] sm:$0xff]
    %v174 = vld [vmem:[#allocation2 + $0x2c0] sm:$0xff]
    %v175 = vld [vmem:[#allocation2 + $0x2c8] sm:$0xff]
    %v176 = vld [vmem:[#allocation2 + $0x2d0] sm:$0xff]
    %v177 = vld [vmem:[#allocation2 + $0x2d8] sm:$0xff]
    %v178 = vld [vmem:[#allocation2 + $0x2e0] sm:$0xff]
    %v179 = vld [vmem:[#allocation2 + $0x2e8] sm:$0xff]
    %v180 = vld [vmem:[#allocation2 + $0x2f0] sm:$0xff]
    %v181 = vld [vmem:[#allocation2 + $0x2f8] sm:$0xff]
    %v182 = vld [vmem:[#allocation2 + $0x300] sm:$0xff]
    %v183 = vld [vmem:[#allocation2 + $0x308] sm:$0xff]
    %v184 = vld [vmem:[#allocation2 + $0x310] sm:$0xff]
    %v185 = vld [vmem:[#allocation2 + $0x318] sm:$0xff]
    %v186 = vld [vmem:[#allocation2 + $0x320] sm:$0xff]
    %v187 = vld [vmem:[#allocation2 + $0x328] sm:$0xff]
    %v188 = vld [vmem:[#allocation2 + $0x330] sm:$0xff]
    %v189 = vld [vmem:[#allocation2 + $0x338] sm:$0xff]
    %v190 = vld [vmem:[#allocation2 + $0x340] sm:$0xff]
    %v191 = vld [vmem:[#allocation2 + $0x348] sm:$0xff]
    %v192 = vld [vmem:[#allocation2 + $0x350] sm:$0xff]
    %v193 = vld [vmem:[#allocation2 + $0x358] sm:$0xff]
    %v194 = vld [vmem:[#allocation2 + $0x360] sm:$0xff]
    %v195 = vld [vmem:[#allocation2 + $0x368] sm:$0xff]
    %v196 = vld [vmem:[#allocation2 + $0x370] sm:$0xff]
    %v197 = vld [vmem:[#allocation2 + $0x378] sm:$0xff]
    %v198 = vld [vmem:[#allocation2 + $0x380] sm:$0xff]
    %v199 = vld [vmem:[#allocation2 + $0x388] sm:$0xff]
    %v200 = vld [vmem:[#allocation2 + $0x390] sm:$0xff]
    %v201 = vld [vmem:[#allocation2 + $0x398] sm:$0xff]
    %v202 = vld [vmem:[#allocation2 + $0x3a0] sm:$0xff]
    %v203 = vld [vmem:[#allocation2 + $0x3a8] sm:$0xff]
    %v204 = vld [vmem:[#allocation2 + $0x3b0] sm:$0xff]
    %v205 = vld [vmem:[#allocation2 + $0x3b8] sm:$0xff]
    %v206 = vld [vmem:[#allocation2 + $0x3c0] sm:$0xff]
    %v207 = vld [vmem:[#allocation2 + $0x3c8] sm:$0xff]
    %v208 = vld [vmem:[#allocation2 + $0x3d0] sm:$0xff]
    %v209 = vld [vmem:[#allocation2 + $0x3d8] sm:$0xff]
    %v210 = vld [vmem:[#allocation2 + $0x3e0] sm:$0xff]
    %v211 = vld [vmem:[#allocation2 + $0x3e8] sm:$0xff]
    %v212 = vld [vmem:[#allocation2 + $0x3f0] sm:$0xff]
    %v213 = vld [vmem:[#allocation2 + $0x3f8] sm:$0xff]
    %v214 = vld [vmem:[#allocation2 + $0x400] sm:$0xff]
    %v215 = vld [vmem:[#allocation2 + $0x408] sm:$0xff]
    %v216 = vld [vmem:[#allocation2 + $0x410] sm:$0xff]
    %v217 = vld [vmem:[#allocation2 + $0x418] sm:$0xff]
    %v218 = vld [vmem:[#allocation2 + $0x420] sm:$0xff]
    %v219 = vld [vmem:[#allocation2 + $0x428] sm:$0xff]
    %v220 = vld [vmem:[#allocation2 + $0x430] sm:$0xff]
    %v221 = vld [vmem:[#allocation2 + $0x438] sm:$0xff]
    %v222 = vld [vmem:[#allocation2 + $0x440] sm:$0xff]
    %v223 = vld [vmem:[#allocation2 + $0x448] sm:$0xff]
    %v224 = vld [vmem:[#allocation2 + $0x450] sm:$0xff]
    %v225 = vld [vmem:[#allocation2 + $0x458] sm:$0xff]
    %v226 = vld [vmem:[#allocation2 + $0x460] sm:$0xff]
    %v227 = vld [vmem:[#allocation2 + $0x468] sm:$0xff]
    %v228 = vld [vmem:[#allocation2 + $0x470] sm:$0xff]
    %v229 = vld [vmem:[#allocation2 + $0x478] sm:$0xff]
    %v230 = vld [vmem:[#allocation2 + $0x480] sm:$0xff]
    %v231 = vld [vmem:[#allocation2 + $0x488] sm:$0xff]
    %v232 = vld [vmem:[#allocation2 + $0x490] sm:$0xff]
    %v233 = vld [vmem:[#allocation2 + $0x498] sm:$0xff]
    %v234 = vld [vmem:[#allocation2 + $0x4a0] sm:$0xff]
    %v235 = vld [vmem:[#allocation2 + $0x4a8] sm:$0xff]
    %v236 = vld [vmem:[#allocation2 + $0x4b0] sm:$0xff]
    %v237 = vld [vmem:[#allocation2 + $0x4b8] sm:$0xff]
    %v238 = vld [vmem:[#allocation2 + $0x4c0] sm:$0xff]
    %v239 = vld [vmem:[#allocation2 + $0x4c8] sm:$0xff]
    %v240 = vld [vmem:[#allocation2 + $0x4d0] sm:$0xff]
    %v241 = vld [vmem:[#allocation2 + $0x4d8] sm:$0xff]
    %v242 = vld [vmem:[#allocation2 + $0x4e0] sm:$0xff]
    %v243 = vld [vmem:[#allocation2 + $0x4e8] sm:$0xff]
    %v244 = vld [vmem:[#allocation2 + $0x4f0] sm:$0xff]
    %v245 = vld [vmem:[#allocation2 + $0x4f8] sm:$0xff]
    %v246 = vld [vmem:[#allocation2 + $0x500] sm:$0xff]
    %v247 = vld [vmem:[#allocation2 + $0x508] sm:$0xff]
    %v248 = vld [vmem:[#allocation2 + $0x510] sm:$0xff]
    %v249 = vld [vmem:[#allocation2 + $0x518] sm:$0xff]
    %v250 = vld [vmem:[#allocation2 + $0x520] sm:$0xff]
    %v251 = vld [vmem:[#allocation2 + $0x528] sm:$0xff]
    %v252 = vld [vmem:[#allocation2 + $0x530] sm:$0xff]
    %v253 = vld [vmem:[#allocation2 + $0x538] sm:$0xff]
    %v254 = vld [vmem:[#allocation2 + $0x540] sm:$0xff]
    %v255 = vld [vmem:[#allocation2 + $0x548] sm:$0xff]
    %v256 = vld [vmem:[#allocation2 + $0x550] sm:$0xff]
    %v257 = vld [vmem:[#allocation2 + $0x558] sm:$0xff]
    %v258 = vld [vmem:[#allocation2 + $0x560] sm:$0xff]
    %v259 = vld [vmem:[#allocation2 + $0x568] sm:$0xff]
    %v260 = vld [vmem:[#allocation2 + $0x570] sm:$0xff]
    %v261 = vld [vmem:[#allocation2 + $0x578] sm:$0xff]
    %v262 = vld [vmem:[#allocation2 + $0x580] sm:$0xff]
    %v263 = vld [vmem:[#allocation2 + $0x588] sm:$0xff]
    %v264 = vld [vmem:[#allocation2 + $0x590] sm:$0xff]
    %v265 = vld [vmem:[#allocation2 + $0x598] sm:$0xff]
    %v266 = vld [vmem:[#allocation2 + $0x5a0] sm:$0xff]
    %v267 = vld [vmem:[#allocation2 + $0x5a8] sm:$0xff]
    %v268 = vld [vmem:[#allocation2 + $0x5b0] sm:$0xff]
    %v269 = vld [vmem:[#allocation2 + $0x5b8] sm:$0xff]
    %v270 = vld [vmem:[#allocation2 + $0x5c0] sm:$0xff]
    %v271 = vld [vmem:[#allocation2 + $0x5c8] sm:$0xff]
    %v272 = vld [vmem:[#allocation2 + $0x5d0] sm:$0xff]
    %v273 = vld [vmem:[#allocation2 + $0x5d8] sm:$0xff]
    %v274 = vld [vmem:[#allocation2 + $0x5e0] sm:$0xff]
    %v275 = vld [vmem:[#allocation2 + $0x5e8] sm:$0xff]
    %v276 = vld [vmem:[#allocation2 + $0x5f0] sm:$0xff]
    %v277 = vld [vmem:[#allocation2 + $0x5f8] sm:$0xff]
    %v278 = vld [vmem:[#allocation2 + $0x600] sm:$0xff]
    %v279 = vld [vmem:[#allocation2 + $0x608] sm:$0xff]
    %v280 = vld [vmem:[#allocation2 + $0x610] sm:$0xff]
    %v281 = vld [vmem:[#allocation2 + $0x618] sm:$0xff]
    %v282 = vld [vmem:[#allocation2 + $0x620] sm:$0xff]
    %v283 = vld [vmem:[#allocation2 + $0x628] sm:$0xff]
    %v284 = vld [vmem:[#allocation2 + $0x630] sm:$0xff]
    %v285 = vld [vmem:[#allocation2 + $0x638] sm:$0xff]
    %v286 = vld [vmem:[#allocation2 + $0x640] sm:$0xff]
    %v287 = vld [vmem:[#allocation2 + $0x648] sm:$0xff]
    %v288 = vld [vmem:[#allocation2 + $0x650] sm:$0xff]
    %v289 = vld [vmem:[#allocation2 + $0x658] sm:$0xff]
    %v290 = vld [vmem:[#allocation2 + $0x660] sm:$0xff]
    %v291 = vld [vmem:[#allocation2 + $0x668] sm:$0xff]
    %v292 = vld [vmem:[#allocation2 + $0x670] sm:$0xff]
    %v293 = vld [vmem:[#allocation2 + $0x678] sm:$0xff]
    %v294 = vld [vmem:[#allocation2 + $0x680] sm:$0xff]
    %v295 = vld [vmem:[#allocation2 + $0x688] sm:$0xff]
    %v296 = vld [vmem:[#allocation2 + $0x690] sm:$0xff]
    %v297 = vld [vmem:[#allocation2 + $0x698] sm:$0xff]
    %v298 = vld [vmem:[#allocation2 + $0x6a0] sm:$0xff]
    %v299 = vld [vmem:[#allocation2 + $0x6a8] sm:$0xff]
    %v300 = vld [vmem:[#allocation2 + $0x6b0] sm:$0xff]
    %v301 = vld [vmem:[#allocation2 + $0x6b8] sm:$0xff]
    %v302 = vld [vmem:[#allocation2 + $0x6c0] sm:$0xff]
    %v303 = vld [vmem:[#allocation2 + $0x6c8] sm:$0xff]
    %v304 = vld [vmem:[#allocation2 + $0x6d0] sm:$0xff]
    %v305 = vld [vmem:[#allocation2 + $0x6d8] sm:$0xff]
    %v306 = vld [vmem:[#allocation2 + $0x6e0] sm:$0xff]
    %v307 = vld [vmem:[#allocation2 + $0x6e8] sm:$0xff]
    %v308 = vld [vmem:[#allocation2 + $0x6f0] sm:$0xff]
    %v309 = vld [vmem:[#allocation2 + $0x6f8] sm:$0xff]
    %v310 = vld [vmem:[#allocation2 + $0x700] sm:$0xff]
    %v311 = vld [vmem:[#allocation2 + $0x708] sm:$0xff]
    %v312 = vld [vmem:[#allocation2 + $0x710] sm:$0xff]
    %v313 = vld [vmem:[#allocation2 + $0x718] sm:$0xff]
    %v314 = vld [vmem:[#allocation2 + $0x720] sm:$0xff]
    %v315 = vld [vmem:[#allocation2 + $0x728] sm:$0xff]
    %v316 = vld [vmem:[#allocation2 + $0x730] sm:$0xff]
    %v317 = vld [vmem:[#allocation2 + $0x738] sm:$0xff]
    %v318 = vld [vmem:[#allocation2 + $0x740] sm:$0xff]
    %v319 = vld [vmem:[#allocation2 + $0x748] sm:$0xff]
    %v320 = vld [vmem:[#allocation2 + $0x750] sm:$0xff]
    %v321 = vld [vmem:[#allocation2 + $0x758] sm:$0xff]
    %v322 = vld [vmem:[#allocation2 + $0x760] sm:$0xff]
    %v323 = vld [vmem:[#allocation2 + $0x768] sm:$0xff]
    %v324 = vld [vmem:[#allocation2 + $0x770] sm:$0xff]
    %v325 = vld [vmem:[#allocation2 + $0x778] sm:$0xff]
    %v326 = vld [vmem:[#allocation2 + $0x780] sm:$0xff]
    %v327 = vld [vmem:[#allocation2 + $0x788] sm:$0xff]
    %v328 = vld [vmem:[#allocation2 + $0x790] sm:$0xff]
    %v329 = vld [vmem:[#allocation2 + $0x798] sm:$0xff]
    %v330 = vld [vmem:[#allocation2 + $0x7a0] sm:$0xff]
    %v331 = vld [vmem:[#allocation2 + $0x7a8] sm:$0xff]
    %v332 = vld [vmem:[#allocation2 + $0x7b0] sm:$0xff]
    %v333 = vld [vmem:[#allocation2 + $0x7b8] sm:$0xff]
    %v334 = vld [vmem:[#allocation2 + $0x7c0] sm:$0xff]
    %v335 = vld [vmem:[#allocation2 + $0x7c8] sm:$0xff]
    %v336 = vld [vmem:[#allocation2 + $0x7d0] sm:$0xff]
    %v337 = vld [vmem:[#allocation2 + $0x7d8] sm:$0xff]
    %v338 = vld [vmem:[#allocation2 + $0x7e0] sm:$0xff]
    %v339 = vld [vmem:[#allocation2 + $0x7e8] sm:$0xff]
    %v340 = vld [vmem:[#allocation2 + $0x7f0] sm:$0xff]
    %v341 = vld [vmem:[#allocation2 + $0x7f8] sm:$0xff]
    %v342 = vld [vmem:[#allocation2 + $0x800] sm:$0xff]
    %v343 = vld [vmem:[#allocation2 + $0x808] sm:$0xff]
    %v344 = vld [vmem:[#allocation2 + $0x810] sm:$0xff]
    %v345 = vld [vmem:[#allocation2 + $0x818] sm:$0xff]
    %v346 = vld [vmem:[#allocation2 + $0x820] sm:$0xff]
    %v347 = vld [vmem:[#allocation2 + $0x828] sm:$0xff]
    %v348 = vld [vmem:[#allocation2 + $0x830] sm:$0xff]
    %v349 = vld [vmem:[#allocation2 + $0x838] sm:$0xff]
    %v350 = vld [vmem:[#allocation2 + $0x840] sm:$0xff]
    %v351 = vld [vmem:[#allocation2 + $0x848] sm:$0xff]
    %v352 = vld [vmem:[#allocation2 + $0x850] sm:$0xff]
    %v353 = vld [vmem:[#allocation2 + $0x858] sm:$0xff]
    %v354 = vld [vmem:[#allocation2 + $0x860] sm:$0xff]
    %v355 = vld [vmem:[#allocation2 + $0x868] sm:$0xff]
    %v356 = vld [vmem:[#allocation2 + $0x870] sm:$0xff]
    %v357 = vld [vmem:[#allocation2 + $0x878] sm:$0xff]
    %v358 = vld [vmem:[#allocation2 + $0x880] sm:$0xff]
    %v359 = vld [vmem:[#allocation2 + $0x888] sm:$0xff]
    %v360 = vld [vmem:[#allocation2 + $0x890] sm:$0xff]
    %v361 = vld [vmem:[#allocation2 + $0x898] sm:$0xff]
    %v362 = vld [vmem:[#allocation2 + $0x8a0] sm:$0xff]
    %v363 = vld [vmem:[#allocation2 + $0x8a8] sm:$0xff]
    %v364 = vld [vmem:[#allocation2 + $0x8b0] sm:$0xff]
    %v365 = vld [vmem:[#allocation2 + $0x8b8] sm:$0xff]
    %v366 = vld [vmem:[#allocation2 + $0x8c0] sm:$0xff]
    %v367 = vld [vmem:[#allocation2 + $0x8c8] sm:$0xff]
    %v368 = vld [vmem:[#allocation2 + $0x8d0] sm:$0xff]
    %v369 = vld [vmem:[#allocation2 + $0x8d8] sm:$0xff]
    %v370 = vld [vmem:[#allocation2 + $0x8e0] sm:$0xff]
    %v371 = vld [vmem:[#allocation2 + $0x8e8] sm:$0xff]
    %v372 = vld [vmem:[#allocation2 + $0x8f0] sm:$0xff]
    %v373 = vld [vmem:[#allocation2 + $0x8f8] sm:$0xff]
    %v374 = vld [vmem:[#allocation2 + $0x900] sm:$0xff]
    %v375 = vld [vmem:[#allocation2 + $0x908] sm:$0xff]
    %v376 = vld [vmem:[#allocation2 + $0x910] sm:$0xff]
    %v377 = vld [vmem:[#allocation2 + $0x918] sm:$0xff]
    %v378 = vld [vmem:[#allocation2 + $0x920] sm:$0xff]
    %v379 = vld [vmem:[#allocation2 + $0x928] sm:$0xff]
    %v380 = vld [vmem:[#allocation2 + $0x930] sm:$0xff]
    %v381 = vld [vmem:[#allocation2 + $0x938] sm:$0xff]
    %v382 = vld [vmem:[#allocation2 + $0x940] sm:$0xff]
    %v383 = vld [vmem:[#allocation2 + $0x948] sm:$0xff]
    %v384 = vld [vmem:[#allocation2 + $0x950] sm:$0xff]
    %v385 = vld [vmem:[#allocation2 + $0x958] sm:$0xff]
    %v386 = vld [vmem:[#allocation2 + $0x960] sm:$0xff]
    %v387 = vld [vmem:[#allocation2 + $0x968] sm:$0xff]
    %v388 = vld [vmem:[#allocation2 + $0x970] sm:$0xff]
    %v389 = vld [vmem:[#allocation2 + $0x978] sm:$0xff]
    %v390 = vld [vmem:[#allocation2 + $0x980] sm:$0xff]
    %v391 = vld [vmem:[#allocation2 + $0x988] sm:$0xff]
    %v392 = vld [vmem:[#allocation2 + $0x990] sm:$0xff]
    %v393 = vld [vmem:[#allocation2 + $0x998] sm:$0xff]
    %v394 = vld [vmem:[#allocation2 + $0x9a0] sm:$0xff]
    %v395 = vld [vmem:[#allocation2 + $0x9a8] sm:$0xff]
    %v396 = vld [vmem:[#allocation2 + $0x9b0] sm:$0xff]
    %v397 = vld [vmem:[#allocation2 + $0x9b8] sm:$0xff]
    %v398 = vld [vmem:[#allocation2 + $0x9c0] sm:$0xff]
    %v399 = vld [vmem:[#allocation2 + $0x9c8] sm:$0xff]
    %v400 = vld [vmem:[#allocation2 + $0x9d0] sm:$0xff]
    %v401 = vld [vmem:[#allocation2 + $0x9d8] sm:$0xff]
    %v402 = vld [vmem:[#allocation2 + $0x9e0] sm:$0xff]
    %v403 = vld [vmem:[#allocation2 + $0x9e8] sm:$0xff]
    %v404 = vld [vmem:[#allocation2 + $0x9f0] sm:$0xff]
    %v405 = vld [vmem:[#allocation2 + $0x9f8] sm:$0xff]
    %v406 = vld [vmem:[#allocation2 + $0xa00] sm:$0xff]
    %v407 = vld [vmem:[#allocation2 + $0xa08] sm:$0xff]
    %v408 = vld [vmem:[#allocation2 + $0xa10] sm:$0xff]
    %v409 = vld [vmem:[#allocation2 + $0xa18] sm:$0xff]
    %v410 = vld [vmem:[#allocation2 + $0xa20] sm:$0xff]
    %v411 = vld [vmem:[#allocation2 + $0xa28] sm:$0xff]
    %v412 = vld [vmem:[#allocation2 + $0xa30] sm:$0xff]
    %v413 = vld [vmem:[#allocation2 + $0xa38] sm:$0xff]
    %v414 = vld [vmem:[#allocation2 + $0xa40] sm:$0xff]
    %v415 = vld [vmem:[#allocation2 + $0xa48] sm:$0xff]
    %v416 = vld [vmem:[#allocation2 + $0xa50] sm:$0xff]
    %v417 = vld [vmem:[#allocation2 + $0xa58] sm:$0xff]
    %v418 = vld [vmem:[#allocation2 + $0xa60] sm:$0xff]
    %v419 = vld [vmem:[#allocation2 + $0xa68] sm:$0xff]
    %v420 = vld [vmem:[#allocation2 + $0xa70] sm:$0xff]
    %v421 = vld [vmem:[#allocation2 + $0xa78] sm:$0xff]
    %v422 = vld [vmem:[#allocation2 + $0xa80] sm:$0xff]
    %v423 = vld [vmem:[#allocation2 + $0xa88] sm:$0xff]
    %v424 = vld [vmem:[#allocation2 + $0xa90] sm:$0xff]
    %v425 = vld [vmem:[#allocation2 + $0xa98] sm:$0xff]
    %v426 = vld [vmem:[#allocation2 + $0xaa0] sm:$0xff]
    %v427 = vld [vmem:[#allocation2 + $0xaa8] sm:$0xff]
    %v428 = vld [vmem:[#allocation2 + $0xab0] sm:$0xff]
    %v429 = vld [vmem:[#allocation2 + $0xab8] sm:$0xff]
    %v430 = vld [vmem:[#allocation2 + $0xac0] sm:$0xff]
    %v431 = vld [vmem:[#allocation2 + $0xac8] sm:$0xff]
    %v432 = vld [vmem:[#allocation2 + $0xad0] sm:$0xff]
    %v433 = vld [vmem:[#allocation2 + $0xad8] sm:$0xff]
    %v434 = vld [vmem:[#allocation2 + $0xae0] sm:$0xff]
    %v435 = vld [vmem:[#allocation2 + $0xae8] sm:$0xff]
    %v436 = vld [vmem:[#allocation2 + $0xaf0] sm:$0xff]
    %v437 = vld [vmem:[#allocation2 + $0xaf8] sm:$0xff]
    %v438 = vld [vmem:[#allocation2 + $0xb00] sm:$0xff]
    %v439 = vld [vmem:[#allocation2 + $0xb08] sm:$0xff]
    %v440 = vld [vmem:[#allocation2 + $0xb10] sm:$0xff]
    %v441 = vld [vmem:[#allocation2 + $0xb18] sm:$0xff]
    %v442 = vld [vmem:[#allocation2 + $0xb20] sm:$0xff]
    %v443 = vld [vmem:[#allocation2 + $0xb28] sm:$0xff]
    %v444 = vld [vmem:[#allocation2 + $0xb30] sm:$0xff]
    %v445 = vld [vmem:[#allocation2 + $0xb38] sm:$0xff]
    %v446 = vld [vmem:[#allocation2 + $0xb40] sm:$0xff]
    %v447 = vld [vmem:[#allocation2 + $0xb48] sm:$0xff]
    %v448 = vld [vmem:[#allocation2 + $0xb50] sm:$0xff]
    %v449 = vld [vmem:[#allocation2 + $0xb58] sm:$0xff]
    %v450 = vld [vmem:[#allocation2 + $0xb60] sm:$0xff]
    %v451 = vld [vmem:[#allocation2 + $0xb68] sm:$0xff]
    %v452 = vld [vmem:[#allocation2 + $0xb70] sm:$0xff]
    %v453 = vld [vmem:[#allocation2 + $0xb78] sm:$0xff]
    %v454 = vld [vmem:[#allocation2 + $0xb80] sm:$0xff]
    %v455 = vld [vmem:[#allocation2 + $0xb88] sm:$0xff]
    %v456 = vld [vmem:[#allocation2 + $0xb90] sm:$0xff]
    %v457 = vld [vmem:[#allocation2 + $0xb98] sm:$0xff]
    %v458 = vld [vmem:[#allocation2 + $0xba0] sm:$0xff]
    %v459 = vld [vmem:[#allocation2 + $0xba8] sm:$0xff]
    %v460 = vld [vmem:[#allocation2 + $0xbb0] sm:$0xff]
    %v461 = vld [vmem:[#allocation2 + $0xbb8] sm:$0xff]
    %v462 = vld [vmem:[#allocation2 + $0xbc0] sm:$0xff]
    %v463 = vld [vmem:[#allocation2 + $0xbc8] sm:$0xff]
    %v464 = vld [vmem:[#allocation2 + $0xbd0] sm:$0xff]
    %v465 = vld [vmem:[#allocation2 + $0xbd8] sm:$0xff]
    %v466 = vld [vmem:[#allocation2 + $0xbe0] sm:$0xff]
    %v467 = vld [vmem:[#allocation2 + $0xbe8] sm:$0xff]
    %v468 = vld [vmem:[#allocation2 + $0xbf0] sm:$0xff]
    %v469 = vld [vmem:[#allocation2 + $0xbf8] sm:$0xff]
    %v470 = vld [vmem:[#allocation5] sm:$0xff]
    %v471 = vld [vmem:[#allocation5 + $0x8] sm:$0xff]
    %v472 = vld [vmem:[#allocation5 + $0x10] sm:$0xff]
    %v473 = vld [vmem:[#allocation5 + $0x18] sm:$0xff]
    %v474 = vld [vmem:[#allocation5 + $0x20] sm:$0xff]
    %v475 = vld [vmem:[#allocation5 + $0x28] sm:$0xff]
    %v476 = vld [vmem:[#allocation5 + $0x30] sm:$0xff]
    %v477 = vld [vmem:[#allocation5 + $0x38] sm:$0xff]
    %v478 = vld [vmem:[#allocation5 + $0x40] sm:$0xff]
    %v479 = vld [vmem:[#allocation5 + $0x48] sm:$0xff]
    %v480 = vld [vmem:[#allocation5 + $0x50] sm:$0xff]
    %v481 = vld [vmem:[#allocation5 + $0x58] sm:$0xff]
    %v482 = vld [vmem:[#allocation5 + $0x60] sm:$0xff]
    %v483 = vld [vmem:[#allocation5 + $0x68] sm:$0xff]
    %v484 = vld [vmem:[#allocation5 + $0x70] sm:$0xff]
    %v485 = vld [vmem:[#allocation5 + $0x78] sm:$0xff]
    %v486 = vld [vmem:[#allocation5 + $0x80] sm:$0xff]
    %v487 = vld [vmem:[#allocation5 + $0x88] sm:$0xff]
    %v488 = vld [vmem:[#allocation5 + $0x90] sm:$0xff]
    %v489 = vld [vmem:[#allocation5 + $0x98] sm:$0xff]
    %v490 = vld [vmem:[#allocation5 + $0xa0] sm:$0xff]
    %v491 = vld [vmem:[#allocation5 + $0xa8] sm:$0xff]
    %v492 = vld [vmem:[#allocation5 + $0xb0] sm:$0xff]
    %v493 = vld [vmem:[#allocation5 + $0xb8] sm:$0xff]
    %v494 = vld [vmem:[#allocation5 + $0xc0] sm:$0xff]
    %v495 = vld [vmem:[#allocation5 + $0xc8] sm:$0xff]
    %v496 = vld [vmem:[#allocation5 + $0xd0] sm:$0xff]
    %v497 = vld [vmem:[#allocation5 + $0xd8] sm:$0xff]
    %v498 = vld [vmem:[#allocation5 + $0xe0] sm:$0xff]
    %v499 = vld [vmem:[#allocation5 + $0xe8] sm:$0xff]
    %v500 = vld [vmem:[#allocation5 + $0xf0] sm:$0xff]
    %v501 = vld [vmem:[#allocation5 + $0xf8] sm:$0xff]
    %v502 = vld [vmem:[#allocation5 + $0x100] sm:$0xff]
    %v503 = vld [vmem:[#allocation5 + $0x108] sm:$0xff]
    %v504 = vld [vmem:[#allocation5 + $0x110] sm:$0xff]
    %v505 = vld [vmem:[#allocation5 + $0x118] sm:$0xff]
    %v506 = vld [vmem:[#allocation5 + $0x120] sm:$0xff]
    %v507 = vld [vmem:[#allocation5 + $0x128] sm:$0xff]
    %v508 = vld [vmem:[#allocation5 + $0x130] sm:$0xff]
    %v509 = vld [vmem:[#allocation5 + $0x138] sm:$0xff]
    %v510 = vld [vmem:[#allocation5 + $0x140] sm:$0xff]
    %v511 = vld [vmem:[#allocation5 + $0x148] sm:$0xff]
    %v512 = vld [vmem:[#allocation5 + $0x150] sm:$0xff]
    %v513 = vld [vmem:[#allocation5 + $0x158] sm:$0xff]
    %v514 = vld [vmem:[#allocation5 + $0x160] sm:$0xff]
    %v515 = vld [vmem:[#allocation5 + $0x168] sm:$0xff]
    %v516 = vld [vmem:[#allocation5 + $0x170] sm:$0xff]
    %v517 = vld [vmem:[#allocation5 + $0x178] sm:$0xff]
    %v518 = vld [vmem:[#allocation5 + $0x180] sm:$0xff]
    %v519 = vld [vmem:[#allocation5 + $0x188] sm:$0xff]
    %v520 = vld [vmem:[#allocation5 + $0x190] sm:$0xff]
    %v521 = vld [vmem:[#allocation5 + $0x198] sm:$0xff]
    %v522 = vld [vmem:[#allocation5 + $0x1a0] sm:$0xff]
    %v523 = vld [vmem:[#allocation5 + $0x1a8] sm:$0xff]
    %v524 = vld [vmem:[#allocation5 + $0x1b0] sm:$0xff]
    %v525 = vld [vmem:[#allocation5 + $0x1b8] sm:$0xff]
    %v526 = vld [vmem:[#allocation5 + $0x1c0] sm:$0xff]
    %v527 = vld [vmem:[#allocation5 + $0x1c8] sm:$0xff]
    %v528 = vld [vmem:[#allocation5 + $0x1d0] sm:$0xff]
    %v529 = vld [vmem:[#allocation5 + $0x1d8] sm:$0xff]
    %v530 = vld [vmem:[#allocation5 + $0x1e0] sm:$0xff]
    %v531 = vld [vmem:[#allocation5 + $0x1e8] sm:$0xff]
    %v532 = vld [vmem:[#allocation5 + $0x1f0] sm:$0xff]
    %v533 = vld [vmem:[#allocation5 + $0x1f8] sm:$0xff]
    %v534 = vld [vmem:[#allocation5 + $0x200] sm:$0xff]
    %v535 = vld [vmem:[#allocation5 + $0x208] sm:$0xff]
    %v536 = vld [vmem:[#allocation5 + $0x210] sm:$0xff]
    %v537 = vld [vmem:[#allocation5 + $0x218] sm:$0xff]
    %v538 = vld [vmem:[#allocation5 + $0x220] sm:$0xff]
    %v539 = vld [vmem:[#allocation5 + $0x228] sm:$0xff]
    %v540 = vld [vmem:[#allocation5 + $0x230] sm:$0xff]
    %v541 = vld [vmem:[#allocation5 + $0x238] sm:$0xff]
    %v542 = vld [vmem:[#allocation5 + $0x240] sm:$0xff]
    %v543 = vld [vmem:[#allocation5 + $0x248] sm:$0xff]
    %v544 = vld [vmem:[#allocation5 + $0x250] sm:$0xff]
    %v545 = vld [vmem:[#allocation5 + $0x258] sm:$0xff]
    %v546 = vld [vmem:[#allocation5 + $0x260] sm:$0xff]
    %v547 = vld [vmem:[#allocation5 + $0x268] sm:$0xff]
    %v548 = vld [vmem:[#allocation5 + $0x270] sm:$0xff]
    %v549 = vld [vmem:[#allocation5 + $0x278] sm:$0xff]
    %v550 = vld [vmem:[#allocation5 + $0x280] sm:$0xff]
    %v551 = vld [vmem:[#allocation5 + $0x288] sm:$0xff]
    %v552 = vld [vmem:[#allocation5 + $0x290] sm:$0xff]
    %v553 = vld [vmem:[#allocation5 + $0x298] sm:$0xff]
    %v554 = vld [vmem:[#allocation5 + $0x2a0] sm:$0xff]
    %v555 = vld [vmem:[#allocation5 + $0x2a8] sm:$0xff]
    %v556 = vld [vmem:[#allocation5 + $0x2b0] sm:$0xff]
    %v557 = vld [vmem:[#allocation5 + $0x2b8] sm:$0xff]
    %v558 = vld [vmem:[#allocation5 + $0x2c0] sm:$0xff]
    %v559 = vld [vmem:[#allocation5 + $0x2c8] sm:$0xff]
    %v560 = vld [vmem:[#allocation5 + $0x2d0] sm:$0xff]
    %v561 = vld [vmem:[#allocation5 + $0x2d8] sm:$0xff]
    %v562 = vld [vmem:[#allocation5 + $0x2e0] sm:$0xff]
    %v563 = vld [vmem:[#allocation5 + $0x2e8] sm:$0xff]
    %v564 = vld [vmem:[#allocation5 + $0x2f0] sm:$0xff]
    %v565 = vld [vmem:[#allocation5 + $0x2f8] sm:$0xff]
    %v566 = vld [vmem:[#allocation5 + $0x300] sm:$0xff]
    %v567 = vld [vmem:[#allocation5 + $0x308] sm:$0xff]
    %v568 = vld [vmem:[#allocation5 + $0x310] sm:$0xff]
    %v569 = vld [vmem:[#allocation5 + $0x318] sm:$0xff]
    %v570 = vld [vmem:[#allocation5 + $0x320] sm:$0xff]
    %v571 = vld [vmem:[#allocation5 + $0x328] sm:$0xff]
    %v572 = vld [vmem:[#allocation5 + $0x330] sm:$0xff]
    %v573 = vld [vmem:[#allocation5 + $0x338] sm:$0xff]
    %v574 = vld [vmem:[#allocation5 + $0x340] sm:$0xff]
    %v575 = vld [vmem:[#allocation5 + $0x348] sm:$0xff]
    %v576 = vld [vmem:[#allocation5 + $0x350] sm:$0xff]
    %v577 = vld [vmem:[#allocation5 + $0x358] sm:$0xff]
    %v578 = vld [vmem:[#allocation5 + $0x360] sm:$0xff]
    %v579 = vld [vmem:[#allocation5 + $0x368] sm:$0xff]
    %v580 = vld [vmem:[#allocation5 + $0x370] sm:$0xff]
    %v581 = vld [vmem:[#allocation5 + $0x378] sm:$0xff]
    %v582 = vld [vmem:[#allocation5 + $0x380] sm:$0xff]
    %v583 = vld [vmem:[#allocation5 + $0x388] sm:$0xff]
    %v584 = vld [vmem:[#allocation5 + $0x390] sm:$0xff]
    %v585 = vld [vmem:[#allocation5 + $0x398] sm:$0xff]
    %v586 = vld [vmem:[#allocation5 + $0x3a0] sm:$0xff]
    %v587 = vld [vmem:[#allocation5 + $0x3a8] sm:$0xff]
    %v588 = vld [vmem:[#allocation5 + $0x3b0] sm:$0xff]
    %v589 = vld [vmem:[#allocation5 + $0x3b8] sm:$0xff]
    %v590 = vld [vmem:[#allocation5 + $0x3c0] sm:$0xff]
    %v591 = vld [vmem:[#allocation5 + $0x3c8] sm:$0xff]
    %v592 = vld [vmem:[#allocation5 + $0x3d0] sm:$0xff]
    %v593 = vld [vmem:[#allocation5 + $0x3d8] sm:$0xff]
    %v594 = vld [vmem:[#allocation5 + $0x3e0] sm:$0xff]
    %v595 = vld [vmem:[#allocation5 + $0x3e8] sm:$0xff]
    %v596 = vld [vmem:[#allocation5 + $0x3f0] sm:$0xff]
    %v597 = vld [vmem:[#allocation5 + $0x3f8] sm:$0xff]
    %v598 = vld [vmem:[#allocation5 + $0x400] sm:$0xff]
    %v599 = vld [vmem:[#allocation5 + $0x408] sm:$0xff]
    %v600 = vld [vmem:[#allocation5 + $0x410] sm:$0xff]
    %v601 = vld [vmem:[#allocation5 + $0x418] sm:$0xff]
    %v602 = vld [vmem:[#allocation5 + $0x420] sm:$0xff]
    %v603 = vld [vmem:[#allocation5 + $0x428] sm:$0xff]
    %v604 = vld [vmem:[#allocation5 + $0x430] sm:$0xff]
    %v605 = vld [vmem:[#allocation5 + $0x438] sm:$0xff]
    %v606 = vld [vmem:[#allocation5 + $0x440] sm:$0xff]
    %v607 = vld [vmem:[#allocation5 + $0x448] sm:$0xff]
    %v608 = vld [vmem:[#allocation5 + $0x450] sm:$0xff]
    %v609 = vld [vmem:[#allocation5 + $0x458] sm:$0xff]
    %v610 = vld [vmem:[#allocation5 + $0x460] sm:$0xff]
    %v611 = vld [vmem:[#allocation5 + $0x468] sm:$0xff]
    %v612 = vld [vmem:[#allocation5 + $0x470] sm:$0xff]
    %v613 = vld [vmem:[#allocation5 + $0x478] sm:$0xff]
    %v614 = vld [vmem:[#allocation5 + $0x480] sm:$0xff]
    %v615 = vld [vmem:[#allocation5 + $0x488] sm:$0xff]
    %v616 = vld [vmem:[#allocation5 + $0x490] sm:$0xff]
    %v617 = vld [vmem:[#allocation5 + $0x498] sm:$0xff]
    %v618 = vld [vmem:[#allocation5 + $0x4a0] sm:$0xff]
    %v619 = vld [vmem:[#allocation5 + $0x4a8] sm:$0xff]
    %v620 = vld [vmem:[#allocation5 + $0x4b0] sm:$0xff]
    %v621 = vld [vmem:[#allocation5 + $0x4b8] sm:$0xff]
    %v622 = vld [vmem:[#allocation5 + $0x4c0] sm:$0xff]
    %v623 = vld [vmem:[#allocation5 + $0x4c8] sm:$0xff]
    %v624 = vld [vmem:[#allocation5 + $0x4d0] sm:$0xff]
    %v625 = vld [vmem:[#allocation5 + $0x4d8] sm:$0xff]
    %v626 = vld [vmem:[#allocation5 + $0x4e0] sm:$0xff]
    %v627 = vld [vmem:[#allocation5 + $0x4e8] sm:$0xff]
    %v628 = vld [vmem:[#allocation5 + $0x4f0] sm:$0xff]
    %v629 = vld [vmem:[#allocation5 + $0x4f8] sm:$0xff]
    %v630 = vld [vmem:[#allocation5 + $0x500] sm:$0xff]
    %v631 = vld [vmem:[#allocation5 + $0x508] sm:$0xff]
    %v632 = vld [vmem:[#allocation5 + $0x510] sm:$0xff]
    %v633 = vld [vmem:[#allocation5 + $0x518] sm:$0xff]
    %v634 = vld [vmem:[#allocation5 + $0x520] sm:$0xff]
    %v635 = vld [vmem:[#allocation5 + $0x528] sm:$0xff]
    %v636 = vld [vmem:[#allocation5 + $0x530] sm:$0xff]
    %v637 = vld [vmem:[#allocation5 + $0x538] sm:$0xff]
    %v638 = vld [vmem:[#allocation5 + $0x540] sm:$0xff]
    %v639 = vld [vmem:[#allocation5 + $0x548] sm:$0xff]
    %v640 = vld [vmem:[#allocation5 + $0x550] sm:$0xff]
    %v641 = vld [vmem:[#allocation5 + $0x558] sm:$0xff]
    %v642 = vld [vmem:[#allocation5 + $0x560] sm:$0xff]
    %v643 = vld [vmem:[#allocation5 + $0x568] sm:$0xff]
    %v644 = vld [vmem:[#allocation5 + $0x570] sm:$0xff]
    %v645 = vld [vmem:[#allocation5 + $0x578] sm:$0xff]
    %v646 = vld [vmem:[#allocation5 + $0x580] sm:$0xff]
    %v647 = vld [vmem:[#allocation5 + $0x588] sm:$0xff]
    %v648 = vld [vmem:[#allocation5 + $0x590] sm:$0xff]
    %v649 = vld [vmem:[#allocation5 + $0x598] sm:$0xff]
    %v650 = vld [vmem:[#allocation5 + $0x5a0] sm:$0xff]
    %v651 = vld [vmem:[#allocation5 + $0x5a8] sm:$0xff]
    %v652 = vld [vmem:[#allocation5 + $0x5b0] sm:$0xff]
    %v653 = vld [vmem:[#allocation5 + $0x5b8] sm:$0xff]
    %v654 = vld [vmem:[#allocation5 + $0x5c0] sm:$0xff]
    %v655 = vld [vmem:[#allocation5 + $0x5c8] sm:$0xff]
    %v656 = vld [vmem:[#allocation5 + $0x5d0] sm:$0xff]
    %v657 = vld [vmem:[#allocation5 + $0x5d8] sm:$0xff]
    %v658 = vld [vmem:[#allocation5 + $0x5e0] sm:$0xff]
    %v659 = vld [vmem:[#allocation5 + $0x5e8] sm:$0xff]
    %v660 = vld [vmem:[#allocation5 + $0x5f0] sm:$0xff]
    %v661 = vld [vmem:[#allocation5 + $0x5f8] sm:$0xff]
    %v662 = vld [vmem:[#allocation5 + $0x600] sm:$0xff]
    %v663 = vld [vmem:[#allocation5 + $0x608] sm:$0xff]
    %v664 = vld [vmem:[#allocation5 + $0x610] sm:$0xff]
    %v665 = vld [vmem:[#allocation5 + $0x618] sm:$0xff]
    %v666 = vld [vmem:[#allocation5 + $0x620] sm:$0xff]
    %v667 = vld [vmem:[#allocation5 + $0x628] sm:$0xff]
    %v668 = vld [vmem:[#allocation5 + $0x630] sm:$0xff]
    %v669 = vld [vmem:[#allocation5 + $0x638] sm:$0xff]
    %v670 = vld [vmem:[#allocation5 + $0x640] sm:$0xff]
    %v671 = vld [vmem:[#allocation5 + $0x648] sm:$0xff]
    %v672 = vld [vmem:[#allocation5 + $0x650] sm:$0xff]
    %v673 = vld [vmem:[#allocation5 + $0x658] sm:$0xff]
    %v674 = vld [vmem:[#allocation5 + $0x660] sm:$0xff]
    %v675 = vld [vmem:[#allocation5 + $0x668] sm:$0xff]
    %v676 = vld [vmem:[#allocation5 + $0x670] sm:$0xff]
    %v677 = vld [vmem:[#allocation5 + $0x678] sm:$0xff]
    %v678 = vld [vmem:[#allocation5 + $0x680] sm:$0xff]
    %v679 = vld [vmem:[#allocation5 + $0x688] sm:$0xff]
    %v680 = vld [vmem:[#allocation5 + $0x690] sm:$0xff]
    %v681 = vld [vmem:[#allocation5 + $0x698] sm:$0xff]
    %v682 = vld [vmem:[#allocation5 + $0x6a0] sm:$0xff]
    %v683 = vld [vmem:[#allocation5 + $0x6a8] sm:$0xff]
    %v684 = vld [vmem:[#allocation5 + $0x6b0] sm:$0xff]
    %v685 = vld [vmem:[#allocation5 + $0x6b8] sm:$0xff]
    %v686 = vld [vmem:[#allocation5 + $0x6c0] sm:$0xff]
    %v687 = vld [vmem:[#allocation5 + $0x6c8] sm:$0xff]
    %v688 = vld [vmem:[#allocation5 + $0x6d0] sm:$0xff]
    %v689 = vld [vmem:[#allocation5 + $0x6d8] sm:$0xff]
    %v690 = vld [vmem:[#allocation5 + $0x6e0] sm:$0xff]
    %v691 = vld [vmem:[#allocation5 + $0x6e8] sm:$0xff]
    %v692 = vld [vmem:[#allocation5 + $0x6f0] sm:$0xff]
    %v693 = vld [vmem:[#allocation5 + $0x6f8] sm:$0xff]
    %v694 = vld [vmem:[#allocation5 + $0x700] sm:$0xff]
    %v695 = vld [vmem:[#allocation5 + $0x708] sm:$0xff]
    %v696 = vld [vmem:[#allocation5 + $0x710] sm:$0xff]
    %v697 = vld [vmem:[#allocation5 + $0x718] sm:$0xff]
    %v698 = vld [vmem:[#allocation5 + $0x720] sm:$0xff]
    %v699 = vld [vmem:[#allocation5 + $0x728] sm:$0xff]
    %v700 = vld [vmem:[#allocation5 + $0x730] sm:$0xff]
    %v701 = vld [vmem:[#allocation5 + $0x738] sm:$0xff]
    %v702 = vld [vmem:[#allocation5 + $0x740] sm:$0xff]
    %v703 = vld [vmem:[#allocation5 + $0x748] sm:$0xff]
    %v704 = vld [vmem:[#allocation5 + $0x750] sm:$0xff]
    %v705 = vld [vmem:[#allocation5 + $0x758] sm:$0xff]
    %v706 = vld [vmem:[#allocation5 + $0x760] sm:$0xff]
    %v707 = vld [vmem:[#allocation5 + $0x768] sm:$0xff]
    %v708 = vld [vmem:[#allocation5 + $0x770] sm:$0xff]
    %v709 = vld [vmem:[#allocation5 + $0x778] sm:$0xff]
    %v710 = vld [vmem:[#allocation5 + $0x780] sm:$0xff]
    %v711 = vld [vmem:[#allocation5 + $0x788] sm:$0xff]
    %v712 = vld [vmem:[#allocation5 + $0x790] sm:$0xff]
    %v713 = vld [vmem:[#allocation5 + $0x798] sm:$0xff]
    %v714 = vld [vmem:[#allocation5 + $0x7a0] sm:$0xff]
    %v715 = vld [vmem:[#allocation5 + $0x7a8] sm:$0xff]
    %v716 = vld [vmem:[#allocation5 + $0x7b0] sm:$0xff]
    %v717 = vld [vmem:[#allocation5 + $0x7b8] sm:$0xff]
    %v718 = vld [vmem:[#allocation5 + $0x7c0] sm:$0xff]
    %v719 = vld [vmem:[#allocation5 + $0x7c8] sm:$0xff]
    %v720 = vld [vmem:[#allocation5 + $0x7d0] sm:$0xff]
    %v721 = vld [vmem:[#allocation5 + $0x7d8] sm:$0xff]
    %v722 = vld [vmem:[#allocation5 + $0x7e0] sm:$0xff]
    %v723 = vld [vmem:[#allocation5 + $0x7e8] sm:$0xff]
    %v724 = vld [vmem:[#allocation5 + $0x7f0] sm:$0xff]
    %v725 = vld [vmem:[#allocation5 + $0x7f8] sm:$0xff]
    %v726 = vld [vmem:[#allocation5 + $0x800] sm:$0xff]
    %v727 = vld [vmem:[#allocation5 + $0x808] sm:$0xff]
    %v728 = vld [vmem:[#allocation5 + $0x810] sm:$0xff]
    %v729 = vld [vmem:[#allocation5 + $0x818] sm:$0xff]
    %v730 = vld [vmem:[#allocation5 + $0x820] sm:$0xff]
    %v731 = vld [vmem:[#allocation5 + $0x828] sm:$0xff]
    %v732 = vld [vmem:[#allocation5 + $0x830] sm:$0xff]
    %v733 = vld [vmem:[#allocation5 + $0x838] sm:$0xff]
    %v734 = vld [vmem:[#allocation5 + $0x840] sm:$0xff]
    %v735 = vld [vmem:[#allocation5 + $0x848] sm:$0xff]
    %v736 = vld [vmem:[#allocation5 + $0x850] sm:$0xff]
    %v737 = vld [vmem:[#allocation5 + $0x858] sm:$0xff]
    %v738 = vld [vmem:[#allocation5 + $0x860] sm:$0xff]
    %v739 = vld [vmem:[#allocation5 + $0x868] sm:$0xff]
    %v740 = vld [vmem:[#allocation5 + $0x870] sm:$0xff]
    %v741 = vld [vmem:[#allocation5 + $0x878] sm:$0xff]
    %v742 = vld [vmem:[#allocation5 + $0x880] sm:$0xff]
    %v743 = vld [vmem:[#allocation5 + $0x888] sm:$0xff]
    %v744 = vld [vmem:[#allocation5 + $0x890] sm:$0xff]
    %v745 = vld [vmem:[#allocation5 + $0x898] sm:$0xff]
    %v746 = vld [vmem:[#allocation5 + $0x8a0] sm:$0xff]
    %v747 = vld [vmem:[#allocation5 + $0x8a8] sm:$0xff]
    %v748 = vld [vmem:[#allocation5 + $0x8b0] sm:$0xff]
    %v749 = vld [vmem:[#allocation5 + $0x8b8] sm:$0xff]
    %v750 = vld [vmem:[#allocation5 + $0x8c0] sm:$0xff]
    %v751 = vld [vmem:[#allocation5 + $0x8c8] sm:$0xff]
    %v752 = vld [vmem:[#allocation5 + $0x8d0] sm:$0xff]
    %v753 = vld [vmem:[#allocation5 + $0x8d8] sm:$0xff]
    %v754 = vld [vmem:[#allocation5 + $0x8e0] sm:$0xff]
    %v755 = vld [vmem:[#allocation5 + $0x8e8] sm:$0xff]
    %v756 = vld [vmem:[#allocation5 + $0x8f0] sm:$0xff]
    %v757 = vld [vmem:[#allocation5 + $0x8f8] sm:$0xff]
    %v758 = vld [vmem:[#allocation5 + $0x900] sm:$0xff]
    %v759 = vld [vmem:[#allocation5 + $0x908] sm:$0xff]
    %v760 = vld [vmem:[#allocation5 + $0x910] sm:$0xff]
    %v761 = vld [vmem:[#allocation5 + $0x918] sm:$0xff]
    %v762 = vld [vmem:[#allocation5 + $0x920] sm:$0xff]
    %v763 = vld [vmem:[#allocation5 + $0x928] sm:$0xff]
    %v764 = vld [vmem:[#allocation5 + $0x930] sm:$0xff]
    %v765 = vld [vmem:[#allocation5 + $0x938] sm:$0xff]
    %v766 = vld [vmem:[#allocation5 + $0x940] sm:$0xff]
    %v767 = vld [vmem:[#allocation5 + $0x948] sm:$0xff]
    %v768 = vld [vmem:[#allocation5 + $0x950] sm:$0xff]
    %v769 = vld [vmem:[#allocation5 + $0x958] sm:$0xff]
    %v770 = vld [vmem:[#allocation5 + $0x960] sm:$0xff]
    %v771 = vld [vmem:[#allocation5 + $0x968] sm:$0xff]
    %v772 = vld [vmem:[#allocation5 + $0x970] sm:$0xff]
    %v773 = vld [vmem:[#allocation5 + $0x978] sm:$0xff]
    %v774 = vld [vmem:[#allocation5 + $0x980] sm:$0xff]
    %v775 = vld [vmem:[#allocation5 + $0x988] sm:$0xff]
    %v776 = vld [vmem:[#allocation5 + $0x990] sm:$0xff]
    %v777 = vld [vmem:[#allocation5 + $0x998] sm:$0xff]
    %v778 = vld [vmem:[#allocation5 + $0x9a0] sm:$0xff]
    %v779 = vld [vmem:[#allocation5 + $0x9a8] sm:$0xff]
    %v780 = vld [vmem:[#allocation5 + $0x9b0] sm:$0xff]
    %v781 = vld [vmem:[#allocation5 + $0x9b8] sm:$0xff]
    %v782 = vld [vmem:[#allocation5 + $0x9c0] sm:$0xff]
    %v783 = vld [vmem:[#allocation5 + $0x9c8] sm:$0xff]
    %v784 = vld [vmem:[#allocation5 + $0x9d0] sm:$0xff]
    %v785 = vld [vmem:[#allocation5 + $0x9d8] sm:$0xff]
    %v786 = vld [vmem:[#allocation5 + $0x9e0] sm:$0xff]
    %v787 = vld [vmem:[#allocation5 + $0x9e8] sm:$0xff]
    %v788 = vld [vmem:[#allocation5 + $0x9f0] sm:$0xff]
    %v789 = vld [vmem:[#allocation5 + $0x9f8] sm:$0xff]
    %v790 = vld [vmem:[#allocation5 + $0xa00] sm:$0xff]
    %v791 = vld [vmem:[#allocation5 + $0xa08] sm:$0xff]
    %v792 = vld [vmem:[#allocation5 + $0xa10] sm:$0xff]
    %v793 = vld [vmem:[#allocation5 + $0xa18] sm:$0xff]
    %v794 = vld [vmem:[#allocation5 + $0xa20] sm:$0xff]
    %v795 = vld [vmem:[#allocation5 + $0xa28] sm:$0xff]
    %v796 = vld [vmem:[#allocation5 + $0xa30] sm:$0xff]
    %v797 = vld [vmem:[#allocation5 + $0xa38] sm:$0xff]
    %v798 = vld [vmem:[#allocation5 + $0xa40] sm:$0xff]
    %v799 = vld [vmem:[#allocation5 + $0xa48] sm:$0xff]
    %v800 = vld [vmem:[#allocation5 + $0xa50] sm:$0xff]
    %v801 = vld [vmem:[#allocation5 + $0xa58] sm:$0xff]
    %v802 = vld [vmem:[#allocation5 + $0xa60] sm:$0xff]
    %v803 = vld [vmem:[#allocation5 + $0xa68] sm:$0xff]
    %v804 = vld [vmem:[#allocation5 + $0xa70] sm:$0xff]
    %v805 = vld [vmem:[#allocation5 + $0xa78] sm:$0xff]
    %v806 = vld [vmem:[#allocation5 + $0xa80] sm:$0xff]
    %v807 = vld [vmem:[#allocation5 + $0xa88] sm:$0xff]
    %v808 = vld [vmem:[#allocation5 + $0xa90] sm:$0xff]
    %v809 = vld [vmem:[#allocation5 + $0xa98] sm:$0xff]
    %v810 = vld [vmem:[#allocation5 + $0xaa0] sm:$0xff]
    %v811 = vld [vmem:[#allocation5 + $0xaa8] sm:$0xff]
    %v812 = vld [vmem:[#allocation5 + $0xab0] sm:$0xff]
    %v813 = vld [vmem:[#allocation5 + $0xab8] sm:$0xff]
    %v814 = vld [vmem:[#allocation5 + $0xac0] sm:$0xff]
    %v815 = vld [vmem:[#allocation5 + $0xac8] sm:$0xff]
    %v816 = vld [vmem:[#allocation5 + $0xad0] sm:$0xff]
    %v817 = vld [vmem:[#allocation5 + $0xad8] sm:$0xff]
    %v818 = vld [vmem:[#allocation5 + $0xae0] sm:$0xff]
    %v819 = vld [vmem:[#allocation5 + $0xae8] sm:$0xff]
    %v820 = vld [vmem:[#allocation5 + $0xaf0] sm:$0xff]
    %v821 = vld [vmem:[#allocation5 + $0xaf8] sm:$0xff]
    %v822 = vld [vmem:[#allocation5 + $0xb00] sm:$0xff]
    %v823 = vld [vmem:[#allocation5 + $0xb08] sm:$0xff]
    %v824 = vld [vmem:[#allocation5 + $0xb10] sm:$0xff]
    %v825 = vld [vmem:[#allocation5 + $0xb18] sm:$0xff]
    %v826 = vld [vmem:[#allocation5 + $0xb20] sm:$0xff]
    %v827 = vld [vmem:[#allocation5 + $0xb28] sm:$0xff]
    %v828 = vld [vmem:[#allocation5 + $0xb30] sm:$0xff]
    %v829 = vld [vmem:[#allocation5 + $0xb38] sm:$0xff]
    %v830 = vld [vmem:[#allocation5 + $0xb40] sm:$0xff]
    %v831 = vld [vmem:[#allocation5 + $0xb48] sm:$0xff]
    %v832 = vld [vmem:[#allocation5 + $0xb50] sm:$0xff]
    %v833 = vld [vmem:[#allocation5 + $0xb58] sm:$0xff]
    %v834 = vld [vmem:[#allocation5 + $0xb60] sm:$0xff]
    %v835 = vld [vmem:[#allocation5 + $0xb68] sm:$0xff]
    %v836 = vld [vmem:[#allocation5 + $0xb70] sm:$0xff]
    %v837 = vld [vmem:[#allocation5 + $0xb78] sm:$0xff]
    %v838 = vld [vmem:[#allocation5 + $0xb80] sm:$0xff]
    %v839 = vld [vmem:[#allocation5 + $0xb88] sm:$0xff]
    %v840 = vld [vmem:[#allocation5 + $0xb90] sm:$0xff]
    %v841 = vld [vmem:[#allocation5 + $0xb98] sm:$0xff]
    %v842 = vld [vmem:[#allocation5 + $0xba0] sm:$0xff]
    %v843 = vld [vmem:[#allocation5 + $0xba8] sm:$0xff]
    %v844 = vld [vmem:[#allocation5 + $0xbb0] sm:$0xff]
    %v845 = vld [vmem:[#allocation5 + $0xbb8] sm:$0xff]
    %v846 = vld [vmem:[#allocation5 + $0xbc0] sm:$0xff]
    %v847 = vld [vmem:[#allocation5 + $0xbc8] sm:$0xff]
    %v848 = vld [vmem:[#allocation5 + $0xbd0] sm:$0xff]
    %v849 = vld [vmem:[#allocation5 + $0xbd8] sm:$0xff]
    %v850 = vld [vmem:[#allocation5 + $0xbe0] sm:$0xff]
    %v851 = vld [vmem:[#allocation5 + $0xbe8] sm:$0xff]
    %v852 = vld [vmem:[#allocation5 + $0xbf0] sm:$0xff]
    %v853 = vld [vmem:[#allocation5 + $0xbf8] sm:$0xff]
    %v854 = vld [vmem:[#allocation7] sm:$0x3]
    %v856 = vlaneseq
    %v857 = vshrl.u32 %v856, 7
    %v858 = vsub.s32 0, %v857
    %v859 = vrot.slane %v854, %v858
    %v860 = vlaneseq
    %v861 = vshrl.u32 %v860, 7
    %v862 = vsub.s32 1, %v861
    %v863 = vrot.slane %v854, %v862
    %v1250 = vunpack.c.l.b16 %v86
    %v1251 = vunpack.c.h.b16 %v86
    %v1252 = vunpack.c.l.b16 %v87
    %v1253 = vunpack.c.h.b16 %v87
    %v1254 = vunpack.c.l.b16 %v88
    %v1255 = vunpack.c.h.b16 %v88
    %v1256 = vunpack.c.l.b16 %v89
    %v1257 = vunpack.c.h.b16 %v89
    %v1258 = vunpack.c.l.b16 %v90
    %v1259 = vunpack.c.h.b16 %v90
    %v1260 = vunpack.c.l.b16 %v91
    %v1261 = vunpack.c.h.b16 %v91
    %v1262 = vunpack.c.l.b16 %v92
    %v1263 = vunpack.c.h.b16 %v92
    %v1264 = vunpack.c.l.b16 %v93
    %v1265 = vunpack.c.h.b16 %v93
    %v1266 = vunpack.c.l.b16 %v94
    %v1267 = vunpack.c.h.b16 %v94
    %v1268 = vunpack.c.l.b16 %v95
    %v1269 = vunpack.c.h.b16 %v95
    %v1270 = vunpack.c.l.b16 %v96
    %v1271 = vunpack.c.h.b16 %v96
    %v1272 = vunpack.c.l.b16 %v97
    %v1273 = vunpack.c.h.b16 %v97
    %v1274 = vunpack.c.l.b16 %v98
    %v1275 = vunpack.c.h.b16 %v98
    %v1276 = vunpack.c.l.b16 %v99
    %v1277 = vunpack.c.h.b16 %v99
    %v1278 = vunpack.c.l.b16 %v100
    %v1279 = vunpack.c.h.b16 %v100
    %v1280 = vunpack.c.l.b16 %v101
    %v1281 = vunpack.c.h.b16 %v101
    %v1282 = vunpack.c.l.b16 %v102
    %v1283 = vunpack.c.h.b16 %v102
    %v1284 = vunpack.c.l.b16 %v103
    %v1285 = vunpack.c.h.b16 %v103
    %v1286 = vunpack.c.l.b16 %v104
    %v1287 = vunpack.c.h.b16 %v104
    %v1288 = vunpack.c.l.b16 %v105
    %v1289 = vunpack.c.h.b16 %v105
    %v1290 = vunpack.c.l.b16 %v106
    %v1291 = vunpack.c.h.b16 %v106
    %v1292 = vunpack.c.l.b16 %v107
    %v1293 = vunpack.c.h.b16 %v107
    %v1294 = vunpack.c.l.b16 %v108
    %v1295 = vunpack.c.h.b16 %v108
    %v1296 = vunpack.c.l.b16 %v109
    %v1297 = vunpack.c.h.b16 %v109
    %v1298 = vunpack.c.l.b16 %v110
    %v1299 = vunpack.c.h.b16 %v110
    %v1300 = vunpack.c.l.b16 %v111
    %v1301 = vunpack.c.h.b16 %v111
    %v1302 = vunpack.c.l.b16 %v112
    %v1303 = vunpack.c.h.b16 %v112
    %v1304 = vunpack.c.l.b16 %v113
    %v1305 = vunpack.c.h.b16 %v113
    %v1306 = vunpack.c.l.b16 %v114
    %v1307 = vunpack.c.h.b16 %v114
    %v1308 = vunpack.c.l.b16 %v115
    %v1309 = vunpack.c.h.b16 %v115
    %v1310 = vunpack.c.l.b16 %v116
    %v1311 = vunpack.c.h.b16 %v116
    %v1312 = vunpack.c.l.b16 %v117
    %v1313 = vunpack.c.h.b16 %v117
    %v1314 = vunpack.c.l.b16 %v118
    %v1315 = vunpack.c.h.b16 %v118
    %v1316 = vunpack.c.l.b16 %v119
    %v1317 = vunpack.c.h.b16 %v119
    %v1318 = vunpack.c.l.b16 %v120
    %v1319 = vunpack.c.h.b16 %v120
    %v1320 = vunpack.c.l.b16 %v121
    %v1321 = vunpack.c.h.b16 %v121
    %v1322 = vunpack.c.l.b16 %v122
    %v1323 = vunpack.c.h.b16 %v122
    %v1324 = vunpack.c.l.b16 %v123
    %v1325 = vunpack.c.h.b16 %v123
    %v1326 = vunpack.c.l.b16 %v124
    %v1327 = vunpack.c.h.b16 %v124
    %v1328 = vunpack.c.l.b16 %v125
    %v1329 = vunpack.c.h.b16 %v125
    %v1330 = vunpack.c.l.b16 %v126
    %v1331 = vunpack.c.h.b16 %v126
    %v1332 = vunpack.c.l.b16 %v127
    %v1333 = vunpack.c.h.b16 %v127
    %v1334 = vunpack.c.l.b16 %v128
    %v1335 = vunpack.c.h.b16 %v128
    %v1336 = vunpack.c.l.b16 %v129
    %v1337 = vunpack.c.h.b16 %v129
    %v1338 = vunpack.c.l.b16 %v130
    %v1339 = vunpack.c.h.b16 %v130
    %v1340 = vunpack.c.l.b16 %v131
    %v1341 = vunpack.c.h.b16 %v131
    %v1342 = vunpack.c.l.b16 %v132
    %v1343 = vunpack.c.h.b16 %v132
    %v1344 = vunpack.c.l.b16 %v133
    %v1345 = vunpack.c.h.b16 %v133
    %v1346 = vunpack.c.l.b16 %v134
    %v1347 = vunpack.c.h.b16 %v134
    %v1348 = vunpack.c.l.b16 %v135
    %v1349 = vunpack.c.h.b16 %v135
    %v1350 = vunpack.c.l.b16 %v136
    %v1351 = vunpack.c.h.b16 %v136
    %v1352 = vunpack.c.l.b16 %v137
    %v1353 = vunpack.c.h.b16 %v137
    %v1354 = vunpack.c.l.b16 %v138
    %v1355 = vunpack.c.h.b16 %v138
    %v1356 = vunpack.c.l.b16 %v139
    %v1357 = vunpack.c.h.b16 %v139
    %v1358 = vunpack.c.l.b16 %v140
    %v1359 = vunpack.c.h.b16 %v140
    %v1360 = vunpack.c.l.b16 %v141
    %v1361 = vunpack.c.h.b16 %v141
    %v1362 = vunpack.c.l.b16 %v142
    %v1363 = vunpack.c.h.b16 %v142
    %v1364 = vunpack.c.l.b16 %v143
    %v1365 = vunpack.c.h.b16 %v143
    %v1366 = vunpack.c.l.b16 %v144
    %v1367 = vunpack.c.h.b16 %v144
    %v1368 = vunpack.c.l.b16 %v145
    %v1369 = vunpack.c.h.b16 %v145
    %v1370 = vunpack.c.l.b16 %v146
    %v1371 = vunpack.c.h.b16 %v146
    %v1372 = vunpack.c.l.b16 %v147
    %v1373 = vunpack.c.h.b16 %v147
    %v1374 = vunpack.c.l.b16 %v148
    %v1375 = vunpack.c.h.b16 %v148
    %v1376 = vunpack.c.l.b16 %v149
    %v1377 = vunpack.c.h.b16 %v149
    %v1378 = vunpack.c.l.b16 %v150
    %v1379 = vunpack.c.h.b16 %v150
    %v1380 = vunpack.c.l.b16 %v151
    %v1381 = vunpack.c.h.b16 %v151
    %v1382 = vunpack.c.l.b16 %v152
    %v1383 = vunpack.c.h.b16 %v152
    %v1384 = vunpack.c.l.b16 %v153
    %v1385 = vunpack.c.h.b16 %v153
    %v1386 = vunpack.c.l.b16 %v154
    %v1387 = vunpack.c.h.b16 %v154
    %v1388 = vunpack.c.l.b16 %v155
    %v1389 = vunpack.c.h.b16 %v155
    %v1390 = vunpack.c.l.b16 %v156
    %v1391 = vunpack.c.h.b16 %v156
    %v1392 = vunpack.c.l.b16 %v157
    %v1393 = vunpack.c.h.b16 %v157
    %v1394 = vunpack.c.l.b16 %v158
    %v1395 = vunpack.c.h.b16 %v158
    %v1396 = vunpack.c.l.b16 %v159
    %v1397 = vunpack.c.h.b16 %v159
    %v1398 = vunpack.c.l.b16 %v160
    %v1399 = vunpack.c.h.b16 %v160
    %v1400 = vunpack.c.l.b16 %v161
    %v1401 = vunpack.c.h.b16 %v161
    %v1402 = vunpack.c.l.b16 %v162
    %v1403 = vunpack.c.h.b16 %v162
    %v1404 = vunpack.c.l.b16 %v163
    %v1405 = vunpack.c.h.b16 %v163
    %v1406 = vunpack.c.l.b16 %v164
    %v1407 = vunpack.c.h.b16 %v164
    %v1408 = vunpack.c.l.b16 %v165
    %v1409 = vunpack.c.h.b16 %v165
    %v1410 = vunpack.c.l.b16 %v166
    %v1411 = vunpack.c.h.b16 %v166
    %v1412 = vunpack.c.l.b16 %v167
    %v1413 = vunpack.c.h.b16 %v167
    %v1414 = vunpack.c.l.b16 %v168
    %v1415 = vunpack.c.h.b16 %v168
    %v1416 = vunpack.c.l.b16 %v169
    %v1417 = vunpack.c.h.b16 %v169
    %v1418 = vunpack.c.l.b16 %v170
    %v1419 = vunpack.c.h.b16 %v170
    %v1420 = vunpack.c.l.b16 %v171
    %v1421 = vunpack.c.h.b16 %v171
    %v1422 = vunpack.c.l.b16 %v172
    %v1423 = vunpack.c.h.b16 %v172
    %v1424 = vunpack.c.l.b16 %v173
    %v1425 = vunpack.c.h.b16 %v173
    %v1426 = vunpack.c.l.b16 %v174
    %v1427 = vunpack.c.h.b16 %v174
    %v1428 = vunpack.c.l.b16 %v175
    %v1429 = vunpack.c.h.b16 %v175
    %v1430 = vunpack.c.l.b16 %v176
    %v1431 = vunpack.c.h.b16 %v176
    %v1432 = vunpack.c.l.b16 %v177
    %v1433 = vunpack.c.h.b16 %v177
    %v1434 = vunpack.c.l.b16 %v178
    %v1435 = vunpack.c.h.b16 %v178
    %v1436 = vunpack.c.l.b16 %v179
    %v1437 = vunpack.c.h.b16 %v179
    %v1438 = vunpack.c.l.b16 %v180
    %v1439 = vunpack.c.h.b16 %v180
    %v1440 = vunpack.c.l.b16 %v181
    %v1441 = vunpack.c.h.b16 %v181
    %v1442 = vunpack.c.l.b16 %v182
    %v1443 = vunpack.c.h.b16 %v182
    %v1444 = vunpack.c.l.b16 %v183
    %v1445 = vunpack.c.h.b16 %v183
    %v1446 = vunpack.c.l.b16 %v184
    %v1447 = vunpack.c.h.b16 %v184
    %v1448 = vunpack.c.l.b16 %v185
    %v1449 = vunpack.c.h.b16 %v185
    %v1450 = vunpack.c.l.b16 %v186
    %v1451 = vunpack.c.h.b16 %v186
    %v1452 = vunpack.c.l.b16 %v187
    %v1453 = vunpack.c.h.b16 %v187
    %v1454 = vunpack.c.l.b16 %v188
    %v1455 = vunpack.c.h.b16 %v188
    %v1456 = vunpack.c.l.b16 %v189
    %v1457 = vunpack.c.h.b16 %v189
    %v1458 = vunpack.c.l.b16 %v190
    %v1459 = vunpack.c.h.b16 %v190
    %v1460 = vunpack.c.l.b16 %v191
    %v1461 = vunpack.c.h.b16 %v191
    %v1462 = vunpack.c.l.b16 %v192
    %v1463 = vunpack.c.h.b16 %v192
    %v1464 = vunpack.c.l.b16 %v193
    %v1465 = vunpack.c.h.b16 %v193
    %v1466 = vunpack.c.l.b16 %v194
    %v1467 = vunpack.c.h.b16 %v194
    %v1468 = vunpack.c.l.b16 %v195
    %v1469 = vunpack.c.h.b16 %v195
    %v1470 = vunpack.c.l.b16 %v196
    %v1471 = vunpack.c.h.b16 %v196
    %v1472 = vunpack.c.l.b16 %v197
    %v1473 = vunpack.c.h.b16 %v197
    %v1474 = vunpack.c.l.b16 %v198
    %v1475 = vunpack.c.h.b16 %v198
    %v1476 = vunpack.c.l.b16 %v199
    %v1477 = vunpack.c.h.b16 %v199
    %v1478 = vunpack.c.l.b16 %v200
    %v1479 = vunpack.c.h.b16 %v200
    %v1480 = vunpack.c.l.b16 %v201
    %v1481 = vunpack.c.h.b16 %v201
    %v1482 = vunpack.c.l.b16 %v202
    %v1483 = vunpack.c.h.b16 %v202
    %v1484 = vunpack.c.l.b16 %v203
    %v1485 = vunpack.c.h.b16 %v203
    %v1486 = vunpack.c.l.b16 %v204
    %v1487 = vunpack.c.h.b16 %v204
    %v1488 = vunpack.c.l.b16 %v205
    %v1489 = vunpack.c.h.b16 %v205
    %v1490 = vunpack.c.l.b16 %v206
    %v1491 = vunpack.c.h.b16 %v206
    %v1492 = vunpack.c.l.b16 %v207
    %v1493 = vunpack.c.h.b16 %v207
    %v1494 = vunpack.c.l.b16 %v208
    %v1495 = vunpack.c.h.b16 %v208
    %v1496 = vunpack.c.l.b16 %v209
    %v1497 = vunpack.c.h.b16 %v209
    %v1498 = vunpack.c.l.b16 %v210
    %v1499 = vunpack.c.h.b16 %v210
    %v1500 = vunpack.c.l.b16 %v211
    %v1501 = vunpack.c.h.b16 %v211
    %v1502 = vunpack.c.l.b16 %v212
    %v1503 = vunpack.c.h.b16 %v212
    %v1504 = vunpack.c.l.b16 %v213
    %v1505 = vunpack.c.h.b16 %v213
    %v1506 = vunpack.c.l.b16 %v214
    %v1507 = vunpack.c.h.b16 %v214
    %v1508 = vunpack.c.l.b16 %v215
    %v1509 = vunpack.c.h.b16 %v215
    %v1510 = vunpack.c.l.b16 %v216
    %v1511 = vunpack.c.h.b16 %v216
    %v1512 = vunpack.c.l.b16 %v217
    %v1513 = vunpack.c.h.b16 %v217
    %v1514 = vunpack.c.l.b16 %v218
    %v1515 = vunpack.c.h.b16 %v218
    %v1516 = vunpack.c.l.b16 %v219
    %v1517 = vunpack.c.h.b16 %v219
    %v1518 = vunpack.c.l.b16 %v220
    %v1519 = vunpack.c.h.b16 %v220
    %v1520 = vunpack.c.l.b16 %v221
    %v1521 = vunpack.c.h.b16 %v221
    %v1522 = vunpack.c.l.b16 %v222
    %v1523 = vunpack.c.h.b16 %v222
    %v1524 = vunpack.c.l.b16 %v223
    %v1525 = vunpack.c.h.b16 %v223
    %v1526 = vunpack.c.l.b16 %v224
    %v1527 = vunpack.c.h.b16 %v224
    %v1528 = vunpack.c.l.b16 %v225
    %v1529 = vunpack.c.h.b16 %v225
    %v1530 = vunpack.c.l.b16 %v226
    %v1531 = vunpack.c.h.b16 %v226
    %v1532 = vunpack.c.l.b16 %v227
    %v1533 = vunpack.c.h.b16 %v227
    %v1534 = vunpack.c.l.b16 %v228
    %v1535 = vunpack.c.h.b16 %v228
    %v1536 = vunpack.c.l.b16 %v229
    %v1537 = vunpack.c.h.b16 %v229
    %v1538 = vunpack.c.l.b16 %v230
    %v1539 = vunpack.c.h.b16 %v230
    %v1540 = vunpack.c.l.b16 %v231
    %v1541 = vunpack.c.h.b16 %v231
    %v1542 = vunpack.c.l.b16 %v232
    %v1543 = vunpack.c.h.b16 %v232
    %v1544 = vunpack.c.l.b16 %v233
    %v1545 = vunpack.c.h.b16 %v233
    %v1546 = vunpack.c.l.b16 %v234
    %v1547 = vunpack.c.h.b16 %v234
    %v1548 = vunpack.c.l.b16 %v235
    %v1549 = vunpack.c.h.b16 %v235
    %v1550 = vunpack.c.l.b16 %v236
    %v1551 = vunpack.c.h.b16 %v236
    %v1552 = vunpack.c.l.b16 %v237
    %v1553 = vunpack.c.h.b16 %v237
    %v1554 = vunpack.c.l.b16 %v238
    %v1555 = vunpack.c.h.b16 %v238
    %v1556 = vunpack.c.l.b16 %v239
    %v1557 = vunpack.c.h.b16 %v239
    %v1558 = vunpack.c.l.b16 %v240
    %v1559 = vunpack.c.h.b16 %v240
    %v1560 = vunpack.c.l.b16 %v241
    %v1561 = vunpack.c.h.b16 %v241
    %v1562 = vunpack.c.l.b16 %v242
    %v1563 = vunpack.c.h.b16 %v242
    %v1564 = vunpack.c.l.b16 %v243
    %v1565 = vunpack.c.h.b16 %v243
    %v1566 = vunpack.c.l.b16 %v244
    %v1567 = vunpack.c.h.b16 %v244
    %v1568 = vunpack.c.l.b16 %v245
    %v1569 = vunpack.c.h.b16 %v245
    %v1570 = vunpack.c.l.b16 %v246
    %v1571 = vunpack.c.h.b16 %v246
    %v1572 = vunpack.c.l.b16 %v247
    %v1573 = vunpack.c.h.b16 %v247
    %v1574 = vunpack.c.l.b16 %v248
    %v1575 = vunpack.c.h.b16 %v248
    %v1576 = vunpack.c.l.b16 %v249
    %v1577 = vunpack.c.h.b16 %v249
    %v1578 = vunpack.c.l.b16 %v250
    %v1579 = vunpack.c.h.b16 %v250
    %v1580 = vunpack.c.l.b16 %v251
    %v1581 = vunpack.c.h.b16 %v251
    %v1582 = vunpack.c.l.b16 %v252
    %v1583 = vunpack.c.h.b16 %v252
    %v1584 = vunpack.c.l.b16 %v253
    %v1585 = vunpack.c.h.b16 %v253
    %v1586 = vunpack.c.l.b16 %v254
    %v1587 = vunpack.c.h.b16 %v254
    %v1588 = vunpack.c.l.b16 %v255
    %v1589 = vunpack.c.h.b16 %v255
    %v1590 = vunpack.c.l.b16 %v256
    %v1591 = vunpack.c.h.b16 %v256
    %v1592 = vunpack.c.l.b16 %v257
    %v1593 = vunpack.c.h.b16 %v257
    %v1594 = vunpack.c.l.b16 %v258
    %v1595 = vunpack.c.h.b16 %v258
    %v1596 = vunpack.c.l.b16 %v259
    %v1597 = vunpack.c.h.b16 %v259
    %v1598 = vunpack.c.l.b16 %v260
    %v1599 = vunpack.c.h.b16 %v260
    %v1600 = vunpack.c.l.b16 %v261
    %v1601 = vunpack.c.h.b16 %v261
    %v1602 = vunpack.c.l.b16 %v262
    %v1603 = vunpack.c.h.b16 %v262
    %v1604 = vunpack.c.l.b16 %v263
    %v1605 = vunpack.c.h.b16 %v263
    %v1606 = vunpack.c.l.b16 %v264
    %v1607 = vunpack.c.h.b16 %v264
    %v1608 = vunpack.c.l.b16 %v265
    %v1609 = vunpack.c.h.b16 %v265
    %v1610 = vunpack.c.l.b16 %v266
    %v1611 = vunpack.c.h.b16 %v266
    %v1612 = vunpack.c.l.b16 %v267
    %v1613 = vunpack.c.h.b16 %v267
    %v1614 = vunpack.c.l.b16 %v268
    %v1615 = vunpack.c.h.b16 %v268
    %v1616 = vunpack.c.l.b16 %v269
    %v1617 = vunpack.c.h.b16 %v269
    %v1618 = vunpack.c.l.b16 %v270
    %v1619 = vunpack.c.h.b16 %v270
    %v1620 = vunpack.c.l.b16 %v271
    %v1621 = vunpack.c.h.b16 %v271
    %v1622 = vunpack.c.l.b16 %v272
    %v1623 = vunpack.c.h.b16 %v272
    %v1624 = vunpack.c.l.b16 %v273
    %v1625 = vunpack.c.h.b16 %v273
    %v1626 = vunpack.c.l.b16 %v274
    %v1627 = vunpack.c.h.b16 %v274
    %v1628 = vunpack.c.l.b16 %v275
    %v1629 = vunpack.c.h.b16 %v275
    %v1630 = vunpack.c.l.b16 %v276
    %v1631 = vunpack.c.h.b16 %v276
    %v1632 = vunpack.c.l.b16 %v277
    %v1633 = vunpack.c.h.b16 %v277
    %v1634 = vunpack.c.l.b16 %v278
    %v1635 = vunpack.c.h.b16 %v278
    %v1636 = vunpack.c.l.b16 %v279
    %v1637 = vunpack.c.h.b16 %v279
    %v1638 = vunpack.c.l.b16 %v280
    %v1639 = vunpack.c.h.b16 %v280
    %v1640 = vunpack.c.l.b16 %v281
    %v1641 = vunpack.c.h.b16 %v281
    %v1642 = vunpack.c.l.b16 %v282
    %v1643 = vunpack.c.h.b16 %v282
    %v1644 = vunpack.c.l.b16 %v283
    %v1645 = vunpack.c.h.b16 %v283
    %v1646 = vunpack.c.l.b16 %v284
    %v1647 = vunpack.c.h.b16 %v284
    %v1648 = vunpack.c.l.b16 %v285
    %v1649 = vunpack.c.h.b16 %v285
    %v1650 = vunpack.c.l.b16 %v286
    %v1651 = vunpack.c.h.b16 %v286
    %v1652 = vunpack.c.l.b16 %v287
    %v1653 = vunpack.c.h.b16 %v287
    %v1654 = vunpack.c.l.b16 %v288
    %v1655 = vunpack.c.h.b16 %v288
    %v1656 = vunpack.c.l.b16 %v289
    %v1657 = vunpack.c.h.b16 %v289
    %v1658 = vunpack.c.l.b16 %v290
    %v1659 = vunpack.c.h.b16 %v290
    %v1660 = vunpack.c.l.b16 %v291
    %v1661 = vunpack.c.h.b16 %v291
    %v1662 = vunpack.c.l.b16 %v292
    %v1663 = vunpack.c.h.b16 %v292
    %v1664 = vunpack.c.l.b16 %v293
    %v1665 = vunpack.c.h.b16 %v293
    %v1666 = vunpack.c.l.b16 %v294
    %v1667 = vunpack.c.h.b16 %v294
    %v1668 = vunpack.c.l.b16 %v295
    %v1669 = vunpack.c.h.b16 %v295
    %v1670 = vunpack.c.l.b16 %v296
    %v1671 = vunpack.c.h.b16 %v296
    %v1672 = vunpack.c.l.b16 %v297
    %v1673 = vunpack.c.h.b16 %v297
    %v1674 = vunpack.c.l.b16 %v298
    %v1675 = vunpack.c.h.b16 %v298
    %v1676 = vunpack.c.l.b16 %v299
    %v1677 = vunpack.c.h.b16 %v299
    %v1678 = vunpack.c.l.b16 %v300
    %v1679 = vunpack.c.h.b16 %v300
    %v1680 = vunpack.c.l.b16 %v301
    %v1681 = vunpack.c.h.b16 %v301
    %v1682 = vunpack.c.l.b16 %v302
    %v1683 = vunpack.c.h.b16 %v302
    %v1684 = vunpack.c.l.b16 %v303
    %v1685 = vunpack.c.h.b16 %v303
    %v1686 = vunpack.c.l.b16 %v304
    %v1687 = vunpack.c.h.b16 %v304
    %v1688 = vunpack.c.l.b16 %v305
    %v1689 = vunpack.c.h.b16 %v305
    %v1690 = vunpack.c.l.b16 %v306
    %v1691 = vunpack.c.h.b16 %v306
    %v1692 = vunpack.c.l.b16 %v307
    %v1693 = vunpack.c.h.b16 %v307
    %v1694 = vunpack.c.l.b16 %v308
    %v1695 = vunpack.c.h.b16 %v308
    %v1696 = vunpack.c.l.b16 %v309
    %v1697 = vunpack.c.h.b16 %v309
    %v1698 = vunpack.c.l.b16 %v310
    %v1699 = vunpack.c.h.b16 %v310
    %v1700 = vunpack.c.l.b16 %v311
    %v1701 = vunpack.c.h.b16 %v311
    %v1702 = vunpack.c.l.b16 %v312
    %v1703 = vunpack.c.h.b16 %v312
    %v1704 = vunpack.c.l.b16 %v313
    %v1705 = vunpack.c.h.b16 %v313
    %v1706 = vunpack.c.l.b16 %v314
    %v1707 = vunpack.c.h.b16 %v314
    %v1708 = vunpack.c.l.b16 %v315
    %v1709 = vunpack.c.h.b16 %v315
    %v1710 = vunpack.c.l.b16 %v316
    %v1711 = vunpack.c.h.b16 %v316
    %v1712 = vunpack.c.l.b16 %v317
    %v1713 = vunpack.c.h.b16 %v317
    %v1714 = vunpack.c.l.b16 %v318
    %v1715 = vunpack.c.h.b16 %v318
    %v1716 = vunpack.c.l.b16 %v319
    %v1717 = vunpack.c.h.b16 %v319
    %v1718 = vunpack.c.l.b16 %v320
    %v1719 = vunpack.c.h.b16 %v320
    %v1720 = vunpack.c.l.b16 %v321
    %v1721 = vunpack.c.h.b16 %v321
    %v1722 = vunpack.c.l.b16 %v322
    %v1723 = vunpack.c.h.b16 %v322
    %v1724 = vunpack.c.l.b16 %v323
    %v1725 = vunpack.c.h.b16 %v323
    %v1726 = vunpack.c.l.b16 %v324
    %v1727 = vunpack.c.h.b16 %v324
    %v1728 = vunpack.c.l.b16 %v325
    %v1729 = vunpack.c.h.b16 %v325
    %v1730 = vunpack.c.l.b16 %v326
    %v1731 = vunpack.c.h.b16 %v326
    %v1732 = vunpack.c.l.b16 %v327
    %v1733 = vunpack.c.h.b16 %v327
    %v1734 = vunpack.c.l.b16 %v328
    %v1735 = vunpack.c.h.b16 %v328
    %v1736 = vunpack.c.l.b16 %v329
    %v1737 = vunpack.c.h.b16 %v329
    %v1738 = vunpack.c.l.b16 %v330
    %v1739 = vunpack.c.h.b16 %v330
    %v1740 = vunpack.c.l.b16 %v331
    %v1741 = vunpack.c.h.b16 %v331
    %v1742 = vunpack.c.l.b16 %v332
    %v1743 = vunpack.c.h.b16 %v332
    %v1744 = vunpack.c.l.b16 %v333
    %v1745 = vunpack.c.h.b16 %v333
    %v1746 = vunpack.c.l.b16 %v334
    %v1747 = vunpack.c.h.b16 %v334
    %v1748 = vunpack.c.l.b16 %v335
    %v1749 = vunpack.c.h.b16 %v335
    %v1750 = vunpack.c.l.b16 %v336
    %v1751 = vunpack.c.h.b16 %v336
    %v1752 = vunpack.c.l.b16 %v337
    %v1753 = vunpack.c.h.b16 %v337
    %v1754 = vunpack.c.l.b16 %v338
    %v1755 = vunpack.c.h.b16 %v338
    %v1756 = vunpack.c.l.b16 %v339
    %v1757 = vunpack.c.h.b16 %v339
    %v1758 = vunpack.c.l.b16 %v340
    %v1759 = vunpack.c.h.b16 %v340
    %v1760 = vunpack.c.l.b16 %v341
    %v1761 = vunpack.c.h.b16 %v341
    %v1762 = vunpack.c.l.b16 %v342
    %v1763 = vunpack.c.h.b16 %v342
    %v1764 = vunpack.c.l.b16 %v343
    %v1765 = vunpack.c.h.b16 %v343
    %v1766 = vunpack.c.l.b16 %v344
    %v1767 = vunpack.c.h.b16 %v344
    %v1768 = vunpack.c.l.b16 %v345
    %v1769 = vunpack.c.h.b16 %v345
    %v1770 = vunpack.c.l.b16 %v346
    %v1771 = vunpack.c.h.b16 %v346
    %v1772 = vunpack.c.l.b16 %v347
    %v1773 = vunpack.c.h.b16 %v347
    %v1774 = vunpack.c.l.b16 %v348
    %v1775 = vunpack.c.h.b16 %v348
    %v1776 = vunpack.c.l.b16 %v349
    %v1777 = vunpack.c.h.b16 %v349
    %v1778 = vunpack.c.l.b16 %v350
    %v1779 = vunpack.c.h.b16 %v350
    %v1780 = vunpack.c.l.b16 %v351
    %v1781 = vunpack.c.h.b16 %v351
    %v1782 = vunpack.c.l.b16 %v352
    %v1783 = vunpack.c.h.b16 %v352
    %v1784 = vunpack.c.l.b16 %v353
    %v1785 = vunpack.c.h.b16 %v353
    %v1786 = vunpack.c.l.b16 %v354
    %v1787 = vunpack.c.h.b16 %v354
    %v1788 = vunpack.c.l.b16 %v355
    %v1789 = vunpack.c.h.b16 %v355
    %v1790 = vunpack.c.l.b16 %v356
    %v1791 = vunpack.c.h.b16 %v356
    %v1792 = vunpack.c.l.b16 %v357
    %v1793 = vunpack.c.h.b16 %v357
    %v1794 = vunpack.c.l.b16 %v358
    %v1795 = vunpack.c.h.b16 %v358
    %v1796 = vunpack.c.l.b16 %v359
    %v1797 = vunpack.c.h.b16 %v359
    %v1798 = vunpack.c.l.b16 %v360
    %v1799 = vunpack.c.h.b16 %v360
    %v1800 = vunpack.c.l.b16 %v361
    %v1801 = vunpack.c.h.b16 %v361
    %v1802 = vunpack.c.l.b16 %v362
    %v1803 = vunpack.c.h.b16 %v362
    %v1804 = vunpack.c.l.b16 %v363
    %v1805 = vunpack.c.h.b16 %v363
    %v1806 = vunpack.c.l.b16 %v364
    %v1807 = vunpack.c.h.b16 %v364
    %v1808 = vunpack.c.l.b16 %v365
    %v1809 = vunpack.c.h.b16 %v365
    %v1810 = vunpack.c.l.b16 %v366
    %v1811 = vunpack.c.h.b16 %v366
    %v1812 = vunpack.c.l.b16 %v367
    %v1813 = vunpack.c.h.b16 %v367
    %v1814 = vunpack.c.l.b16 %v368
    %v1815 = vunpack.c.h.b16 %v368
    %v1816 = vunpack.c.l.b16 %v369
    %v1817 = vunpack.c.h.b16 %v369
    %v1818 = vunpack.c.l.b16 %v370
    %v1819 = vunpack.c.h.b16 %v370
    %v1820 = vunpack.c.l.b16 %v371
    %v1821 = vunpack.c.h.b16 %v371
    %v1822 = vunpack.c.l.b16 %v372
    %v1823 = vunpack.c.h.b16 %v372
    %v1824 = vunpack.c.l.b16 %v373
    %v1825 = vunpack.c.h.b16 %v373
    %v1826 = vunpack.c.l.b16 %v374
    %v1827 = vunpack.c.h.b16 %v374
    %v1828 = vunpack.c.l.b16 %v375
    %v1829 = vunpack.c.h.b16 %v375
    %v1830 = vunpack.c.l.b16 %v376
    %v1831 = vunpack.c.h.b16 %v376
    %v1832 = vunpack.c.l.b16 %v377
    %v1833 = vunpack.c.h.b16 %v377
    %v1834 = vunpack.c.l.b16 %v378
    %v1835 = vunpack.c.h.b16 %v378
    %v1836 = vunpack.c.l.b16 %v379
    %v1837 = vunpack.c.h.b16 %v379
    %v1838 = vunpack.c.l.b16 %v380
    %v1839 = vunpack.c.h.b16 %v380
    %v1840 = vunpack.c.l.b16 %v381
    %v1841 = vunpack.c.h.b16 %v381
    %v1842 = vunpack.c.l.b16 %v382
    %v1843 = vunpack.c.h.b16 %v382
    %v1844 = vunpack.c.l.b16 %v383
    %v1845 = vunpack.c.h.b16 %v383
    %v1846 = vunpack.c.l.b16 %v384
    %v1847 = vunpack.c.h.b16 %v384
    %v1848 = vunpack.c.l.b16 %v385
    %v1849 = vunpack.c.h.b16 %v385
    %v1850 = vunpack.c.l.b16 %v386
    %v1851 = vunpack.c.h.b16 %v386
    %v1852 = vunpack.c.l.b16 %v387
    %v1853 = vunpack.c.h.b16 %v387
    %v1854 = vunpack.c.l.b16 %v388
    %v1855 = vunpack.c.h.b16 %v388
    %v1856 = vunpack.c.l.b16 %v389
    %v1857 = vunpack.c.h.b16 %v389
    %v1858 = vunpack.c.l.b16 %v390
    %v1859 = vunpack.c.h.b16 %v390
    %v1860 = vunpack.c.l.b16 %v391
    %v1861 = vunpack.c.h.b16 %v391
    %v1862 = vunpack.c.l.b16 %v392
    %v1863 = vunpack.c.h.b16 %v392
    %v1864 = vunpack.c.l.b16 %v393
    %v1865 = vunpack.c.h.b16 %v393
    %v1866 = vunpack.c.l.b16 %v394
    %v1867 = vunpack.c.h.b16 %v394
    %v1868 = vunpack.c.l.b16 %v395
    %v1869 = vunpack.c.h.b16 %v395
    %v1870 = vunpack.c.l.b16 %v396
    %v1871 = vunpack.c.h.b16 %v396
    %v1872 = vunpack.c.l.b16 %v397
    %v1873 = vunpack.c.h.b16 %v397
    %v1874 = vunpack.c.l.b16 %v398
    %v1875 = vunpack.c.h.b16 %v398
    %v1876 = vunpack.c.l.b16 %v399
    %v1877 = vunpack.c.h.b16 %v399
    %v1878 = vunpack.c.l.b16 %v400
    %v1879 = vunpack.c.h.b16 %v400
    %v1880 = vunpack.c.l.b16 %v401
    %v1881 = vunpack.c.h.b16 %v401
    %v1882 = vunpack.c.l.b16 %v402
    %v1883 = vunpack.c.h.b16 %v402
    %v1884 = vunpack.c.l.b16 %v403
    %v1885 = vunpack.c.h.b16 %v403
    %v1886 = vunpack.c.l.b16 %v404
    %v1887 = vunpack.c.h.b16 %v404
    %v1888 = vunpack.c.l.b16 %v405
    %v1889 = vunpack.c.h.b16 %v405
    %v1890 = vunpack.c.l.b16 %v406
    %v1891 = vunpack.c.h.b16 %v406
    %v1892 = vunpack.c.l.b16 %v407
    %v1893 = vunpack.c.h.b16 %v407
    %v1894 = vunpack.c.l.b16 %v408
    %v1895 = vunpack.c.h.b16 %v408
    %v1896 = vunpack.c.l.b16 %v409
    %v1897 = vunpack.c.h.b16 %v409
    %v1898 = vunpack.c.l.b16 %v410
    %v1899 = vunpack.c.h.b16 %v410
    %v1900 = vunpack.c.l.b16 %v411
    %v1901 = vunpack.c.h.b16 %v411
    %v1902 = vunpack.c.l.b16 %v412
    %v1903 = vunpack.c.h.b16 %v412
    %v1904 = vunpack.c.l.b16 %v413
    %v1905 = vunpack.c.h.b16 %v413
    %v1906 = vunpack.c.l.b16 %v414
    %v1907 = vunpack.c.h.b16 %v414
    %v1908 = vunpack.c.l.b16 %v415
    %v1909 = vunpack.c.h.b16 %v415
    %v1910 = vunpack.c.l.b16 %v416
    %v1911 = vunpack.c.h.b16 %v416
    %v1912 = vunpack.c.l.b16 %v417
    %v1913 = vunpack.c.h.b16 %v417
    %v1914 = vunpack.c.l.b16 %v418
    %v1915 = vunpack.c.h.b16 %v418
    %v1916 = vunpack.c.l.b16 %v419
    %v1917 = vunpack.c.h.b16 %v419
    %v1918 = vunpack.c.l.b16 %v420
    %v1919 = vunpack.c.h.b16 %v420
    %v1920 = vunpack.c.l.b16 %v421
    %v1921 = vunpack.c.h.b16 %v421
    %v1922 = vunpack.c.l.b16 %v422
    %v1923 = vunpack.c.h.b16 %v422
    %v1924 = vunpack.c.l.b16 %v423
    %v1925 = vunpack.c.h.b16 %v423
    %v1926 = vunpack.c.l.b16 %v424
    %v1927 = vunpack.c.h.b16 %v424
    %v1928 = vunpack.c.l.b16 %v425
    %v1929 = vunpack.c.h.b16 %v425
    %v1930 = vunpack.c.l.b16 %v426
    %v1931 = vunpack.c.h.b16 %v426
    %v1932 = vunpack.c.l.b16 %v427
    %v1933 = vunpack.c.h.b16 %v427
    %v1934 = vunpack.c.l.b16 %v428
    %v1935 = vunpack.c.h.b16 %v428
    %v1936 = vunpack.c.l.b16 %v429
    %v1937 = vunpack.c.h.b16 %v429
    %v1938 = vunpack.c.l.b16 %v430
    %v1939 = vunpack.c.h.b16 %v430
    %v1940 = vunpack.c.l.b16 %v431
    %v1941 = vunpack.c.h.b16 %v431
    %v1942 = vunpack.c.l.b16 %v432
    %v1943 = vunpack.c.h.b16 %v432
    %v1944 = vunpack.c.l.b16 %v433
    %v1945 = vunpack.c.h.b16 %v433
    %v1946 = vunpack.c.l.b16 %v434
    %v1947 = vunpack.c.h.b16 %v434
    %v1948 = vunpack.c.l.b16 %v435
    %v1949 = vunpack.c.h.b16 %v435
    %v1950 = vunpack.c.l.b16 %v436
    %v1951 = vunpack.c.h.b16 %v436
    %v1952 = vunpack.c.l.b16 %v437
    %v1953 = vunpack.c.h.b16 %v437
    %v1954 = vunpack.c.l.b16 %v438
    %v1955 = vunpack.c.h.b16 %v438
    %v1956 = vunpack.c.l.b16 %v439
    %v1957 = vunpack.c.h.b16 %v439
    %v1958 = vunpack.c.l.b16 %v440
    %v1959 = vunpack.c.h.b16 %v440
    %v1960 = vunpack.c.l.b16 %v441
    %v1961 = vunpack.c.h.b16 %v441
    %v1962 = vunpack.c.l.b16 %v442
    %v1963 = vunpack.c.h.b16 %v442
    %v1964 = vunpack.c.l.b16 %v443
    %v1965 = vunpack.c.h.b16 %v443
    %v1966 = vunpack.c.l.b16 %v444
    %v1967 = vunpack.c.h.b16 %v444
    %v1968 = vunpack.c.l.b16 %v445
    %v1969 = vunpack.c.h.b16 %v445
    %v1970 = vunpack.c.l.b16 %v446
    %v1971 = vunpack.c.h.b16 %v446
    %v1972 = vunpack.c.l.b16 %v447
    %v1973 = vunpack.c.h.b16 %v447
    %v1974 = vunpack.c.l.b16 %v448
    %v1975 = vunpack.c.h.b16 %v448
    %v1976 = vunpack.c.l.b16 %v449
    %v1977 = vunpack.c.h.b16 %v449
    %v1978 = vunpack.c.l.b16 %v450
    %v1979 = vunpack.c.h.b16 %v450
    %v1980 = vunpack.c.l.b16 %v451
    %v1981 = vunpack.c.h.b16 %v451
    %v1982 = vunpack.c.l.b16 %v452
    %v1983 = vunpack.c.h.b16 %v452
    %v1984 = vunpack.c.l.b16 %v453
    %v1985 = vunpack.c.h.b16 %v453
    %v1986 = vunpack.c.l.b16 %v454
    %v1987 = vunpack.c.h.b16 %v454
    %v1988 = vunpack.c.l.b16 %v455
    %v1989 = vunpack.c.h.b16 %v455
    %v1990 = vunpack.c.l.b16 %v456
    %v1991 = vunpack.c.h.b16 %v456
    %v1992 = vunpack.c.l.b16 %v457
    %v1993 = vunpack.c.h.b16 %v457
    %v1994 = vunpack.c.l.b16 %v458
    %v1995 = vunpack.c.h.b16 %v458
    %v1996 = vunpack.c.l.b16 %v459
    %v1997 = vunpack.c.h.b16 %v459
    %v1998 = vunpack.c.l.b16 %v460
    %v1999 = vunpack.c.h.b16 %v460
    %v2000 = vunpack.c.l.b16 %v461
    %v2001 = vunpack.c.h.b16 %v461
    %v2002 = vunpack.c.l.b16 %v462
    %v2003 = vunpack.c.h.b16 %v462
    %v2004 = vunpack.c.l.b16 %v463
    %v2005 = vunpack.c.h.b16 %v463
    %v2006 = vunpack.c.l.b16 %v464
    %v2007 = vunpack.c.h.b16 %v464
    %v2008 = vunpack.c.l.b16 %v465
    %v2009 = vunpack.c.h.b16 %v465
    %v2010 = vunpack.c.l.b16 %v466
    %v2011 = vunpack.c.h.b16 %v466
    %v2012 = vunpack.c.l.b16 %v467
    %v2013 = vunpack.c.h.b16 %v467
    %v2014 = vunpack.c.l.b16 %v468
    %v2015 = vunpack.c.h.b16 %v468
    %v2016 = vunpack.c.l.b16 %v469
    %v2017 = vunpack.c.h.b16 %v469
    %v2018 = vpack.c.b16 %v1274, %v1250
    %v2019 = vpack.c.b16 %v1275, %v1251
    %v2020 = vpack.c.b16 %v1276, %v1252
    %v2021 = vpack.c.b16 %v1277, %v1253
    %v2022 = vpack.c.b16 %v1278, %v1254
    %v2023 = vpack.c.b16 %v1279, %v1255
    %v2024 = vpack.c.b16 %v1280, %v1256
    %v2025 = vpack.c.b16 %v1281, %v1257
    %v2026 = vpack.c.b16 %v1282, %v1258
    %v2027 = vpack.c.b16 %v1283, %v1259
    %v2028 = vpack.c.b16 %v1284, %v1260
    %v2029 = vpack.c.b16 %v1285, %v1261
    %v2030 = vpack.c.b16 %v1286, %v1262
    %v2031 = vpack.c.b16 %v1287, %v1263
    %v2032 = vpack.c.b16 %v1288, %v1264
    %v2033 = vpack.c.b16 %v1289, %v1265
    %v2034 = vpack.c.b16 %v1290, %v1266
    %v2035 = vpack.c.b16 %v1291, %v1267
    %v2036 = vpack.c.b16 %v1292, %v1268
    %v2037 = vpack.c.b16 %v1293, %v1269
    %v2038 = vpack.c.b16 %v1294, %v1270
    %v2039 = vpack.c.b16 %v1295, %v1271
    %v2040 = vpack.c.b16 %v1296, %v1272
    %v2041 = vpack.c.b16 %v1297, %v1273
    %v2042 = vpack.c.b16 %v1322, %v1298
    %v2043 = vpack.c.b16 %v1323, %v1299
    %v2044 = vpack.c.b16 %v1324, %v1300
    %v2045 = vpack.c.b16 %v1325, %v1301
    %v2046 = vpack.c.b16 %v1326, %v1302
    %v2047 = vpack.c.b16 %v1327, %v1303
    %v2048 = vpack.c.b16 %v1328, %v1304
    %v2049 = vpack.c.b16 %v1329, %v1305
    %v2050 = vpack.c.b16 %v1330, %v1306
    %v2051 = vpack.c.b16 %v1331, %v1307
    %v2052 = vpack.c.b16 %v1332, %v1308
    %v2053 = vpack.c.b16 %v1333, %v1309
    %v2054 = vpack.c.b16 %v1334, %v1310
    %v2055 = vpack.c.b16 %v1335, %v1311
    %v2056 = vpack.c.b16 %v1336, %v1312
    %v2057 = vpack.c.b16 %v1337, %v1313
    %v2058 = vpack.c.b16 %v1338, %v1314
    %v2059 = vpack.c.b16 %v1339, %v1315
    %v2060 = vpack.c.b16 %v1340, %v1316
    %v2061 = vpack.c.b16 %v1341, %v1317
    %v2062 = vpack.c.b16 %v1342, %v1318
    %v2063 = vpack.c.b16 %v1343, %v1319
    %v2064 = vpack.c.b16 %v1344, %v1320
    %v2065 = vpack.c.b16 %v1345, %v1321
    %v2066 = vpack.c.b16 %v1370, %v1346
    %v2067 = vpack.c.b16 %v1371, %v1347
    %v2068 = vpack.c.b16 %v1372, %v1348
    %v2069 = vpack.c.b16 %v1373, %v1349
    %v2070 = vpack.c.b16 %v1374, %v1350
    %v2071 = vpack.c.b16 %v1375, %v1351
    %v2072 = vpack.c.b16 %v1376, %v1352
    %v2073 = vpack.c.b16 %v1377, %v1353
    %v2074 = vpack.c.b16 %v1378, %v1354
    %v2075 = vpack.c.b16 %v1379, %v1355
    %v2076 = vpack.c.b16 %v1380, %v1356
    %v2077 = vpack.c.b16 %v1381, %v1357
    %v2078 = vpack.c.b16 %v1382, %v1358
    %v2079 = vpack.c.b16 %v1383, %v1359
    %v2080 = vpack.c.b16 %v1384, %v1360
    %v2081 = vpack.c.b16 %v1385, %v1361
    %v2082 = vpack.c.b16 %v1386, %v1362
    %v2083 = vpack.c.b16 %v1387, %v1363
    %v2084 = vpack.c.b16 %v1388, %v1364
    %v2085 = vpack.c.b16 %v1389, %v1365
    %v2086 = vpack.c.b16 %v1390, %v1366
    %v2087 = vpack.c.b16 %v1391, %v1367
    %v2088 = vpack.c.b16 %v1392, %v1368
    %v2089 = vpack.c.b16 %v1393, %v1369
    %v2090 = vpack.c.b16 %v1418, %v1394
    %v2091 = vpack.c.b16 %v1419, %v1395
    %v2092 = vpack.c.b16 %v1420, %v1396
    %v2093 = vpack.c.b16 %v1421, %v1397
    %v2094 = vpack.c.b16 %v1422, %v1398
    %v2095 = vpack.c.b16 %v1423, %v1399
    %v2096 = vpack.c.b16 %v1424, %v1400
    %v2097 = vpack.c.b16 %v1425, %v1401
    %v2098 = vpack.c.b16 %v1426, %v1402
    %v2099 = vpack.c.b16 %v1427, %v1403
    %v2100 = vpack.c.b16 %v1428, %v1404
    %v2101 = vpack.c.b16 %v1429, %v1405
    %v2102 = vpack.c.b16 %v1430, %v1406
    %v2103 = vpack.c.b16 %v1431, %v1407
    %v2104 = vpack.c.b16 %v1432, %v1408
    %v2105 = vpack.c.b16 %v1433, %v1409
    %v2106 = vpack.c.b16 %v1434, %v1410
    %v2107 = vpack.c.b16 %v1435, %v1411
    %v2108 = vpack.c.b16 %v1436, %v1412
    %v2109 = vpack.c.b16 %v1437, %v1413
    %v2110 = vpack.c.b16 %v1438, %v1414
    %v2111 = vpack.c.b16 %v1439, %v1415
    %v2112 = vpack.c.b16 %v1440, %v1416
    %v2113 = vpack.c.b16 %v1441, %v1417
    %v2114 = vpack.c.b16 %v1466, %v1442
    %v2115 = vpack.c.b16 %v1467, %v1443
    %v2116 = vpack.c.b16 %v1468, %v1444
    %v2117 = vpack.c.b16 %v1469, %v1445
    %v2118 = vpack.c.b16 %v1470, %v1446
    %v2119 = vpack.c.b16 %v1471, %v1447
    %v2120 = vpack.c.b16 %v1472, %v1448
    %v2121 = vpack.c.b16 %v1473, %v1449
    %v2122 = vpack.c.b16 %v1474, %v1450
    %v2123 = vpack.c.b16 %v1475, %v1451
    %v2124 = vpack.c.b16 %v1476, %v1452
    %v2125 = vpack.c.b16 %v1477, %v1453
    %v2126 = vpack.c.b16 %v1478, %v1454
    %v2127 = vpack.c.b16 %v1479, %v1455
    %v2128 = vpack.c.b16 %v1480, %v1456
    %v2129 = vpack.c.b16 %v1481, %v1457
    %v2130 = vpack.c.b16 %v1482, %v1458
    %v2131 = vpack.c.b16 %v1483, %v1459
    %v2132 = vpack.c.b16 %v1484, %v1460
    %v2133 = vpack.c.b16 %v1485, %v1461
    %v2134 = vpack.c.b16 %v1486, %v1462
    %v2135 = vpack.c.b16 %v1487, %v1463
    %v2136 = vpack.c.b16 %v1488, %v1464
    %v2137 = vpack.c.b16 %v1489, %v1465
    %v2138 = vpack.c.b16 %v1514, %v1490
    %v2139 = vpack.c.b16 %v1515, %v1491
    %v2140 = vpack.c.b16 %v1516, %v1492
    %v2141 = vpack.c.b16 %v1517, %v1493
    %v2142 = vpack.c.b16 %v1518, %v1494
    %v2143 = vpack.c.b16 %v1519, %v1495
    %v2144 = vpack.c.b16 %v1520, %v1496
    %v2145 = vpack.c.b16 %v1521, %v1497
    %v2146 = vpack.c.b16 %v1522, %v1498
    %v2147 = vpack.c.b16 %v1523, %v1499
    %v2148 = vpack.c.b16 %v1524, %v1500
    %v2149 = vpack.c.b16 %v1525, %v1501
    %v2150 = vpack.c.b16 %v1526, %v1502
    %v2151 = vpack.c.b16 %v1527, %v1503
    %v2152 = vpack.c.b16 %v1528, %v1504
    %v2153 = vpack.c.b16 %v1529, %v1505
    %v2154 = vpack.c.b16 %v1530, %v1506
    %v2155 = vpack.c.b16 %v1531, %v1507
    %v2156 = vpack.c.b16 %v1532, %v1508
    %v2157 = vpack.c.b16 %v1533, %v1509
    %v2158 = vpack.c.b16 %v1534, %v1510
    %v2159 = vpack.c.b16 %v1535, %v1511
    %v2160 = vpack.c.b16 %v1536, %v1512
    %v2161 = vpack.c.b16 %v1537, %v1513
    %v2162 = vpack.c.b16 %v1562, %v1538
    %v2163 = vpack.c.b16 %v1563, %v1539
    %v2164 = vpack.c.b16 %v1564, %v1540
    %v2165 = vpack.c.b16 %v1565, %v1541
    %v2166 = vpack.c.b16 %v1566, %v1542
    %v2167 = vpack.c.b16 %v1567, %v1543
    %v2168 = vpack.c.b16 %v1568, %v1544
    %v2169 = vpack.c.b16 %v1569, %v1545
    %v2170 = vpack.c.b16 %v1570, %v1546
    %v2171 = vpack.c.b16 %v1571, %v1547
    %v2172 = vpack.c.b16 %v1572, %v1548
    %v2173 = vpack.c.b16 %v1573, %v1549
    %v2174 = vpack.c.b16 %v1574, %v1550
    %v2175 = vpack.c.b16 %v1575, %v1551
    %v2176 = vpack.c.b16 %v1576, %v1552
    %v2177 = vpack.c.b16 %v1577, %v1553
    %v2178 = vpack.c.b16 %v1578, %v1554
    %v2179 = vpack.c.b16 %v1579, %v1555
    %v2180 = vpack.c.b16 %v1580, %v1556
    %v2181 = vpack.c.b16 %v1581, %v1557
    %v2182 = vpack.c.b16 %v1582, %v1558
    %v2183 = vpack.c.b16 %v1583, %v1559
    %v2184 = vpack.c.b16 %v1584, %v1560
    %v2185 = vpack.c.b16 %v1585, %v1561
    %v2186 = vpack.c.b16 %v1610, %v1586
    %v2187 = vpack.c.b16 %v1611, %v1587
    %v2188 = vpack.c.b16 %v1612, %v1588
    %v2189 = vpack.c.b16 %v1613, %v1589
    %v2190 = vpack.c.b16 %v1614, %v1590
    %v2191 = vpack.c.b16 %v1615, %v1591
    %v2192 = vpack.c.b16 %v1616, %v1592
    %v2193 = vpack.c.b16 %v1617, %v1593
    %v2194 = vpack.c.b16 %v1618, %v1594
    %v2195 = vpack.c.b16 %v1619, %v1595
    %v2196 = vpack.c.b16 %v1620, %v1596
    %v2197 = vpack.c.b16 %v1621, %v1597
    %v2198 = vpack.c.b16 %v1622, %v1598
    %v2199 = vpack.c.b16 %v1623, %v1599
    %v2200 = vpack.c.b16 %v1624, %v1600
    %v2201 = vpack.c.b16 %v1625, %v1601
    %v2202 = vpack.c.b16 %v1626, %v1602
    %v2203 = vpack.c.b16 %v1627, %v1603
    %v2204 = vpack.c.b16 %v1628, %v1604
    %v2205 = vpack.c.b16 %v1629, %v1605
    %v2206 = vpack.c.b16 %v1630, %v1606
    %v2207 = vpack.c.b16 %v1631, %v1607
    %v2208 = vpack.c.b16 %v1632, %v1608
    %v2209 = vpack.c.b16 %v1633, %v1609
    %v2210 = vpack.c.b16 %v1658, %v1634
    %v2211 = vpack.c.b16 %v1659, %v1635
    %v2212 = vpack.c.b16 %v1660, %v1636
    %v2213 = vpack.c.b16 %v1661, %v1637
    %v2214 = vpack.c.b16 %v1662, %v1638
    %v2215 = vpack.c.b16 %v1663, %v1639
    %v2216 = vpack.c.b16 %v1664, %v1640
    %v2217 = vpack.c.b16 %v1665, %v1641
    %v2218 = vpack.c.b16 %v1666, %v1642
    %v2219 = vpack.c.b16 %v1667, %v1643
    %v2220 = vpack.c.b16 %v1668, %v1644
    %v2221 = vpack.c.b16 %v1669, %v1645
    %v2222 = vpack.c.b16 %v1670, %v1646
    %v2223 = vpack.c.b16 %v1671, %v1647
    %v2224 = vpack.c.b16 %v1672, %v1648
    %v2225 = vpack.c.b16 %v1673, %v1649
    %v2226 = vpack.c.b16 %v1674, %v1650
    %v2227 = vpack.c.b16 %v1675, %v1651
    %v2228 = vpack.c.b16 %v1676, %v1652
    %v2229 = vpack.c.b16 %v1677, %v1653
    %v2230 = vpack.c.b16 %v1678, %v1654
    %v2231 = vpack.c.b16 %v1679, %v1655
    %v2232 = vpack.c.b16 %v1680, %v1656
    %v2233 = vpack.c.b16 %v1681, %v1657
    %v2234 = vpack.c.b16 %v1706, %v1682
    %v2235 = vpack.c.b16 %v1707, %v1683
    %v2236 = vpack.c.b16 %v1708, %v1684
    %v2237 = vpack.c.b16 %v1709, %v1685
    %v2238 = vpack.c.b16 %v1710, %v1686
    %v2239 = vpack.c.b16 %v1711, %v1687
    %v2240 = vpack.c.b16 %v1712, %v1688
    %v2241 = vpack.c.b16 %v1713, %v1689
    %v2242 = vpack.c.b16 %v1714, %v1690
    %v2243 = vpack.c.b16 %v1715, %v1691
    %v2244 = vpack.c.b16 %v1716, %v1692
    %v2245 = vpack.c.b16 %v1717, %v1693
    %v2246 = vpack.c.b16 %v1718, %v1694
    %v2247 = vpack.c.b16 %v1719, %v1695
    %v2248 = vpack.c.b16 %v1720, %v1696
    %v2249 = vpack.c.b16 %v1721, %v1697
    %v2250 = vpack.c.b16 %v1722, %v1698
    %v2251 = vpack.c.b16 %v1723, %v1699
    %v2252 = vpack.c.b16 %v1724, %v1700
    %v2253 = vpack.c.b16 %v1725, %v1701
    %v2254 = vpack.c.b16 %v1726, %v1702
    %v2255 = vpack.c.b16 %v1727, %v1703
    %v2256 = vpack.c.b16 %v1728, %v1704
    %v2257 = vpack.c.b16 %v1729, %v1705
    %v2258 = vpack.c.b16 %v1754, %v1730
    %v2259 = vpack.c.b16 %v1755, %v1731
    %v2260 = vpack.c.b16 %v1756, %v1732
    %v2261 = vpack.c.b16 %v1757, %v1733
    %v2262 = vpack.c.b16 %v1758, %v1734
    %v2263 = vpack.c.b16 %v1759, %v1735
    %v2264 = vpack.c.b16 %v1760, %v1736
    %v2265 = vpack.c.b16 %v1761, %v1737
    %v2266 = vpack.c.b16 %v1762, %v1738
    %v2267 = vpack.c.b16 %v1763, %v1739
    %v2268 = vpack.c.b16 %v1764, %v1740
    %v2269 = vpack.c.b16 %v1765, %v1741
    %v2270 = vpack.c.b16 %v1766, %v1742
    %v2271 = vpack.c.b16 %v1767, %v1743
    %v2272 = vpack.c.b16 %v1768, %v1744
    %v2273 = vpack.c.b16 %v1769, %v1745
    %v2274 = vpack.c.b16 %v1770, %v1746
    %v2275 = vpack.c.b16 %v1771, %v1747
    %v2276 = vpack.c.b16 %v1772, %v1748
    %v2277 = vpack.c.b16 %v1773, %v1749
    %v2278 = vpack.c.b16 %v1774, %v1750
    %v2279 = vpack.c.b16 %v1775, %v1751
    %v2280 = vpack.c.b16 %v1776, %v1752
    %v2281 = vpack.c.b16 %v1777, %v1753
    %v2282 = vpack.c.b16 %v1802, %v1778
    %v2283 = vpack.c.b16 %v1803, %v1779
    %v2284 = vpack.c.b16 %v1804, %v1780
    %v2285 = vpack.c.b16 %v1805, %v1781
    %v2286 = vpack.c.b16 %v1806, %v1782
    %v2287 = vpack.c.b16 %v1807, %v1783
    %v2288 = vpack.c.b16 %v1808, %v1784
    %v2289 = vpack.c.b16 %v1809, %v1785
    %v2290 = vpack.c.b16 %v1810, %v1786
    %v2291 = vpack.c.b16 %v1811, %v1787
    %v2292 = vpack.c.b16 %v1812, %v1788
    %v2293 = vpack.c.b16 %v1813, %v1789
    %v2294 = vpack.c.b16 %v1814, %v1790
    %v2295 = vpack.c.b16 %v1815, %v1791
    %v2296 = vpack.c.b16 %v1816, %v1792
    %v2297 = vpack.c.b16 %v1817, %v1793
    %v2298 = vpack.c.b16 %v1818, %v1794
    %v2299 = vpack.c.b16 %v1819, %v1795
    %v2300 = vpack.c.b16 %v1820, %v1796
    %v2301 = vpack.c.b16 %v1821, %v1797
    %v2302 = vpack.c.b16 %v1822, %v1798
    %v2303 = vpack.c.b16 %v1823, %v1799
    %v2304 = vpack.c.b16 %v1824, %v1800
    %v2305 = vpack.c.b16 %v1825, %v1801
    %v2306 = vpack.c.b16 %v1850, %v1826
    %v2307 = vpack.c.b16 %v1851, %v1827
    %v2308 = vpack.c.b16 %v1852, %v1828
    %v2309 = vpack.c.b16 %v1853, %v1829
    %v2310 = vpack.c.b16 %v1854, %v1830
    %v2311 = vpack.c.b16 %v1855, %v1831
    %v2312 = vpack.c.b16 %v1856, %v1832
    %v2313 = vpack.c.b16 %v1857, %v1833
    %v2314 = vpack.c.b16 %v1858, %v1834
    %v2315 = vpack.c.b16 %v1859, %v1835
    %v2316 = vpack.c.b16 %v1860, %v1836
    %v2317 = vpack.c.b16 %v1861, %v1837
    %v2318 = vpack.c.b16 %v1862, %v1838
    %v2319 = vpack.c.b16 %v1863, %v1839
    %v2320 = vpack.c.b16 %v1864, %v1840
    %v2321 = vpack.c.b16 %v1865, %v1841
    %v2322 = vpack.c.b16 %v1866, %v1842
    %v2323 = vpack.c.b16 %v1867, %v1843
    %v2324 = vpack.c.b16 %v1868, %v1844
    %v2325 = vpack.c.b16 %v1869, %v1845
    %v2326 = vpack.c.b16 %v1870, %v1846
    %v2327 = vpack.c.b16 %v1871, %v1847
    %v2328 = vpack.c.b16 %v1872, %v1848
    %v2329 = vpack.c.b16 %v1873, %v1849
    %v2330 = vpack.c.b16 %v1898, %v1874
    %v2331 = vpack.c.b16 %v1899, %v1875
    %v2332 = vpack.c.b16 %v1900, %v1876
    %v2333 = vpack.c.b16 %v1901, %v1877
    %v2334 = vpack.c.b16 %v1902, %v1878
    %v2335 = vpack.c.b16 %v1903, %v1879
    %v2336 = vpack.c.b16 %v1904, %v1880
    %v2337 = vpack.c.b16 %v1905, %v1881
    %v2338 = vpack.c.b16 %v1906, %v1882
    %v2339 = vpack.c.b16 %v1907, %v1883
    %v2340 = vpack.c.b16 %v1908, %v1884
    %v2341 = vpack.c.b16 %v1909, %v1885
    %v2342 = vpack.c.b16 %v1910, %v1886
    %v2343 = vpack.c.b16 %v1911, %v1887
    %v2344 = vpack.c.b16 %v1912, %v1888
    %v2345 = vpack.c.b16 %v1913, %v1889
    %v2346 = vpack.c.b16 %v1914, %v1890
    %v2347 = vpack.c.b16 %v1915, %v1891
    %v2348 = vpack.c.b16 %v1916, %v1892
    %v2349 = vpack.c.b16 %v1917, %v1893
    %v2350 = vpack.c.b16 %v1918, %v1894
    %v2351 = vpack.c.b16 %v1919, %v1895
    %v2352 = vpack.c.b16 %v1920, %v1896
    %v2353 = vpack.c.b16 %v1921, %v1897
    %v2354 = vpack.c.b16 %v1946, %v1922
    %v2355 = vpack.c.b16 %v1947, %v1923
    %v2356 = vpack.c.b16 %v1948, %v1924
    %v2357 = vpack.c.b16 %v1949, %v1925
    %v2358 = vpack.c.b16 %v1950, %v1926
    %v2359 = vpack.c.b16 %v1951, %v1927
    %v2360 = vpack.c.b16 %v1952, %v1928
    %v2361 = vpack.c.b16 %v1953, %v1929
    %v2362 = vpack.c.b16 %v1954, %v1930
    %v2363 = vpack.c.b16 %v1955, %v1931
    %v2364 = vpack.c.b16 %v1956, %v1932
    %v2365 = vpack.c.b16 %v1957, %v1933
    %v2366 = vpack.c.b16 %v1958, %v1934
    %v2367 = vpack.c.b16 %v1959, %v1935
    %v2368 = vpack.c.b16 %v1960, %v1936
    %v2369 = vpack.c.b16 %v1961, %v1937
    %v2370 = vpack.c.b16 %v1962, %v1938
    %v2371 = vpack.c.b16 %v1963, %v1939
    %v2372 = vpack.c.b16 %v1964, %v1940
    %v2373 = vpack.c.b16 %v1965, %v1941
    %v2374 = vpack.c.b16 %v1966, %v1942
    %v2375 = vpack.c.b16 %v1967, %v1943
    %v2376 = vpack.c.b16 %v1968, %v1944
    %v2377 = vpack.c.b16 %v1969, %v1945
    %v2378 = vpack.c.b16 %v1994, %v1970
    %v2379 = vpack.c.b16 %v1995, %v1971
    %v2380 = vpack.c.b16 %v1996, %v1972
    %v2381 = vpack.c.b16 %v1997, %v1973
    %v2382 = vpack.c.b16 %v1998, %v1974
    %v2383 = vpack.c.b16 %v1999, %v1975
    %v2384 = vpack.c.b16 %v2000, %v1976
    %v2385 = vpack.c.b16 %v2001, %v1977
    %v2386 = vpack.c.b16 %v2002, %v1978
    %v2387 = vpack.c.b16 %v2003, %v1979
    %v2388 = vpack.c.b16 %v2004, %v1980
    %v2389 = vpack.c.b16 %v2005, %v1981
    %v2390 = vpack.c.b16 %v2006, %v1982
    %v2391 = vpack.c.b16 %v2007, %v1983
    %v2392 = vpack.c.b16 %v2008, %v1984
    %v2393 = vpack.c.b16 %v2009, %v1985
    %v2394 = vpack.c.b16 %v2010, %v1986
    %v2395 = vpack.c.b16 %v2011, %v1987
    %v2396 = vpack.c.b16 %v2012, %v1988
    %v2397 = vpack.c.b16 %v2013, %v1989
    %v2398 = vpack.c.b16 %v2014, %v1990
    %v2399 = vpack.c.b16 %v2015, %v1991
    %v2400 = vpack.c.b16 %v2016, %v1992
    %v2401 = vpack.c.b16 %v2017, %v1993
    %v3170 = vunpack.c.l.b16 %v470
    %v3171 = vunpack.c.h.b16 %v470
    %v3172 = vunpack.c.l.b16 %v471
    %v3173 = vunpack.c.h.b16 %v471
    %v3174 = vunpack.c.l.b16 %v472
    %v3175 = vunpack.c.h.b16 %v472
    %v3176 = vunpack.c.l.b16 %v473
    %v3177 = vunpack.c.h.b16 %v473
    %v3178 = vunpack.c.l.b16 %v474
    %v3179 = vunpack.c.h.b16 %v474
    %v3180 = vunpack.c.l.b16 %v475
    %v3181 = vunpack.c.h.b16 %v475
    %v3182 = vunpack.c.l.b16 %v476
    %v3183 = vunpack.c.h.b16 %v476
    %v3184 = vunpack.c.l.b16 %v477
    %v3185 = vunpack.c.h.b16 %v477
    %v3186 = vunpack.c.l.b16 %v478
    %v3187 = vunpack.c.h.b16 %v478
    %v3188 = vunpack.c.l.b16 %v479
    %v3189 = vunpack.c.h.b16 %v479
    %v3190 = vunpack.c.l.b16 %v480
    %v3191 = vunpack.c.h.b16 %v480
    %v3192 = vunpack.c.l.b16 %v481
    %v3193 = vunpack.c.h.b16 %v481
    %v3194 = vunpack.c.l.b16 %v482
    %v3195 = vunpack.c.h.b16 %v482
    %v3196 = vunpack.c.l.b16 %v483
    %v3197 = vunpack.c.h.b16 %v483
    %v3198 = vunpack.c.l.b16 %v484
    %v3199 = vunpack.c.h.b16 %v484
    %v3200 = vunpack.c.l.b16 %v485
    %v3201 = vunpack.c.h.b16 %v485
    %v3202 = vunpack.c.l.b16 %v486
    %v3203 = vunpack.c.h.b16 %v486
    %v3204 = vunpack.c.l.b16 %v487
    %v3205 = vunpack.c.h.b16 %v487
    %v3206 = vunpack.c.l.b16 %v488
    %v3207 = vunpack.c.h.b16 %v488
    %v3208 = vunpack.c.l.b16 %v489
    %v3209 = vunpack.c.h.b16 %v489
    %v3210 = vunpack.c.l.b16 %v490
    %v3211 = vunpack.c.h.b16 %v490
    %v3212 = vunpack.c.l.b16 %v491
    %v3213 = vunpack.c.h.b16 %v491
    %v3214 = vunpack.c.l.b16 %v492
    %v3215 = vunpack.c.h.b16 %v492
    %v3216 = vunpack.c.l.b16 %v493
    %v3217 = vunpack.c.h.b16 %v493
    %v3218 = vunpack.c.l.b16 %v494
    %v3219 = vunpack.c.h.b16 %v494
    %v3220 = vunpack.c.l.b16 %v495
    %v3221 = vunpack.c.h.b16 %v495
    %v3222 = vunpack.c.l.b16 %v496
    %v3223 = vunpack.c.h.b16 %v496
    %v3224 = vunpack.c.l.b16 %v497
    %v3225 = vunpack.c.h.b16 %v497
    %v3226 = vunpack.c.l.b16 %v498
    %v3227 = vunpack.c.h.b16 %v498
    %v3228 = vunpack.c.l.b16 %v499
    %v3229 = vunpack.c.h.b16 %v499
    %v3230 = vunpack.c.l.b16 %v500
    %v3231 = vunpack.c.h.b16 %v500
    %v3232 = vunpack.c.l.b16 %v501
    %v3233 = vunpack.c.h.b16 %v501
    %v3234 = vunpack.c.l.b16 %v502
    %v3235 = vunpack.c.h.b16 %v502
    %v3236 = vunpack.c.l.b16 %v503
    %v3237 = vunpack.c.h.b16 %v503
    %v3238 = vunpack.c.l.b16 %v504
    %v3239 = vunpack.c.h.b16 %v504
    %v3240 = vunpack.c.l.b16 %v505
    %v3241 = vunpack.c.h.b16 %v505
    %v3242 = vunpack.c.l.b16 %v506
    %v3243 = vunpack.c.h.b16 %v506
    %v3244 = vunpack.c.l.b16 %v507
    %v3245 = vunpack.c.h.b16 %v507
    %v3246 = vunpack.c.l.b16 %v508
    %v3247 = vunpack.c.h.b16 %v508
    %v3248 = vunpack.c.l.b16 %v509
    %v3249 = vunpack.c.h.b16 %v509
    %v3250 = vunpack.c.l.b16 %v510
    %v3251 = vunpack.c.h.b16 %v510
    %v3252 = vunpack.c.l.b16 %v511
    %v3253 = vunpack.c.h.b16 %v511
    %v3254 = vunpack.c.l.b16 %v512
    %v3255 = vunpack.c.h.b16 %v512
    %v3256 = vunpack.c.l.b16 %v513
    %v3257 = vunpack.c.h.b16 %v513
    %v3258 = vunpack.c.l.b16 %v514
    %v3259 = vunpack.c.h.b16 %v514
    %v3260 = vunpack.c.l.b16 %v515
    %v3261 = vunpack.c.h.b16 %v515
    %v3262 = vunpack.c.l.b16 %v516
    %v3263 = vunpack.c.h.b16 %v516
    %v3264 = vunpack.c.l.b16 %v517
    %v3265 = vunpack.c.h.b16 %v517
    %v3266 = vunpack.c.l.b16 %v518
    %v3267 = vunpack.c.h.b16 %v518
    %v3268 = vunpack.c.l.b16 %v519
    %v3269 = vunpack.c.h.b16 %v519
    %v3270 = vunpack.c.l.b16 %v520
    %v3271 = vunpack.c.h.b16 %v520
    %v3272 = vunpack.c.l.b16 %v521
    %v3273 = vunpack.c.h.b16 %v521
    %v3274 = vunpack.c.l.b16 %v522
    %v3275 = vunpack.c.h.b16 %v522
    %v3276 = vunpack.c.l.b16 %v523
    %v3277 = vunpack.c.h.b16 %v523
    %v3278 = vunpack.c.l.b16 %v524
    %v3279 = vunpack.c.h.b16 %v524
    %v3280 = vunpack.c.l.b16 %v525
    %v3281 = vunpack.c.h.b16 %v525
    %v3282 = vunpack.c.l.b16 %v526
    %v3283 = vunpack.c.h.b16 %v526
    %v3284 = vunpack.c.l.b16 %v527
    %v3285 = vunpack.c.h.b16 %v527
    %v3286 = vunpack.c.l.b16 %v528
    %v3287 = vunpack.c.h.b16 %v528
    %v3288 = vunpack.c.l.b16 %v529
    %v3289 = vunpack.c.h.b16 %v529
    %v3290 = vunpack.c.l.b16 %v530
    %v3291 = vunpack.c.h.b16 %v530
    %v3292 = vunpack.c.l.b16 %v531
    %v3293 = vunpack.c.h.b16 %v531
    %v3294 = vunpack.c.l.b16 %v532
    %v3295 = vunpack.c.h.b16 %v532
    %v3296 = vunpack.c.l.b16 %v533
    %v3297 = vunpack.c.h.b16 %v533
    %v3298 = vunpack.c.l.b16 %v534
    %v3299 = vunpack.c.h.b16 %v534
    %v3300 = vunpack.c.l.b16 %v535
    %v3301 = vunpack.c.h.b16 %v535
    %v3302 = vunpack.c.l.b16 %v536
    %v3303 = vunpack.c.h.b16 %v536
    %v3304 = vunpack.c.l.b16 %v537
    %v3305 = vunpack.c.h.b16 %v537
    %v3306 = vunpack.c.l.b16 %v538
    %v3307 = vunpack.c.h.b16 %v538
    %v3308 = vunpack.c.l.b16 %v539
    %v3309 = vunpack.c.h.b16 %v539
    %v3310 = vunpack.c.l.b16 %v540
    %v3311 = vunpack.c.h.b16 %v540
    %v3312 = vunpack.c.l.b16 %v541
    %v3313 = vunpack.c.h.b16 %v541
    %v3314 = vunpack.c.l.b16 %v542
    %v3315 = vunpack.c.h.b16 %v542
    %v3316 = vunpack.c.l.b16 %v543
    %v3317 = vunpack.c.h.b16 %v543
    %v3318 = vunpack.c.l.b16 %v544
    %v3319 = vunpack.c.h.b16 %v544
    %v3320 = vunpack.c.l.b16 %v545
    %v3321 = vunpack.c.h.b16 %v545
    %v3322 = vunpack.c.l.b16 %v546
    %v3323 = vunpack.c.h.b16 %v546
    %v3324 = vunpack.c.l.b16 %v547
    %v3325 = vunpack.c.h.b16 %v547
    %v3326 = vunpack.c.l.b16 %v548
    %v3327 = vunpack.c.h.b16 %v548
    %v3328 = vunpack.c.l.b16 %v549
    %v3329 = vunpack.c.h.b16 %v549
    %v3330 = vunpack.c.l.b16 %v550
    %v3331 = vunpack.c.h.b16 %v550
    %v3332 = vunpack.c.l.b16 %v551
    %v3333 = vunpack.c.h.b16 %v551
    %v3334 = vunpack.c.l.b16 %v552
    %v3335 = vunpack.c.h.b16 %v552
    %v3336 = vunpack.c.l.b16 %v553
    %v3337 = vunpack.c.h.b16 %v553
    %v3338 = vunpack.c.l.b16 %v554
    %v3339 = vunpack.c.h.b16 %v554
    %v3340 = vunpack.c.l.b16 %v555
    %v3341 = vunpack.c.h.b16 %v555
    %v3342 = vunpack.c.l.b16 %v556
    %v3343 = vunpack.c.h.b16 %v556
    %v3344 = vunpack.c.l.b16 %v557
    %v3345 = vunpack.c.h.b16 %v557
    %v3346 = vunpack.c.l.b16 %v558
    %v3347 = vunpack.c.h.b16 %v558
    %v3348 = vunpack.c.l.b16 %v559
    %v3349 = vunpack.c.h.b16 %v559
    %v3350 = vunpack.c.l.b16 %v560
    %v3351 = vunpack.c.h.b16 %v560
    %v3352 = vunpack.c.l.b16 %v561
    %v3353 = vunpack.c.h.b16 %v561
    %v3354 = vunpack.c.l.b16 %v562
    %v3355 = vunpack.c.h.b16 %v562
    %v3356 = vunpack.c.l.b16 %v563
    %v3357 = vunpack.c.h.b16 %v563
    %v3358 = vunpack.c.l.b16 %v564
    %v3359 = vunpack.c.h.b16 %v564
    %v3360 = vunpack.c.l.b16 %v565
    %v3361 = vunpack.c.h.b16 %v565
    %v3362 = vunpack.c.l.b16 %v566
    %v3363 = vunpack.c.h.b16 %v566
    %v3364 = vunpack.c.l.b16 %v567
    %v3365 = vunpack.c.h.b16 %v567
    %v3366 = vunpack.c.l.b16 %v568
    %v3367 = vunpack.c.h.b16 %v568
    %v3368 = vunpack.c.l.b16 %v569
    %v3369 = vunpack.c.h.b16 %v569
    %v3370 = vunpack.c.l.b16 %v570
    %v3371 = vunpack.c.h.b16 %v570
    %v3372 = vunpack.c.l.b16 %v571
    %v3373 = vunpack.c.h.b16 %v571
    %v3374 = vunpack.c.l.b16 %v572
    %v3375 = vunpack.c.h.b16 %v572
    %v3376 = vunpack.c.l.b16 %v573
    %v3377 = vunpack.c.h.b16 %v573
    %v3378 = vunpack.c.l.b16 %v574
    %v3379 = vunpack.c.h.b16 %v574
    %v3380 = vunpack.c.l.b16 %v575
    %v3381 = vunpack.c.h.b16 %v575
    %v3382 = vunpack.c.l.b16 %v576
    %v3383 = vunpack.c.h.b16 %v576
    %v3384 = vunpack.c.l.b16 %v577
    %v3385 = vunpack.c.h.b16 %v577
    %v3386 = vunpack.c.l.b16 %v578
    %v3387 = vunpack.c.h.b16 %v578
    %v3388 = vunpack.c.l.b16 %v579
    %v3389 = vunpack.c.h.b16 %v579
    %v3390 = vunpack.c.l.b16 %v580
    %v3391 = vunpack.c.h.b16 %v580
    %v3392 = vunpack.c.l.b16 %v581
    %v3393 = vunpack.c.h.b16 %v581
    %v3394 = vunpack.c.l.b16 %v582
    %v3395 = vunpack.c.h.b16 %v582
    %v3396 = vunpack.c.l.b16 %v583
    %v3397 = vunpack.c.h.b16 %v583
    %v3398 = vunpack.c.l.b16 %v584
    %v3399 = vunpack.c.h.b16 %v584
    %v3400 = vunpack.c.l.b16 %v585
    %v3401 = vunpack.c.h.b16 %v585
    %v3402 = vunpack.c.l.b16 %v586
    %v3403 = vunpack.c.h.b16 %v586
    %v3404 = vunpack.c.l.b16 %v587
    %v3405 = vunpack.c.h.b16 %v587
    %v3406 = vunpack.c.l.b16 %v588
    %v3407 = vunpack.c.h.b16 %v588
    %v3408 = vunpack.c.l.b16 %v589
    %v3409 = vunpack.c.h.b16 %v589
    %v3410 = vunpack.c.l.b16 %v590
    %v3411 = vunpack.c.h.b16 %v590
    %v3412 = vunpack.c.l.b16 %v591
    %v3413 = vunpack.c.h.b16 %v591
    %v3414 = vunpack.c.l.b16 %v592
    %v3415 = vunpack.c.h.b16 %v592
    %v3416 = vunpack.c.l.b16 %v593
    %v3417 = vunpack.c.h.b16 %v593
    %v3418 = vunpack.c.l.b16 %v594
    %v3419 = vunpack.c.h.b16 %v594
    %v3420 = vunpack.c.l.b16 %v595
    %v3421 = vunpack.c.h.b16 %v595
    %v3422 = vunpack.c.l.b16 %v596
    %v3423 = vunpack.c.h.b16 %v596
    %v3424 = vunpack.c.l.b16 %v597
    %v3425 = vunpack.c.h.b16 %v597
    %v3426 = vunpack.c.l.b16 %v598
    %v3427 = vunpack.c.h.b16 %v598
    %v3428 = vunpack.c.l.b16 %v599
    %v3429 = vunpack.c.h.b16 %v599
    %v3430 = vunpack.c.l.b16 %v600
    %v3431 = vunpack.c.h.b16 %v600
    %v3432 = vunpack.c.l.b16 %v601
    %v3433 = vunpack.c.h.b16 %v601
    %v3434 = vunpack.c.l.b16 %v602
    %v3435 = vunpack.c.h.b16 %v602
    %v3436 = vunpack.c.l.b16 %v603
    %v3437 = vunpack.c.h.b16 %v603
    %v3438 = vunpack.c.l.b16 %v604
    %v3439 = vunpack.c.h.b16 %v604
    %v3440 = vunpack.c.l.b16 %v605
    %v3441 = vunpack.c.h.b16 %v605
    %v3442 = vunpack.c.l.b16 %v606
    %v3443 = vunpack.c.h.b16 %v606
    %v3444 = vunpack.c.l.b16 %v607
    %v3445 = vunpack.c.h.b16 %v607
    %v3446 = vunpack.c.l.b16 %v608
    %v3447 = vunpack.c.h.b16 %v608
    %v3448 = vunpack.c.l.b16 %v609
    %v3449 = vunpack.c.h.b16 %v609
    %v3450 = vunpack.c.l.b16 %v610
    %v3451 = vunpack.c.h.b16 %v610
    %v3452 = vunpack.c.l.b16 %v611
    %v3453 = vunpack.c.h.b16 %v611
    %v3454 = vunpack.c.l.b16 %v612
    %v3455 = vunpack.c.h.b16 %v612
    %v3456 = vunpack.c.l.b16 %v613
    %v3457 = vunpack.c.h.b16 %v613
    %v3458 = vunpack.c.l.b16 %v614
    %v3459 = vunpack.c.h.b16 %v614
    %v3460 = vunpack.c.l.b16 %v615
    %v3461 = vunpack.c.h.b16 %v615
    %v3462 = vunpack.c.l.b16 %v616
    %v3463 = vunpack.c.h.b16 %v616
    %v3464 = vunpack.c.l.b16 %v617
    %v3465 = vunpack.c.h.b16 %v617
    %v3466 = vunpack.c.l.b16 %v618
    %v3467 = vunpack.c.h.b16 %v618
    %v3468 = vunpack.c.l.b16 %v619
    %v3469 = vunpack.c.h.b16 %v619
    %v3470 = vunpack.c.l.b16 %v620
    %v3471 = vunpack.c.h.b16 %v620
    %v3472 = vunpack.c.l.b16 %v621
    %v3473 = vunpack.c.h.b16 %v621
    %v3474 = vunpack.c.l.b16 %v622
    %v3475 = vunpack.c.h.b16 %v622
    %v3476 = vunpack.c.l.b16 %v623
    %v3477 = vunpack.c.h.b16 %v623
    %v3478 = vunpack.c.l.b16 %v624
    %v3479 = vunpack.c.h.b16 %v624
    %v3480 = vunpack.c.l.b16 %v625
    %v3481 = vunpack.c.h.b16 %v625
    %v3482 = vunpack.c.l.b16 %v626
    %v3483 = vunpack.c.h.b16 %v626
    %v3484 = vunpack.c.l.b16 %v627
    %v3485 = vunpack.c.h.b16 %v627
    %v3486 = vunpack.c.l.b16 %v628
    %v3487 = vunpack.c.h.b16 %v628
    %v3488 = vunpack.c.l.b16 %v629
    %v3489 = vunpack.c.h.b16 %v629
    %v3490 = vunpack.c.l.b16 %v630
    %v3491 = vunpack.c.h.b16 %v630
    %v3492 = vunpack.c.l.b16 %v631
    %v3493 = vunpack.c.h.b16 %v631
    %v3494 = vunpack.c.l.b16 %v632
    %v3495 = vunpack.c.h.b16 %v632
    %v3496 = vunpack.c.l.b16 %v633
    %v3497 = vunpack.c.h.b16 %v633
    %v3498 = vunpack.c.l.b16 %v634
    %v3499 = vunpack.c.h.b16 %v634
    %v3500 = vunpack.c.l.b16 %v635
    %v3501 = vunpack.c.h.b16 %v635
    %v3502 = vunpack.c.l.b16 %v636
    %v3503 = vunpack.c.h.b16 %v636
    %v3504 = vunpack.c.l.b16 %v637
    %v3505 = vunpack.c.h.b16 %v637
    %v3506 = vunpack.c.l.b16 %v638
    %v3507 = vunpack.c.h.b16 %v638
    %v3508 = vunpack.c.l.b16 %v639
    %v3509 = vunpack.c.h.b16 %v639
    %v3510 = vunpack.c.l.b16 %v640
    %v3511 = vunpack.c.h.b16 %v640
    %v3512 = vunpack.c.l.b16 %v641
    %v3513 = vunpack.c.h.b16 %v641
    %v3514 = vunpack.c.l.b16 %v642
    %v3515 = vunpack.c.h.b16 %v642
    %v3516 = vunpack.c.l.b16 %v643
    %v3517 = vunpack.c.h.b16 %v643
    %v3518 = vunpack.c.l.b16 %v644
    %v3519 = vunpack.c.h.b16 %v644
    %v3520 = vunpack.c.l.b16 %v645
    %v3521 = vunpack.c.h.b16 %v645
    %v3522 = vunpack.c.l.b16 %v646
    %v3523 = vunpack.c.h.b16 %v646
    %v3524 = vunpack.c.l.b16 %v647
    %v3525 = vunpack.c.h.b16 %v647
    %v3526 = vunpack.c.l.b16 %v648
    %v3527 = vunpack.c.h.b16 %v648
    %v3528 = vunpack.c.l.b16 %v649
    %v3529 = vunpack.c.h.b16 %v649
    %v3530 = vunpack.c.l.b16 %v650
    %v3531 = vunpack.c.h.b16 %v650
    %v3532 = vunpack.c.l.b16 %v651
    %v3533 = vunpack.c.h.b16 %v651
    %v3534 = vunpack.c.l.b16 %v652
    %v3535 = vunpack.c.h.b16 %v652
    %v3536 = vunpack.c.l.b16 %v653
    %v3537 = vunpack.c.h.b16 %v653
    %v3538 = vunpack.c.l.b16 %v654
    %v3539 = vunpack.c.h.b16 %v654
    %v3540 = vunpack.c.l.b16 %v655
    %v3541 = vunpack.c.h.b16 %v655
    %v3542 = vunpack.c.l.b16 %v656
    %v3543 = vunpack.c.h.b16 %v656
    %v3544 = vunpack.c.l.b16 %v657
    %v3545 = vunpack.c.h.b16 %v657
    %v3546 = vunpack.c.l.b16 %v658
    %v3547 = vunpack.c.h.b16 %v658
    %v3548 = vunpack.c.l.b16 %v659
    %v3549 = vunpack.c.h.b16 %v659
    %v3550 = vunpack.c.l.b16 %v660
    %v3551 = vunpack.c.h.b16 %v660
    %v3552 = vunpack.c.l.b16 %v661
    %v3553 = vunpack.c.h.b16 %v661
    %v3554 = vunpack.c.l.b16 %v662
    %v3555 = vunpack.c.h.b16 %v662
    %v3556 = vunpack.c.l.b16 %v663
    %v3557 = vunpack.c.h.b16 %v663
    %v3558 = vunpack.c.l.b16 %v664
    %v3559 = vunpack.c.h.b16 %v664
    %v3560 = vunpack.c.l.b16 %v665
    %v3561 = vunpack.c.h.b16 %v665
    %v3562 = vunpack.c.l.b16 %v666
    %v3563 = vunpack.c.h.b16 %v666
    %v3564 = vunpack.c.l.b16 %v667
    %v3565 = vunpack.c.h.b16 %v667
    %v3566 = vunpack.c.l.b16 %v668
    %v3567 = vunpack.c.h.b16 %v668
    %v3568 = vunpack.c.l.b16 %v669
    %v3569 = vunpack.c.h.b16 %v669
    %v3570 = vunpack.c.l.b16 %v670
    %v3571 = vunpack.c.h.b16 %v670
    %v3572 = vunpack.c.l.b16 %v671
    %v3573 = vunpack.c.h.b16 %v671
    %v3574 = vunpack.c.l.b16 %v672
    %v3575 = vunpack.c.h.b16 %v672
    %v3576 = vunpack.c.l.b16 %v673
    %v3577 = vunpack.c.h.b16 %v673
    %v3578 = vunpack.c.l.b16 %v674
    %v3579 = vunpack.c.h.b16 %v674
    %v3580 = vunpack.c.l.b16 %v675
    %v3581 = vunpack.c.h.b16 %v675
    %v3582 = vunpack.c.l.b16 %v676
    %v3583 = vunpack.c.h.b16 %v676
    %v3584 = vunpack.c.l.b16 %v677
    %v3585 = vunpack.c.h.b16 %v677
    %v3586 = vunpack.c.l.b16 %v678
    %v3587 = vunpack.c.h.b16 %v678
    %v3588 = vunpack.c.l.b16 %v679
    %v3589 = vunpack.c.h.b16 %v679
    %v3590 = vunpack.c.l.b16 %v680
    %v3591 = vunpack.c.h.b16 %v680
    %v3592 = vunpack.c.l.b16 %v681
    %v3593 = vunpack.c.h.b16 %v681
    %v3594 = vunpack.c.l.b16 %v682
    %v3595 = vunpack.c.h.b16 %v682
    %v3596 = vunpack.c.l.b16 %v683
    %v3597 = vunpack.c.h.b16 %v683
    %v3598 = vunpack.c.l.b16 %v684
    %v3599 = vunpack.c.h.b16 %v684
    %v3600 = vunpack.c.l.b16 %v685
    %v3601 = vunpack.c.h.b16 %v685
    %v3602 = vunpack.c.l.b16 %v686
    %v3603 = vunpack.c.h.b16 %v686
    %v3604 = vunpack.c.l.b16 %v687
    %v3605 = vunpack.c.h.b16 %v687
    %v3606 = vunpack.c.l.b16 %v688
    %v3607 = vunpack.c.h.b16 %v688
    %v3608 = vunpack.c.l.b16 %v689
    %v3609 = vunpack.c.h.b16 %v689
    %v3610 = vunpack.c.l.b16 %v690
    %v3611 = vunpack.c.h.b16 %v690
    %v3612 = vunpack.c.l.b16 %v691
    %v3613 = vunpack.c.h.b16 %v691
    %v3614 = vunpack.c.l.b16 %v692
    %v3615 = vunpack.c.h.b16 %v692
    %v3616 = vunpack.c.l.b16 %v693
    %v3617 = vunpack.c.h.b16 %v693
    %v3618 = vunpack.c.l.b16 %v694
    %v3619 = vunpack.c.h.b16 %v694
    %v3620 = vunpack.c.l.b16 %v695
    %v3621 = vunpack.c.h.b16 %v695
    %v3622 = vunpack.c.l.b16 %v696
    %v3623 = vunpack.c.h.b16 %v696
    %v3624 = vunpack.c.l.b16 %v697
    %v3625 = vunpack.c.h.b16 %v697
    %v3626 = vunpack.c.l.b16 %v698
    %v3627 = vunpack.c.h.b16 %v698
    %v3628 = vunpack.c.l.b16 %v699
    %v3629 = vunpack.c.h.b16 %v699
    %v3630 = vunpack.c.l.b16 %v700
    %v3631 = vunpack.c.h.b16 %v700
    %v3632 = vunpack.c.l.b16 %v701
    %v3633 = vunpack.c.h.b16 %v701
    %v3634 = vunpack.c.l.b16 %v702
    %v3635 = vunpack.c.h.b16 %v702
    %v3636 = vunpack.c.l.b16 %v703
    %v3637 = vunpack.c.h.b16 %v703
    %v3638 = vunpack.c.l.b16 %v704
    %v3639 = vunpack.c.h.b16 %v704
    %v3640 = vunpack.c.l.b16 %v705
    %v3641 = vunpack.c.h.b16 %v705
    %v3642 = vunpack.c.l.b16 %v706
    %v3643 = vunpack.c.h.b16 %v706
    %v3644 = vunpack.c.l.b16 %v707
    %v3645 = vunpack.c.h.b16 %v707
    %v3646 = vunpack.c.l.b16 %v708
    %v3647 = vunpack.c.h.b16 %v708
    %v3648 = vunpack.c.l.b16 %v709
    %v3649 = vunpack.c.h.b16 %v709
    %v3650 = vunpack.c.l.b16 %v710
    %v3651 = vunpack.c.h.b16 %v710
    %v3652 = vunpack.c.l.b16 %v711
    %v3653 = vunpack.c.h.b16 %v711
    %v3654 = vunpack.c.l.b16 %v712
    %v3655 = vunpack.c.h.b16 %v712
    %v3656 = vunpack.c.l.b16 %v713
    %v3657 = vunpack.c.h.b16 %v713
    %v3658 = vunpack.c.l.b16 %v714
    %v3659 = vunpack.c.h.b16 %v714
    %v3660 = vunpack.c.l.b16 %v715
    %v3661 = vunpack.c.h.b16 %v715
    %v3662 = vunpack.c.l.b16 %v716
    %v3663 = vunpack.c.h.b16 %v716
    %v3664 = vunpack.c.l.b16 %v717
    %v3665 = vunpack.c.h.b16 %v717
    %v3666 = vunpack.c.l.b16 %v718
    %v3667 = vunpack.c.h.b16 %v718
    %v3668 = vunpack.c.l.b16 %v719
    %v3669 = vunpack.c.h.b16 %v719
    %v3670 = vunpack.c.l.b16 %v720
    %v3671 = vunpack.c.h.b16 %v720
    %v3672 = vunpack.c.l.b16 %v721
    %v3673 = vunpack.c.h.b16 %v721
    %v3674 = vunpack.c.l.b16 %v722
    %v3675 = vunpack.c.h.b16 %v722
    %v3676 = vunpack.c.l.b16 %v723
    %v3677 = vunpack.c.h.b16 %v723
    %v3678 = vunpack.c.l.b16 %v724
    %v3679 = vunpack.c.h.b16 %v724
    %v3680 = vunpack.c.l.b16 %v725
    %v3681 = vunpack.c.h.b16 %v725
    %v3682 = vunpack.c.l.b16 %v726
    %v3683 = vunpack.c.h.b16 %v726
    %v3684 = vunpack.c.l.b16 %v727
    %v3685 = vunpack.c.h.b16 %v727
    %v3686 = vunpack.c.l.b16 %v728
    %v3687 = vunpack.c.h.b16 %v728
    %v3688 = vunpack.c.l.b16 %v729
    %v3689 = vunpack.c.h.b16 %v729
    %v3690 = vunpack.c.l.b16 %v730
    %v3691 = vunpack.c.h.b16 %v730
    %v3692 = vunpack.c.l.b16 %v731
    %v3693 = vunpack.c.h.b16 %v731
    %v3694 = vunpack.c.l.b16 %v732
    %v3695 = vunpack.c.h.b16 %v732
    %v3696 = vunpack.c.l.b16 %v733
    %v3697 = vunpack.c.h.b16 %v733
    %v3698 = vunpack.c.l.b16 %v734
    %v3699 = vunpack.c.h.b16 %v734
    %v3700 = vunpack.c.l.b16 %v735
    %v3701 = vunpack.c.h.b16 %v735
    %v3702 = vunpack.c.l.b16 %v736
    %v3703 = vunpack.c.h.b16 %v736
    %v3704 = vunpack.c.l.b16 %v737
    %v3705 = vunpack.c.h.b16 %v737
    %v3706 = vunpack.c.l.b16 %v738
    %v3707 = vunpack.c.h.b16 %v738
    %v3708 = vunpack.c.l.b16 %v739
    %v3709 = vunpack.c.h.b16 %v739
    %v3710 = vunpack.c.l.b16 %v740
    %v3711 = vunpack.c.h.b16 %v740
    %v3712 = vunpack.c.l.b16 %v741
    %v3713 = vunpack.c.h.b16 %v741
    %v3714 = vunpack.c.l.b16 %v742
    %v3715 = vunpack.c.h.b16 %v742
    %v3716 = vunpack.c.l.b16 %v743
    %v3717 = vunpack.c.h.b16 %v743
    %v3718 = vunpack.c.l.b16 %v744
    %v3719 = vunpack.c.h.b16 %v744
    %v3720 = vunpack.c.l.b16 %v745
    %v3721 = vunpack.c.h.b16 %v745
    %v3722 = vunpack.c.l.b16 %v746
    %v3723 = vunpack.c.h.b16 %v746
    %v3724 = vunpack.c.l.b16 %v747
    %v3725 = vunpack.c.h.b16 %v747
    %v3726 = vunpack.c.l.b16 %v748
    %v3727 = vunpack.c.h.b16 %v748
    %v3728 = vunpack.c.l.b16 %v749
    %v3729 = vunpack.c.h.b16 %v749
    %v3730 = vunpack.c.l.b16 %v750
    %v3731 = vunpack.c.h.b16 %v750
    %v3732 = vunpack.c.l.b16 %v751
    %v3733 = vunpack.c.h.b16 %v751
    %v3734 = vunpack.c.l.b16 %v752
    %v3735 = vunpack.c.h.b16 %v752
    %v3736 = vunpack.c.l.b16 %v753
    %v3737 = vunpack.c.h.b16 %v753
    %v3738 = vunpack.c.l.b16 %v754
    %v3739 = vunpack.c.h.b16 %v754
    %v3740 = vunpack.c.l.b16 %v755
    %v3741 = vunpack.c.h.b16 %v755
    %v3742 = vunpack.c.l.b16 %v756
    %v3743 = vunpack.c.h.b16 %v756
    %v3744 = vunpack.c.l.b16 %v757
    %v3745 = vunpack.c.h.b16 %v757
    %v3746 = vunpack.c.l.b16 %v758
    %v3747 = vunpack.c.h.b16 %v758
    %v3748 = vunpack.c.l.b16 %v759
    %v3749 = vunpack.c.h.b16 %v759
    %v3750 = vunpack.c.l.b16 %v760
    %v3751 = vunpack.c.h.b16 %v760
    %v3752 = vunpack.c.l.b16 %v761
    %v3753 = vunpack.c.h.b16 %v761
    %v3754 = vunpack.c.l.b16 %v762
    %v3755 = vunpack.c.h.b16 %v762
    %v3756 = vunpack.c.l.b16 %v763
    %v3757 = vunpack.c.h.b16 %v763
    %v3758 = vunpack.c.l.b16 %v764
    %v3759 = vunpack.c.h.b16 %v764
    %v3760 = vunpack.c.l.b16 %v765
    %v3761 = vunpack.c.h.b16 %v765
    %v3762 = vunpack.c.l.b16 %v766
    %v3763 = vunpack.c.h.b16 %v766
    %v3764 = vunpack.c.l.b16 %v767
    %v3765 = vunpack.c.h.b16 %v767
    %v3766 = vunpack.c.l.b16 %v768
    %v3767 = vunpack.c.h.b16 %v768
    %v3768 = vunpack.c.l.b16 %v769
    %v3769 = vunpack.c.h.b16 %v769
    %v3770 = vunpack.c.l.b16 %v770
    %v3771 = vunpack.c.h.b16 %v770
    %v3772 = vunpack.c.l.b16 %v771
    %v3773 = vunpack.c.h.b16 %v771
    %v3774 = vunpack.c.l.b16 %v772
    %v3775 = vunpack.c.h.b16 %v772
    %v3776 = vunpack.c.l.b16 %v773
    %v3777 = vunpack.c.h.b16 %v773
    %v3778 = vunpack.c.l.b16 %v774
    %v3779 = vunpack.c.h.b16 %v774
    %v3780 = vunpack.c.l.b16 %v775
    %v3781 = vunpack.c.h.b16 %v775
    %v3782 = vunpack.c.l.b16 %v776
    %v3783 = vunpack.c.h.b16 %v776
    %v3784 = vunpack.c.l.b16 %v777
    %v3785 = vunpack.c.h.b16 %v777
    %v3786 = vunpack.c.l.b16 %v778
    %v3787 = vunpack.c.h.b16 %v778
    %v3788 = vunpack.c.l.b16 %v779
    %v3789 = vunpack.c.h.b16 %v779
    %v3790 = vunpack.c.l.b16 %v780
    %v3791 = vunpack.c.h.b16 %v780
    %v3792 = vunpack.c.l.b16 %v781
    %v3793 = vunpack.c.h.b16 %v781
    %v3794 = vunpack.c.l.b16 %v782
    %v3795 = vunpack.c.h.b16 %v782
    %v3796 = vunpack.c.l.b16 %v783
    %v3797 = vunpack.c.h.b16 %v783
    %v3798 = vunpack.c.l.b16 %v784
    %v3799 = vunpack.c.h.b16 %v784
    %v3800 = vunpack.c.l.b16 %v785
    %v3801 = vunpack.c.h.b16 %v785
    %v3802 = vunpack.c.l.b16 %v786
    %v3803 = vunpack.c.h.b16 %v786
    %v3804 = vunpack.c.l.b16 %v787
    %v3805 = vunpack.c.h.b16 %v787
    %v3806 = vunpack.c.l.b16 %v788
    %v3807 = vunpack.c.h.b16 %v788
    %v3808 = vunpack.c.l.b16 %v789
    %v3809 = vunpack.c.h.b16 %v789
    %v3810 = vunpack.c.l.b16 %v790
    %v3811 = vunpack.c.h.b16 %v790
    %v3812 = vunpack.c.l.b16 %v791
    %v3813 = vunpack.c.h.b16 %v791
    %v3814 = vunpack.c.l.b16 %v792
    %v3815 = vunpack.c.h.b16 %v792
    %v3816 = vunpack.c.l.b16 %v793
    %v3817 = vunpack.c.h.b16 %v793
    %v3818 = vunpack.c.l.b16 %v794
    %v3819 = vunpack.c.h.b16 %v794
    %v3820 = vunpack.c.l.b16 %v795
    %v3821 = vunpack.c.h.b16 %v795
    %v3822 = vunpack.c.l.b16 %v796
    %v3823 = vunpack.c.h.b16 %v796
    %v3824 = vunpack.c.l.b16 %v797
    %v3825 = vunpack.c.h.b16 %v797
    %v3826 = vunpack.c.l.b16 %v798
    %v3827 = vunpack.c.h.b16 %v798
    %v3828 = vunpack.c.l.b16 %v799
    %v3829 = vunpack.c.h.b16 %v799
    %v3830 = vunpack.c.l.b16 %v800
    %v3831 = vunpack.c.h.b16 %v800
    %v3832 = vunpack.c.l.b16 %v801
    %v3833 = vunpack.c.h.b16 %v801
    %v3834 = vunpack.c.l.b16 %v802
    %v3835 = vunpack.c.h.b16 %v802
    %v3836 = vunpack.c.l.b16 %v803
    %v3837 = vunpack.c.h.b16 %v803
    %v3838 = vunpack.c.l.b16 %v804
    %v3839 = vunpack.c.h.b16 %v804
    %v3840 = vunpack.c.l.b16 %v805
    %v3841 = vunpack.c.h.b16 %v805
    %v3842 = vunpack.c.l.b16 %v806
    %v3843 = vunpack.c.h.b16 %v806
    %v3844 = vunpack.c.l.b16 %v807
    %v3845 = vunpack.c.h.b16 %v807
    %v3846 = vunpack.c.l.b16 %v808
    %v3847 = vunpack.c.h.b16 %v808
    %v3848 = vunpack.c.l.b16 %v809
    %v3849 = vunpack.c.h.b16 %v809
    %v3850 = vunpack.c.l.b16 %v810
    %v3851 = vunpack.c.h.b16 %v810
    %v3852 = vunpack.c.l.b16 %v811
    %v3853 = vunpack.c.h.b16 %v811
    %v3854 = vunpack.c.l.b16 %v812
    %v3855 = vunpack.c.h.b16 %v812
    %v3856 = vunpack.c.l.b16 %v813
    %v3857 = vunpack.c.h.b16 %v813
    %v3858 = vunpack.c.l.b16 %v814
    %v3859 = vunpack.c.h.b16 %v814
    %v3860 = vunpack.c.l.b16 %v815
    %v3861 = vunpack.c.h.b16 %v815
    %v3862 = vunpack.c.l.b16 %v816
    %v3863 = vunpack.c.h.b16 %v816
    %v3864 = vunpack.c.l.b16 %v817
    %v3865 = vunpack.c.h.b16 %v817
    %v3866 = vunpack.c.l.b16 %v818
    %v3867 = vunpack.c.h.b16 %v818
    %v3868 = vunpack.c.l.b16 %v819
    %v3869 = vunpack.c.h.b16 %v819
    %v3870 = vunpack.c.l.b16 %v820
    %v3871 = vunpack.c.h.b16 %v820
    %v3872 = vunpack.c.l.b16 %v821
    %v3873 = vunpack.c.h.b16 %v821
    %v3874 = vunpack.c.l.b16 %v822
    %v3875 = vunpack.c.h.b16 %v822
    %v3876 = vunpack.c.l.b16 %v823
    %v3877 = vunpack.c.h.b16 %v823
    %v3878 = vunpack.c.l.b16 %v824
    %v3879 = vunpack.c.h.b16 %v824
    %v3880 = vunpack.c.l.b16 %v825
    %v3881 = vunpack.c.h.b16 %v825
    %v3882 = vunpack.c.l.b16 %v826
    %v3883 = vunpack.c.h.b16 %v826
    %v3884 = vunpack.c.l.b16 %v827
    %v3885 = vunpack.c.h.b16 %v827
    %v3886 = vunpack.c.l.b16 %v828
    %v3887 = vunpack.c.h.b16 %v828
    %v3888 = vunpack.c.l.b16 %v829
    %v3889 = vunpack.c.h.b16 %v829
    %v3890 = vunpack.c.l.b16 %v830
    %v3891 = vunpack.c.h.b16 %v830
    %v3892 = vunpack.c.l.b16 %v831
    %v3893 = vunpack.c.h.b16 %v831
    %v3894 = vunpack.c.l.b16 %v832
    %v3895 = vunpack.c.h.b16 %v832
    %v3896 = vunpack.c.l.b16 %v833
    %v3897 = vunpack.c.h.b16 %v833
    %v3898 = vunpack.c.l.b16 %v834
    %v3899 = vunpack.c.h.b16 %v834
    %v3900 = vunpack.c.l.b16 %v835
    %v3901 = vunpack.c.h.b16 %v835
    %v3902 = vunpack.c.l.b16 %v836
    %v3903 = vunpack.c.h.b16 %v836
    %v3904 = vunpack.c.l.b16 %v837
    %v3905 = vunpack.c.h.b16 %v837
    %v3906 = vunpack.c.l.b16 %v838
    %v3907 = vunpack.c.h.b16 %v838
    %v3908 = vunpack.c.l.b16 %v839
    %v3909 = vunpack.c.h.b16 %v839
    %v3910 = vunpack.c.l.b16 %v840
    %v3911 = vunpack.c.h.b16 %v840
    %v3912 = vunpack.c.l.b16 %v841
    %v3913 = vunpack.c.h.b16 %v841
    %v3914 = vunpack.c.l.b16 %v842
    %v3915 = vunpack.c.h.b16 %v842
    %v3916 = vunpack.c.l.b16 %v843
    %v3917 = vunpack.c.h.b16 %v843
    %v3918 = vunpack.c.l.b16 %v844
    %v3919 = vunpack.c.h.b16 %v844
    %v3920 = vunpack.c.l.b16 %v845
    %v3921 = vunpack.c.h.b16 %v845
    %v3922 = vunpack.c.l.b16 %v846
    %v3923 = vunpack.c.h.b16 %v846
    %v3924 = vunpack.c.l.b16 %v847
    %v3925 = vunpack.c.h.b16 %v847
    %v3926 = vunpack.c.l.b16 %v848
    %v3927 = vunpack.c.h.b16 %v848
    %v3928 = vunpack.c.l.b16 %v849
    %v3929 = vunpack.c.h.b16 %v849
    %v3930 = vunpack.c.l.b16 %v850
    %v3931 = vunpack.c.h.b16 %v850
    %v3932 = vunpack.c.l.b16 %v851
    %v3933 = vunpack.c.h.b16 %v851
    %v3934 = vunpack.c.l.b16 %v852
    %v3935 = vunpack.c.h.b16 %v852
    %v3936 = vunpack.c.l.b16 %v853
    %v3937 = vunpack.c.h.b16 %v853
    %v3938 = vpack.c.b16 %v3172, %v3170
    %v3939 = vpack.c.b16 %v3173, %v3171
    %v3940 = vpack.c.b16 %v3176, %v3174
    %v3941 = vpack.c.b16 %v3177, %v3175
    %v3942 = vpack.c.b16 %v3180, %v3178
    %v3943 = vpack.c.b16 %v3181, %v3179
    %v3944 = vpack.c.b16 %v3184, %v3182
    %v3945 = vpack.c.b16 %v3185, %v3183
    %v3946 = vpack.c.b16 %v3188, %v3186
    %v3947 = vpack.c.b16 %v3189, %v3187
    %v3948 = vpack.c.b16 %v3192, %v3190
    %v3949 = vpack.c.b16 %v3193, %v3191
    %v3950 = vpack.c.b16 %v3196, %v3194
    %v3951 = vpack.c.b16 %v3197, %v3195
    %v3952 = vpack.c.b16 %v3200, %v3198
    %v3953 = vpack.c.b16 %v3201, %v3199
    %v3954 = vpack.c.b16 %v3204, %v3202
    %v3955 = vpack.c.b16 %v3205, %v3203
    %v3956 = vpack.c.b16 %v3208, %v3206
    %v3957 = vpack.c.b16 %v3209, %v3207
    %v3958 = vpack.c.b16 %v3212, %v3210
    %v3959 = vpack.c.b16 %v3213, %v3211
    %v3960 = vpack.c.b16 %v3216, %v3214
    %v3961 = vpack.c.b16 %v3217, %v3215
    %v3962 = vpack.c.b16 %v3220, %v3218
    %v3963 = vpack.c.b16 %v3221, %v3219
    %v3964 = vpack.c.b16 %v3224, %v3222
    %v3965 = vpack.c.b16 %v3225, %v3223
    %v3966 = vpack.c.b16 %v3228, %v3226
    %v3967 = vpack.c.b16 %v3229, %v3227
    %v3968 = vpack.c.b16 %v3232, %v3230
    %v3969 = vpack.c.b16 %v3233, %v3231
    %v3970 = vpack.c.b16 %v3236, %v3234
    %v3971 = vpack.c.b16 %v3237, %v3235
    %v3972 = vpack.c.b16 %v3240, %v3238
    %v3973 = vpack.c.b16 %v3241, %v3239
    %v3974 = vpack.c.b16 %v3244, %v3242
    %v3975 = vpack.c.b16 %v3245, %v3243
    %v3976 = vpack.c.b16 %v3248, %v3246
    %v3977 = vpack.c.b16 %v3249, %v3247
    %v3978 = vpack.c.b16 %v3252, %v3250
    %v3979 = vpack.c.b16 %v3253, %v3251
    %v3980 = vpack.c.b16 %v3256, %v3254
    %v3981 = vpack.c.b16 %v3257, %v3255
    %v3982 = vpack.c.b16 %v3260, %v3258
    %v3983 = vpack.c.b16 %v3261, %v3259
    %v3984 = vpack.c.b16 %v3264, %v3262
    %v3985 = vpack.c.b16 %v3265, %v3263
    %v3986 = vpack.c.b16 %v3268, %v3266
    %v3987 = vpack.c.b16 %v3269, %v3267
    %v3988 = vpack.c.b16 %v3272, %v3270
    %v3989 = vpack.c.b16 %v3273, %v3271
    %v3990 = vpack.c.b16 %v3276, %v3274
    %v3991 = vpack.c.b16 %v3277, %v3275
    %v3992 = vpack.c.b16 %v3280, %v3278
    %v3993 = vpack.c.b16 %v3281, %v3279
    %v3994 = vpack.c.b16 %v3284, %v3282
    %v3995 = vpack.c.b16 %v3285, %v3283
    %v3996 = vpack.c.b16 %v3288, %v3286
    %v3997 = vpack.c.b16 %v3289, %v3287
    %v3998 = vpack.c.b16 %v3292, %v3290
    %v3999 = vpack.c.b16 %v3293, %v3291
    %v4000 = vpack.c.b16 %v3296, %v3294
    %v4001 = vpack.c.b16 %v3297, %v3295
    %v4002 = vpack.c.b16 %v3300, %v3298
    %v4003 = vpack.c.b16 %v3301, %v3299
    %v4004 = vpack.c.b16 %v3304, %v3302
    %v4005 = vpack.c.b16 %v3305, %v3303
    %v4006 = vpack.c.b16 %v3308, %v3306
    %v4007 = vpack.c.b16 %v3309, %v3307
    %v4008 = vpack.c.b16 %v3312, %v3310
    %v4009 = vpack.c.b16 %v3313, %v3311
    %v4010 = vpack.c.b16 %v3316, %v3314
    %v4011 = vpack.c.b16 %v3317, %v3315
    %v4012 = vpack.c.b16 %v3320, %v3318
    %v4013 = vpack.c.b16 %v3321, %v3319
    %v4014 = vpack.c.b16 %v3324, %v3322
    %v4015 = vpack.c.b16 %v3325, %v3323
    %v4016 = vpack.c.b16 %v3328, %v3326
    %v4017 = vpack.c.b16 %v3329, %v3327
    %v4018 = vpack.c.b16 %v3332, %v3330
    %v4019 = vpack.c.b16 %v3333, %v3331
    %v4020 = vpack.c.b16 %v3336, %v3334
    %v4021 = vpack.c.b16 %v3337, %v3335
    %v4022 = vpack.c.b16 %v3340, %v3338
    %v4023 = vpack.c.b16 %v3341, %v3339
    %v4024 = vpack.c.b16 %v3344, %v3342
    %v4025 = vpack.c.b16 %v3345, %v3343
    %v4026 = vpack.c.b16 %v3348, %v3346
    %v4027 = vpack.c.b16 %v3349, %v3347
    %v4028 = vpack.c.b16 %v3352, %v3350
    %v4029 = vpack.c.b16 %v3353, %v3351
    %v4030 = vpack.c.b16 %v3356, %v3354
    %v4031 = vpack.c.b16 %v3357, %v3355
    %v4032 = vpack.c.b16 %v3360, %v3358
    %v4033 = vpack.c.b16 %v3361, %v3359
    %v4034 = vpack.c.b16 %v3364, %v3362
    %v4035 = vpack.c.b16 %v3365, %v3363
    %v4036 = vpack.c.b16 %v3368, %v3366
    %v4037 = vpack.c.b16 %v3369, %v3367
    %v4038 = vpack.c.b16 %v3372, %v3370
    %v4039 = vpack.c.b16 %v3373, %v3371
    %v4040 = vpack.c.b16 %v3376, %v3374
    %v4041 = vpack.c.b16 %v3377, %v3375
    %v4042 = vpack.c.b16 %v3380, %v3378
    %v4043 = vpack.c.b16 %v3381, %v3379
    %v4044 = vpack.c.b16 %v3384, %v3382
    %v4045 = vpack.c.b16 %v3385, %v3383
    %v4046 = vpack.c.b16 %v3388, %v3386
    %v4047 = vpack.c.b16 %v3389, %v3387
    %v4048 = vpack.c.b16 %v3392, %v3390
    %v4049 = vpack.c.b16 %v3393, %v3391
    %v4050 = vpack.c.b16 %v3396, %v3394
    %v4051 = vpack.c.b16 %v3397, %v3395
    %v4052 = vpack.c.b16 %v3400, %v3398
    %v4053 = vpack.c.b16 %v3401, %v3399
    %v4054 = vpack.c.b16 %v3404, %v3402
    %v4055 = vpack.c.b16 %v3405, %v3403
    %v4056 = vpack.c.b16 %v3408, %v3406
    %v4057 = vpack.c.b16 %v3409, %v3407
    %v4058 = vpack.c.b16 %v3412, %v3410
    %v4059 = vpack.c.b16 %v3413, %v3411
    %v4060 = vpack.c.b16 %v3416, %v3414
    %v4061 = vpack.c.b16 %v3417, %v3415
    %v4062 = vpack.c.b16 %v3420, %v3418
    %v4063 = vpack.c.b16 %v3421, %v3419
    %v4064 = vpack.c.b16 %v3424, %v3422
    %v4065 = vpack.c.b16 %v3425, %v3423
    %v4066 = vpack.c.b16 %v3428, %v3426
    %v4067 = vpack.c.b16 %v3429, %v3427
    %v4068 = vpack.c.b16 %v3432, %v3430
    %v4069 = vpack.c.b16 %v3433, %v3431
    %v4070 = vpack.c.b16 %v3436, %v3434
    %v4071 = vpack.c.b16 %v3437, %v3435
    %v4072 = vpack.c.b16 %v3440, %v3438
    %v4073 = vpack.c.b16 %v3441, %v3439
    %v4074 = vpack.c.b16 %v3444, %v3442
    %v4075 = vpack.c.b16 %v3445, %v3443
    %v4076 = vpack.c.b16 %v3448, %v3446
    %v4077 = vpack.c.b16 %v3449, %v3447
    %v4078 = vpack.c.b16 %v3452, %v3450
    %v4079 = vpack.c.b16 %v3453, %v3451
    %v4080 = vpack.c.b16 %v3456, %v3454
    %v4081 = vpack.c.b16 %v3457, %v3455
    %v4082 = vpack.c.b16 %v3460, %v3458
    %v4083 = vpack.c.b16 %v3461, %v3459
    %v4084 = vpack.c.b16 %v3464, %v3462
    %v4085 = vpack.c.b16 %v3465, %v3463
    %v4086 = vpack.c.b16 %v3468, %v3466
    %v4087 = vpack.c.b16 %v3469, %v3467
    %v4088 = vpack.c.b16 %v3472, %v3470
    %v4089 = vpack.c.b16 %v3473, %v3471
    %v4090 = vpack.c.b16 %v3476, %v3474
    %v4091 = vpack.c.b16 %v3477, %v3475
    %v4092 = vpack.c.b16 %v3480, %v3478
    %v4093 = vpack.c.b16 %v3481, %v3479
    %v4094 = vpack.c.b16 %v3484, %v3482
    %v4095 = vpack.c.b16 %v3485, %v3483
    %v4096 = vpack.c.b16 %v3488, %v3486
    %v4097 = vpack.c.b16 %v3489, %v3487
    %v4098 = vpack.c.b16 %v3492, %v3490
    %v4099 = vpack.c.b16 %v3493, %v3491
    %v4100 = vpack.c.b16 %v3496, %v3494
    %v4101 = vpack.c.b16 %v3497, %v3495
    %v4102 = vpack.c.b16 %v3500, %v3498
    %v4103 = vpack.c.b16 %v3501, %v3499
    %v4104 = vpack.c.b16 %v3504, %v3502
    %v4105 = vpack.c.b16 %v3505, %v3503
    %v4106 = vpack.c.b16 %v3508, %v3506
    %v4107 = vpack.c.b16 %v3509, %v3507
    %v4108 = vpack.c.b16 %v3512, %v3510
    %v4109 = vpack.c.b16 %v3513, %v3511
    %v4110 = vpack.c.b16 %v3516, %v3514
    %v4111 = vpack.c.b16 %v3517, %v3515
    %v4112 = vpack.c.b16 %v3520, %v3518
    %v4113 = vpack.c.b16 %v3521, %v3519
    %v4114 = vpack.c.b16 %v3524, %v3522
    %v4115 = vpack.c.b16 %v3525, %v3523
    %v4116 = vpack.c.b16 %v3528, %v3526
    %v4117 = vpack.c.b16 %v3529, %v3527
    %v4118 = vpack.c.b16 %v3532, %v3530
    %v4119 = vpack.c.b16 %v3533, %v3531
    %v4120 = vpack.c.b16 %v3536, %v3534
    %v4121 = vpack.c.b16 %v3537, %v3535
    %v4122 = vpack.c.b16 %v3540, %v3538
    %v4123 = vpack.c.b16 %v3541, %v3539
    %v4124 = vpack.c.b16 %v3544, %v3542
    %v4125 = vpack.c.b16 %v3545, %v3543
    %v4126 = vpack.c.b16 %v3548, %v3546
    %v4127 = vpack.c.b16 %v3549, %v3547
    %v4128 = vpack.c.b16 %v3552, %v3550
    %v4129 = vpack.c.b16 %v3553, %v3551
    %v4130 = vpack.c.b16 %v3556, %v3554
    %v4131 = vpack.c.b16 %v3557, %v3555
    %v4132 = vpack.c.b16 %v3560, %v3558
    %v4133 = vpack.c.b16 %v3561, %v3559
    %v4134 = vpack.c.b16 %v3564, %v3562
    %v4135 = vpack.c.b16 %v3565, %v3563
    %v4136 = vpack.c.b16 %v3568, %v3566
    %v4137 = vpack.c.b16 %v3569, %v3567
    %v4138 = vpack.c.b16 %v3572, %v3570
    %v4139 = vpack.c.b16 %v3573, %v3571
    %v4140 = vpack.c.b16 %v3576, %v3574
    %v4141 = vpack.c.b16 %v3577, %v3575
    %v4142 = vpack.c.b16 %v3580, %v3578
    %v4143 = vpack.c.b16 %v3581, %v3579
    %v4144 = vpack.c.b16 %v3584, %v3582
    %v4145 = vpack.c.b16 %v3585, %v3583
    %v4146 = vpack.c.b16 %v3588, %v3586
    %v4147 = vpack.c.b16 %v3589, %v3587
    %v4148 = vpack.c.b16 %v3592, %v3590
    %v4149 = vpack.c.b16 %v3593, %v3591
    %v4150 = vpack.c.b16 %v3596, %v3594
    %v4151 = vpack.c.b16 %v3597, %v3595
    %v4152 = vpack.c.b16 %v3600, %v3598
    %v4153 = vpack.c.b16 %v3601, %v3599
    %v4154 = vpack.c.b16 %v3604, %v3602
    %v4155 = vpack.c.b16 %v3605, %v3603
    %v4156 = vpack.c.b16 %v3608, %v3606
    %v4157 = vpack.c.b16 %v3609, %v3607
    %v4158 = vpack.c.b16 %v3612, %v3610
    %v4159 = vpack.c.b16 %v3613, %v3611
    %v4160 = vpack.c.b16 %v3616, %v3614
    %v4161 = vpack.c.b16 %v3617, %v3615
    %v4162 = vpack.c.b16 %v3620, %v3618
    %v4163 = vpack.c.b16 %v3621, %v3619
    %v4164 = vpack.c.b16 %v3624, %v3622
    %v4165 = vpack.c.b16 %v3625, %v3623
    %v4166 = vpack.c.b16 %v3628, %v3626
    %v4167 = vpack.c.b16 %v3629, %v3627
    %v4168 = vpack.c.b16 %v3632, %v3630
    %v4169 = vpack.c.b16 %v3633, %v3631
    %v4170 = vpack.c.b16 %v3636, %v3634
    %v4171 = vpack.c.b16 %v3637, %v3635
    %v4172 = vpack.c.b16 %v3640, %v3638
    %v4173 = vpack.c.b16 %v3641, %v3639
    %v4174 = vpack.c.b16 %v3644, %v3642
    %v4175 = vpack.c.b16 %v3645, %v3643
    %v4176 = vpack.c.b16 %v3648, %v3646
    %v4177 = vpack.c.b16 %v3649, %v3647
    %v4178 = vpack.c.b16 %v3652, %v3650
    %v4179 = vpack.c.b16 %v3653, %v3651
    %v4180 = vpack.c.b16 %v3656, %v3654
    %v4181 = vpack.c.b16 %v3657, %v3655
    %v4182 = vpack.c.b16 %v3660, %v3658
    %v4183 = vpack.c.b16 %v3661, %v3659
    %v4184 = vpack.c.b16 %v3664, %v3662
    %v4185 = vpack.c.b16 %v3665, %v3663
    %v4186 = vpack.c.b16 %v3668, %v3666
    %v4187 = vpack.c.b16 %v3669, %v3667
    %v4188 = vpack.c.b16 %v3672, %v3670
    %v4189 = vpack.c.b16 %v3673, %v3671
    %v4190 = vpack.c.b16 %v3676, %v3674
    %v4191 = vpack.c.b16 %v3677, %v3675
    %v4192 = vpack.c.b16 %v3680, %v3678
    %v4193 = vpack.c.b16 %v3681, %v3679
    %v4194 = vpack.c.b16 %v3684, %v3682
    %v4195 = vpack.c.b16 %v3685, %v3683
    %v4196 = vpack.c.b16 %v3688, %v3686
    %v4197 = vpack.c.b16 %v3689, %v3687
    %v4198 = vpack.c.b16 %v3692, %v3690
    %v4199 = vpack.c.b16 %v3693, %v3691
    %v4200 = vpack.c.b16 %v3696, %v3694
    %v4201 = vpack.c.b16 %v3697, %v3695
    %v4202 = vpack.c.b16 %v3700, %v3698
    %v4203 = vpack.c.b16 %v3701, %v3699
    %v4204 = vpack.c.b16 %v3704, %v3702
    %v4205 = vpack.c.b16 %v3705, %v3703
    %v4206 = vpack.c.b16 %v3708, %v3706
    %v4207 = vpack.c.b16 %v3709, %v3707
    %v4208 = vpack.c.b16 %v3712, %v3710
    %v4209 = vpack.c.b16 %v3713, %v3711
    %v4210 = vpack.c.b16 %v3716, %v3714
    %v4211 = vpack.c.b16 %v3717, %v3715
    %v4212 = vpack.c.b16 %v3720, %v3718
    %v4213 = vpack.c.b16 %v3721, %v3719
    %v4214 = vpack.c.b16 %v3724, %v3722
    %v4215 = vpack.c.b16 %v3725, %v3723
    %v4216 = vpack.c.b16 %v3728, %v3726
    %v4217 = vpack.c.b16 %v3729, %v3727
    %v4218 = vpack.c.b16 %v3732, %v3730
    %v4219 = vpack.c.b16 %v3733, %v3731
    %v4220 = vpack.c.b16 %v3736, %v3734
    %v4221 = vpack.c.b16 %v3737, %v3735
    %v4222 = vpack.c.b16 %v3740, %v3738
    %v4223 = vpack.c.b16 %v3741, %v3739
    %v4224 = vpack.c.b16 %v3744, %v3742
    %v4225 = vpack.c.b16 %v3745, %v3743
    %v4226 = vpack.c.b16 %v3748, %v3746
    %v4227 = vpack.c.b16 %v3749, %v3747
    %v4228 = vpack.c.b16 %v3752, %v3750
    %v4229 = vpack.c.b16 %v3753, %v3751
    %v4230 = vpack.c.b16 %v3756, %v3754
    %v4231 = vpack.c.b16 %v3757, %v3755
    %v4232 = vpack.c.b16 %v3760, %v3758
    %v4233 = vpack.c.b16 %v3761, %v3759
    %v4234 = vpack.c.b16 %v3764, %v3762
    %v4235 = vpack.c.b16 %v3765, %v3763
    %v4236 = vpack.c.b16 %v3768, %v3766
    %v4237 = vpack.c.b16 %v3769, %v3767
    %v4238 = vpack.c.b16 %v3772, %v3770
    %v4239 = vpack.c.b16 %v3773, %v3771
    %v4240 = vpack.c.b16 %v3776, %v3774
    %v4241 = vpack.c.b16 %v3777, %v3775
    %v4242 = vpack.c.b16 %v3780, %v3778
    %v4243 = vpack.c.b16 %v3781, %v3779
    %v4244 = vpack.c.b16 %v3784, %v3782
    %v4245 = vpack.c.b16 %v3785, %v3783
    %v4246 = vpack.c.b16 %v3788, %v3786
    %v4247 = vpack.c.b16 %v3789, %v3787
    %v4248 = vpack.c.b16 %v3792, %v3790
    %v4249 = vpack.c.b16 %v3793, %v3791
    %v4250 = vpack.c.b16 %v3796, %v3794
    %v4251 = vpack.c.b16 %v3797, %v3795
    %v4252 = vpack.c.b16 %v3800, %v3798
    %v4253 = vpack.c.b16 %v3801, %v3799
    %v4254 = vpack.c.b16 %v3804, %v3802
    %v4255 = vpack.c.b16 %v3805, %v3803
    %v4256 = vpack.c.b16 %v3808, %v3806
    %v4257 = vpack.c.b16 %v3809, %v3807
    %v4258 = vpack.c.b16 %v3812, %v3810
    %v4259 = vpack.c.b16 %v3813, %v3811
    %v4260 = vpack.c.b16 %v3816, %v3814
    %v4261 = vpack.c.b16 %v3817, %v3815
    %v4262 = vpack.c.b16 %v3820, %v3818
    %v4263 = vpack.c.b16 %v3821, %v3819
    %v4264 = vpack.c.b16 %v3824, %v3822
    %v4265 = vpack.c.b16 %v3825, %v3823
    %v4266 = vpack.c.b16 %v3828, %v3826
    %v4267 = vpack.c.b16 %v3829, %v3827
    %v4268 = vpack.c.b16 %v3832, %v3830
    %v4269 = vpack.c.b16 %v3833, %v3831
    %v4270 = vpack.c.b16 %v3836, %v3834
    %v4271 = vpack.c.b16 %v3837, %v3835
    %v4272 = vpack.c.b16 %v3840, %v3838
    %v4273 = vpack.c.b16 %v3841, %v3839
    %v4274 = vpack.c.b16 %v3844, %v3842
    %v4275 = vpack.c.b16 %v3845, %v3843
    %v4276 = vpack.c.b16 %v3848, %v3846
    %v4277 = vpack.c.b16 %v3849, %v3847
    %v4278 = vpack.c.b16 %v3852, %v3850
    %v4279 = vpack.c.b16 %v3853, %v3851
    %v4280 = vpack.c.b16 %v3856, %v3854
    %v4281 = vpack.c.b16 %v3857, %v3855
    %v4282 = vpack.c.b16 %v3860, %v3858
    %v4283 = vpack.c.b16 %v3861, %v3859
    %v4284 = vpack.c.b16 %v3864, %v3862
    %v4285 = vpack.c.b16 %v3865, %v3863
    %v4286 = vpack.c.b16 %v3868, %v3866
    %v4287 = vpack.c.b16 %v3869, %v3867
    %v4288 = vpack.c.b16 %v3872, %v3870
    %v4289 = vpack.c.b16 %v3873, %v3871
    %v4290 = vpack.c.b16 %v3876, %v3874
    %v4291 = vpack.c.b16 %v3877, %v3875
    %v4292 = vpack.c.b16 %v3880, %v3878
    %v4293 = vpack.c.b16 %v3881, %v3879
    %v4294 = vpack.c.b16 %v3884, %v3882
    %v4295 = vpack.c.b16 %v3885, %v3883
    %v4296 = vpack.c.b16 %v3888, %v3886
    %v4297 = vpack.c.b16 %v3889, %v3887
    %v4298 = vpack.c.b16 %v3892, %v3890
    %v4299 = vpack.c.b16 %v3893, %v3891
    %v4300 = vpack.c.b16 %v3896, %v3894
    %v4301 = vpack.c.b16 %v3897, %v3895
    %v4302 = vpack.c.b16 %v3900, %v3898
    %v4303 = vpack.c.b16 %v3901, %v3899
    %v4304 = vpack.c.b16 %v3904, %v3902
    %v4305 = vpack.c.b16 %v3905, %v3903
    %v4306 = vpack.c.b16 %v3908, %v3906
    %v4307 = vpack.c.b16 %v3909, %v3907
    %v4308 = vpack.c.b16 %v3912, %v3910
    %v4309 = vpack.c.b16 %v3913, %v3911
    %v4310 = vpack.c.b16 %v3916, %v3914
    %v4311 = vpack.c.b16 %v3917, %v3915
    %v4312 = vpack.c.b16 %v3920, %v3918
    %v4313 = vpack.c.b16 %v3921, %v3919
    %v4314 = vpack.c.b16 %v3924, %v3922
    %v4315 = vpack.c.b16 %v3925, %v3923
    %v4316 = vpack.c.b16 %v3928, %v3926
    %v4317 = vpack.c.b16 %v3929, %v3927
    %v4318 = vpack.c.b16 %v3932, %v3930
    %v4319 = vpack.c.b16 %v3933, %v3931
    %v4320 = vpack.c.b16 %v3936, %v3934
    %v4321 = vpack.c.b16 %v3937, %v3935
    %4706 = vmatprep.subr.bf16.mxu0 %v3953
    %4707 = vmatpush1.bf16.msra.mxu0 %v3952
    %4708 = vmatprep.subr.bf16.mxu0 %v3951
    %4709 = vmatpush1.bf16.msra.mxu0 %v3950
    %4710 = vmatprep.subr.bf16.mxu0 %v3949
    %4711 = vmatpush1.bf16.msra.mxu0 %v3948
    %4712 = vmatprep.subr.bf16.mxu0 %v3947
    %4713 = vmatpush1.bf16.msra.mxu0 %v3946
    %4714 = vmatprep.subr.bf16.mxu0 %v3945
    %4715 = vmatpush1.bf16.msra.mxu0 %v3944
    %4716 = vmatprep.subr.bf16.mxu0 %v3943
    %4717 = vmatpush1.bf16.msra.mxu0 %v3942
    %4718 = vmatprep.subr.bf16.mxu0 %v3941
    %4719 = vmatpush1.bf16.msra.mxu0 %v3940
    %4720 = vmatprep.subr.bf16.mxu0 %v3939
    %4721 = vmatpush1.bf16.msra.mxu0 %v3938
    %4722 = vmatprep.subr.bf16.mxu0 %v3969
    %4723 = vmatpush2.bf16.msra.mxu0 %v3968
    %4724 = vmatprep.subr.bf16.mxu0 %v3967
    %4725 = vmatpush2.bf16.msra.mxu0 %v3966
    %4726 = vmatprep.subr.bf16.mxu0 %v3965
    %4727 = vmatpush2.bf16.msra.mxu0 %v3964
    %4728 = vmatprep.subr.bf16.mxu0 %v3963
    %4729 = vmatpush2.bf16.msra.mxu0 %v3962
    %4730 = vmatprep.subr.bf16.mxu0 %v3961
    %4731 = vmatpush2.bf16.msra.mxu0 %v3960
    %4732 = vmatprep.subr.bf16.mxu0 %v3959
    %4733 = vmatpush2.bf16.msra.mxu0 %v3958
    %4734 = vmatprep.subr.bf16.mxu0 %v3957
    %4735 = vmatpush2.bf16.msra.mxu0 %v3956
    %4736 = vmatprep.subr.bf16.mxu0 %v3955
    %4737 = vmatpush2.bf16.msra.mxu0 %v3954
    %4738 = vmatprep.mubr.bf16.mxu0 %v2019
    %4739 = vmatmul.mubr.bf16.gmra.mxu0 %v2018
    %v4740 = vpop.f32.mrf.mxu0
    %v4741 = vadd.f32 %v859, %v4740
    %v4742 = vpop.f32.mrf.mxu0
    %v4743 = vadd.f32 %v863, %v4742
    %v4744 = vpop.f32.mrf.mxu0
    %v4745 = vadd.f32 %v859, %v4744
    %v4746 = vpop.f32.mrf.mxu0
    %v4747 = vadd.f32 %v863, %v4746
    %4748 = vmatprep.mubr.bf16.mxu0 %v2043
    %4749 = vmatmul.mubr.bf16.gmra.mxu0 %v2042
    %v4750 = vpop.f32.mrf.mxu0
    %v4751 = vadd.f32 %v859, %v4750
    %v4752 = vpop.f32.mrf.mxu0
    %v4753 = vadd.f32 %v863, %v4752
    %v4754 = vpop.f32.mrf.mxu0
    %v4755 = vadd.f32 %v859, %v4754
    %v4756 = vpop.f32.mrf.mxu0
    %v4757 = vadd.f32 %v863, %v4756
    %4758 = vmatprep.mubr.bf16.mxu0 %v2067
    %4759 = vmatmul.mubr.bf16.gmra.mxu0 %v2066
    %v4760 = vpop.f32.mrf.mxu0
    %v4761 = vadd.f32 %v859, %v4760
    %v4762 = vpop.f32.mrf.mxu0
    %v4763 = vadd.f32 %v863, %v4762
    %v4764 = vpop.f32.mrf.mxu0
    %v4765 = vadd.f32 %v859, %v4764
    %v4766 = vpop.f32.mrf.mxu0
    %v4767 = vadd.f32 %v863, %v4766
    %4768 = vmatprep.mubr.bf16.mxu0 %v2091
    %4769 = vmatmul.mubr.bf16.gmra.mxu0 %v2090
    %v4770 = vpop.f32.mrf.mxu0
    %v4771 = vadd.f32 %v859, %v4770
    %v4772 = vpop.f32.mrf.mxu0
    %v4773 = vadd.f32 %v863, %v4772
    %v4774 = vpop.f32.mrf.mxu0
    %v4775 = vadd.f32 %v859, %v4774
    %v4776 = vpop.f32.mrf.mxu0
    %v4777 = vadd.f32 %v863, %v4776
    %4778 = vmatprep.mubr.bf16.mxu0 %v2115
    %4779 = vmatmul.mubr.bf16.gmra.mxu0 %v2114
    %v4780 = vpop.f32.mrf.mxu0
    %v4781 = vadd.f32 %v859, %v4780
    %v4782 = vpop.f32.mrf.mxu0
    %v4783 = vadd.f32 %v863, %v4782
    %v4784 = vpop.f32.mrf.mxu0
    %v4785 = vadd.f32 %v859, %v4784
    %v4786 = vpop.f32.mrf.mxu0
    %v4787 = vadd.f32 %v863, %v4786
    %4788 = vmatprep.mubr.bf16.mxu0 %v2139
    %4789 = vmatmul.mubr.bf16.gmra.mxu0 %v2138
    %v4790 = vpop.f32.mrf.mxu0
    %v4791 = vadd.f32 %v859, %v4790
    %v4792 = vpop.f32.mrf.mxu0
    %v4793 = vadd.f32 %v863, %v4792
    %v4794 = vpop.f32.mrf.mxu0
    %v4795 = vadd.f32 %v859, %v4794
    %v4796 = vpop.f32.mrf.mxu0
    %v4797 = vadd.f32 %v863, %v4796
    %4798 = vmatprep.mubr.bf16.mxu0 %v2163
    %4799 = vmatmul.mubr.bf16.gmra.mxu0 %v2162
    %v4800 = vpop.f32.mrf.mxu0
    %v4801 = vadd.f32 %v859, %v4800
    %v4802 = vpop.f32.mrf.mxu0
    %v4803 = vadd.f32 %v863, %v4802
    %v4804 = vpop.f32.mrf.mxu0
    %v4805 = vadd.f32 %v859, %v4804
    %v4806 = vpop.f32.mrf.mxu0
    %v4807 = vadd.f32 %v863, %v4806
    %4808 = vmatprep.mubr.bf16.mxu0 %v2187
    %4809 = vmatmul.mubr.bf16.gmra.mxu0 %v2186
    %v4810 = vpop.f32.mrf.mxu0
    %v4811 = vadd.f32 %v859, %v4810
    %v4812 = vpop.f32.mrf.mxu0
    %v4813 = vadd.f32 %v863, %v4812
    %v4814 = vpop.f32.mrf.mxu0
    %v4815 = vadd.f32 %v859, %v4814
    %v4816 = vpop.f32.mrf.mxu0
    %v4817 = vadd.f32 %v863, %v4816
    %4818 = vmatprep.mubr.bf16.mxu0 %v2211
    %4819 = vmatmul.mubr.bf16.gmra.mxu0 %v2210
    %v4820 = vpop.f32.mrf.mxu0
    %v4821 = vadd.f32 %v859, %v4820
    %v4822 = vpop.f32.mrf.mxu0
    %v4823 = vadd.f32 %v863, %v4822
    %v4824 = vpop.f32.mrf.mxu0
    %v4825 = vadd.f32 %v859, %v4824
    %v4826 = vpop.f32.mrf.mxu0
    %v4827 = vadd.f32 %v863, %v4826
    %4828 = vmatprep.mubr.bf16.mxu0 %v2235
    %4829 = vmatmul.mubr.bf16.gmra.mxu0 %v2234
    %v4830 = vpop.f32.mrf.mxu0
    %v4831 = vadd.f32 %v859, %v4830
    %v4832 = vpop.f32.mrf.mxu0
    %v4833 = vadd.f32 %v863, %v4832
    %v4834 = vpop.f32.mrf.mxu0
    %v4835 = vadd.f32 %v859, %v4834
    %v4836 = vpop.f32.mrf.mxu0
    %v4837 = vadd.f32 %v863, %v4836
    %4838 = vmatprep.mubr.bf16.mxu0 %v2259
    %4839 = vmatmul.mubr.bf16.gmra.mxu0 %v2258
    %v4840 = vpop.f32.mrf.mxu0
    %v4841 = vadd.f32 %v859, %v4840
    %v4842 = vpop.f32.mrf.mxu0
    %v4843 = vadd.f32 %v863, %v4842
    %v4844 = vpop.f32.mrf.mxu0
    %v4845 = vadd.f32 %v859, %v4844
    %v4846 = vpop.f32.mrf.mxu0
    %v4847 = vadd.f32 %v863, %v4846
    %4848 = vmatprep.mubr.bf16.mxu0 %v2283
    %4849 = vmatmul.mubr.bf16.gmra.mxu0 %v2282
    %v4850 = vpop.f32.mrf.mxu0
    %v4851 = vadd.f32 %v859, %v4850
    %v4852 = vpop.f32.mrf.mxu0
    %v4853 = vadd.f32 %v863, %v4852
    %v4854 = vpop.f32.mrf.mxu0
    %v4855 = vadd.f32 %v859, %v4854
    %v4856 = vpop.f32.mrf.mxu0
    %v4857 = vadd.f32 %v863, %v4856
    %4858 = vmatprep.mubr.bf16.mxu0 %v2307
    %4859 = vmatmul.mubr.bf16.gmra.mxu0 %v2306
    %v4860 = vpop.f32.mrf.mxu0
    %v4861 = vadd.f32 %v859, %v4860
    %v4862 = vpop.f32.mrf.mxu0
    %v4863 = vadd.f32 %v863, %v4862
    %v4864 = vpop.f32.mrf.mxu0
    %v4865 = vadd.f32 %v859, %v4864
    %v4866 = vpop.f32.mrf.mxu0
    %v4867 = vadd.f32 %v863, %v4866
    %4868 = vmatprep.mubr.bf16.mxu0 %v2331
    %4869 = vmatmul.mubr.bf16.gmra.mxu0 %v2330
    %v4870 = vpop.f32.mrf.mxu0
    %v4871 = vadd.f32 %v859, %v4870
    %v4872 = vpop.f32.mrf.mxu0
    %v4873 = vadd.f32 %v863, %v4872
    %v4874 = vpop.f32.mrf.mxu0
    %v4875 = vadd.f32 %v859, %v4874
    %v4876 = vpop.f32.mrf.mxu0
    %v4877 = vadd.f32 %v863, %v4876
    %4878 = vmatprep.mubr.bf16.mxu0 %v2355
    %4879 = vmatmul.mubr.bf16.gmra.mxu0 %v2354
    %v4880 = vpop.f32.mrf.mxu0
    %v4881 = vadd.f32 %v859, %v4880
    %v4882 = vpop.f32.mrf.mxu0
    %v4883 = vadd.f32 %v863, %v4882
    %v4884 = vpop.f32.mrf.mxu0
    %v4885 = vadd.f32 %v859, %v4884
    %v4886 = vpop.f32.mrf.mxu0
    %v4887 = vadd.f32 %v863, %v4886
    %4888 = vmatprep.mubr.bf16.mxu0 %v2379
    %4889 = vmatmul.mubr.bf16.gmra.mxu0 %v2378
    %v4890 = vpop.f32.mrf.mxu0
    %v4891 = vadd.f32 %v859, %v4890
    %v4892 = vpop.f32.mrf.mxu0
    %v4893 = vadd.f32 %v863, %v4892
    %v4894 = vpop.f32.mrf.mxu0
    %v4895 = vadd.f32 %v859, %v4894
    %v4896 = vpop.f32.mrf.mxu0
    %v4897 = vadd.f32 %v863, %v4896
    %4898 = vdwg.mxu0
    %4899 = vmatprep.subr.bf16.mxu0 %v3985
    %4900 = vmatpush1.bf16.msra.mxu0 %v3984
    %4901 = vmatprep.subr.bf16.mxu0 %v3983
    %4902 = vmatpush1.bf16.msra.mxu0 %v3982
    %4903 = vmatprep.subr.bf16.mxu0 %v3981
    %4904 = vmatpush1.bf16.msra.mxu0 %v3980
    %4905 = vmatprep.subr.bf16.mxu0 %v3979
    %4906 = vmatpush1.bf16.msra.mxu0 %v3978
    %4907 = vmatprep.subr.bf16.mxu0 %v3977
    %4908 = vmatpush1.bf16.msra.mxu0 %v3976
    %4909 = vmatprep.subr.bf16.mxu0 %v3975
    %4910 = vmatpush1.bf16.msra.mxu0 %v3974
    %4911 = vmatprep.subr.bf16.mxu0 %v3973
    %4912 = vmatpush1.bf16.msra.mxu0 %v3972
    %4913 = vmatprep.subr.bf16.mxu0 %v3971
    %4914 = vmatpush1.bf16.msra.mxu0 %v3970
    %4915 = vmatprep.subr.bf16.mxu0 %v4001
    %4916 = vmatpush2.bf16.msra.mxu0 %v4000
    %4917 = vmatprep.subr.bf16.mxu0 %v3999
    %4918 = vmatpush2.bf16.msra.mxu0 %v3998
    %4919 = vmatprep.subr.bf16.mxu0 %v3997
    %4920 = vmatpush2.bf16.msra.mxu0 %v3996
    %4921 = vmatprep.subr.bf16.mxu0 %v3995
    %4922 = vmatpush2.bf16.msra.mxu0 %v3994
    %4923 = vmatprep.subr.bf16.mxu0 %v3993
    %4924 = vmatpush2.bf16.msra.mxu0 %v3992
    %4925 = vmatprep.subr.bf16.mxu0 %v3991
    %4926 = vmatpush2.bf16.msra.mxu0 %v3990
    %4927 = vmatprep.subr.bf16.mxu0 %v3989
    %4928 = vmatpush2.bf16.msra.mxu0 %v3988
    %4929 = vmatprep.subr.bf16.mxu0 %v3987
    %4930 = vmatpush2.bf16.msra.mxu0 %v3986
    %4931 = vmatprep.mubr.bf16.mxu0 %v2021
    %4932 = vmatmul.mubr.bf16.gmra.mxu0 %v2020
    %v4933 = vpop.f32.mrf.mxu0
    %v4934 = vadd.f32 %v4741, %v4933
    %v4935 = vpop.f32.mrf.mxu0
    %v4936 = vadd.f32 %v4743, %v4935
    %v4937 = vpop.f32.mrf.mxu0
    %v4938 = vadd.f32 %v4745, %v4937
    %v4939 = vpop.f32.mrf.mxu0
    %v4940 = vadd.f32 %v4747, %v4939
    %4941 = vmatprep.mubr.bf16.mxu0 %v2045
    %4942 = vmatmul.mubr.bf16.gmra.mxu0 %v2044
    %v4943 = vpop.f32.mrf.mxu0
    %v4944 = vadd.f32 %v4751, %v4943
    %v4945 = vpop.f32.mrf.mxu0
    %v4946 = vadd.f32 %v4753, %v4945
    %v4947 = vpop.f32.mrf.mxu0
    %v4948 = vadd.f32 %v4755, %v4947
    %v4949 = vpop.f32.mrf.mxu0
    %v4950 = vadd.f32 %v4757, %v4949
    %4951 = vmatprep.mubr.bf16.mxu0 %v2069
    %4952 = vmatmul.mubr.bf16.gmra.mxu0 %v2068
    %v4953 = vpop.f32.mrf.mxu0
    %v4954 = vadd.f32 %v4761, %v4953
    %v4955 = vpop.f32.mrf.mxu0
    %v4956 = vadd.f32 %v4763, %v4955
    %v4957 = vpop.f32.mrf.mxu0
    %v4958 = vadd.f32 %v4765, %v4957
    %v4959 = vpop.f32.mrf.mxu0
    %v4960 = vadd.f32 %v4767, %v4959
    %4961 = vmatprep.mubr.bf16.mxu0 %v2093
    %4962 = vmatmul.mubr.bf16.gmra.mxu0 %v2092
    %v4963 = vpop.f32.mrf.mxu0
    %v4964 = vadd.f32 %v4771, %v4963
    %v4965 = vpop.f32.mrf.mxu0
    %v4966 = vadd.f32 %v4773, %v4965
    %v4967 = vpop.f32.mrf.mxu0
    %v4968 = vadd.f32 %v4775, %v4967
    %v4969 = vpop.f32.mrf.mxu0
    %v4970 = vadd.f32 %v4777, %v4969
    %4971 = vmatprep.mubr.bf16.mxu0 %v2117
    %4972 = vmatmul.mubr.bf16.gmra.mxu0 %v2116
    %v4973 = vpop.f32.mrf.mxu0
    %v4974 = vadd.f32 %v4781, %v4973
    %v4975 = vpop.f32.mrf.mxu0
    %v4976 = vadd.f32 %v4783, %v4975
    %v4977 = vpop.f32.mrf.mxu0
    %v4978 = vadd.f32 %v4785, %v4977
    %v4979 = vpop.f32.mrf.mxu0
    %v4980 = vadd.f32 %v4787, %v4979
    %4981 = vmatprep.mubr.bf16.mxu0 %v2141
    %4982 = vmatmul.mubr.bf16.gmra.mxu0 %v2140
    %v4983 = vpop.f32.mrf.mxu0
    %v4984 = vadd.f32 %v4791, %v4983
    %v4985 = vpop.f32.mrf.mxu0
    %v4986 = vadd.f32 %v4793, %v4985
    %v4987 = vpop.f32.mrf.mxu0
    %v4988 = vadd.f32 %v4795, %v4987
    %v4989 = vpop.f32.mrf.mxu0
    %v4990 = vadd.f32 %v4797, %v4989
    %4991 = vmatprep.mubr.bf16.mxu0 %v2165
    %4992 = vmatmul.mubr.bf16.gmra.mxu0 %v2164
    %v4993 = vpop.f32.mrf.mxu0
    %v4994 = vadd.f32 %v4801, %v4993
    %v4995 = vpop.f32.mrf.mxu0
    %v4996 = vadd.f32 %v4803, %v4995
    %v4997 = vpop.f32.mrf.mxu0
    %v4998 = vadd.f32 %v4805, %v4997
    %v4999 = vpop.f32.mrf.mxu0
    %v5000 = vadd.f32 %v4807, %v4999
    %5001 = vmatprep.mubr.bf16.mxu0 %v2189
    %5002 = vmatmul.mubr.bf16.gmra.mxu0 %v2188
    %v5003 = vpop.f32.mrf.mxu0
    %v5004 = vadd.f32 %v4811, %v5003
    %v5005 = vpop.f32.mrf.mxu0
    %v5006 = vadd.f32 %v4813, %v5005
    %v5007 = vpop.f32.mrf.mxu0
    %v5008 = vadd.f32 %v4815, %v5007
    %v5009 = vpop.f32.mrf.mxu0
    %v5010 = vadd.f32 %v4817, %v5009
    %5011 = vmatprep.mubr.bf16.mxu0 %v2213
    %5012 = vmatmul.mubr.bf16.gmra.mxu0 %v2212
    %v5013 = vpop.f32.mrf.mxu0
    %v5014 = vadd.f32 %v4821, %v5013
    %v5015 = vpop.f32.mrf.mxu0
    %v5016 = vadd.f32 %v4823, %v5015
    %v5017 = vpop.f32.mrf.mxu0
    %v5018 = vadd.f32 %v4825, %v5017
    %v5019 = vpop.f32.mrf.mxu0
    %v5020 = vadd.f32 %v4827, %v5019
    %5021 = vmatprep.mubr.bf16.mxu0 %v2237
    %5022 = vmatmul.mubr.bf16.gmra.mxu0 %v2236
    %v5023 = vpop.f32.mrf.mxu0
    %v5024 = vadd.f32 %v4831, %v5023
    %v5025 = vpop.f32.mrf.mxu0
    %v5026 = vadd.f32 %v4833, %v5025
    %v5027 = vpop.f32.mrf.mxu0
    %v5028 = vadd.f32 %v4835, %v5027
    %v5029 = vpop.f32.mrf.mxu0
    %v5030 = vadd.f32 %v4837, %v5029
    %5031 = vmatprep.mubr.bf16.mxu0 %v2261
    %5032 = vmatmul.mubr.bf16.gmra.mxu0 %v2260
    %v5033 = vpop.f32.mrf.mxu0
    %v5034 = vadd.f32 %v4841, %v5033
    %v5035 = vpop.f32.mrf.mxu0
    %v5036 = vadd.f32 %v4843, %v5035
    %v5037 = vpop.f32.mrf.mxu0
    %v5038 = vadd.f32 %v4845, %v5037
    %v5039 = vpop.f32.mrf.mxu0
    %v5040 = vadd.f32 %v4847, %v5039
    %5041 = vmatprep.mubr.bf16.mxu0 %v2285
    %5042 = vmatmul.mubr.bf16.gmra.mxu0 %v2284
    %v5043 = vpop.f32.mrf.mxu0
    %v5044 = vadd.f32 %v4851, %v5043
    %v5045 = vpop.f32.mrf.mxu0
    %v5046 = vadd.f32 %v4853, %v5045
    %v5047 = vpop.f32.mrf.mxu0
    %v5048 = vadd.f32 %v4855, %v5047
    %v5049 = vpop.f32.mrf.mxu0
    %v5050 = vadd.f32 %v4857, %v5049
    %5051 = vmatprep.mubr.bf16.mxu0 %v2309
    %5052 = vmatmul.mubr.bf16.gmra.mxu0 %v2308
    %v5053 = vpop.f32.mrf.mxu0
    %v5054 = vadd.f32 %v4861, %v5053
    %v5055 = vpop.f32.mrf.mxu0
    %v5056 = vadd.f32 %v4863, %v5055
    %v5057 = vpop.f32.mrf.mxu0
    %v5058 = vadd.f32 %v4865, %v5057
    %v5059 = vpop.f32.mrf.mxu0
    %v5060 = vadd.f32 %v4867, %v5059
    %5061 = vmatprep.mubr.bf16.mxu0 %v2333
    %5062 = vmatmul.mubr.bf16.gmra.mxu0 %v2332
    %v5063 = vpop.f32.mrf.mxu0
    %v5064 = vadd.f32 %v4871, %v5063
    %v5065 = vpop.f32.mrf.mxu0
    %v5066 = vadd.f32 %v4873, %v5065
    %v5067 = vpop.f32.mrf.mxu0
    %v5068 = vadd.f32 %v4875, %v5067
    %v5069 = vpop.f32.mrf.mxu0
    %v5070 = vadd.f32 %v4877, %v5069
    %5071 = vmatprep.mubr.bf16.mxu0 %v2357
    %5072 = vmatmul.mubr.bf16.gmra.mxu0 %v2356
    %v5073 = vpop.f32.mrf.mxu0
    %v5074 = vadd.f32 %v4881, %v5073
    %v5075 = vpop.f32.mrf.mxu0
    %v5076 = vadd.f32 %v4883, %v5075
    %v5077 = vpop.f32.mrf.mxu0
    %v5078 = vadd.f32 %v4885, %v5077
    %v5079 = vpop.f32.mrf.mxu0
    %v5080 = vadd.f32 %v4887, %v5079
    %5081 = vmatprep.mubr.bf16.mxu0 %v2381
    %5082 = vmatmul.mubr.bf16.gmra.mxu0 %v2380
    %v5083 = vpop.f32.mrf.mxu0
    %v5084 = vadd.f32 %v4891, %v5083
    %v5085 = vpop.f32.mrf.mxu0
    %v5086 = vadd.f32 %v4893, %v5085
    %v5087 = vpop.f32.mrf.mxu0
    %v5088 = vadd.f32 %v4895, %v5087
    %v5089 = vpop.f32.mrf.mxu0
    %v5090 = vadd.f32 %v4897, %v5089
    %5091 = vdwg.mxu0
    %5092 = vmatprep.subr.bf16.mxu0 %v4017
    %5093 = vmatpush1.bf16.msra.mxu0 %v4016
    %5094 = vmatprep.subr.bf16.mxu0 %v4015
    %5095 = vmatpush1.bf16.msra.mxu0 %v4014
    %5096 = vmatprep.subr.bf16.mxu0 %v4013
    %5097 = vmatpush1.bf16.msra.mxu0 %v4012
    %5098 = vmatprep.subr.bf16.mxu0 %v4011
    %5099 = vmatpush1.bf16.msra.mxu0 %v4010
    %5100 = vmatprep.subr.bf16.mxu0 %v4009
    %5101 = vmatpush1.bf16.msra.mxu0 %v4008
    %5102 = vmatprep.subr.bf16.mxu0 %v4007
    %5103 = vmatpush1.bf16.msra.mxu0 %v4006
    %5104 = vmatprep.subr.bf16.mxu0 %v4005
    %5105 = vmatpush1.bf16.msra.mxu0 %v4004
    %5106 = vmatprep.subr.bf16.mxu0 %v4003
    %5107 = vmatpush1.bf16.msra.mxu0 %v4002
    %5108 = vmatprep.subr.bf16.mxu0 %v4033
    %5109 = vmatpush2.bf16.msra.mxu0 %v4032
    %5110 = vmatprep.subr.bf16.mxu0 %v4031
    %5111 = vmatpush2.bf16.msra.mxu0 %v4030
    %5112 = vmatprep.subr.bf16.mxu0 %v4029
    %5113 = vmatpush2.bf16.msra.mxu0 %v4028
    %5114 = vmatprep.subr.bf16.mxu0 %v4027
    %5115 = vmatpush2.bf16.msra.mxu0 %v4026
    %5116 = vmatprep.subr.bf16.mxu0 %v4025
    %5117 = vmatpush2.bf16.msra.mxu0 %v4024
    %5118 = vmatprep.subr.bf16.mxu0 %v4023
    %5119 = vmatpush2.bf16.msra.mxu0 %v4022
    %5120 = vmatprep.subr.bf16.mxu0 %v4021
    %5121 = vmatpush2.bf16.msra.mxu0 %v4020
    %5122 = vmatprep.subr.bf16.mxu0 %v4019
    %5123 = vmatpush2.bf16.msra.mxu0 %v4018
    %5124 = vmatprep.mubr.bf16.mxu0 %v2023
    %5125 = vmatmul.mubr.bf16.gmra.mxu0 %v2022
    %v5126 = vpop.f32.mrf.mxu0
    %v5127 = vadd.f32 %v4934, %v5126
    %v5128 = vpop.f32.mrf.mxu0
    %v5129 = vadd.f32 %v4936, %v5128
    %v5130 = vpop.f32.mrf.mxu0
    %v5131 = vadd.f32 %v4938, %v5130
    %v5132 = vpop.f32.mrf.mxu0
    %v5133 = vadd.f32 %v4940, %v5132
    %5134 = vmatprep.mubr.bf16.mxu0 %v2047
    %5135 = vmatmul.mubr.bf16.gmra.mxu0 %v2046
    %v5136 = vpop.f32.mrf.mxu0
    %v5137 = vadd.f32 %v4944, %v5136
    %v5138 = vpop.f32.mrf.mxu0
    %v5139 = vadd.f32 %v4946, %v5138
    %v5140 = vpop.f32.mrf.mxu0
    %v5141 = vadd.f32 %v4948, %v5140
    %v5142 = vpop.f32.mrf.mxu0
    %v5143 = vadd.f32 %v4950, %v5142
    %5144 = vmatprep.mubr.bf16.mxu0 %v2071
    %5145 = vmatmul.mubr.bf16.gmra.mxu0 %v2070
    %v5146 = vpop.f32.mrf.mxu0
    %v5147 = vadd.f32 %v4954, %v5146
    %v5148 = vpop.f32.mrf.mxu0
    %v5149 = vadd.f32 %v4956, %v5148
    %v5150 = vpop.f32.mrf.mxu0
    %v5151 = vadd.f32 %v4958, %v5150
    %v5152 = vpop.f32.mrf.mxu0
    %v5153 = vadd.f32 %v4960, %v5152
    %5154 = vmatprep.mubr.bf16.mxu0 %v2095
    %5155 = vmatmul.mubr.bf16.gmra.mxu0 %v2094
    %v5156 = vpop.f32.mrf.mxu0
    %v5157 = vadd.f32 %v4964, %v5156
    %v5158 = vpop.f32.mrf.mxu0
    %v5159 = vadd.f32 %v4966, %v5158
    %v5160 = vpop.f32.mrf.mxu0
    %v5161 = vadd.f32 %v4968, %v5160
    %v5162 = vpop.f32.mrf.mxu0
    %v5163 = vadd.f32 %v4970, %v5162
    %5164 = vmatprep.mubr.bf16.mxu0 %v2119
    %5165 = vmatmul.mubr.bf16.gmra.mxu0 %v2118
    %v5166 = vpop.f32.mrf.mxu0
    %v5167 = vadd.f32 %v4974, %v5166
    %v5168 = vpop.f32.mrf.mxu0
    %v5169 = vadd.f32 %v4976, %v5168
    %v5170 = vpop.f32.mrf.mxu0
    %v5171 = vadd.f32 %v4978, %v5170
    %v5172 = vpop.f32.mrf.mxu0
    %v5173 = vadd.f32 %v4980, %v5172
    %5174 = vmatprep.mubr.bf16.mxu0 %v2143
    %5175 = vmatmul.mubr.bf16.gmra.mxu0 %v2142
    %v5176 = vpop.f32.mrf.mxu0
    %v5177 = vadd.f32 %v4984, %v5176
    %v5178 = vpop.f32.mrf.mxu0
    %v5179 = vadd.f32 %v4986, %v5178
    %v5180 = vpop.f32.mrf.mxu0
    %v5181 = vadd.f32 %v4988, %v5180
    %v5182 = vpop.f32.mrf.mxu0
    %v5183 = vadd.f32 %v4990, %v5182
    %5184 = vmatprep.mubr.bf16.mxu0 %v2167
    %5185 = vmatmul.mubr.bf16.gmra.mxu0 %v2166
    %v5186 = vpop.f32.mrf.mxu0
    %v5187 = vadd.f32 %v4994, %v5186
    %v5188 = vpop.f32.mrf.mxu0
    %v5189 = vadd.f32 %v4996, %v5188
    %v5190 = vpop.f32.mrf.mxu0
    %v5191 = vadd.f32 %v4998, %v5190
    %v5192 = vpop.f32.mrf.mxu0
    %v5193 = vadd.f32 %v5000, %v5192
    %5194 = vmatprep.mubr.bf16.mxu0 %v2191
    %5195 = vmatmul.mubr.bf16.gmra.mxu0 %v2190
    %v5196 = vpop.f32.mrf.mxu0
    %v5197 = vadd.f32 %v5004, %v5196
    %v5198 = vpop.f32.mrf.mxu0
    %v5199 = vadd.f32 %v5006, %v5198
    %v5200 = vpop.f32.mrf.mxu0
    %v5201 = vadd.f32 %v5008, %v5200
    %v5202 = vpop.f32.mrf.mxu0
    %v5203 = vadd.f32 %v5010, %v5202
    %5204 = vmatprep.mubr.bf16.mxu0 %v2215
    %5205 = vmatmul.mubr.bf16.gmra.mxu0 %v2214
    %v5206 = vpop.f32.mrf.mxu0
    %v5207 = vadd.f32 %v5014, %v5206
    %v5208 = vpop.f32.mrf.mxu0
    %v5209 = vadd.f32 %v5016, %v5208
    %v5210 = vpop.f32.mrf.mxu0
    %v5211 = vadd.f32 %v5018, %v5210
    %v5212 = vpop.f32.mrf.mxu0
    %v5213 = vadd.f32 %v5020, %v5212
    %5214 = vmatprep.mubr.bf16.mxu0 %v2239
    %5215 = vmatmul.mubr.bf16.gmra.mxu0 %v2238
    %v5216 = vpop.f32.mrf.mxu0
    %v5217 = vadd.f32 %v5024, %v5216
    %v5218 = vpop.f32.mrf.mxu0
    %v5219 = vadd.f32 %v5026, %v5218
    %v5220 = vpop.f32.mrf.mxu0
    %v5221 = vadd.f32 %v5028, %v5220
    %v5222 = vpop.f32.mrf.mxu0
    %v5223 = vadd.f32 %v5030, %v5222
    %5224 = vmatprep.mubr.bf16.mxu0 %v2263
    %5225 = vmatmul.mubr.bf16.gmra.mxu0 %v2262
    %v5226 = vpop.f32.mrf.mxu0
    %v5227 = vadd.f32 %v5034, %v5226
    %v5228 = vpop.f32.mrf.mxu0
    %v5229 = vadd.f32 %v5036, %v5228
    %v5230 = vpop.f32.mrf.mxu0
    %v5231 = vadd.f32 %v5038, %v5230
    %v5232 = vpop.f32.mrf.mxu0
    %v5233 = vadd.f32 %v5040, %v5232
    %5234 = vmatprep.mubr.bf16.mxu0 %v2287
    %5235 = vmatmul.mubr.bf16.gmra.mxu0 %v2286
    %v5236 = vpop.f32.mrf.mxu0
    %v5237 = vadd.f32 %v5044, %v5236
    %v5238 = vpop.f32.mrf.mxu0
    %v5239 = vadd.f32 %v5046, %v5238
    %v5240 = vpop.f32.mrf.mxu0
    %v5241 = vadd.f32 %v5048, %v5240
    %v5242 = vpop.f32.mrf.mxu0
    %v5243 = vadd.f32 %v5050, %v5242
    %5244 = vmatprep.mubr.bf16.mxu0 %v2311
    %5245 = vmatmul.mubr.bf16.gmra.mxu0 %v2310
    %v5246 = vpop.f32.mrf.mxu0
    %v5247 = vadd.f32 %v5054, %v5246
    %v5248 = vpop.f32.mrf.mxu0
    %v5249 = vadd.f32 %v5056, %v5248
    %v5250 = vpop.f32.mrf.mxu0
    %v5251 = vadd.f32 %v5058, %v5250
    %v5252 = vpop.f32.mrf.mxu0
    %v5253 = vadd.f32 %v5060, %v5252
    %5254 = vmatprep.mubr.bf16.mxu0 %v2335
    %5255 = vmatmul.mubr.bf16.gmra.mxu0 %v2334
    %v5256 = vpop.f32.mrf.mxu0
    %v5257 = vadd.f32 %v5064, %v5256
    %v5258 = vpop.f32.mrf.mxu0
    %v5259 = vadd.f32 %v5066, %v5258
    %v5260 = vpop.f32.mrf.mxu0
    %v5261 = vadd.f32 %v5068, %v5260
    %v5262 = vpop.f32.mrf.mxu0
    %v5263 = vadd.f32 %v5070, %v5262
    %5264 = vmatprep.mubr.bf16.mxu0 %v2359
    %5265 = vmatmul.mubr.bf16.gmra.mxu0 %v2358
    %v5266 = vpop.f32.mrf.mxu0
    %v5267 = vadd.f32 %v5074, %v5266
    %v5268 = vpop.f32.mrf.mxu0
    %v5269 = vadd.f32 %v5076, %v5268
    %v5270 = vpop.f32.mrf.mxu0
    %v5271 = vadd.f32 %v5078, %v5270
    %v5272 = vpop.f32.mrf.mxu0
    %v5273 = vadd.f32 %v5080, %v5272
    %5274 = vmatprep.mubr.bf16.mxu0 %v2383
    %5275 = vmatmul.mubr.bf16.gmra.mxu0 %v2382
    %v5276 = vpop.f32.mrf.mxu0
    %v5277 = vadd.f32 %v5084, %v5276
    %v5278 = vpop.f32.mrf.mxu0
    %v5279 = vadd.f32 %v5086, %v5278
    %v5280 = vpop.f32.mrf.mxu0
    %v5281 = vadd.f32 %v5088, %v5280
    %v5282 = vpop.f32.mrf.mxu0
    %v5283 = vadd.f32 %v5090, %v5282
    %5284 = vdwg.mxu0
    %5285 = vmatprep.subr.bf16.mxu0 %v4049
    %5286 = vmatpush1.bf16.msra.mxu0 %v4048
    %5287 = vmatprep.subr.bf16.mxu0 %v4047
    %5288 = vmatpush1.bf16.msra.mxu0 %v4046
    %5289 = vmatprep.subr.bf16.mxu0 %v4045
    %5290 = vmatpush1.bf16.msra.mxu0 %v4044
    %5291 = vmatprep.subr.bf16.mxu0 %v4043
    %5292 = vmatpush1.bf16.msra.mxu0 %v4042
    %5293 = vmatprep.subr.bf16.mxu0 %v4041
    %5294 = vmatpush1.bf16.msra.mxu0 %v4040
    %5295 = vmatprep.subr.bf16.mxu0 %v4039
    %5296 = vmatpush1.bf16.msra.mxu0 %v4038
    %5297 = vmatprep.subr.bf16.mxu0 %v4037
    %5298 = vmatpush1.bf16.msra.mxu0 %v4036
    %5299 = vmatprep.subr.bf16.mxu0 %v4035
    %5300 = vmatpush1.bf16.msra.mxu0 %v4034
    %5301 = vmatprep.subr.bf16.mxu0 %v4065
    %5302 = vmatpush2.bf16.msra.mxu0 %v4064
    %5303 = vmatprep.subr.bf16.mxu0 %v4063
    %5304 = vmatpush2.bf16.msra.mxu0 %v4062
    %5305 = vmatprep.subr.bf16.mxu0 %v4061
    %5306 = vmatpush2.bf16.msra.mxu0 %v4060
    %5307 = vmatprep.subr.bf16.mxu0 %v4059
    %5308 = vmatpush2.bf16.msra.mxu0 %v4058
    %5309 = vmatprep.subr.bf16.mxu0 %v4057
    %5310 = vmatpush2.bf16.msra.mxu0 %v4056
    %5311 = vmatprep.subr.bf16.mxu0 %v4055
    %5312 = vmatpush2.bf16.msra.mxu0 %v4054
    %5313 = vmatprep.subr.bf16.mxu0 %v4053
    %5314 = vmatpush2.bf16.msra.mxu0 %v4052
    %5315 = vmatprep.subr.bf16.mxu0 %v4051
    %5316 = vmatpush2.bf16.msra.mxu0 %v4050
    %5317 = vmatprep.mubr.bf16.mxu0 %v2025
    %5318 = vmatmul.mubr.bf16.gmra.mxu0 %v2024
    %v5319 = vpop.f32.mrf.mxu0
    %v5320 = vadd.f32 %v5127, %v5319
    %v5321 = vpop.f32.mrf.mxu0
    %v5322 = vadd.f32 %v5129, %v5321
    %v5323 = vpop.f32.mrf.mxu0
    %v5324 = vadd.f32 %v5131, %v5323
    %v5325 = vpop.f32.mrf.mxu0
    %v5326 = vadd.f32 %v5133, %v5325
    %5327 = vmatprep.mubr.bf16.mxu0 %v2049
    %5328 = vmatmul.mubr.bf16.gmra.mxu0 %v2048
    %v5329 = vpop.f32.mrf.mxu0
    %v5330 = vadd.f32 %v5137, %v5329
    %v5331 = vpop.f32.mrf.mxu0
    %v5332 = vadd.f32 %v5139, %v5331
    %v5333 = vpop.f32.mrf.mxu0
    %v5334 = vadd.f32 %v5141, %v5333
    %v5335 = vpop.f32.mrf.mxu0
    %v5336 = vadd.f32 %v5143, %v5335
    %5337 = vmatprep.mubr.bf16.mxu0 %v2073
    %5338 = vmatmul.mubr.bf16.gmra.mxu0 %v2072
    %v5339 = vpop.f32.mrf.mxu0
    %v5340 = vadd.f32 %v5147, %v5339
    %v5341 = vpop.f32.mrf.mxu0
    %v5342 = vadd.f32 %v5149, %v5341
    %v5343 = vpop.f32.mrf.mxu0
    %v5344 = vadd.f32 %v5151, %v5343
    %v5345 = vpop.f32.mrf.mxu0
    %v5346 = vadd.f32 %v5153, %v5345
    %5347 = vmatprep.mubr.bf16.mxu0 %v2097
    %5348 = vmatmul.mubr.bf16.gmra.mxu0 %v2096
    %v5349 = vpop.f32.mrf.mxu0
    %v5350 = vadd.f32 %v5157, %v5349
    %v5351 = vpop.f32.mrf.mxu0
    %v5352 = vadd.f32 %v5159, %v5351
    %v5353 = vpop.f32.mrf.mxu0
    %v5354 = vadd.f32 %v5161, %v5353
    %v5355 = vpop.f32.mrf.mxu0
    %v5356 = vadd.f32 %v5163, %v5355
    %5357 = vmatprep.mubr.bf16.mxu0 %v2121
    %5358 = vmatmul.mubr.bf16.gmra.mxu0 %v2120
    %v5359 = vpop.f32.mrf.mxu0
    %v5360 = vadd.f32 %v5167, %v5359
    %v5361 = vpop.f32.mrf.mxu0
    %v5362 = vadd.f32 %v5169, %v5361
    %v5363 = vpop.f32.mrf.mxu0
    %v5364 = vadd.f32 %v5171, %v5363
    %v5365 = vpop.f32.mrf.mxu0
    %v5366 = vadd.f32 %v5173, %v5365
    %5367 = vmatprep.mubr.bf16.mxu0 %v2145
    %5368 = vmatmul.mubr.bf16.gmra.mxu0 %v2144
    %v5369 = vpop.f32.mrf.mxu0
    %v5370 = vadd.f32 %v5177, %v5369
    %v5371 = vpop.f32.mrf.mxu0
    %v5372 = vadd.f32 %v5179, %v5371
    %v5373 = vpop.f32.mrf.mxu0
    %v5374 = vadd.f32 %v5181, %v5373
    %v5375 = vpop.f32.mrf.mxu0
    %v5376 = vadd.f32 %v5183, %v5375
    %5377 = vmatprep.mubr.bf16.mxu0 %v2169
    %5378 = vmatmul.mubr.bf16.gmra.mxu0 %v2168
    %v5379 = vpop.f32.mrf.mxu0
    %v5380 = vadd.f32 %v5187, %v5379
    %v5381 = vpop.f32.mrf.mxu0
    %v5382 = vadd.f32 %v5189, %v5381
    %v5383 = vpop.f32.mrf.mxu0
    %v5384 = vadd.f32 %v5191, %v5383
    %v5385 = vpop.f32.mrf.mxu0
    %v5386 = vadd.f32 %v5193, %v5385
    %5387 = vmatprep.mubr.bf16.mxu0 %v2193
    %5388 = vmatmul.mubr.bf16.gmra.mxu0 %v2192
    %v5389 = vpop.f32.mrf.mxu0
    %v5390 = vadd.f32 %v5197, %v5389
    %v5391 = vpop.f32.mrf.mxu0
    %v5392 = vadd.f32 %v5199, %v5391
    %v5393 = vpop.f32.mrf.mxu0
    %v5394 = vadd.f32 %v5201, %v5393
    %v5395 = vpop.f32.mrf.mxu0
    %v5396 = vadd.f32 %v5203, %v5395
    %5397 = vmatprep.mubr.bf16.mxu0 %v2217
    %5398 = vmatmul.mubr.bf16.gmra.mxu0 %v2216
    %v5399 = vpop.f32.mrf.mxu0
    %v5400 = vadd.f32 %v5207, %v5399
    %v5401 = vpop.f32.mrf.mxu0
    %v5402 = vadd.f32 %v5209, %v5401
    %v5403 = vpop.f32.mrf.mxu0
    %v5404 = vadd.f32 %v5211, %v5403
    %v5405 = vpop.f32.mrf.mxu0
    %v5406 = vadd.f32 %v5213, %v5405
    %5407 = vmatprep.mubr.bf16.mxu0 %v2241
    %5408 = vmatmul.mubr.bf16.gmra.mxu0 %v2240
    %v5409 = vpop.f32.mrf.mxu0
    %v5410 = vadd.f32 %v5217, %v5409
    %v5411 = vpop.f32.mrf.mxu0
    %v5412 = vadd.f32 %v5219, %v5411
    %v5413 = vpop.f32.mrf.mxu0
    %v5414 = vadd.f32 %v5221, %v5413
    %v5415 = vpop.f32.mrf.mxu0
    %v5416 = vadd.f32 %v5223, %v5415
    %5417 = vmatprep.mubr.bf16.mxu0 %v2265
    %5418 = vmatmul.mubr.bf16.gmra.mxu0 %v2264
    %v5419 = vpop.f32.mrf.mxu0
    %v5420 = vadd.f32 %v5227, %v5419
    %v5421 = vpop.f32.mrf.mxu0
    %v5422 = vadd.f32 %v5229, %v5421
    %v5423 = vpop.f32.mrf.mxu0
    %v5424 = vadd.f32 %v5231, %v5423
    %v5425 = vpop.f32.mrf.mxu0
    %v5426 = vadd.f32 %v5233, %v5425
    %5427 = vmatprep.mubr.bf16.mxu0 %v2289
    %5428 = vmatmul.mubr.bf16.gmra.mxu0 %v2288
    %v5429 = vpop.f32.mrf.mxu0
    %v5430 = vadd.f32 %v5237, %v5429
    %v5431 = vpop.f32.mrf.mxu0
    %v5432 = vadd.f32 %v5239, %v5431
    %v5433 = vpop.f32.mrf.mxu0
    %v5434 = vadd.f32 %v5241, %v5433
    %v5435 = vpop.f32.mrf.mxu0
    %v5436 = vadd.f32 %v5243, %v5435
    %5437 = vmatprep.mubr.bf16.mxu0 %v2313
    %5438 = vmatmul.mubr.bf16.gmra.mxu0 %v2312
    %v5439 = vpop.f32.mrf.mxu0
    %v5440 = vadd.f32 %v5247, %v5439
    %v5441 = vpop.f32.mrf.mxu0
    %v5442 = vadd.f32 %v5249, %v5441
    %v5443 = vpop.f32.mrf.mxu0
    %v5444 = vadd.f32 %v5251, %v5443
    %v5445 = vpop.f32.mrf.mxu0
    %v5446 = vadd.f32 %v5253, %v5445
    %5447 = vmatprep.mubr.bf16.mxu0 %v2337
    %5448 = vmatmul.mubr.bf16.gmra.mxu0 %v2336
    %v5449 = vpop.f32.mrf.mxu0
    %v5450 = vadd.f32 %v5257, %v5449
    %v5451 = vpop.f32.mrf.mxu0
    %v5452 = vadd.f32 %v5259, %v5451
    %v5453 = vpop.f32.mrf.mxu0
    %v5454 = vadd.f32 %v5261, %v5453
    %v5455 = vpop.f32.mrf.mxu0
    %v5456 = vadd.f32 %v5263, %v5455
    %5457 = vmatprep.mubr.bf16.mxu0 %v2361
    %5458 = vmatmul.mubr.bf16.gmra.mxu0 %v2360
    %v5459 = vpop.f32.mrf.mxu0
    %v5460 = vadd.f32 %v5267, %v5459
    %v5461 = vpop.f32.mrf.mxu0
    %v5462 = vadd.f32 %v5269, %v5461
    %v5463 = vpop.f32.mrf.mxu0
    %v5464 = vadd.f32 %v5271, %v5463
    %v5465 = vpop.f32.mrf.mxu0
    %v5466 = vadd.f32 %v5273, %v5465
    %5467 = vmatprep.mubr.bf16.mxu0 %v2385
    %5468 = vmatmul.mubr.bf16.gmra.mxu0 %v2384
    %v5469 = vpop.f32.mrf.mxu0
    %v5470 = vadd.f32 %v5277, %v5469
    %v5471 = vpop.f32.mrf.mxu0
    %v5472 = vadd.f32 %v5279, %v5471
    %v5473 = vpop.f32.mrf.mxu0
    %v5474 = vadd.f32 %v5281, %v5473
    %v5475 = vpop.f32.mrf.mxu0
    %v5476 = vadd.f32 %v5283, %v5475
    %5477 = vdwg.mxu0
    %5478 = vmatprep.subr.bf16.mxu0 %v4081
    %5479 = vmatpush1.bf16.msra.mxu0 %v4080
    %5480 = vmatprep.subr.bf16.mxu0 %v4079
    %5481 = vmatpush1.bf16.msra.mxu0 %v4078
    %5482 = vmatprep.subr.bf16.mxu0 %v4077
    %5483 = vmatpush1.bf16.msra.mxu0 %v4076
    %5484 = vmatprep.subr.bf16.mxu0 %v4075
    %5485 = vmatpush1.bf16.msra.mxu0 %v4074
    %5486 = vmatprep.subr.bf16.mxu0 %v4073
    %5487 = vmatpush1.bf16.msra.mxu0 %v4072
    %5488 = vmatprep.subr.bf16.mxu0 %v4071
    %5489 = vmatpush1.bf16.msra.mxu0 %v4070
    %5490 = vmatprep.subr.bf16.mxu0 %v4069
    %5491 = vmatpush1.bf16.msra.mxu0 %v4068
    %5492 = vmatprep.subr.bf16.mxu0 %v4067
    %5493 = vmatpush1.bf16.msra.mxu0 %v4066
    %5494 = vmatprep.subr.bf16.mxu0 %v4097
    %5495 = vmatpush2.bf16.msra.mxu0 %v4096
    %5496 = vmatprep.subr.bf16.mxu0 %v4095
    %5497 = vmatpush2.bf16.msra.mxu0 %v4094
    %5498 = vmatprep.subr.bf16.mxu0 %v4093
    %5499 = vmatpush2.bf16.msra.mxu0 %v4092
    %5500 = vmatprep.subr.bf16.mxu0 %v4091
    %5501 = vmatpush2.bf16.msra.mxu0 %v4090
    %5502 = vmatprep.subr.bf16.mxu0 %v4089
    %5503 = vmatpush2.bf16.msra.mxu0 %v4088
    %5504 = vmatprep.subr.bf16.mxu0 %v4087
    %5505 = vmatpush2.bf16.msra.mxu0 %v4086
    %5506 = vmatprep.subr.bf16.mxu0 %v4085
    %5507 = vmatpush2.bf16.msra.mxu0 %v4084
    %5508 = vmatprep.subr.bf16.mxu0 %v4083
    %5509 = vmatpush2.bf16.msra.mxu0 %v4082
    %5510 = vmatprep.mubr.bf16.mxu0 %v2027
    %5511 = vmatmul.mubr.bf16.gmra.mxu0 %v2026
    %v5512 = vpop.f32.mrf.mxu0
    %v5513 = vadd.f32 %v5320, %v5512
    %v5514 = vpop.f32.mrf.mxu0
    %v5515 = vadd.f32 %v5322, %v5514
    %v5516 = vpop.f32.mrf.mxu0
    %v5517 = vadd.f32 %v5324, %v5516
    %v5518 = vpop.f32.mrf.mxu0
    %v5519 = vadd.f32 %v5326, %v5518
    %5520 = vmatprep.mubr.bf16.mxu0 %v2051
    %5521 = vmatmul.mubr.bf16.gmra.mxu0 %v2050
    %v5522 = vpop.f32.mrf.mxu0
    %v5523 = vadd.f32 %v5330, %v5522
    %v5524 = vpop.f32.mrf.mxu0
    %v5525 = vadd.f32 %v5332, %v5524
    %v5526 = vpop.f32.mrf.mxu0
    %v5527 = vadd.f32 %v5334, %v5526
    %v5528 = vpop.f32.mrf.mxu0
    %v5529 = vadd.f32 %v5336, %v5528
    %5530 = vmatprep.mubr.bf16.mxu0 %v2075
    %5531 = vmatmul.mubr.bf16.gmra.mxu0 %v2074
    %v5532 = vpop.f32.mrf.mxu0
    %v5533 = vadd.f32 %v5340, %v5532
    %v5534 = vpop.f32.mrf.mxu0
    %v5535 = vadd.f32 %v5342, %v5534
    %v5536 = vpop.f32.mrf.mxu0
    %v5537 = vadd.f32 %v5344, %v5536
    %v5538 = vpop.f32.mrf.mxu0
    %v5539 = vadd.f32 %v5346, %v5538
    %5540 = vmatprep.mubr.bf16.mxu0 %v2099
    %5541 = vmatmul.mubr.bf16.gmra.mxu0 %v2098
    %v5542 = vpop.f32.mrf.mxu0
    %v5543 = vadd.f32 %v5350, %v5542
    %v5544 = vpop.f32.mrf.mxu0
    %v5545 = vadd.f32 %v5352, %v5544
    %v5546 = vpop.f32.mrf.mxu0
    %v5547 = vadd.f32 %v5354, %v5546
    %v5548 = vpop.f32.mrf.mxu0
    %v5549 = vadd.f32 %v5356, %v5548
    %5550 = vmatprep.mubr.bf16.mxu0 %v2123
    %5551 = vmatmul.mubr.bf16.gmra.mxu0 %v2122
    %v5552 = vpop.f32.mrf.mxu0
    %v5553 = vadd.f32 %v5360, %v5552
    %v5554 = vpop.f32.mrf.mxu0
    %v5555 = vadd.f32 %v5362, %v5554
    %v5556 = vpop.f32.mrf.mxu0
    %v5557 = vadd.f32 %v5364, %v5556
    %v5558 = vpop.f32.mrf.mxu0
    %v5559 = vadd.f32 %v5366, %v5558
    %5560 = vmatprep.mubr.bf16.mxu0 %v2147
    %5561 = vmatmul.mubr.bf16.gmra.mxu0 %v2146
    %v5562 = vpop.f32.mrf.mxu0
    %v5563 = vadd.f32 %v5370, %v5562
    %v5564 = vpop.f32.mrf.mxu0
    %v5565 = vadd.f32 %v5372, %v5564
    %v5566 = vpop.f32.mrf.mxu0
    %v5567 = vadd.f32 %v5374, %v5566
    %v5568 = vpop.f32.mrf.mxu0
    %v5569 = vadd.f32 %v5376, %v5568
    %5570 = vmatprep.mubr.bf16.mxu0 %v2171
    %5571 = vmatmul.mubr.bf16.gmra.mxu0 %v2170
    %v5572 = vpop.f32.mrf.mxu0
    %v5573 = vadd.f32 %v5380, %v5572
    %v5574 = vpop.f32.mrf.mxu0
    %v5575 = vadd.f32 %v5382, %v5574
    %v5576 = vpop.f32.mrf.mxu0
    %v5577 = vadd.f32 %v5384, %v5576
    %v5578 = vpop.f32.mrf.mxu0
    %v5579 = vadd.f32 %v5386, %v5578
    %5580 = vmatprep.mubr.bf16.mxu0 %v2195
    %5581 = vmatmul.mubr.bf16.gmra.mxu0 %v2194
    %v5582 = vpop.f32.mrf.mxu0
    %v5583 = vadd.f32 %v5390, %v5582
    %v5584 = vpop.f32.mrf.mxu0
    %v5585 = vadd.f32 %v5392, %v5584
    %v5586 = vpop.f32.mrf.mxu0
    %v5587 = vadd.f32 %v5394, %v5586
    %v5588 = vpop.f32.mrf.mxu0
    %v5589 = vadd.f32 %v5396, %v5588
    %5590 = vmatprep.mubr.bf16.mxu0 %v2219
    %5591 = vmatmul.mubr.bf16.gmra.mxu0 %v2218
    %v5592 = vpop.f32.mrf.mxu0
    %v5593 = vadd.f32 %v5400, %v5592
    %v5594 = vpop.f32.mrf.mxu0
    %v5595 = vadd.f32 %v5402, %v5594
    %v5596 = vpop.f32.mrf.mxu0
    %v5597 = vadd.f32 %v5404, %v5596
    %v5598 = vpop.f32.mrf.mxu0
    %v5599 = vadd.f32 %v5406, %v5598
    %5600 = vmatprep.mubr.bf16.mxu0 %v2243
    %5601 = vmatmul.mubr.bf16.gmra.mxu0 %v2242
    %v5602 = vpop.f32.mrf.mxu0
    %v5603 = vadd.f32 %v5410, %v5602
    %v5604 = vpop.f32.mrf.mxu0
    %v5605 = vadd.f32 %v5412, %v5604
    %v5606 = vpop.f32.mrf.mxu0
    %v5607 = vadd.f32 %v5414, %v5606
    %v5608 = vpop.f32.mrf.mxu0
    %v5609 = vadd.f32 %v5416, %v5608
    %5610 = vmatprep.mubr.bf16.mxu0 %v2267
    %5611 = vmatmul.mubr.bf16.gmra.mxu0 %v2266
    %v5612 = vpop.f32.mrf.mxu0
    %v5613 = vadd.f32 %v5420, %v5612
    %v5614 = vpop.f32.mrf.mxu0
    %v5615 = vadd.f32 %v5422, %v5614
    %v5616 = vpop.f32.mrf.mxu0
    %v5617 = vadd.f32 %v5424, %v5616
    %v5618 = vpop.f32.mrf.mxu0
    %v5619 = vadd.f32 %v5426, %v5618
    %5620 = vmatprep.mubr.bf16.mxu0 %v2291
    %5621 = vmatmul.mubr.bf16.gmra.mxu0 %v2290
    %v5622 = vpop.f32.mrf.mxu0
    %v5623 = vadd.f32 %v5430, %v5622
    %v5624 = vpop.f32.mrf.mxu0
    %v5625 = vadd.f32 %v5432, %v5624
    %v5626 = vpop.f32.mrf.mxu0
    %v5627 = vadd.f32 %v5434, %v5626
    %v5628 = vpop.f32.mrf.mxu0
    %v5629 = vadd.f32 %v5436, %v5628
    %5630 = vmatprep.mubr.bf16.mxu0 %v2315
    %5631 = vmatmul.mubr.bf16.gmra.mxu0 %v2314
    %v5632 = vpop.f32.mrf.mxu0
    %v5633 = vadd.f32 %v5440, %v5632
    %v5634 = vpop.f32.mrf.mxu0
    %v5635 = vadd.f32 %v5442, %v5634
    %v5636 = vpop.f32.mrf.mxu0
    %v5637 = vadd.f32 %v5444, %v5636
    %v5638 = vpop.f32.mrf.mxu0
    %v5639 = vadd.f32 %v5446, %v5638
    %5640 = vmatprep.mubr.bf16.mxu0 %v2339
    %5641 = vmatmul.mubr.bf16.gmra.mxu0 %v2338
    %v5642 = vpop.f32.mrf.mxu0
    %v5643 = vadd.f32 %v5450, %v5642
    %v5644 = vpop.f32.mrf.mxu0
    %v5645 = vadd.f32 %v5452, %v5644
    %v5646 = vpop.f32.mrf.mxu0
    %v5647 = vadd.f32 %v5454, %v5646
    %v5648 = vpop.f32.mrf.mxu0
    %v5649 = vadd.f32 %v5456, %v5648
    %5650 = vmatprep.mubr.bf16.mxu0 %v2363
    %5651 = vmatmul.mubr.bf16.gmra.mxu0 %v2362
    %v5652 = vpop.f32.mrf.mxu0
    %v5653 = vadd.f32 %v5460, %v5652
    %v5654 = vpop.f32.mrf.mxu0
    %v5655 = vadd.f32 %v5462, %v5654
    %v5656 = vpop.f32.mrf.mxu0
    %v5657 = vadd.f32 %v5464, %v5656
    %v5658 = vpop.f32.mrf.mxu0
    %v5659 = vadd.f32 %v5466, %v5658
    %5660 = vmatprep.mubr.bf16.mxu0 %v2387
    %5661 = vmatmul.mubr.bf16.gmra.mxu0 %v2386
    %v5662 = vpop.f32.mrf.mxu0
    %v5663 = vadd.f32 %v5470, %v5662
    %v5664 = vpop.f32.mrf.mxu0
    %v5665 = vadd.f32 %v5472, %v5664
    %v5666 = vpop.f32.mrf.mxu0
    %v5667 = vadd.f32 %v5474, %v5666
    %v5668 = vpop.f32.mrf.mxu0
    %v5669 = vadd.f32 %v5476, %v5668
    %5670 = vdwg.mxu0
    %5671 = vmatprep.subr.bf16.mxu0 %v4113
    %5672 = vmatpush1.bf16.msra.mxu0 %v4112
    %5673 = vmatprep.subr.bf16.mxu0 %v4111
    %5674 = vmatpush1.bf16.msra.mxu0 %v4110
    %5675 = vmatprep.subr.bf16.mxu0 %v4109
    %5676 = vmatpush1.bf16.msra.mxu0 %v4108
    %5677 = vmatprep.subr.bf16.mxu0 %v4107
    %5678 = vmatpush1.bf16.msra.mxu0 %v4106
    %5679 = vmatprep.subr.bf16.mxu0 %v4105
    %5680 = vmatpush1.bf16.msra.mxu0 %v4104
    %5681 = vmatprep.subr.bf16.mxu0 %v4103
    %5682 = vmatpush1.bf16.msra.mxu0 %v4102
    %5683 = vmatprep.subr.bf16.mxu0 %v4101
    %5684 = vmatpush1.bf16.msra.mxu0 %v4100
    %5685 = vmatprep.subr.bf16.mxu0 %v4099
    %5686 = vmatpush1.bf16.msra.mxu0 %v4098
    %5687 = vmatprep.subr.bf16.mxu0 %v4129
    %5688 = vmatpush2.bf16.msra.mxu0 %v4128
    %5689 = vmatprep.subr.bf16.mxu0 %v4127
    %5690 = vmatpush2.bf16.msra.mxu0 %v4126
    %5691 = vmatprep.subr.bf16.mxu0 %v4125
    %5692 = vmatpush2.bf16.msra.mxu0 %v4124
    %5693 = vmatprep.subr.bf16.mxu0 %v4123
    %5694 = vmatpush2.bf16.msra.mxu0 %v4122
    %5695 = vmatprep.subr.bf16.mxu0 %v4121
    %5696 = vmatpush2.bf16.msra.mxu0 %v4120
    %5697 = vmatprep.subr.bf16.mxu0 %v4119
    %5698 = vmatpush2.bf16.msra.mxu0 %v4118
    %5699 = vmatprep.subr.bf16.mxu0 %v4117
    %5700 = vmatpush2.bf16.msra.mxu0 %v4116
    %5701 = vmatprep.subr.bf16.mxu0 %v4115
    %5702 = vmatpush2.bf16.msra.mxu0 %v4114
    %5703 = vmatprep.mubr.bf16.mxu0 %v2029
    %5704 = vmatmul.mubr.bf16.gmra.mxu0 %v2028
    %v5705 = vpop.f32.mrf.mxu0
    %v5706 = vadd.f32 %v5513, %v5705
    %v5707 = vpop.f32.mrf.mxu0
    %v5708 = vadd.f32 %v5515, %v5707
    %v5709 = vpop.f32.mrf.mxu0
    %v5710 = vadd.f32 %v5517, %v5709
    %v5711 = vpop.f32.mrf.mxu0
    %v5712 = vadd.f32 %v5519, %v5711
    %5713 = vmatprep.mubr.bf16.mxu0 %v2053
    %5714 = vmatmul.mubr.bf16.gmra.mxu0 %v2052
    %v5715 = vpop.f32.mrf.mxu0
    %v5716 = vadd.f32 %v5523, %v5715
    %v5717 = vpop.f32.mrf.mxu0
    %v5718 = vadd.f32 %v5525, %v5717
    %v5719 = vpop.f32.mrf.mxu0
    %v5720 = vadd.f32 %v5527, %v5719
    %v5721 = vpop.f32.mrf.mxu0
    %v5722 = vadd.f32 %v5529, %v5721
    %5723 = vmatprep.mubr.bf16.mxu0 %v2077
    %5724 = vmatmul.mubr.bf16.gmra.mxu0 %v2076
    %v5725 = vpop.f32.mrf.mxu0
    %v5726 = vadd.f32 %v5533, %v5725
    %v5727 = vpop.f32.mrf.mxu0
    %v5728 = vadd.f32 %v5535, %v5727
    %v5729 = vpop.f32.mrf.mxu0
    %v5730 = vadd.f32 %v5537, %v5729
    %v5731 = vpop.f32.mrf.mxu0
    %v5732 = vadd.f32 %v5539, %v5731
    %5733 = vmatprep.mubr.bf16.mxu0 %v2101
    %5734 = vmatmul.mubr.bf16.gmra.mxu0 %v2100
    %v5735 = vpop.f32.mrf.mxu0
    %v5736 = vadd.f32 %v5543, %v5735
    %v5737 = vpop.f32.mrf.mxu0
    %v5738 = vadd.f32 %v5545, %v5737
    %v5739 = vpop.f32.mrf.mxu0
    %v5740 = vadd.f32 %v5547, %v5739
    %v5741 = vpop.f32.mrf.mxu0
    %v5742 = vadd.f32 %v5549, %v5741
    %5743 = vmatprep.mubr.bf16.mxu0 %v2125
    %5744 = vmatmul.mubr.bf16.gmra.mxu0 %v2124
    %v5745 = vpop.f32.mrf.mxu0
    %v5746 = vadd.f32 %v5553, %v5745
    %v5747 = vpop.f32.mrf.mxu0
    %v5748 = vadd.f32 %v5555, %v5747
    %v5749 = vpop.f32.mrf.mxu0
    %v5750 = vadd.f32 %v5557, %v5749
    %v5751 = vpop.f32.mrf.mxu0
    %v5752 = vadd.f32 %v5559, %v5751
    %5753 = vmatprep.mubr.bf16.mxu0 %v2149
    %5754 = vmatmul.mubr.bf16.gmra.mxu0 %v2148
    %v5755 = vpop.f32.mrf.mxu0
    %v5756 = vadd.f32 %v5563, %v5755
    %v5757 = vpop.f32.mrf.mxu0
    %v5758 = vadd.f32 %v5565, %v5757
    %v5759 = vpop.f32.mrf.mxu0
    %v5760 = vadd.f32 %v5567, %v5759
    %v5761 = vpop.f32.mrf.mxu0
    %v5762 = vadd.f32 %v5569, %v5761
    %5763 = vmatprep.mubr.bf16.mxu0 %v2173
    %5764 = vmatmul.mubr.bf16.gmra.mxu0 %v2172
    %v5765 = vpop.f32.mrf.mxu0
    %v5766 = vadd.f32 %v5573, %v5765
    %v5767 = vpop.f32.mrf.mxu0
    %v5768 = vadd.f32 %v5575, %v5767
    %v5769 = vpop.f32.mrf.mxu0
    %v5770 = vadd.f32 %v5577, %v5769
    %v5771 = vpop.f32.mrf.mxu0
    %v5772 = vadd.f32 %v5579, %v5771
    %5773 = vmatprep.mubr.bf16.mxu0 %v2197
    %5774 = vmatmul.mubr.bf16.gmra.mxu0 %v2196
    %v5775 = vpop.f32.mrf.mxu0
    %v5776 = vadd.f32 %v5583, %v5775
    %v5777 = vpop.f32.mrf.mxu0
    %v5778 = vadd.f32 %v5585, %v5777
    %v5779 = vpop.f32.mrf.mxu0
    %v5780 = vadd.f32 %v5587, %v5779
    %v5781 = vpop.f32.mrf.mxu0
    %v5782 = vadd.f32 %v5589, %v5781
    %5783 = vmatprep.mubr.bf16.mxu0 %v2221
    %5784 = vmatmul.mubr.bf16.gmra.mxu0 %v2220
    %v5785 = vpop.f32.mrf.mxu0
    %v5786 = vadd.f32 %v5593, %v5785
    %v5787 = vpop.f32.mrf.mxu0
    %v5788 = vadd.f32 %v5595, %v5787
    %v5789 = vpop.f32.mrf.mxu0
    %v5790 = vadd.f32 %v5597, %v5789
    %v5791 = vpop.f32.mrf.mxu0
    %v5792 = vadd.f32 %v5599, %v5791
    %5793 = vmatprep.mubr.bf16.mxu0 %v2245
    %5794 = vmatmul.mubr.bf16.gmra.mxu0 %v2244
    %v5795 = vpop.f32.mrf.mxu0
    %v5796 = vadd.f32 %v5603, %v5795
    %v5797 = vpop.f32.mrf.mxu0
    %v5798 = vadd.f32 %v5605, %v5797
    %v5799 = vpop.f32.mrf.mxu0
    %v5800 = vadd.f32 %v5607, %v5799
    %v5801 = vpop.f32.mrf.mxu0
    %v5802 = vadd.f32 %v5609, %v5801
    %5803 = vmatprep.mubr.bf16.mxu0 %v2269
    %5804 = vmatmul.mubr.bf16.gmra.mxu0 %v2268
    %v5805 = vpop.f32.mrf.mxu0
    %v5806 = vadd.f32 %v5613, %v5805
    %v5807 = vpop.f32.mrf.mxu0
    %v5808 = vadd.f32 %v5615, %v5807
    %v5809 = vpop.f32.mrf.mxu0
    %v5810 = vadd.f32 %v5617, %v5809
    %v5811 = vpop.f32.mrf.mxu0
    %v5812 = vadd.f32 %v5619, %v5811
    %5813 = vmatprep.mubr.bf16.mxu0 %v2293
    %5814 = vmatmul.mubr.bf16.gmra.mxu0 %v2292
    %v5815 = vpop.f32.mrf.mxu0
    %v5816 = vadd.f32 %v5623, %v5815
    %v5817 = vpop.f32.mrf.mxu0
    %v5818 = vadd.f32 %v5625, %v5817
    %v5819 = vpop.f32.mrf.mxu0
    %v5820 = vadd.f32 %v5627, %v5819
    %v5821 = vpop.f32.mrf.mxu0
    %v5822 = vadd.f32 %v5629, %v5821
    %5823 = vmatprep.mubr.bf16.mxu0 %v2317
    %5824 = vmatmul.mubr.bf16.gmra.mxu0 %v2316
    %v5825 = vpop.f32.mrf.mxu0
    %v5826 = vadd.f32 %v5633, %v5825
    %v5827 = vpop.f32.mrf.mxu0
    %v5828 = vadd.f32 %v5635, %v5827
    %v5829 = vpop.f32.mrf.mxu0
    %v5830 = vadd.f32 %v5637, %v5829
    %v5831 = vpop.f32.mrf.mxu0
    %v5832 = vadd.f32 %v5639, %v5831
    %5833 = vmatprep.mubr.bf16.mxu0 %v2341
    %5834 = vmatmul.mubr.bf16.gmra.mxu0 %v2340
    %v5835 = vpop.f32.mrf.mxu0
    %v5836 = vadd.f32 %v5643, %v5835
    %v5837 = vpop.f32.mrf.mxu0
    %v5838 = vadd.f32 %v5645, %v5837
    %v5839 = vpop.f32.mrf.mxu0
    %v5840 = vadd.f32 %v5647, %v5839
    %v5841 = vpop.f32.mrf.mxu0
    %v5842 = vadd.f32 %v5649, %v5841
    %5843 = vmatprep.mubr.bf16.mxu0 %v2365
    %5844 = vmatmul.mubr.bf16.gmra.mxu0 %v2364
    %v5845 = vpop.f32.mrf.mxu0
    %v5846 = vadd.f32 %v5653, %v5845
    %v5847 = vpop.f32.mrf.mxu0
    %v5848 = vadd.f32 %v5655, %v5847
    %v5849 = vpop.f32.mrf.mxu0
    %v5850 = vadd.f32 %v5657, %v5849
    %v5851 = vpop.f32.mrf.mxu0
    %v5852 = vadd.f32 %v5659, %v5851
    %5853 = vmatprep.mubr.bf16.mxu0 %v2389
    %5854 = vmatmul.mubr.bf16.gmra.mxu0 %v2388
    %v5855 = vpop.f32.mrf.mxu0
    %v5856 = vadd.f32 %v5663, %v5855
    %v5857 = vpop.f32.mrf.mxu0
    %v5858 = vadd.f32 %v5665, %v5857
    %v5859 = vpop.f32.mrf.mxu0
    %v5860 = vadd.f32 %v5667, %v5859
    %v5861 = vpop.f32.mrf.mxu0
    %v5862 = vadd.f32 %v5669, %v5861
    %5863 = vdwg.mxu0
    %5864 = vmatprep.subr.bf16.mxu0 %v4145
    %5865 = vmatpush1.bf16.msra.mxu0 %v4144
    %5866 = vmatprep.subr.bf16.mxu0 %v4143
    %5867 = vmatpush1.bf16.msra.mxu0 %v4142
    %5868 = vmatprep.subr.bf16.mxu0 %v4141
    %5869 = vmatpush1.bf16.msra.mxu0 %v4140
    %5870 = vmatprep.subr.bf16.mxu0 %v4139
    %5871 = vmatpush1.bf16.msra.mxu0 %v4138
    %5872 = vmatprep.subr.bf16.mxu0 %v4137
    %5873 = vmatpush1.bf16.msra.mxu0 %v4136
    %5874 = vmatprep.subr.bf16.mxu0 %v4135
    %5875 = vmatpush1.bf16.msra.mxu0 %v4134
    %5876 = vmatprep.subr.bf16.mxu0 %v4133
    %5877 = vmatpush1.bf16.msra.mxu0 %v4132
    %5878 = vmatprep.subr.bf16.mxu0 %v4131
    %5879 = vmatpush1.bf16.msra.mxu0 %v4130
    %5880 = vmatprep.subr.bf16.mxu0 %v4161
    %5881 = vmatpush2.bf16.msra.mxu0 %v4160
    %5882 = vmatprep.subr.bf16.mxu0 %v4159
    %5883 = vmatpush2.bf16.msra.mxu0 %v4158
    %5884 = vmatprep.subr.bf16.mxu0 %v4157
    %5885 = vmatpush2.bf16.msra.mxu0 %v4156
    %5886 = vmatprep.subr.bf16.mxu0 %v4155
    %5887 = vmatpush2.bf16.msra.mxu0 %v4154
    %5888 = vmatprep.subr.bf16.mxu0 %v4153
    %5889 = vmatpush2.bf16.msra.mxu0 %v4152
    %5890 = vmatprep.subr.bf16.mxu0 %v4151
    %5891 = vmatpush2.bf16.msra.mxu0 %v4150
    %5892 = vmatprep.subr.bf16.mxu0 %v4149
    %5893 = vmatpush2.bf16.msra.mxu0 %v4148
    %5894 = vmatprep.subr.bf16.mxu0 %v4147
    %5895 = vmatpush2.bf16.msra.mxu0 %v4146
    %5896 = vmatprep.mubr.bf16.mxu0 %v2031
    %5897 = vmatmul.mubr.bf16.gmra.mxu0 %v2030
    %v5898 = vpop.f32.mrf.mxu0
    %v5899 = vadd.f32 %v5706, %v5898
    %v5900 = vpop.f32.mrf.mxu0
    %v5901 = vadd.f32 %v5708, %v5900
    %v5902 = vpop.f32.mrf.mxu0
    %v5903 = vadd.f32 %v5710, %v5902
    %v5904 = vpop.f32.mrf.mxu0
    %v5905 = vadd.f32 %v5712, %v5904
    %5906 = vmatprep.mubr.bf16.mxu0 %v2055
    %5907 = vmatmul.mubr.bf16.gmra.mxu0 %v2054
    %v5908 = vpop.f32.mrf.mxu0
    %v5909 = vadd.f32 %v5716, %v5908
    %v5910 = vpop.f32.mrf.mxu0
    %v5911 = vadd.f32 %v5718, %v5910
    %v5912 = vpop.f32.mrf.mxu0
    %v5913 = vadd.f32 %v5720, %v5912
    %v5914 = vpop.f32.mrf.mxu0
    %v5915 = vadd.f32 %v5722, %v5914
    %5916 = vmatprep.mubr.bf16.mxu0 %v2079
    %5917 = vmatmul.mubr.bf16.gmra.mxu0 %v2078
    %v5918 = vpop.f32.mrf.mxu0
    %v5919 = vadd.f32 %v5726, %v5918
    %v5920 = vpop.f32.mrf.mxu0
    %v5921 = vadd.f32 %v5728, %v5920
    %v5922 = vpop.f32.mrf.mxu0
    %v5923 = vadd.f32 %v5730, %v5922
    %v5924 = vpop.f32.mrf.mxu0
    %v5925 = vadd.f32 %v5732, %v5924
    %5926 = vmatprep.mubr.bf16.mxu0 %v2103
    %5927 = vmatmul.mubr.bf16.gmra.mxu0 %v2102
    %v5928 = vpop.f32.mrf.mxu0
    %v5929 = vadd.f32 %v5736, %v5928
    %v5930 = vpop.f32.mrf.mxu0
    %v5931 = vadd.f32 %v5738, %v5930
    %v5932 = vpop.f32.mrf.mxu0
    %v5933 = vadd.f32 %v5740, %v5932
    %v5934 = vpop.f32.mrf.mxu0
    %v5935 = vadd.f32 %v5742, %v5934
    %5936 = vmatprep.mubr.bf16.mxu0 %v2127
    %5937 = vmatmul.mubr.bf16.gmra.mxu0 %v2126
    %v5938 = vpop.f32.mrf.mxu0
    %v5939 = vadd.f32 %v5746, %v5938
    %v5940 = vpop.f32.mrf.mxu0
    %v5941 = vadd.f32 %v5748, %v5940
    %v5942 = vpop.f32.mrf.mxu0
    %v5943 = vadd.f32 %v5750, %v5942
    %v5944 = vpop.f32.mrf.mxu0
    %v5945 = vadd.f32 %v5752, %v5944
    %5946 = vmatprep.mubr.bf16.mxu0 %v2151
    %5947 = vmatmul.mubr.bf16.gmra.mxu0 %v2150
    %v5948 = vpop.f32.mrf.mxu0
    %v5949 = vadd.f32 %v5756, %v5948
    %v5950 = vpop.f32.mrf.mxu0
    %v5951 = vadd.f32 %v5758, %v5950
    %v5952 = vpop.f32.mrf.mxu0
    %v5953 = vadd.f32 %v5760, %v5952
    %v5954 = vpop.f32.mrf.mxu0
    %v5955 = vadd.f32 %v5762, %v5954
    %5956 = vmatprep.mubr.bf16.mxu0 %v2175
    %5957 = vmatmul.mubr.bf16.gmra.mxu0 %v2174
    %v5958 = vpop.f32.mrf.mxu0
    %v5959 = vadd.f32 %v5766, %v5958
    %v5960 = vpop.f32.mrf.mxu0
    %v5961 = vadd.f32 %v5768, %v5960
    %v5962 = vpop.f32.mrf.mxu0
    %v5963 = vadd.f32 %v5770, %v5962
    %v5964 = vpop.f32.mrf.mxu0
    %v5965 = vadd.f32 %v5772, %v5964
    %5966 = vmatprep.mubr.bf16.mxu0 %v2199
    %5967 = vmatmul.mubr.bf16.gmra.mxu0 %v2198
    %v5968 = vpop.f32.mrf.mxu0
    %v5969 = vadd.f32 %v5776, %v5968
    %v5970 = vpop.f32.mrf.mxu0
    %v5971 = vadd.f32 %v5778, %v5970
    %v5972 = vpop.f32.mrf.mxu0
    %v5973 = vadd.f32 %v5780, %v5972
    %v5974 = vpop.f32.mrf.mxu0
    %v5975 = vadd.f32 %v5782, %v5974
    %5976 = vmatprep.mubr.bf16.mxu0 %v2223
    %5977 = vmatmul.mubr.bf16.gmra.mxu0 %v2222
    %v5978 = vpop.f32.mrf.mxu0
    %v5979 = vadd.f32 %v5786, %v5978
    %v5980 = vpop.f32.mrf.mxu0
    %v5981 = vadd.f32 %v5788, %v5980
    %v5982 = vpop.f32.mrf.mxu0
    %v5983 = vadd.f32 %v5790, %v5982
    %v5984 = vpop.f32.mrf.mxu0
    %v5985 = vadd.f32 %v5792, %v5984
    %5986 = vmatprep.mubr.bf16.mxu0 %v2247
    %5987 = vmatmul.mubr.bf16.gmra.mxu0 %v2246
    %v5988 = vpop.f32.mrf.mxu0
    %v5989 = vadd.f32 %v5796, %v5988
    %v5990 = vpop.f32.mrf.mxu0
    %v5991 = vadd.f32 %v5798, %v5990
    %v5992 = vpop.f32.mrf.mxu0
    %v5993 = vadd.f32 %v5800, %v5992
    %v5994 = vpop.f32.mrf.mxu0
    %v5995 = vadd.f32 %v5802, %v5994
    %5996 = vmatprep.mubr.bf16.mxu0 %v2271
    %5997 = vmatmul.mubr.bf16.gmra.mxu0 %v2270
    %v5998 = vpop.f32.mrf.mxu0
    %v5999 = vadd.f32 %v5806, %v5998
    %v6000 = vpop.f32.mrf.mxu0
    %v6001 = vadd.f32 %v5808, %v6000
    %v6002 = vpop.f32.mrf.mxu0
    %v6003 = vadd.f32 %v5810, %v6002
    %v6004 = vpop.f32.mrf.mxu0
    %v6005 = vadd.f32 %v5812, %v6004
    %6006 = vmatprep.mubr.bf16.mxu0 %v2295
    %6007 = vmatmul.mubr.bf16.gmra.mxu0 %v2294
    %v6008 = vpop.f32.mrf.mxu0
    %v6009 = vadd.f32 %v5816, %v6008
    %v6010 = vpop.f32.mrf.mxu0
    %v6011 = vadd.f32 %v5818, %v6010
    %v6012 = vpop.f32.mrf.mxu0
    %v6013 = vadd.f32 %v5820, %v6012
    %v6014 = vpop.f32.mrf.mxu0
    %v6015 = vadd.f32 %v5822, %v6014
    %6016 = vmatprep.mubr.bf16.mxu0 %v2319
    %6017 = vmatmul.mubr.bf16.gmra.mxu0 %v2318
    %v6018 = vpop.f32.mrf.mxu0
    %v6019 = vadd.f32 %v5826, %v6018
    %v6020 = vpop.f32.mrf.mxu0
    %v6021 = vadd.f32 %v5828, %v6020
    %v6022 = vpop.f32.mrf.mxu0
    %v6023 = vadd.f32 %v5830, %v6022
    %v6024 = vpop.f32.mrf.mxu0
    %v6025 = vadd.f32 %v5832, %v6024
    %6026 = vmatprep.mubr.bf16.mxu0 %v2343
    %6027 = vmatmul.mubr.bf16.gmra.mxu0 %v2342
    %v6028 = vpop.f32.mrf.mxu0
    %v6029 = vadd.f32 %v5836, %v6028
    %v6030 = vpop.f32.mrf.mxu0
    %v6031 = vadd.f32 %v5838, %v6030
    %v6032 = vpop.f32.mrf.mxu0
    %v6033 = vadd.f32 %v5840, %v6032
    %v6034 = vpop.f32.mrf.mxu0
    %v6035 = vadd.f32 %v5842, %v6034
    %6036 = vmatprep.mubr.bf16.mxu0 %v2367
    %6037 = vmatmul.mubr.bf16.gmra.mxu0 %v2366
    %v6038 = vpop.f32.mrf.mxu0
    %v6039 = vadd.f32 %v5846, %v6038
    %v6040 = vpop.f32.mrf.mxu0
    %v6041 = vadd.f32 %v5848, %v6040
    %v6042 = vpop.f32.mrf.mxu0
    %v6043 = vadd.f32 %v5850, %v6042
    %v6044 = vpop.f32.mrf.mxu0
    %v6045 = vadd.f32 %v5852, %v6044
    %6046 = vmatprep.mubr.bf16.mxu0 %v2391
    %6047 = vmatmul.mubr.bf16.gmra.mxu0 %v2390
    %v6048 = vpop.f32.mrf.mxu0
    %v6049 = vadd.f32 %v5856, %v6048
    %v6050 = vpop.f32.mrf.mxu0
    %v6051 = vadd.f32 %v5858, %v6050
    %v6052 = vpop.f32.mrf.mxu0
    %v6053 = vadd.f32 %v5860, %v6052
    %v6054 = vpop.f32.mrf.mxu0
    %v6055 = vadd.f32 %v5862, %v6054
    %6056 = vdwg.mxu0
    %6057 = vmatprep.subr.bf16.mxu0 %v4177
    %6058 = vmatpush1.bf16.msra.mxu0 %v4176
    %6059 = vmatprep.subr.bf16.mxu0 %v4175
    %6060 = vmatpush1.bf16.msra.mxu0 %v4174
    %6061 = vmatprep.subr.bf16.mxu0 %v4173
    %6062 = vmatpush1.bf16.msra.mxu0 %v4172
    %6063 = vmatprep.subr.bf16.mxu0 %v4171
    %6064 = vmatpush1.bf16.msra.mxu0 %v4170
    %6065 = vmatprep.subr.bf16.mxu0 %v4169
    %6066 = vmatpush1.bf16.msra.mxu0 %v4168
    %6067 = vmatprep.subr.bf16.mxu0 %v4167
    %6068 = vmatpush1.bf16.msra.mxu0 %v4166
    %6069 = vmatprep.subr.bf16.mxu0 %v4165
    %6070 = vmatpush1.bf16.msra.mxu0 %v4164
    %6071 = vmatprep.subr.bf16.mxu0 %v4163
    %6072 = vmatpush1.bf16.msra.mxu0 %v4162
    %6073 = vmatprep.subr.bf16.mxu0 %v4193
    %6074 = vmatpush2.bf16.msra.mxu0 %v4192
    %6075 = vmatprep.subr.bf16.mxu0 %v4191
    %6076 = vmatpush2.bf16.msra.mxu0 %v4190
    %6077 = vmatprep.subr.bf16.mxu0 %v4189
    %6078 = vmatpush2.bf16.msra.mxu0 %v4188
    %6079 = vmatprep.subr.bf16.mxu0 %v4187
    %6080 = vmatpush2.bf16.msra.mxu0 %v4186
    %6081 = vmatprep.subr.bf16.mxu0 %v4185
    %6082 = vmatpush2.bf16.msra.mxu0 %v4184
    %6083 = vmatprep.subr.bf16.mxu0 %v4183
    %6084 = vmatpush2.bf16.msra.mxu0 %v4182
    %6085 = vmatprep.subr.bf16.mxu0 %v4181
    %6086 = vmatpush2.bf16.msra.mxu0 %v4180
    %6087 = vmatprep.subr.bf16.mxu0 %v4179
    %6088 = vmatpush2.bf16.msra.mxu0 %v4178
    %6089 = vmatprep.mubr.bf16.mxu0 %v2033
    %6090 = vmatmul.mubr.bf16.gmra.mxu0 %v2032
    %v6091 = vpop.f32.mrf.mxu0
    %v6092 = vadd.f32 %v5899, %v6091
    %v6093 = vpop.f32.mrf.mxu0
    %v6094 = vadd.f32 %v5901, %v6093
    %v6095 = vpop.f32.mrf.mxu0
    %v6096 = vadd.f32 %v5903, %v6095
    %v6097 = vpop.f32.mrf.mxu0
    %v6098 = vadd.f32 %v5905, %v6097
    %6099 = vmatprep.mubr.bf16.mxu0 %v2057
    %6100 = vmatmul.mubr.bf16.gmra.mxu0 %v2056
    %v6101 = vpop.f32.mrf.mxu0
    %v6102 = vadd.f32 %v5909, %v6101
    %v6103 = vpop.f32.mrf.mxu0
    %v6104 = vadd.f32 %v5911, %v6103
    %v6105 = vpop.f32.mrf.mxu0
    %v6106 = vadd.f32 %v5913, %v6105
    %v6107 = vpop.f32.mrf.mxu0
    %v6108 = vadd.f32 %v5915, %v6107
    %6109 = vmatprep.mubr.bf16.mxu0 %v2081
    %6110 = vmatmul.mubr.bf16.gmra.mxu0 %v2080
    %v6111 = vpop.f32.mrf.mxu0
    %v6112 = vadd.f32 %v5919, %v6111
    %v6113 = vpop.f32.mrf.mxu0
    %v6114 = vadd.f32 %v5921, %v6113
    %v6115 = vpop.f32.mrf.mxu0
    %v6116 = vadd.f32 %v5923, %v6115
    %v6117 = vpop.f32.mrf.mxu0
    %v6118 = vadd.f32 %v5925, %v6117
    %6119 = vmatprep.mubr.bf16.mxu0 %v2105
    %6120 = vmatmul.mubr.bf16.gmra.mxu0 %v2104
    %v6121 = vpop.f32.mrf.mxu0
    %v6122 = vadd.f32 %v5929, %v6121
    %v6123 = vpop.f32.mrf.mxu0
    %v6124 = vadd.f32 %v5931, %v6123
    %v6125 = vpop.f32.mrf.mxu0
    %v6126 = vadd.f32 %v5933, %v6125
    %v6127 = vpop.f32.mrf.mxu0
    %v6128 = vadd.f32 %v5935, %v6127
    %6129 = vmatprep.mubr.bf16.mxu0 %v2129
    %6130 = vmatmul.mubr.bf16.gmra.mxu0 %v2128
    %v6131 = vpop.f32.mrf.mxu0
    %v6132 = vadd.f32 %v5939, %v6131
    %v6133 = vpop.f32.mrf.mxu0
    %v6134 = vadd.f32 %v5941, %v6133
    %v6135 = vpop.f32.mrf.mxu0
    %v6136 = vadd.f32 %v5943, %v6135
    %v6137 = vpop.f32.mrf.mxu0
    %v6138 = vadd.f32 %v5945, %v6137
    %6139 = vmatprep.mubr.bf16.mxu0 %v2153
    %6140 = vmatmul.mubr.bf16.gmra.mxu0 %v2152
    %v6141 = vpop.f32.mrf.mxu0
    %v6142 = vadd.f32 %v5949, %v6141
    %v6143 = vpop.f32.mrf.mxu0
    %v6144 = vadd.f32 %v5951, %v6143
    %v6145 = vpop.f32.mrf.mxu0
    %v6146 = vadd.f32 %v5953, %v6145
    %v6147 = vpop.f32.mrf.mxu0
    %v6148 = vadd.f32 %v5955, %v6147
    %6149 = vmatprep.mubr.bf16.mxu0 %v2177
    %6150 = vmatmul.mubr.bf16.gmra.mxu0 %v2176
    %v6151 = vpop.f32.mrf.mxu0
    %v6152 = vadd.f32 %v5959, %v6151
    %v6153 = vpop.f32.mrf.mxu0
    %v6154 = vadd.f32 %v5961, %v6153
    %v6155 = vpop.f32.mrf.mxu0
    %v6156 = vadd.f32 %v5963, %v6155
    %v6157 = vpop.f32.mrf.mxu0
    %v6158 = vadd.f32 %v5965, %v6157
    %6159 = vmatprep.mubr.bf16.mxu0 %v2201
    %6160 = vmatmul.mubr.bf16.gmra.mxu0 %v2200
    %v6161 = vpop.f32.mrf.mxu0
    %v6162 = vadd.f32 %v5969, %v6161
    %v6163 = vpop.f32.mrf.mxu0
    %v6164 = vadd.f32 %v5971, %v6163
    %v6165 = vpop.f32.mrf.mxu0
    %v6166 = vadd.f32 %v5973, %v6165
    %v6167 = vpop.f32.mrf.mxu0
    %v6168 = vadd.f32 %v5975, %v6167
    %6169 = vmatprep.mubr.bf16.mxu0 %v2225
    %6170 = vmatmul.mubr.bf16.gmra.mxu0 %v2224
    %v6171 = vpop.f32.mrf.mxu0
    %v6172 = vadd.f32 %v5979, %v6171
    %v6173 = vpop.f32.mrf.mxu0
    %v6174 = vadd.f32 %v5981, %v6173
    %v6175 = vpop.f32.mrf.mxu0
    %v6176 = vadd.f32 %v5983, %v6175
    %v6177 = vpop.f32.mrf.mxu0
    %v6178 = vadd.f32 %v5985, %v6177
    %6179 = vmatprep.mubr.bf16.mxu0 %v2249
    %6180 = vmatmul.mubr.bf16.gmra.mxu0 %v2248
    %v6181 = vpop.f32.mrf.mxu0
    %v6182 = vadd.f32 %v5989, %v6181
    %v6183 = vpop.f32.mrf.mxu0
    %v6184 = vadd.f32 %v5991, %v6183
    %v6185 = vpop.f32.mrf.mxu0
    %v6186 = vadd.f32 %v5993, %v6185
    %v6187 = vpop.f32.mrf.mxu0
    %v6188 = vadd.f32 %v5995, %v6187
    %6189 = vmatprep.mubr.bf16.mxu0 %v2273
    %6190 = vmatmul.mubr.bf16.gmra.mxu0 %v2272
    %v6191 = vpop.f32.mrf.mxu0
    %v6192 = vadd.f32 %v5999, %v6191
    %v6193 = vpop.f32.mrf.mxu0
    %v6194 = vadd.f32 %v6001, %v6193
    %v6195 = vpop.f32.mrf.mxu0
    %v6196 = vadd.f32 %v6003, %v6195
    %v6197 = vpop.f32.mrf.mxu0
    %v6198 = vadd.f32 %v6005, %v6197
    %6199 = vmatprep.mubr.bf16.mxu0 %v2297
    %6200 = vmatmul.mubr.bf16.gmra.mxu0 %v2296
    %v6201 = vpop.f32.mrf.mxu0
    %v6202 = vadd.f32 %v6009, %v6201
    %v6203 = vpop.f32.mrf.mxu0
    %v6204 = vadd.f32 %v6011, %v6203
    %v6205 = vpop.f32.mrf.mxu0
    %v6206 = vadd.f32 %v6013, %v6205
    %v6207 = vpop.f32.mrf.mxu0
    %v6208 = vadd.f32 %v6015, %v6207
    %6209 = vmatprep.mubr.bf16.mxu0 %v2321
    %6210 = vmatmul.mubr.bf16.gmra.mxu0 %v2320
    %v6211 = vpop.f32.mrf.mxu0
    %v6212 = vadd.f32 %v6019, %v6211
    %v6213 = vpop.f32.mrf.mxu0
    %v6214 = vadd.f32 %v6021, %v6213
    %v6215 = vpop.f32.mrf.mxu0
    %v6216 = vadd.f32 %v6023, %v6215
    %v6217 = vpop.f32.mrf.mxu0
    %v6218 = vadd.f32 %v6025, %v6217
    %6219 = vmatprep.mubr.bf16.mxu0 %v2345
    %6220 = vmatmul.mubr.bf16.gmra.mxu0 %v2344
    %v6221 = vpop.f32.mrf.mxu0
    %v6222 = vadd.f32 %v6029, %v6221
    %v6223 = vpop.f32.mrf.mxu0
    %v6224 = vadd.f32 %v6031, %v6223
    %v6225 = vpop.f32.mrf.mxu0
    %v6226 = vadd.f32 %v6033, %v6225
    %v6227 = vpop.f32.mrf.mxu0
    %v6228 = vadd.f32 %v6035, %v6227
    %6229 = vmatprep.mubr.bf16.mxu0 %v2369
    %6230 = vmatmul.mubr.bf16.gmra.mxu0 %v2368
    %v6231 = vpop.f32.mrf.mxu0
    %v6232 = vadd.f32 %v6039, %v6231
    %v6233 = vpop.f32.mrf.mxu0
    %v6234 = vadd.f32 %v6041, %v6233
    %v6235 = vpop.f32.mrf.mxu0
    %v6236 = vadd.f32 %v6043, %v6235
    %v6237 = vpop.f32.mrf.mxu0
    %v6238 = vadd.f32 %v6045, %v6237
    %6239 = vmatprep.mubr.bf16.mxu0 %v2393
    %6240 = vmatmul.mubr.bf16.gmra.mxu0 %v2392
    %v6241 = vpop.f32.mrf.mxu0
    %v6242 = vadd.f32 %v6049, %v6241
    %v6243 = vpop.f32.mrf.mxu0
    %v6244 = vadd.f32 %v6051, %v6243
    %v6245 = vpop.f32.mrf.mxu0
    %v6246 = vadd.f32 %v6053, %v6245
    %v6247 = vpop.f32.mrf.mxu0
    %v6248 = vadd.f32 %v6055, %v6247
    %6249 = vdwg.mxu0
    %6250 = vmatprep.subr.bf16.mxu0 %v4209
    %6251 = vmatpush1.bf16.msra.mxu0 %v4208
    %6252 = vmatprep.subr.bf16.mxu0 %v4207
    %6253 = vmatpush1.bf16.msra.mxu0 %v4206
    %6254 = vmatprep.subr.bf16.mxu0 %v4205
    %6255 = vmatpush1.bf16.msra.mxu0 %v4204
    %6256 = vmatprep.subr.bf16.mxu0 %v4203
    %6257 = vmatpush1.bf16.msra.mxu0 %v4202
    %6258 = vmatprep.subr.bf16.mxu0 %v4201
    %6259 = vmatpush1.bf16.msra.mxu0 %v4200
    %6260 = vmatprep.subr.bf16.mxu0 %v4199
    %6261 = vmatpush1.bf16.msra.mxu0 %v4198
    %6262 = vmatprep.subr.bf16.mxu0 %v4197
    %6263 = vmatpush1.bf16.msra.mxu0 %v4196
    %6264 = vmatprep.subr.bf16.mxu0 %v4195
    %6265 = vmatpush1.bf16.msra.mxu0 %v4194
    %6266 = vmatprep.subr.bf16.mxu0 %v4225
    %6267 = vmatpush2.bf16.msra.mxu0 %v4224
    %6268 = vmatprep.subr.bf16.mxu0 %v4223
    %6269 = vmatpush2.bf16.msra.mxu0 %v4222
    %6270 = vmatprep.subr.bf16.mxu0 %v4221
    %6271 = vmatpush2.bf16.msra.mxu0 %v4220
    %6272 = vmatprep.subr.bf16.mxu0 %v4219
    %6273 = vmatpush2.bf16.msra.mxu0 %v4218
    %6274 = vmatprep.subr.bf16.mxu0 %v4217
    %6275 = vmatpush2.bf16.msra.mxu0 %v4216
    %6276 = vmatprep.subr.bf16.mxu0 %v4215
    %6277 = vmatpush2.bf16.msra.mxu0 %v4214
    %6278 = vmatprep.subr.bf16.mxu0 %v4213
    %6279 = vmatpush2.bf16.msra.mxu0 %v4212
    %6280 = vmatprep.subr.bf16.mxu0 %v4211
    %6281 = vmatpush2.bf16.msra.mxu0 %v4210
    %6282 = vmatprep.mubr.bf16.mxu0 %v2035
    %6283 = vmatmul.mubr.bf16.gmra.mxu0 %v2034
    %v6284 = vpop.f32.mrf.mxu0
    %v6285 = vadd.f32 %v6092, %v6284
    %v6286 = vpop.f32.mrf.mxu0
    %v6287 = vadd.f32 %v6094, %v6286
    %v6288 = vpop.f32.mrf.mxu0
    %v6289 = vadd.f32 %v6096, %v6288
    %v6290 = vpop.f32.mrf.mxu0
    %v6291 = vadd.f32 %v6098, %v6290
    %6292 = vmatprep.mubr.bf16.mxu0 %v2059
    %6293 = vmatmul.mubr.bf16.gmra.mxu0 %v2058
    %v6294 = vpop.f32.mrf.mxu0
    %v6295 = vadd.f32 %v6102, %v6294
    %v6296 = vpop.f32.mrf.mxu0
    %v6297 = vadd.f32 %v6104, %v6296
    %v6298 = vpop.f32.mrf.mxu0
    %v6299 = vadd.f32 %v6106, %v6298
    %v6300 = vpop.f32.mrf.mxu0
    %v6301 = vadd.f32 %v6108, %v6300
    %6302 = vmatprep.mubr.bf16.mxu0 %v2083
    %6303 = vmatmul.mubr.bf16.gmra.mxu0 %v2082
    %v6304 = vpop.f32.mrf.mxu0
    %v6305 = vadd.f32 %v6112, %v6304
    %v6306 = vpop.f32.mrf.mxu0
    %v6307 = vadd.f32 %v6114, %v6306
    %v6308 = vpop.f32.mrf.mxu0
    %v6309 = vadd.f32 %v6116, %v6308
    %v6310 = vpop.f32.mrf.mxu0
    %v6311 = vadd.f32 %v6118, %v6310
    %6312 = vmatprep.mubr.bf16.mxu0 %v2107
    %6313 = vmatmul.mubr.bf16.gmra.mxu0 %v2106
    %v6314 = vpop.f32.mrf.mxu0
    %v6315 = vadd.f32 %v6122, %v6314
    %v6316 = vpop.f32.mrf.mxu0
    %v6317 = vadd.f32 %v6124, %v6316
    %v6318 = vpop.f32.mrf.mxu0
    %v6319 = vadd.f32 %v6126, %v6318
    %v6320 = vpop.f32.mrf.mxu0
    %v6321 = vadd.f32 %v6128, %v6320
    %6322 = vmatprep.mubr.bf16.mxu0 %v2131
    %6323 = vmatmul.mubr.bf16.gmra.mxu0 %v2130
    %v6324 = vpop.f32.mrf.mxu0
    %v6325 = vadd.f32 %v6132, %v6324
    %v6326 = vpop.f32.mrf.mxu0
    %v6327 = vadd.f32 %v6134, %v6326
    %v6328 = vpop.f32.mrf.mxu0
    %v6329 = vadd.f32 %v6136, %v6328
    %v6330 = vpop.f32.mrf.mxu0
    %v6331 = vadd.f32 %v6138, %v6330
    %6332 = vmatprep.mubr.bf16.mxu0 %v2155
    %6333 = vmatmul.mubr.bf16.gmra.mxu0 %v2154
    %v6334 = vpop.f32.mrf.mxu0
    %v6335 = vadd.f32 %v6142, %v6334
    %v6336 = vpop.f32.mrf.mxu0
    %v6337 = vadd.f32 %v6144, %v6336
    %v6338 = vpop.f32.mrf.mxu0
    %v6339 = vadd.f32 %v6146, %v6338
    %v6340 = vpop.f32.mrf.mxu0
    %v6341 = vadd.f32 %v6148, %v6340
    %6342 = vmatprep.mubr.bf16.mxu0 %v2179
    %6343 = vmatmul.mubr.bf16.gmra.mxu0 %v2178
    %v6344 = vpop.f32.mrf.mxu0
    %v6345 = vadd.f32 %v6152, %v6344
    %v6346 = vpop.f32.mrf.mxu0
    %v6347 = vadd.f32 %v6154, %v6346
    %v6348 = vpop.f32.mrf.mxu0
    %v6349 = vadd.f32 %v6156, %v6348
    %v6350 = vpop.f32.mrf.mxu0
    %v6351 = vadd.f32 %v6158, %v6350
    %6352 = vmatprep.mubr.bf16.mxu0 %v2203
    %6353 = vmatmul.mubr.bf16.gmra.mxu0 %v2202
    %v6354 = vpop.f32.mrf.mxu0
    %v6355 = vadd.f32 %v6162, %v6354
    %v6356 = vpop.f32.mrf.mxu0
    %v6357 = vadd.f32 %v6164, %v6356
    %v6358 = vpop.f32.mrf.mxu0
    %v6359 = vadd.f32 %v6166, %v6358
    %v6360 = vpop.f32.mrf.mxu0
    %v6361 = vadd.f32 %v6168, %v6360
    %6362 = vmatprep.mubr.bf16.mxu0 %v2227
    %6363 = vmatmul.mubr.bf16.gmra.mxu0 %v2226
    %v6364 = vpop.f32.mrf.mxu0
    %v6365 = vadd.f32 %v6172, %v6364
    %v6366 = vpop.f32.mrf.mxu0
    %v6367 = vadd.f32 %v6174, %v6366
    %v6368 = vpop.f32.mrf.mxu0
    %v6369 = vadd.f32 %v6176, %v6368
    %v6370 = vpop.f32.mrf.mxu0
    %v6371 = vadd.f32 %v6178, %v6370
    %6372 = vmatprep.mubr.bf16.mxu0 %v2251
    %6373 = vmatmul.mubr.bf16.gmra.mxu0 %v2250
    %v6374 = vpop.f32.mrf.mxu0
    %v6375 = vadd.f32 %v6182, %v6374
    %v6376 = vpop.f32.mrf.mxu0
    %v6377 = vadd.f32 %v6184, %v6376
    %v6378 = vpop.f32.mrf.mxu0
    %v6379 = vadd.f32 %v6186, %v6378
    %v6380 = vpop.f32.mrf.mxu0
    %v6381 = vadd.f32 %v6188, %v6380
    %6382 = vmatprep.mubr.bf16.mxu0 %v2275
    %6383 = vmatmul.mubr.bf16.gmra.mxu0 %v2274
    %v6384 = vpop.f32.mrf.mxu0
    %v6385 = vadd.f32 %v6192, %v6384
    %v6386 = vpop.f32.mrf.mxu0
    %v6387 = vadd.f32 %v6194, %v6386
    %v6388 = vpop.f32.mrf.mxu0
    %v6389 = vadd.f32 %v6196, %v6388
    %v6390 = vpop.f32.mrf.mxu0
    %v6391 = vadd.f32 %v6198, %v6390
    %6392 = vmatprep.mubr.bf16.mxu0 %v2299
    %6393 = vmatmul.mubr.bf16.gmra.mxu0 %v2298
    %v6394 = vpop.f32.mrf.mxu0
    %v6395 = vadd.f32 %v6202, %v6394
    %v6396 = vpop.f32.mrf.mxu0
    %v6397 = vadd.f32 %v6204, %v6396
    %v6398 = vpop.f32.mrf.mxu0
    %v6399 = vadd.f32 %v6206, %v6398
    %v6400 = vpop.f32.mrf.mxu0
    %v6401 = vadd.f32 %v6208, %v6400
    %6402 = vmatprep.mubr.bf16.mxu0 %v2323
    %6403 = vmatmul.mubr.bf16.gmra.mxu0 %v2322
    %v6404 = vpop.f32.mrf.mxu0
    %v6405 = vadd.f32 %v6212, %v6404
    %v6406 = vpop.f32.mrf.mxu0
    %v6407 = vadd.f32 %v6214, %v6406
    %v6408 = vpop.f32.mrf.mxu0
    %v6409 = vadd.f32 %v6216, %v6408
    %v6410 = vpop.f32.mrf.mxu0
    %v6411 = vadd.f32 %v6218, %v6410
    %6412 = vmatprep.mubr.bf16.mxu0 %v2347
    %6413 = vmatmul.mubr.bf16.gmra.mxu0 %v2346
    %v6414 = vpop.f32.mrf.mxu0
    %v6415 = vadd.f32 %v6222, %v6414
    %v6416 = vpop.f32.mrf.mxu0
    %v6417 = vadd.f32 %v6224, %v6416
    %v6418 = vpop.f32.mrf.mxu0
    %v6419 = vadd.f32 %v6226, %v6418
    %v6420 = vpop.f32.mrf.mxu0
    %v6421 = vadd.f32 %v6228, %v6420
    %6422 = vmatprep.mubr.bf16.mxu0 %v2371
    %6423 = vmatmul.mubr.bf16.gmra.mxu0 %v2370
    %v6424 = vpop.f32.mrf.mxu0
    %v6425 = vadd.f32 %v6232, %v6424
    %v6426 = vpop.f32.mrf.mxu0
    %v6427 = vadd.f32 %v6234, %v6426
    %v6428 = vpop.f32.mrf.mxu0
    %v6429 = vadd.f32 %v6236, %v6428
    %v6430 = vpop.f32.mrf.mxu0
    %v6431 = vadd.f32 %v6238, %v6430
    %6432 = vmatprep.mubr.bf16.mxu0 %v2395
    %6433 = vmatmul.mubr.bf16.gmra.mxu0 %v2394
    %v6434 = vpop.f32.mrf.mxu0
    %v6435 = vadd.f32 %v6242, %v6434
    %v6436 = vpop.f32.mrf.mxu0
    %v6437 = vadd.f32 %v6244, %v6436
    %v6438 = vpop.f32.mrf.mxu0
    %v6439 = vadd.f32 %v6246, %v6438
    %v6440 = vpop.f32.mrf.mxu0
    %v6441 = vadd.f32 %v6248, %v6440
    %6442 = vdwg.mxu0
    %6443 = vmatprep.subr.bf16.mxu0 %v4241
    %6444 = vmatpush1.bf16.msra.mxu0 %v4240
    %6445 = vmatprep.subr.bf16.mxu0 %v4239
    %6446 = vmatpush1.bf16.msra.mxu0 %v4238
    %6447 = vmatprep.subr.bf16.mxu0 %v4237
    %6448 = vmatpush1.bf16.msra.mxu0 %v4236
    %6449 = vmatprep.subr.bf16.mxu0 %v4235
    %6450 = vmatpush1.bf16.msra.mxu0 %v4234
    %6451 = vmatprep.subr.bf16.mxu0 %v4233
    %6452 = vmatpush1.bf16.msra.mxu0 %v4232
    %6453 = vmatprep.subr.bf16.mxu0 %v4231
    %6454 = vmatpush1.bf16.msra.mxu0 %v4230
    %6455 = vmatprep.subr.bf16.mxu0 %v4229
    %6456 = vmatpush1.bf16.msra.mxu0 %v4228
    %6457 = vmatprep.subr.bf16.mxu0 %v4227
    %6458 = vmatpush1.bf16.msra.mxu0 %v4226
    %6459 = vmatprep.subr.bf16.mxu0 %v4257
    %6460 = vmatpush2.bf16.msra.mxu0 %v4256
    %6461 = vmatprep.subr.bf16.mxu0 %v4255
    %6462 = vmatpush2.bf16.msra.mxu0 %v4254
    %6463 = vmatprep.subr.bf16.mxu0 %v4253
    %6464 = vmatpush2.bf16.msra.mxu0 %v4252
    %6465 = vmatprep.subr.bf16.mxu0 %v4251
    %6466 = vmatpush2.bf16.msra.mxu0 %v4250
    %6467 = vmatprep.subr.bf16.mxu0 %v4249
    %6468 = vmatpush2.bf16.msra.mxu0 %v4248
    %6469 = vmatprep.subr.bf16.mxu0 %v4247
    %6470 = vmatpush2.bf16.msra.mxu0 %v4246
    %6471 = vmatprep.subr.bf16.mxu0 %v4245
    %6472 = vmatpush2.bf16.msra.mxu0 %v4244
    %6473 = vmatprep.subr.bf16.mxu0 %v4243
    %6474 = vmatpush2.bf16.msra.mxu0 %v4242
    %6475 = vmatprep.mubr.bf16.mxu0 %v2037
    %6476 = vmatmul.mubr.bf16.gmra.mxu0 %v2036
    %v6477 = vpop.f32.mrf.mxu0
    %v6478 = vadd.f32 %v6285, %v6477
    %v6479 = vpop.f32.mrf.mxu0
    %v6480 = vadd.f32 %v6287, %v6479
    %v6481 = vpop.f32.mrf.mxu0
    %v6482 = vadd.f32 %v6289, %v6481
    %v6483 = vpop.f32.mrf.mxu0
    %v6484 = vadd.f32 %v6291, %v6483
    %6485 = vmatprep.mubr.bf16.mxu0 %v2061
    %6486 = vmatmul.mubr.bf16.gmra.mxu0 %v2060
    %v6487 = vpop.f32.mrf.mxu0
    %v6488 = vadd.f32 %v6295, %v6487
    %v6489 = vpop.f32.mrf.mxu0
    %v6490 = vadd.f32 %v6297, %v6489
    %v6491 = vpop.f32.mrf.mxu0
    %v6492 = vadd.f32 %v6299, %v6491
    %v6493 = vpop.f32.mrf.mxu0
    %v6494 = vadd.f32 %v6301, %v6493
    %6495 = vmatprep.mubr.bf16.mxu0 %v2085
    %6496 = vmatmul.mubr.bf16.gmra.mxu0 %v2084
    %v6497 = vpop.f32.mrf.mxu0
    %v6498 = vadd.f32 %v6305, %v6497
    %v6499 = vpop.f32.mrf.mxu0
    %v6500 = vadd.f32 %v6307, %v6499
    %v6501 = vpop.f32.mrf.mxu0
    %v6502 = vadd.f32 %v6309, %v6501
    %v6503 = vpop.f32.mrf.mxu0
    %v6504 = vadd.f32 %v6311, %v6503
    %6505 = vmatprep.mubr.bf16.mxu0 %v2109
    %6506 = vmatmul.mubr.bf16.gmra.mxu0 %v2108
    %v6507 = vpop.f32.mrf.mxu0
    %v6508 = vadd.f32 %v6315, %v6507
    %v6509 = vpop.f32.mrf.mxu0
    %v6510 = vadd.f32 %v6317, %v6509
    %v6511 = vpop.f32.mrf.mxu0
    %v6512 = vadd.f32 %v6319, %v6511
    %v6513 = vpop.f32.mrf.mxu0
    %v6514 = vadd.f32 %v6321, %v6513
    %6515 = vmatprep.mubr.bf16.mxu0 %v2133
    %6516 = vmatmul.mubr.bf16.gmra.mxu0 %v2132
    %v6517 = vpop.f32.mrf.mxu0
    %v6518 = vadd.f32 %v6325, %v6517
    %v6519 = vpop.f32.mrf.mxu0
    %v6520 = vadd.f32 %v6327, %v6519
    %v6521 = vpop.f32.mrf.mxu0
    %v6522 = vadd.f32 %v6329, %v6521
    %v6523 = vpop.f32.mrf.mxu0
    %v6524 = vadd.f32 %v6331, %v6523
    %6525 = vmatprep.mubr.bf16.mxu0 %v2157
    %6526 = vmatmul.mubr.bf16.gmra.mxu0 %v2156
    %v6527 = vpop.f32.mrf.mxu0
    %v6528 = vadd.f32 %v6335, %v6527
    %v6529 = vpop.f32.mrf.mxu0
    %v6530 = vadd.f32 %v6337, %v6529
    %v6531 = vpop.f32.mrf.mxu0
    %v6532 = vadd.f32 %v6339, %v6531
    %v6533 = vpop.f32.mrf.mxu0
    %v6534 = vadd.f32 %v6341, %v6533
    %6535 = vmatprep.mubr.bf16.mxu0 %v2181
    %6536 = vmatmul.mubr.bf16.gmra.mxu0 %v2180
    %v6537 = vpop.f32.mrf.mxu0
    %v6538 = vadd.f32 %v6345, %v6537
    %v6539 = vpop.f32.mrf.mxu0
    %v6540 = vadd.f32 %v6347, %v6539
    %v6541 = vpop.f32.mrf.mxu0
    %v6542 = vadd.f32 %v6349, %v6541
    %v6543 = vpop.f32.mrf.mxu0
    %v6544 = vadd.f32 %v6351, %v6543
    %6545 = vmatprep.mubr.bf16.mxu0 %v2205
    %6546 = vmatmul.mubr.bf16.gmra.mxu0 %v2204
    %v6547 = vpop.f32.mrf.mxu0
    %v6548 = vadd.f32 %v6355, %v6547
    %v6549 = vpop.f32.mrf.mxu0
    %v6550 = vadd.f32 %v6357, %v6549
    %v6551 = vpop.f32.mrf.mxu0
    %v6552 = vadd.f32 %v6359, %v6551
    %v6553 = vpop.f32.mrf.mxu0
    %v6554 = vadd.f32 %v6361, %v6553
    %6555 = vmatprep.mubr.bf16.mxu0 %v2229
    %6556 = vmatmul.mubr.bf16.gmra.mxu0 %v2228
    %v6557 = vpop.f32.mrf.mxu0
    %v6558 = vadd.f32 %v6365, %v6557
    %v6559 = vpop.f32.mrf.mxu0
    %v6560 = vadd.f32 %v6367, %v6559
    %v6561 = vpop.f32.mrf.mxu0
    %v6562 = vadd.f32 %v6369, %v6561
    %v6563 = vpop.f32.mrf.mxu0
    %v6564 = vadd.f32 %v6371, %v6563
    %6565 = vmatprep.mubr.bf16.mxu0 %v2253
    %6566 = vmatmul.mubr.bf16.gmra.mxu0 %v2252
    %v6567 = vpop.f32.mrf.mxu0
    %v6568 = vadd.f32 %v6375, %v6567
    %v6569 = vpop.f32.mrf.mxu0
    %v6570 = vadd.f32 %v6377, %v6569
    %v6571 = vpop.f32.mrf.mxu0
    %v6572 = vadd.f32 %v6379, %v6571
    %v6573 = vpop.f32.mrf.mxu0
    %v6574 = vadd.f32 %v6381, %v6573
    %6575 = vmatprep.mubr.bf16.mxu0 %v2277
    %6576 = vmatmul.mubr.bf16.gmra.mxu0 %v2276
    %v6577 = vpop.f32.mrf.mxu0
    %v6578 = vadd.f32 %v6385, %v6577
    %v6579 = vpop.f32.mrf.mxu0
    %v6580 = vadd.f32 %v6387, %v6579
    %v6581 = vpop.f32.mrf.mxu0
    %v6582 = vadd.f32 %v6389, %v6581
    %v6583 = vpop.f32.mrf.mxu0
    %v6584 = vadd.f32 %v6391, %v6583
    %6585 = vmatprep.mubr.bf16.mxu0 %v2301
    %6586 = vmatmul.mubr.bf16.gmra.mxu0 %v2300
    %v6587 = vpop.f32.mrf.mxu0
    %v6588 = vadd.f32 %v6395, %v6587
    %v6589 = vpop.f32.mrf.mxu0
    %v6590 = vadd.f32 %v6397, %v6589
    %v6591 = vpop.f32.mrf.mxu0
    %v6592 = vadd.f32 %v6399, %v6591
    %v6593 = vpop.f32.mrf.mxu0
    %v6594 = vadd.f32 %v6401, %v6593
    %6595 = vmatprep.mubr.bf16.mxu0 %v2325
    %6596 = vmatmul.mubr.bf16.gmra.mxu0 %v2324
    %v6597 = vpop.f32.mrf.mxu0
    %v6598 = vadd.f32 %v6405, %v6597
    %v6599 = vpop.f32.mrf.mxu0
    %v6600 = vadd.f32 %v6407, %v6599
    %v6601 = vpop.f32.mrf.mxu0
    %v6602 = vadd.f32 %v6409, %v6601
    %v6603 = vpop.f32.mrf.mxu0
    %v6604 = vadd.f32 %v6411, %v6603
    %6605 = vmatprep.mubr.bf16.mxu0 %v2349
    %6606 = vmatmul.mubr.bf16.gmra.mxu0 %v2348
    %v6607 = vpop.f32.mrf.mxu0
    %v6608 = vadd.f32 %v6415, %v6607
    %v6609 = vpop.f32.mrf.mxu0
    %v6610 = vadd.f32 %v6417, %v6609
    %v6611 = vpop.f32.mrf.mxu0
    %v6612 = vadd.f32 %v6419, %v6611
    %v6613 = vpop.f32.mrf.mxu0
    %v6614 = vadd.f32 %v6421, %v6613
    %6615 = vmatprep.mubr.bf16.mxu0 %v2373
    %6616 = vmatmul.mubr.bf16.gmra.mxu0 %v2372
    %v6617 = vpop.f32.mrf.mxu0
    %v6618 = vadd.f32 %v6425, %v6617
    %v6619 = vpop.f32.mrf.mxu0
    %v6620 = vadd.f32 %v6427, %v6619
    %v6621 = vpop.f32.mrf.mxu0
    %v6622 = vadd.f32 %v6429, %v6621
    %v6623 = vpop.f32.mrf.mxu0
    %v6624 = vadd.f32 %v6431, %v6623
    %6625 = vmatprep.mubr.bf16.mxu0 %v2397
    %6626 = vmatmul.mubr.bf16.gmra.mxu0 %v2396
    %v6627 = vpop.f32.mrf.mxu0
    %v6628 = vadd.f32 %v6435, %v6627
    %v6629 = vpop.f32.mrf.mxu0
    %v6630 = vadd.f32 %v6437, %v6629
    %v6631 = vpop.f32.mrf.mxu0
    %v6632 = vadd.f32 %v6439, %v6631
    %v6633 = vpop.f32.mrf.mxu0
    %v6634 = vadd.f32 %v6441, %v6633
    %6635 = vdwg.mxu0
    %6636 = vmatprep.subr.bf16.mxu0 %v4273
    %6637 = vmatpush1.bf16.msra.mxu0 %v4272
    %6638 = vmatprep.subr.bf16.mxu0 %v4271
    %6639 = vmatpush1.bf16.msra.mxu0 %v4270
    %6640 = vmatprep.subr.bf16.mxu0 %v4269
    %6641 = vmatpush1.bf16.msra.mxu0 %v4268
    %6642 = vmatprep.subr.bf16.mxu0 %v4267
    %6643 = vmatpush1.bf16.msra.mxu0 %v4266
    %6644 = vmatprep.subr.bf16.mxu0 %v4265
    %6645 = vmatpush1.bf16.msra.mxu0 %v4264
    %6646 = vmatprep.subr.bf16.mxu0 %v4263
    %6647 = vmatpush1.bf16.msra.mxu0 %v4262
    %6648 = vmatprep.subr.bf16.mxu0 %v4261
    %6649 = vmatpush1.bf16.msra.mxu0 %v4260
    %6650 = vmatprep.subr.bf16.mxu0 %v4259
    %6651 = vmatpush1.bf16.msra.mxu0 %v4258
    %6652 = vmatprep.subr.bf16.mxu0 %v4289
    %6653 = vmatpush2.bf16.msra.mxu0 %v4288
    %6654 = vmatprep.subr.bf16.mxu0 %v4287
    %6655 = vmatpush2.bf16.msra.mxu0 %v4286
    %6656 = vmatprep.subr.bf16.mxu0 %v4285
    %6657 = vmatpush2.bf16.msra.mxu0 %v4284
    %6658 = vmatprep.subr.bf16.mxu0 %v4283
    %6659 = vmatpush2.bf16.msra.mxu0 %v4282
    %6660 = vmatprep.subr.bf16.mxu0 %v4281
    %6661 = vmatpush2.bf16.msra.mxu0 %v4280
    %6662 = vmatprep.subr.bf16.mxu0 %v4279
    %6663 = vmatpush2.bf16.msra.mxu0 %v4278
    %6664 = vmatprep.subr.bf16.mxu0 %v4277
    %6665 = vmatpush2.bf16.msra.mxu0 %v4276
    %6666 = vmatprep.subr.bf16.mxu0 %v4275
    %6667 = vmatpush2.bf16.msra.mxu0 %v4274
    %6668 = vmatprep.mubr.bf16.mxu0 %v2039
    %6669 = vmatmul.mubr.bf16.gmra.mxu0 %v2038
    %v6670 = vpop.f32.mrf.mxu0
    %v6671 = vadd.f32 %v6478, %v6670
    %v6672 = vpop.f32.mrf.mxu0
    %v6673 = vadd.f32 %v6480, %v6672
    %v6674 = vpop.f32.mrf.mxu0
    %v6675 = vadd.f32 %v6482, %v6674
    %v6676 = vpop.f32.mrf.mxu0
    %v6677 = vadd.f32 %v6484, %v6676
    %6678 = vmatprep.mubr.bf16.mxu0 %v2063
    %6679 = vmatmul.mubr.bf16.gmra.mxu0 %v2062
    %v6680 = vpop.f32.mrf.mxu0
    %v6681 = vadd.f32 %v6488, %v6680
    %v6682 = vpop.f32.mrf.mxu0
    %v6683 = vadd.f32 %v6490, %v6682
    %v6684 = vpop.f32.mrf.mxu0
    %v6685 = vadd.f32 %v6492, %v6684
    %v6686 = vpop.f32.mrf.mxu0
    %v6687 = vadd.f32 %v6494, %v6686
    %6688 = vmatprep.mubr.bf16.mxu0 %v2087
    %6689 = vmatmul.mubr.bf16.gmra.mxu0 %v2086
    %v6690 = vpop.f32.mrf.mxu0
    %v6691 = vadd.f32 %v6498, %v6690
    %v6692 = vpop.f32.mrf.mxu0
    %v6693 = vadd.f32 %v6500, %v6692
    %v6694 = vpop.f32.mrf.mxu0
    %v6695 = vadd.f32 %v6502, %v6694
    %v6696 = vpop.f32.mrf.mxu0
    %v6697 = vadd.f32 %v6504, %v6696
    %6698 = vmatprep.mubr.bf16.mxu0 %v2111
    %6699 = vmatmul.mubr.bf16.gmra.mxu0 %v2110
    %v6700 = vpop.f32.mrf.mxu0
    %v6701 = vadd.f32 %v6508, %v6700
    %v6702 = vpop.f32.mrf.mxu0
    %v6703 = vadd.f32 %v6510, %v6702
    %v6704 = vpop.f32.mrf.mxu0
    %v6705 = vadd.f32 %v6512, %v6704
    %v6706 = vpop.f32.mrf.mxu0
    %v6707 = vadd.f32 %v6514, %v6706
    %6708 = vmatprep.mubr.bf16.mxu0 %v2135
    %6709 = vmatmul.mubr.bf16.gmra.mxu0 %v2134
    %v6710 = vpop.f32.mrf.mxu0
    %v6711 = vadd.f32 %v6518, %v6710
    %v6712 = vpop.f32.mrf.mxu0
    %v6713 = vadd.f32 %v6520, %v6712
    %v6714 = vpop.f32.mrf.mxu0
    %v6715 = vadd.f32 %v6522, %v6714
    %v6716 = vpop.f32.mrf.mxu0
    %v6717 = vadd.f32 %v6524, %v6716
    %6718 = vmatprep.mubr.bf16.mxu0 %v2159
    %6719 = vmatmul.mubr.bf16.gmra.mxu0 %v2158
    %v6720 = vpop.f32.mrf.mxu0
    %v6721 = vadd.f32 %v6528, %v6720
    %v6722 = vpop.f32.mrf.mxu0
    %v6723 = vadd.f32 %v6530, %v6722
    %v6724 = vpop.f32.mrf.mxu0
    %v6725 = vadd.f32 %v6532, %v6724
    %v6726 = vpop.f32.mrf.mxu0
    %v6727 = vadd.f32 %v6534, %v6726
    %6728 = vmatprep.mubr.bf16.mxu0 %v2183
    %6729 = vmatmul.mubr.bf16.gmra.mxu0 %v2182
    %v6730 = vpop.f32.mrf.mxu0
    %v6731 = vadd.f32 %v6538, %v6730
    %v6732 = vpop.f32.mrf.mxu0
    %v6733 = vadd.f32 %v6540, %v6732
    %v6734 = vpop.f32.mrf.mxu0
    %v6735 = vadd.f32 %v6542, %v6734
    %v6736 = vpop.f32.mrf.mxu0
    %v6737 = vadd.f32 %v6544, %v6736
    %6738 = vmatprep.mubr.bf16.mxu0 %v2207
    %6739 = vmatmul.mubr.bf16.gmra.mxu0 %v2206
    %v6740 = vpop.f32.mrf.mxu0
    %v6741 = vadd.f32 %v6548, %v6740
    %v6742 = vpop.f32.mrf.mxu0
    %v6743 = vadd.f32 %v6550, %v6742
    %v6744 = vpop.f32.mrf.mxu0
    %v6745 = vadd.f32 %v6552, %v6744
    %v6746 = vpop.f32.mrf.mxu0
    %v6747 = vadd.f32 %v6554, %v6746
    %6748 = vmatprep.mubr.bf16.mxu0 %v2231
    %6749 = vmatmul.mubr.bf16.gmra.mxu0 %v2230
    %v6750 = vpop.f32.mrf.mxu0
    %v6751 = vadd.f32 %v6558, %v6750
    %v6752 = vpop.f32.mrf.mxu0
    %v6753 = vadd.f32 %v6560, %v6752
    %v6754 = vpop.f32.mrf.mxu0
    %v6755 = vadd.f32 %v6562, %v6754
    %v6756 = vpop.f32.mrf.mxu0
    %v6757 = vadd.f32 %v6564, %v6756
    %6758 = vmatprep.mubr.bf16.mxu0 %v2255
    %6759 = vmatmul.mubr.bf16.gmra.mxu0 %v2254
    %v6760 = vpop.f32.mrf.mxu0
    %v6761 = vadd.f32 %v6568, %v6760
    %v6762 = vpop.f32.mrf.mxu0
    %v6763 = vadd.f32 %v6570, %v6762
    %v6764 = vpop.f32.mrf.mxu0
    %v6765 = vadd.f32 %v6572, %v6764
    %v6766 = vpop.f32.mrf.mxu0
    %v6767 = vadd.f32 %v6574, %v6766
    %6768 = vmatprep.mubr.bf16.mxu0 %v2279
    %6769 = vmatmul.mubr.bf16.gmra.mxu0 %v2278
    %v6770 = vpop.f32.mrf.mxu0
    %v6771 = vadd.f32 %v6578, %v6770
    %v6772 = vpop.f32.mrf.mxu0
    %v6773 = vadd.f32 %v6580, %v6772
    %v6774 = vpop.f32.mrf.mxu0
    %v6775 = vadd.f32 %v6582, %v6774
    %v6776 = vpop.f32.mrf.mxu0
    %v6777 = vadd.f32 %v6584, %v6776
    %6778 = vmatprep.mubr.bf16.mxu0 %v2303
    %6779 = vmatmul.mubr.bf16.gmra.mxu0 %v2302
    %v6780 = vpop.f32.mrf.mxu0
    %v6781 = vadd.f32 %v6588, %v6780
    %v6782 = vpop.f32.mrf.mxu0
    %v6783 = vadd.f32 %v6590, %v6782
    %v6784 = vpop.f32.mrf.mxu0
    %v6785 = vadd.f32 %v6592, %v6784
    %v6786 = vpop.f32.mrf.mxu0
    %v6787 = vadd.f32 %v6594, %v6786
    %6788 = vmatprep.mubr.bf16.mxu0 %v2327
    %6789 = vmatmul.mubr.bf16.gmra.mxu0 %v2326
    %v6790 = vpop.f32.mrf.mxu0
    %v6791 = vadd.f32 %v6598, %v6790
    %v6792 = vpop.f32.mrf.mxu0
    %v6793 = vadd.f32 %v6600, %v6792
    %v6794 = vpop.f32.mrf.mxu0
    %v6795 = vadd.f32 %v6602, %v6794
    %v6796 = vpop.f32.mrf.mxu0
    %v6797 = vadd.f32 %v6604, %v6796
    %6798 = vmatprep.mubr.bf16.mxu0 %v2351
    %6799 = vmatmul.mubr.bf16.gmra.mxu0 %v2350
    %v6800 = vpop.f32.mrf.mxu0
    %v6801 = vadd.f32 %v6608, %v6800
    %v6802 = vpop.f32.mrf.mxu0
    %v6803 = vadd.f32 %v6610, %v6802
    %v6804 = vpop.f32.mrf.mxu0
    %v6805 = vadd.f32 %v6612, %v6804
    %v6806 = vpop.f32.mrf.mxu0
    %v6807 = vadd.f32 %v6614, %v6806
    %6808 = vmatprep.mubr.bf16.mxu0 %v2375
    %6809 = vmatmul.mubr.bf16.gmra.mxu0 %v2374
    %v6810 = vpop.f32.mrf.mxu0
    %v6811 = vadd.f32 %v6618, %v6810
    %v6812 = vpop.f32.mrf.mxu0
    %v6813 = vadd.f32 %v6620, %v6812
    %v6814 = vpop.f32.mrf.mxu0
    %v6815 = vadd.f32 %v6622, %v6814
    %v6816 = vpop.f32.mrf.mxu0
    %v6817 = vadd.f32 %v6624, %v6816
    %6818 = vmatprep.mubr.bf16.mxu0 %v2399
    %6819 = vmatmul.mubr.bf16.gmra.mxu0 %v2398
    %v6820 = vpop.f32.mrf.mxu0
    %v6821 = vadd.f32 %v6628, %v6820
    %v6822 = vpop.f32.mrf.mxu0
    %v6823 = vadd.f32 %v6630, %v6822
    %v6824 = vpop.f32.mrf.mxu0
    %v6825 = vadd.f32 %v6632, %v6824
    %v6826 = vpop.f32.mrf.mxu0
    %v6827 = vadd.f32 %v6634, %v6826
    %6828 = vdwg.mxu0
    %6829 = vmatprep.subr.bf16.mxu0 %v4305
    %6830 = vmatpush1.bf16.msra.mxu0 %v4304
    %6831 = vmatprep.subr.bf16.mxu0 %v4303
    %6832 = vmatpush1.bf16.msra.mxu0 %v4302
    %6833 = vmatprep.subr.bf16.mxu0 %v4301
    %6834 = vmatpush1.bf16.msra.mxu0 %v4300
    %6835 = vmatprep.subr.bf16.mxu0 %v4299
    %6836 = vmatpush1.bf16.msra.mxu0 %v4298
    %6837 = vmatprep.subr.bf16.mxu0 %v4297
    %6838 = vmatpush1.bf16.msra.mxu0 %v4296
    %6839 = vmatprep.subr.bf16.mxu0 %v4295
    %6840 = vmatpush1.bf16.msra.mxu0 %v4294
    %6841 = vmatprep.subr.bf16.mxu0 %v4293
    %6842 = vmatpush1.bf16.msra.mxu0 %v4292
    %6843 = vmatprep.subr.bf16.mxu0 %v4291
    %6844 = vmatpush1.bf16.msra.mxu0 %v4290
    %6845 = vmatprep.subr.bf16.mxu0 %v4321
    %6846 = vmatpush2.bf16.msra.mxu0 %v4320
    %6847 = vmatprep.subr.bf16.mxu0 %v4319
    %6848 = vmatpush2.bf16.msra.mxu0 %v4318
    %6849 = vmatprep.subr.bf16.mxu0 %v4317
    %6850 = vmatpush2.bf16.msra.mxu0 %v4316
    %6851 = vmatprep.subr.bf16.mxu0 %v4315
    %6852 = vmatpush2.bf16.msra.mxu0 %v4314
    %6853 = vmatprep.subr.bf16.mxu0 %v4313
    %6854 = vmatpush2.bf16.msra.mxu0 %v4312
    %6855 = vmatprep.subr.bf16.mxu0 %v4311
    %6856 = vmatpush2.bf16.msra.mxu0 %v4310
    %6857 = vmatprep.subr.bf16.mxu0 %v4309
    %6858 = vmatpush2.bf16.msra.mxu0 %v4308
    %6859 = vmatprep.subr.bf16.mxu0 %v4307
    %6860 = vmatpush2.bf16.msra.mxu0 %v4306
    %6861 = vmatprep.mubr.bf16.mxu0 %v2041
    %6862 = vmatmul.mubr.bf16.gmra.mxu0 %v2040
    %v6863 = vpop.f32.mrf.mxu0
    %v6864 = vadd.f32 %v6671, %v6863
    %v6865 = vpop.f32.mrf.mxu0
    %v6866 = vadd.f32 %v6673, %v6865
    %v6867 = vpop.f32.mrf.mxu0
    %v6868 = vadd.f32 %v6675, %v6867
    %v6869 = vpop.f32.mrf.mxu0
    %v6870 = vadd.f32 %v6677, %v6869
    %6871 = vmatprep.mubr.bf16.mxu0 %v2065
    %6872 = vmatmul.mubr.bf16.gmra.mxu0 %v2064
    %v6873 = vpop.f32.mrf.mxu0
    %v6874 = vadd.f32 %v6681, %v6873
    %v6875 = vpop.f32.mrf.mxu0
    %v6876 = vadd.f32 %v6683, %v6875
    %v6877 = vpop.f32.mrf.mxu0
    %v6878 = vadd.f32 %v6685, %v6877
    %v6879 = vpop.f32.mrf.mxu0
    %v6880 = vadd.f32 %v6687, %v6879
    %6881 = vmatprep.mubr.bf16.mxu0 %v2089
    %6882 = vmatmul.mubr.bf16.gmra.mxu0 %v2088
    %v6883 = vpop.f32.mrf.mxu0
    %v6884 = vadd.f32 %v6691, %v6883
    %v6885 = vpop.f32.mrf.mxu0
    %v6886 = vadd.f32 %v6693, %v6885
    %v6887 = vpop.f32.mrf.mxu0
    %v6888 = vadd.f32 %v6695, %v6887
    %v6889 = vpop.f32.mrf.mxu0
    %v6890 = vadd.f32 %v6697, %v6889
    %6891 = vmatprep.mubr.bf16.mxu0 %v2113
    %6892 = vmatmul.mubr.bf16.gmra.mxu0 %v2112
    %v6893 = vpop.f32.mrf.mxu0
    %v6894 = vadd.f32 %v6701, %v6893
    %v6895 = vpop.f32.mrf.mxu0
    %v6896 = vadd.f32 %v6703, %v6895
    %v6897 = vpop.f32.mrf.mxu0
    %v6898 = vadd.f32 %v6705, %v6897
    %v6899 = vpop.f32.mrf.mxu0
    %v6900 = vadd.f32 %v6707, %v6899
    %6901 = vmatprep.mubr.bf16.mxu0 %v2137
    %6902 = vmatmul.mubr.bf16.gmra.mxu0 %v2136
    %v6903 = vpop.f32.mrf.mxu0
    %v6904 = vadd.f32 %v6711, %v6903
    %v6905 = vpop.f32.mrf.mxu0
    %v6906 = vadd.f32 %v6713, %v6905
    %v6907 = vpop.f32.mrf.mxu0
    %v6908 = vadd.f32 %v6715, %v6907
    %v6909 = vpop.f32.mrf.mxu0
    %v6910 = vadd.f32 %v6717, %v6909
    %6911 = vmatprep.mubr.bf16.mxu0 %v2161
    %6912 = vmatmul.mubr.bf16.gmra.mxu0 %v2160
    %v6913 = vpop.f32.mrf.mxu0
    %v6914 = vadd.f32 %v6721, %v6913
    %v6915 = vpop.f32.mrf.mxu0
    %v6916 = vadd.f32 %v6723, %v6915
    %v6917 = vpop.f32.mrf.mxu0
    %v6918 = vadd.f32 %v6725, %v6917
    %v6919 = vpop.f32.mrf.mxu0
    %v6920 = vadd.f32 %v6727, %v6919
    %6921 = vmatprep.mubr.bf16.mxu0 %v2185
    %6922 = vmatmul.mubr.bf16.gmra.mxu0 %v2184
    %v6923 = vpop.f32.mrf.mxu0
    %v6924 = vadd.f32 %v6731, %v6923
    %v6925 = vpop.f32.mrf.mxu0
    %v6926 = vadd.f32 %v6733, %v6925
    %v6927 = vpop.f32.mrf.mxu0
    %v6928 = vadd.f32 %v6735, %v6927
    %v6929 = vpop.f32.mrf.mxu0
    %v6930 = vadd.f32 %v6737, %v6929
    %6931 = vmatprep.mubr.bf16.mxu0 %v2209
    %6932 = vmatmul.mubr.bf16.gmra.mxu0 %v2208
    %v6933 = vpop.f32.mrf.mxu0
    %v6934 = vadd.f32 %v6741, %v6933
    %v6935 = vpop.f32.mrf.mxu0
    %v6936 = vadd.f32 %v6743, %v6935
    %v6937 = vpop.f32.mrf.mxu0
    %v6938 = vadd.f32 %v6745, %v6937
    %v6939 = vpop.f32.mrf.mxu0
    %v6940 = vadd.f32 %v6747, %v6939
    %6941 = vmatprep.mubr.bf16.mxu0 %v2233
    %6942 = vmatmul.mubr.bf16.gmra.mxu0 %v2232
    %v6943 = vpop.f32.mrf.mxu0
    %v6944 = vadd.f32 %v6751, %v6943
    %v6945 = vpop.f32.mrf.mxu0
    %v6946 = vadd.f32 %v6753, %v6945
    %v6947 = vpop.f32.mrf.mxu0
    %v6948 = vadd.f32 %v6755, %v6947
    %v6949 = vpop.f32.mrf.mxu0
    %v6950 = vadd.f32 %v6757, %v6949
    %6951 = vmatprep.mubr.bf16.mxu0 %v2257
    %6952 = vmatmul.mubr.bf16.gmra.mxu0 %v2256
    %v6953 = vpop.f32.mrf.mxu0
    %v6954 = vadd.f32 %v6761, %v6953
    %v6955 = vpop.f32.mrf.mxu0
    %v6956 = vadd.f32 %v6763, %v6955
    %v6957 = vpop.f32.mrf.mxu0
    %v6958 = vadd.f32 %v6765, %v6957
    %v6959 = vpop.f32.mrf.mxu0
    %v6960 = vadd.f32 %v6767, %v6959
    %6961 = vmatprep.mubr.bf16.mxu0 %v2281
    %6962 = vmatmul.mubr.bf16.gmra.mxu0 %v2280
    %v6963 = vpop.f32.mrf.mxu0
    %v6964 = vadd.f32 %v6771, %v6963
    %v6965 = vpop.f32.mrf.mxu0
    %v6966 = vadd.f32 %v6773, %v6965
    %v6967 = vpop.f32.mrf.mxu0
    %v6968 = vadd.f32 %v6775, %v6967
    %v6969 = vpop.f32.mrf.mxu0
    %v6970 = vadd.f32 %v6777, %v6969
    %6971 = vmatprep.mubr.bf16.mxu0 %v2305
    %6972 = vmatmul.mubr.bf16.gmra.mxu0 %v2304
    %v6973 = vpop.f32.mrf.mxu0
    %v6974 = vadd.f32 %v6781, %v6973
    %v6975 = vpop.f32.mrf.mxu0
    %v6976 = vadd.f32 %v6783, %v6975
    %v6977 = vpop.f32.mrf.mxu0
    %v6978 = vadd.f32 %v6785, %v6977
    %v6979 = vpop.f32.mrf.mxu0
    %v6980 = vadd.f32 %v6787, %v6979
    %6981 = vmatprep.mubr.bf16.mxu0 %v2329
    %6982 = vmatmul.mubr.bf16.gmra.mxu0 %v2328
    %v6983 = vpop.f32.mrf.mxu0
    %v6984 = vadd.f32 %v6791, %v6983
    %v6985 = vpop.f32.mrf.mxu0
    %v6986 = vadd.f32 %v6793, %v6985
    %v6987 = vpop.f32.mrf.mxu0
    %v6988 = vadd.f32 %v6795, %v6987
    %v6989 = vpop.f32.mrf.mxu0
    %v6990 = vadd.f32 %v6797, %v6989
    %6991 = vmatprep.mubr.bf16.mxu0 %v2353
    %6992 = vmatmul.mubr.bf16.gmra.mxu0 %v2352
    %v6993 = vpop.f32.mrf.mxu0
    %v6994 = vadd.f32 %v6801, %v6993
    %v6995 = vpop.f32.mrf.mxu0
    %v6996 = vadd.f32 %v6803, %v6995
    %v6997 = vpop.f32.mrf.mxu0
    %v6998 = vadd.f32 %v6805, %v6997
    %v6999 = vpop.f32.mrf.mxu0
    %v7000 = vadd.f32 %v6807, %v6999
    %7001 = vmatprep.mubr.bf16.mxu0 %v2377
    %7002 = vmatmul.mubr.bf16.gmra.mxu0 %v2376
    %v7003 = vpop.f32.mrf.mxu0
    %v7004 = vadd.f32 %v6811, %v7003
    %v7005 = vpop.f32.mrf.mxu0
    %v7006 = vadd.f32 %v6813, %v7005
    %v7007 = vpop.f32.mrf.mxu0
    %v7008 = vadd.f32 %v6815, %v7007
    %v7009 = vpop.f32.mrf.mxu0
    %v7010 = vadd.f32 %v6817, %v7009
    %7011 = vmatprep.mubr.bf16.mxu0 %v2401
    %7012 = vmatmul.mubr.bf16.gmra.mxu0 %v2400
    %v7013 = vpop.f32.mrf.mxu0
    %v7014 = vadd.f32 %v6821, %v7013
    %v7015 = vpop.f32.mrf.mxu0
    %v7016 = vadd.f32 %v6823, %v7015
    %v7017 = vpop.f32.mrf.mxu0
    %v7018 = vadd.f32 %v6825, %v7017
    %v7019 = vpop.f32.mrf.mxu0
    %v7020 = vadd.f32 %v6827, %v7019
    %7021 = vdwg.mxu0
    %v7022 = vmax.f32 %v6864, 0.0
    %v7023 = vmax.f32 %v6866, 0.0
    %v7024 = vmax.f32 %v6868, 0.0
    %v7025 = vmax.f32 %v6870, 0.0
    %v7026 = vmax.f32 %v6874, 0.0
    %v7027 = vmax.f32 %v6876, 0.0
    %v7028 = vmax.f32 %v6878, 0.0
    %v7029 = vmax.f32 %v6880, 0.0
    %v7030 = vmax.f32 %v6884, 0.0
    %v7031 = vmax.f32 %v6886, 0.0
    %v7032 = vmax.f32 %v6888, 0.0
    %v7033 = vmax.f32 %v6890, 0.0
    %v7034 = vmax.f32 %v6894, 0.0
    %v7035 = vmax.f32 %v6896, 0.0
    %v7036 = vmax.f32 %v6898, 0.0
    %v7037 = vmax.f32 %v6900, 0.0
    %v7038 = vmax.f32 %v6904, 0.0
    %v7039 = vmax.f32 %v6906, 0.0
    %v7040 = vmax.f32 %v6908, 0.0
    %v7041 = vmax.f32 %v6910, 0.0
    %v7042 = vmax.f32 %v6914, 0.0
    %v7043 = vmax.f32 %v6916, 0.0
    %v7044 = vmax.f32 %v6918, 0.0
    %v7045 = vmax.f32 %v6920, 0.0
    %v7046 = vmax.f32 %v6924, 0.0
    %v7047 = vmax.f32 %v6926, 0.0
    %v7048 = vmax.f32 %v6928, 0.0
    %v7049 = vmax.f32 %v6930, 0.0
    %v7050 = vmax.f32 %v6934, 0.0
    %v7051 = vmax.f32 %v6936, 0.0
    %v7052 = vmax.f32 %v6938, 0.0
    %v7053 = vmax.f32 %v6940, 0.0
    %v7054 = vmax.f32 %v6944, 0.0
    %v7055 = vmax.f32 %v6946, 0.0
    %v7056 = vmax.f32 %v6948, 0.0
    %v7057 = vmax.f32 %v6950, 0.0
    %v7058 = vmax.f32 %v6954, 0.0
    %v7059 = vmax.f32 %v6956, 0.0
    %v7060 = vmax.f32 %v6958, 0.0
    %v7061 = vmax.f32 %v6960, 0.0
    %v7062 = vmax.f32 %v6964, 0.0
    %v7063 = vmax.f32 %v6966, 0.0
    %v7064 = vmax.f32 %v6968, 0.0
    %v7065 = vmax.f32 %v6970, 0.0
    %v7066 = vmax.f32 %v6974, 0.0
    %v7067 = vmax.f32 %v6976, 0.0
    %v7068 = vmax.f32 %v6978, 0.0
    %v7069 = vmax.f32 %v6980, 0.0
    %v7070 = vmax.f32 %v6984, 0.0
    %v7071 = vmax.f32 %v6986, 0.0
    %v7072 = vmax.f32 %v6988, 0.0
    %v7073 = vmax.f32 %v6990, 0.0
    %v7074 = vmax.f32 %v6994, 0.0
    %v7075 = vmax.f32 %v6996, 0.0
    %v7076 = vmax.f32 %v6998, 0.0
    %v7077 = vmax.f32 %v7000, 0.0
    %v7078 = vmax.f32 %v7004, 0.0
    %v7079 = vmax.f32 %v7006, 0.0
    %v7080 = vmax.f32 %v7008, 0.0
    %v7081 = vmax.f32 %v7010, 0.0
    %v7082 = vmax.f32 %v7014, 0.0
    %v7083 = vmax.f32 %v7016, 0.0
    %v7084 = vmax.f32 %v7018, 0.0
    %v7085 = vmax.f32 %v7020, 0.0
    %v7086 = vpack.c.bf16 %v7024, %v7022
    %v7087 = vpack.c.bf16 %v7025, %v7023
    %v7088 = vpack.c.bf16 %v7028, %v7026
    %v7089 = vpack.c.bf16 %v7029, %v7027
    %v7090 = vpack.c.bf16 %v7032, %v7030
    %v7091 = vpack.c.bf16 %v7033, %v7031
    %v7092 = vpack.c.bf16 %v7036, %v7034
    %v7093 = vpack.c.bf16 %v7037, %v7035
    %v7094 = vpack.c.bf16 %v7040, %v7038
    %v7095 = vpack.c.bf16 %v7041, %v7039
    %v7096 = vpack.c.bf16 %v7044, %v7042
    %v7097 = vpack.c.bf16 %v7045, %v7043
    %v7098 = vpack.c.bf16 %v7048, %v7046
    %v7099 = vpack.c.bf16 %v7049, %v7047
    %v7100 = vpack.c.bf16 %v7052, %v7050
    %v7101 = vpack.c.bf16 %v7053, %v7051
    %v7102 = vpack.c.bf16 %v7056, %v7054
    %v7103 = vpack.c.bf16 %v7057, %v7055
    %v7104 = vpack.c.bf16 %v7060, %v7058
    %v7105 = vpack.c.bf16 %v7061, %v7059
    %v7106 = vpack.c.bf16 %v7064, %v7062
    %v7107 = vpack.c.bf16 %v7065, %v7063
    %v7108 = vpack.c.bf16 %v7068, %v7066
    %v7109 = vpack.c.bf16 %v7069, %v7067
    %v7110 = vpack.c.bf16 %v7072, %v7070
    %v7111 = vpack.c.bf16 %v7073, %v7071
    %v7112 = vpack.c.bf16 %v7076, %v7074
    %v7113 = vpack.c.bf16 %v7077, %v7075
    %v7114 = vpack.c.bf16 %v7080, %v7078
    %v7115 = vpack.c.bf16 %v7081, %v7079
    %v7116 = vpack.c.bf16 %v7084, %v7082
    %v7117 = vpack.c.bf16 %v7085, %v7083
    %v7118 = vld [vmem:[#allocation8] sm:$0xf]
    %v7119 = vld [vmem:[#allocation8 + $0x4] sm:$0xf]
    %v7120 = vld [vmem:[#allocation8 + $0x8] sm:$0xf]
    %v7121 = vld [vmem:[#allocation8 + $0xc] sm:$0xf]
    %v7122 = vld [vmem:[#allocation8 + $0x10] sm:$0xf]
    %v7123 = vld [vmem:[#allocation8 + $0x14] sm:$0xf]
    %v7124 = vld [vmem:[#allocation8 + $0x18] sm:$0xf]
    %v7125 = vld [vmem:[#allocation8 + $0x1c] sm:$0xf]
    %v7126 = vld [vmem:[#allocation8 + $0x20] sm:$0xf]
    %v7127 = vld [vmem:[#allocation8 + $0x24] sm:$0xf]
    %v7128 = vld [vmem:[#allocation8 + $0x28] sm:$0xf]
    %v7129 = vld [vmem:[#allocation8 + $0x2c] sm:$0xf]
    %v7130 = vld [vmem:[#allocation8 + $0x30] sm:$0xf]
    %v7131 = vld [vmem:[#allocation8 + $0x34] sm:$0xf]
    %v7132 = vld [vmem:[#allocation8 + $0x38] sm:$0xf]
    %v7133 = vld [vmem:[#allocation8 + $0x3c] sm:$0xf]
    %v7134 = vld [vmem:[#allocation8 + $0x40] sm:$0xf]
    %v7135 = vld [vmem:[#allocation8 + $0x44] sm:$0xf]
    %v7136 = vld [vmem:[#allocation8 + $0x48] sm:$0xf]
    %v7137 = vld [vmem:[#allocation8 + $0x4c] sm:$0xf]
    %v7138 = vld [vmem:[#allocation8 + $0x50] sm:$0xf]
    %v7139 = vld [vmem:[#allocation8 + $0x54] sm:$0xf]
    %v7140 = vld [vmem:[#allocation8 + $0x58] sm:$0xf]
    %v7141 = vld [vmem:[#allocation8 + $0x5c] sm:$0xf]
    %v7142 = vld [vmem:[#allocation8 + $0x60] sm:$0xf]
    %v7143 = vld [vmem:[#allocation8 + $0x64] sm:$0xf]
    %v7144 = vld [vmem:[#allocation8 + $0x68] sm:$0xf]
    %v7145 = vld [vmem:[#allocation8 + $0x6c] sm:$0xf]
    %v7146 = vld [vmem:[#allocation8 + $0x70] sm:$0xf]
    %v7147 = vld [vmem:[#allocation8 + $0x74] sm:$0xf]
    %v7148 = vld [vmem:[#allocation8 + $0x78] sm:$0xf]
    %v7149 = vld [vmem:[#allocation8 + $0x7c] sm:$0xf]
    %v7150 = vld [vmem:[#allocation10] sm:$0x1]
    %v7152 = vlaneseq
    %v7153 = vshrl.u32 %v7152, 7
    %v7154 = vsub.s32 0, %v7153
    %v7155 = vrot.slane %v7150, %v7154
    %v7189 = vunpack.c.l.b16 %v7118
    %v7190 = vunpack.c.l.b16 %v7119
    %v7191 = vunpack.c.l.b16 %v7120
    %v7192 = vunpack.c.l.b16 %v7121
    %v7193 = vunpack.c.l.b16 %v7122
    %v7194 = vunpack.c.l.b16 %v7123
    %v7195 = vunpack.c.l.b16 %v7124
    %v7196 = vunpack.c.l.b16 %v7125
    %v7197 = vunpack.c.l.b16 %v7126
    %v7198 = vunpack.c.l.b16 %v7127
    %v7199 = vunpack.c.l.b16 %v7128
    %v7200 = vunpack.c.l.b16 %v7129
    %v7201 = vunpack.c.l.b16 %v7130
    %v7202 = vunpack.c.l.b16 %v7131
    %v7203 = vunpack.c.l.b16 %v7132
    %v7204 = vunpack.c.l.b16 %v7133
    %v7205 = vunpack.c.l.b16 %v7134
    %v7206 = vunpack.c.l.b16 %v7135
    %v7207 = vunpack.c.l.b16 %v7136
    %v7208 = vunpack.c.l.b16 %v7137
    %v7209 = vunpack.c.l.b16 %v7138
    %v7210 = vunpack.c.l.b16 %v7139
    %v7211 = vunpack.c.l.b16 %v7140
    %v7212 = vunpack.c.l.b16 %v7141
    %v7213 = vunpack.c.l.b16 %v7142
    %v7214 = vunpack.c.l.b16 %v7143
    %v7215 = vunpack.c.l.b16 %v7144
    %v7216 = vunpack.c.l.b16 %v7145
    %v7217 = vunpack.c.l.b16 %v7146
    %v7218 = vunpack.c.l.b16 %v7147
    %v7219 = vunpack.c.l.b16 %v7148
    %v7220 = vunpack.c.l.b16 %v7149
    %v7221 = vpack.c.b16 %v7190, %v7189
    %v7222 = vpack.c.b16 %v7192, %v7191
    %v7223 = vpack.c.b16 %v7194, %v7193
    %v7224 = vpack.c.b16 %v7196, %v7195
    %v7225 = vpack.c.b16 %v7198, %v7197
    %v7226 = vpack.c.b16 %v7200, %v7199
    %v7227 = vpack.c.b16 %v7202, %v7201
    %v7228 = vpack.c.b16 %v7204, %v7203
    %v7229 = vpack.c.b16 %v7206, %v7205
    %v7230 = vpack.c.b16 %v7208, %v7207
    %v7231 = vpack.c.b16 %v7210, %v7209
    %v7232 = vpack.c.b16 %v7212, %v7211
    %v7233 = vpack.c.b16 %v7214, %v7213
    %v7234 = vpack.c.b16 %v7216, %v7215
    %v7235 = vpack.c.b16 %v7218, %v7217
    %v7236 = vpack.c.b16 %v7220, %v7219
    %7253 = vmatprep.subr.bf16.mxu0 0
    %7254 = vmatpush1.bf16.msra.mxu0 %v7228
    %7255 = vmatprep.subr.bf16.mxu0 0
    %7256 = vmatpush1.bf16.msra.mxu0 %v7227
    %7257 = vmatprep.subr.bf16.mxu0 0
    %7258 = vmatpush1.bf16.msra.mxu0 %v7226
    %7259 = vmatprep.subr.bf16.mxu0 0
    %7260 = vmatpush1.bf16.msra.mxu0 %v7225
    %7261 = vmatprep.subr.bf16.mxu0 0
    %7262 = vmatpush1.bf16.msra.mxu0 %v7224
    %7263 = vmatprep.subr.bf16.mxu0 0
    %7264 = vmatpush1.bf16.msra.mxu0 %v7223
    %7265 = vmatprep.subr.bf16.mxu0 0
    %7266 = vmatpush1.bf16.msra.mxu0 %v7222
    %7267 = vmatprep.subr.bf16.mxu0 0
    %7268 = vmatpush1.bf16.msra.mxu0 %v7221
    %7269 = vmatprep.subr.bf16.mxu0 0
    %7270 = vmatpush2.bf16.msra.mxu0 %v7236
    %7271 = vmatprep.subr.bf16.mxu0 0
    %7272 = vmatpush2.bf16.msra.mxu0 %v7235
    %7273 = vmatprep.subr.bf16.mxu0 0
    %7274 = vmatpush2.bf16.msra.mxu0 %v7234
    %7275 = vmatprep.subr.bf16.mxu0 0
    %7276 = vmatpush2.bf16.msra.mxu0 %v7233
    %7277 = vmatprep.subr.bf16.mxu0 0
    %7278 = vmatpush2.bf16.msra.mxu0 %v7232
    %7279 = vmatprep.subr.bf16.mxu0 0
    %7280 = vmatpush2.bf16.msra.mxu0 %v7231
    %7281 = vmatprep.subr.bf16.mxu0 0
    %7282 = vmatpush2.bf16.msra.mxu0 %v7230
    %7283 = vmatprep.subr.bf16.mxu0 0
    %7284 = vmatpush2.bf16.msra.mxu0 %v7229
    %7285 = vmatprep.mubr.bf16.mxu0 %v7087
    %7286 = vmatmul.mubr.bf16.gmra.mxu0 %v7086
    %v7287 = vpop.f32.mrf.mxu0
    %v7288 = vadd.f32 %v7155, %v7287
    %v7289 = vpop.f32.mrf.mxu0
    %v7290 = vpop.f32.mrf.mxu0
    %v7291 = vadd.f32 %v7155, %v7290
    %v7292 = vpop.f32.mrf.mxu0
    %7293 = vmatprep.mubr.bf16.mxu0 %v7089
    %7294 = vmatmul.mubr.bf16.gmra.mxu0 %v7088
    %v7295 = vpop.f32.mrf.mxu0
    %v7296 = vadd.f32 %v7155, %v7295
    %v7297 = vpop.f32.mrf.mxu0
    %v7298 = vpop.f32.mrf.mxu0
    %v7299 = vadd.f32 %v7155, %v7298
    %v7300 = vpop.f32.mrf.mxu0
    %7301 = vmatprep.mubr.bf16.mxu0 %v7091
    %7302 = vmatmul.mubr.bf16.gmra.mxu0 %v7090
    %v7303 = vpop.f32.mrf.mxu0
    %v7304 = vadd.f32 %v7155, %v7303
    %v7305 = vpop.f32.mrf.mxu0
    %v7306 = vpop.f32.mrf.mxu0
    %v7307 = vadd.f32 %v7155, %v7306
    %v7308 = vpop.f32.mrf.mxu0
    %7309 = vmatprep.mubr.bf16.mxu0 %v7093
    %7310 = vmatmul.mubr.bf16.gmra.mxu0 %v7092
    %v7311 = vpop.f32.mrf.mxu0
    %v7312 = vadd.f32 %v7155, %v7311
    %v7313 = vpop.f32.mrf.mxu0
    %v7314 = vpop.f32.mrf.mxu0
    %v7315 = vadd.f32 %v7155, %v7314
    %v7316 = vpop.f32.mrf.mxu0
    %7317 = vmatprep.mubr.bf16.mxu0 %v7095
    %7318 = vmatmul.mubr.bf16.gmra.mxu0 %v7094
    %v7319 = vpop.f32.mrf.mxu0
    %v7320 = vadd.f32 %v7155, %v7319
    %v7321 = vpop.f32.mrf.mxu0
    %v7322 = vpop.f32.mrf.mxu0
    %v7323 = vadd.f32 %v7155, %v7322
    %v7324 = vpop.f32.mrf.mxu0
    %7325 = vmatprep.mubr.bf16.mxu0 %v7097
    %7326 = vmatmul.mubr.bf16.gmra.mxu0 %v7096
    %v7327 = vpop.f32.mrf.mxu0
    %v7328 = vadd.f32 %v7155, %v7327
    %v7329 = vpop.f32.mrf.mxu0
    %v7330 = vpop.f32.mrf.mxu0
    %v7331 = vadd.f32 %v7155, %v7330
    %v7332 = vpop.f32.mrf.mxu0
    %7333 = vmatprep.mubr.bf16.mxu0 %v7099
    %7334 = vmatmul.mubr.bf16.gmra.mxu0 %v7098
    %v7335 = vpop.f32.mrf.mxu0
    %v7336 = vadd.f32 %v7155, %v7335
    %v7337 = vpop.f32.mrf.mxu0
    %v7338 = vpop.f32.mrf.mxu0
    %v7339 = vadd.f32 %v7155, %v7338
    %v7340 = vpop.f32.mrf.mxu0
    %7341 = vmatprep.mubr.bf16.mxu0 %v7101
    %7342 = vmatmul.mubr.bf16.gmra.mxu0 %v7100
    %v7343 = vpop.f32.mrf.mxu0
    %v7344 = vadd.f32 %v7155, %v7343
    %v7345 = vpop.f32.mrf.mxu0
    %v7346 = vpop.f32.mrf.mxu0
    %v7347 = vadd.f32 %v7155, %v7346
    %v7348 = vpop.f32.mrf.mxu0
    %7349 = vmatprep.mubr.bf16.mxu0 %v7103
    %7350 = vmatmul.mubr.bf16.gmra.mxu0 %v7102
    %v7351 = vpop.f32.mrf.mxu0
    %v7352 = vadd.f32 %v7155, %v7351
    %v7353 = vpop.f32.mrf.mxu0
    %v7354 = vpop.f32.mrf.mxu0
    %v7355 = vadd.f32 %v7155, %v7354
    %v7356 = vpop.f32.mrf.mxu0
    %7357 = vmatprep.mubr.bf16.mxu0 %v7105
    %7358 = vmatmul.mubr.bf16.gmra.mxu0 %v7104
    %v7359 = vpop.f32.mrf.mxu0
    %v7360 = vadd.f32 %v7155, %v7359
    %v7361 = vpop.f32.mrf.mxu0
    %v7362 = vpop.f32.mrf.mxu0
    %v7363 = vadd.f32 %v7155, %v7362
    %v7364 = vpop.f32.mrf.mxu0
    %7365 = vmatprep.mubr.bf16.mxu0 %v7107
    %7366 = vmatmul.mubr.bf16.gmra.mxu0 %v7106
    %v7367 = vpop.f32.mrf.mxu0
    %v7368 = vadd.f32 %v7155, %v7367
    %v7369 = vpop.f32.mrf.mxu0
    %v7370 = vpop.f32.mrf.mxu0
    %v7371 = vadd.f32 %v7155, %v7370
    %v7372 = vpop.f32.mrf.mxu0
    %7373 = vmatprep.mubr.bf16.mxu0 %v7109
    %7374 = vmatmul.mubr.bf16.gmra.mxu0 %v7108
    %v7375 = vpop.f32.mrf.mxu0
    %v7376 = vadd.f32 %v7155, %v7375
    %v7377 = vpop.f32.mrf.mxu0
    %v7378 = vpop.f32.mrf.mxu0
    %v7379 = vadd.f32 %v7155, %v7378
    %v7380 = vpop.f32.mrf.mxu0
    %7381 = vmatprep.mubr.bf16.mxu0 %v7111
    %7382 = vmatmul.mubr.bf16.gmra.mxu0 %v7110
    %v7383 = vpop.f32.mrf.mxu0
    %v7384 = vadd.f32 %v7155, %v7383
    %v7385 = vpop.f32.mrf.mxu0
    %v7386 = vpop.f32.mrf.mxu0
    %v7387 = vadd.f32 %v7155, %v7386
    %v7388 = vpop.f32.mrf.mxu0
    %7389 = vmatprep.mubr.bf16.mxu0 %v7113
    %7390 = vmatmul.mubr.bf16.gmra.mxu0 %v7112
    %v7391 = vpop.f32.mrf.mxu0
    %v7392 = vadd.f32 %v7155, %v7391
    %v7393 = vpop.f32.mrf.mxu0
    %v7394 = vpop.f32.mrf.mxu0
    %v7395 = vadd.f32 %v7155, %v7394
    %v7396 = vpop.f32.mrf.mxu0
    %7397 = vmatprep.mubr.bf16.mxu0 %v7115
    %7398 = vmatmul.mubr.bf16.gmra.mxu0 %v7114
    %v7399 = vpop.f32.mrf.mxu0
    %v7400 = vadd.f32 %v7155, %v7399
    %v7401 = vpop.f32.mrf.mxu0
    %v7402 = vpop.f32.mrf.mxu0
    %v7403 = vadd.f32 %v7155, %v7402
    %v7404 = vpop.f32.mrf.mxu0
    %7405 = vmatprep.mubr.bf16.mxu0 %v7117
    %7406 = vmatmul.mubr.bf16.gmra.mxu0 %v7116
    %v7407 = vpop.f32.mrf.mxu0
    %v7408 = vadd.f32 %v7155, %v7407
    %v7409 = vpop.f32.mrf.mxu0
    %v7410 = vpop.f32.mrf.mxu0
    %v7411 = vadd.f32 %v7155, %v7410
    %v7412 = vpop.f32.mrf.mxu0
    %7413 = vdwg.mxu0
    %7414 = vst [vmem:[#allocation11] sm:$0xff] %v7288
    %7415 = vst [vmem:[#allocation11 + $0x8] sm:$0xff] %v7291
    %7416 = vst [vmem:[#allocation11 + $0x10] sm:$0xff] %v7296
    %7417 = vst [vmem:[#allocation11 + $0x18] sm:$0xff] %v7299
    %7418 = vst [vmem:[#allocation11 + $0x20] sm:$0xff] %v7304
    %7419 = vst [vmem:[#allocation11 + $0x28] sm:$0xff] %v7307
    %7420 = vst [vmem:[#allocation11 + $0x30] sm:$0xff] %v7312
    %7421 = vst [vmem:[#allocation11 + $0x38] sm:$0xff] %v7315
    %7422 = vst [vmem:[#allocation11 + $0x40] sm:$0xff] %v7320
    %7423 = vst [vmem:[#allocation11 + $0x48] sm:$0xff] %v7323
    %7424 = vst [vmem:[#allocation11 + $0x50] sm:$0xff] %v7328
    %7425 = vst [vmem:[#allocation11 + $0x58] sm:$0xff] %v7331
    %7426 = vst [vmem:[#allocation11 + $0x60] sm:$0xff] %v7336
    %7427 = vst [vmem:[#allocation11 + $0x68] sm:$0xff] %v7339
    %7428 = vst [vmem:[#allocation11 + $0x70] sm:$0xff] %v7344
    %7429 = vst [vmem:[#allocation11 + $0x78] sm:$0xff] %v7347
    %7430 = vst [vmem:[#allocation11 + $0x80] sm:$0xff] %v7352
    %7431 = vst [vmem:[#allocation11 + $0x88] sm:$0xff] %v7355
    %7432 = vst [vmem:[#allocation11 + $0x90] sm:$0xff] %v7360
    %7433 = vst [vmem:[#allocation11 + $0x98] sm:$0xff] %v7363
    %7434 = vst [vmem:[#allocation11 + $0xa0] sm:$0xff] %v7368
    %7435 = vst [vmem:[#allocation11 + $0xa8] sm:$0xff] %v7371
    %7436 = vst [vmem:[#allocation11 + $0xb0] sm:$0xff] %v7376
    %7437 = vst [vmem:[#allocation11 + $0xb8] sm:$0xff] %v7379
    %7438 = vst [vmem:[#allocation11 + $0xc0] sm:$0xff] %v7384
    %7439 = vst [vmem:[#allocation11 + $0xc8] sm:$0xff] %v7387
    %7440 = vst [vmem:[#allocation11 + $0xd0] sm:$0xff] %v7392
    %7441 = vst [vmem:[#allocation11 + $0xd8] sm:$0xff] %v7395
    %7442 = vst [vmem:[#allocation11 + $0xe0] sm:$0xff] %v7400
    %7443 = vst [vmem:[#allocation11 + $0xe8] sm:$0xff] %v7403
    %7444 = vst [vmem:[#allocation11 + $0xf0] sm:$0xff] %v7408
    %7445 = vst [vmem:[#allocation11 + $0xf8] sm:$0xff] %v7411
    // Predicated region
    $region42: #{tpu_custom_call.1} parent=1 // pred_check
      _
    $region43: #{tpu_custom_call.1} parent=1 // pred_check_branch
      %7447 = sbr.rel (0) target = $region45
    $region44: #{tpu_custom_call.1} parent=1 // pred_region
      %s7449 = ssub.s32 4096, 4096
      %7450 = vsyncadd [#allocation4], %s7449
      %s7451 = sshll.u32 [#allocation11], 4
      %s7452 = int_to_ptr.vmem [resolvable:$true] %s7451
      %7457 = dma.vmem_to_hbm [thread:$0]  %s7452, 4096, %s5, [#allocation4], 128, 128, 8
    $region45: #{tpu_custom_call.1} parent=1 // pred_fallthru
      _
    // Predicated region
    $region46: #{tpu_custom_call.1} parent=1 // pred_check
      _
    $region47: #{tpu_custom_call.1} parent=1 // pred_check_branch
      %7459 = sbr.rel (0) target = $region49
    $region48: #{tpu_custom_call.1} parent=1 // pred_region
      %7460 = dma.done [#allocation4], 4096
    $region49: #{tpu_custom_call.1} parent=1 // pred_fallthru
      _
    %7461 = vsyncpa [#allocation3], 1
    %7462 = vsyncpa [#allocation6], 1
    %7463 = vsyncpa [#allocation9], 1
    %7464 = vsyncpa [#allocation4], 1

</llo_original>
